<compile_context>
chip_gen: v7x
topology: tpu7x:2x2x1
jax: 0.10.0
libtpu: 0.0.40
codegen_flags: <defaults>
</compile_context>

<pallas_src>
import numpy as np
import jax
import jax.numpy as jnp
from jax.experimental import pallas as pl
from jax.experimental.pallas import tpu as pltpu


# Geometry implied by the PyTorch module (fc1 = Linear(spec[1]*4*4, ...)).
_H, _W, _K = 28, 28, 5
_HO1, _WO1 = 24, 24      # conv1 output spatial
_HO2, _WO2 = 8, 8        # conv2 output spatial (input to it is the 12x12 pool)
_HP2, _WP2 = 4, 4        # after pool2


def _round_up(n, m):
    return (n + m - 1) // m * m


# ---------------------------------------------------------------------------
# The fused kernel: one block of TB samples per grid step.
# ---------------------------------------------------------------------------
def _make_kernel(C1, C2):
    D1 = _HO1 * _WO1 * C1            # conv1 lanes, index = ho*WO1*C1 + wo*C1 + c
    D2 = _HO2 * _WO2 * C2            # conv2 lanes, index = ho2*WO2*C2 + wo2*C2 + co

    def kernel(x_ref, w1_ref, b1_ref, w2_ref, b2_ref,
               f1w_ref, f1b_ref, f2w_ref, f2b_ref, f3w_ref, f3b_ref, o_ref):
        f32 = jnp.float32
        x = x_ref[...]                                            # (TB, 784) bf16

        # conv1 + bias + relu as a single (TB,784)@(784,D1) MXU matmul.
        a1 = jnp.dot(x, w1_ref[...], preferred_element_type=f32)  # (TB, D1) f32
        h1 = jnp.maximum(a1 + b1_ref[...], 0.0)

        # 2x2 max-pool #1: two lane-shifted elementwise maxima (no MXU).
        # After these, lane r = 2*ho'*WO1*C1 + 2*wo'*C1 + c holds the pooled
        # value for (ho', wo', c); other lanes hold junk that w2 never reads
        # (their rows in w2 are zero).
        m = jnp.maximum(h1[:, :D1 - C1], h1[:, C1:])                      # wo pair
        m = jnp.maximum(m[:, :m.shape[1] - _WO1 * C1], m[:, _WO1 * C1:])  # ho pair

        # conv2 + bias + relu: pool-1 compaction is folded into w2 packing.
        a2 = jnp.dot(m.astype(jnp.bfloat16), w2_ref[...],
                     preferred_element_type=f32)                  # (TB, D2) f32
        h2 = jnp.maximum(a2 + b2_ref[...], 0.0)

        # 2x2 max-pool #2, same lane-shift trick.
        n = jnp.maximum(h2[:, :D2 - C2], h2[:, C2:])
        n = jnp.maximum(n[:, :n.shape[1] - _WO2 * C2], n[:, _WO2 * C2:])

        # fc1 (pool-2 compaction + PyTorch NCHW flatten order folded into f1w).
        z = jnp.maximum(jnp.dot(n, f1w_ref[...], preferred_element_type=f32)
                        + f1b_ref[...], 0.0)
        # fc2
        z = jnp.maximum(jnp.dot(z, f2w_ref[...], preferred_element_type=f32)
                        + f2b_ref[...], 0.0)
        # fc3, zero-padded to 128 output lanes for a lane-dense store.
        o_ref[...] = jnp.dot(z, f3w_ref[...], preferred_element_type=f32) \
            + f3b_ref[...]

    return kernel


# ---------------------------------------------------------------------------
# One-time weight packing (outside the per-forward hot path).
# ---------------------------------------------------------------------------
def prepare_kernel_params(params, spec):
    C1, C2, F1, F2 = spec
    w1 = np.asarray(params["conv1_w"], np.float32)        # (C1, 1, 5, 5)
    w2 = np.asarray(params["conv2_w"], np.float32)        # (C2, C1, 5, 5)
    f1 = np.asarray(params["fc1_w"], np.float32)          # (F1, C2*16)

    D1 = _HO1 * _WO1 * C1
    D2 = _HO2 * _WO2 * C2
    D1p = D1 - C1 - _WO1 * C1        # width after the two pool-1 lane shifts
    D2p = D2 - C2 - _WO2 * C2        # width after the two pool-2 lane shifts

    # conv1 as one dense (784, D1) matrix; column index = ho*WO1*C1 + wo*C1 + c.
    W1f = np.zeros((_H * _W, D1), np.float32)
    ho, wo, c, kh, kw = np.meshgrid(np.arange(_HO1), np.arange(_WO1),
                                    np.arange(C1), np.arange(_K), np.arange(_K),
                                    indexing="ij")
    W1f[(ho + kh) * _W + (wo + kw),
        ho * _WO1 * C1 + wo * C1 + c] = w1[c, 0, kh, kw]
    b1 = np.tile(np.asarray(params["conv1_b"], np.float32), _HO1 * _WO1)[None, :]

    # conv2 over the *uncompacted* pool-1 lanes: the pooled pixel (ho', wo', ci)
    # sits at lane 2*ho'*WO1*C1 + 2*wo'*C1 + ci of the pool-1 result.
    W2f = np.zeros((D1p, D2), np.float32)
    ho2, wo2, co, ci, kh, kw = np.meshgrid(np.arange(_HO2), np.arange(_WO2),
                                           np.arange(C2), np.arange(C1),
                                           np.arange(_K), np.arange(_K),
                                           indexing="ij")
    W2f[2 * (ho2 + kh) * _WO1 * C1 + 2 * (wo2 + kw) * C1 + ci,
        ho2 * _WO2 * C2 + wo2 * C2 + co] = w2[co, ci, kh, kw]
    b2 = np.tile(np.asarray(params["conv2_b"], np.float32), _HO2 * _WO2)[None, :]

    # fc1 over the uncompacted pool-2 lanes, reproducing PyTorch's NCHW flatten
    # order (co*16 + ho3*4 + wo3).
    F1f = np.zeros((D2p, F1), np.float32)
    ho3, wo3, co, f = np.meshgrid(np.arange(_HP2), np.arange(_WP2),
                                  np.arange(C2), np.arange(F1), indexing="ij")
    F1f[2 * ho3 * _WO2 * C2 + 2 * wo3 * C2 + co, f] = \
        f1[f, co * (_HP2 * _WP2) + ho3 * _WP2 + wo3]

    # fc3 padded to 128 output columns for a lane-dense store.
    f3w = np.zeros((F2, 128), np.float32)
    f3w[:, :10] = np.asarray(params["fc3_w"], np.float32).T
    f3b = np.zeros((1, 128), np.float32)
    f3b[0, :10] = np.asarray(params["fc3_b"], np.float32)

    return dict(
        w1=jnp.asarray(W1f, jnp.bfloat16),
        b1=jnp.asarray(b1, jnp.float32),
        w2=jnp.asarray(W2f, jnp.bfloat16),
        b2=jnp.asarray(b2, jnp.float32),
        f1w=jnp.asarray(F1f, jnp.float32),
        f1b=jnp.asarray(params["fc1_b"], jnp.float32).reshape(1, F1),
        f2w=jnp.asarray(params["fc2_w"], jnp.float32).T,
        f2b=jnp.asarray(params["fc2_b"], jnp.float32).reshape(1, F2),
        f3w=jnp.asarray(f3w, jnp.float32),
        f3b=jnp.asarray(f3b, jnp.float32),
    )


_CONST_KEYS = ("w1", "b1", "w2", "b2", "f1w", "f1b", "f2w", "f2b", "f3w", "f3b")


@jax.jit
def net_forward(kparams, x):
    """x: (N, 1, 28, 28) float32 -> (N, 10) logits."""
    N = x.shape[0]
    C1 = kparams["b1"].shape[1] // (_HO1 * _WO1)
    C2 = kparams["b2"].shape[1] // (_HO2 * _WO2)

    TB = min(128, _round_up(N, 8))          # samples per grid step
    N_pad = _round_up(N, TB)

    xf = x.reshape(N, _H * _W).astype(jnp.bfloat16)
    if N_pad != N:
        xf = jnp.pad(xf, ((0, N_pad - N), (0, 0)))

    consts = tuple(kparams[k] for k in _CONST_KEYS)

    out = pl.pallas_call(
        _make_kernel(C1, C2),
        out_shape=jax.ShapeDtypeStruct((N_pad, 128), jnp.float32),
        grid=(N_pad // TB,),
        in_specs=[pl.BlockSpec((TB, _H * _W), lambda n: (n, 0))]
                 + [pl.BlockSpec(a.shape, lambda n: (0, 0)) for a in consts],
        out_specs=pl.BlockSpec((TB, 128), lambda n: (n, 0)),
        compiler_params=pltpu.CompilerParams(
            dimension_semantics=("parallel",),
            vmem_limit_bytes=40 * 1024 * 1024),
    )(xf, *consts)
    return out[:N, :10]


# ---------------------------------------------------------------------------
# Parameter init (PyTorch layout) and a plain-JAX reference for verification.
# ---------------------------------------------------------------------------
def init_params(key, spec):
    c1, c2, f1, f2 = spec
    ks = jax.random.split(key, 10)
    s = 0.1
    return dict(
        conv1_w=jax.random.normal(ks[0], (c1, 1, 5, 5), jnp.float32) * s,
        conv1_b=jax.random.normal(ks[1], (c1,), jnp.float32) * s,
        conv2_w=jax.random.normal(ks[2], (c2, c1, 5, 5), jnp.float32) * s,
        conv2_b=jax.random.normal(ks[3], (c2,), jnp.float32) * s,
        fc1_w=jax.random.normal(ks[4], (f1, c2 * 4 * 4), jnp.float32) * s,
        fc1_b=jax.random.normal(ks[5], (f1,), jnp.float32) * s,
        fc2_w=jax.random.normal(ks[6], (f2, f1), jnp.float32) * s,
        fc2_b=jax.random.normal(ks[7], (f2,), jnp.float32) * s,
        fc3_w=jax.random.normal(ks[8], (10, f2), jnp.float32) * s,
        fc3_b=jax.random.normal(ks[9], (10,), jnp.float32) * s,
    )


def ref_forward(params, x, spec):
    C1, C2, F1, F2 = spec
    N = x.shape[0]
    xs = x[:, 0]
    w1 = params["conv1_w"][:, 0]
    y = jnp.zeros((N, C1, 24, 24), jnp.float32)
    for kh in range(5):
        for kw in range(5):
            y = y + w1[None, :, kh, kw, None, None] * \
                xs[:, None, kh:kh + 24, kw:kw + 24]
    y = jax.nn.relu(y + params["conv1_b"][None, :, None, None])
    y = jnp.max(y.reshape(N, C1, 12, 2, 12, 2), axis=(3, 5))
    w2 = params["conv2_w"]
    z = jnp.zeros((N, C2, 8, 8), jnp.float32)
    for kh in range(5):
        for kw in range(5):
            z = z + jnp.einsum("nchw,oc->nohw",
                               y[:, :, kh:kh + 8, kw:kw + 8], w2[:, :, kh, kw])
    z = jax.nn.relu(z + params["conv2_b"][None, :, None, None])
    z = jnp.max(z.reshape(N, C2, 4, 2, 4, 2), axis=(3, 5))
    f = z.reshape(N, C2 * 16)
    f = jax.nn.relu(f @ params["fc1_w"].T + params["fc1_b"])
    f = jax.nn.relu(f @ params["fc2_w"].T + params["fc2_b"])
    return f @ params["fc3_w"].T + params["fc3_b"]


if __name__ == "__main__":
    spec = (4, 8, 32, 16)          # (conv1_out, conv2_out, fc1_out, fc2_out)
    key = jax.random.PRNGKey(0)
    k_params, k_x = jax.random.split(key)
    params = init_params(k_params, spec)
    kparams = prepare_kernel_params(params, spec)
    # 28x28 input is implied by fc1 = Linear(spec[1]*4*4, ...)
    x = jax.random.normal(k_x, (2, 1, 28, 28), jnp.float32)

    out = jax.block_until_ready(net_forward(kparams, x))

    assert out.shape == (2, 10), out.shape
    assert bool(jnp.all(jnp.isfinite(out)))

    ref = jax.block_until_ready(ref_forward(params, x, spec))
    assert bool(jnp.allclose(out, ref, rtol=5e-2, atol=5e-2)), \
        float(jnp.max(jnp.abs(out - ref)))

    print("KERNEL_OK")
</pallas_src>

<mosaic_0001>
module attributes {stable_mosaic.version = 11 : i64} {
  func.func @kernel(%arg0: i32, %arg1: memref<8x784xbf16, #tpu.memory_space<vmem>>, %arg2: memref<784x2304xbf16, #tpu.memory_space<vmem>>, %arg3: memref<1x2304xf32, #tpu.memory_space<vmem>>, %arg4: memref<2204x512xbf16, #tpu.memory_space<vmem>>, %arg5: memref<1x512xf32, #tpu.memory_space<vmem>>, %arg6: memref<440x32xf32, #tpu.memory_space<vmem>>, %arg7: memref<1x32xf32, #tpu.memory_space<vmem>>, %arg8: memref<32x16xf32, #tpu.memory_space<vmem>>, %arg9: memref<1x16xf32, #tpu.memory_space<vmem>>, %arg10: memref<16x128xf32, #tpu.memory_space<vmem>>, %arg11: memref<1x128xf32, #tpu.memory_space<vmem>>, %arg12: memref<8x128xf32, #tpu.memory_space<vmem>>) attributes {dimension_semantics = [#tpu.dimension_semantics<parallel>], iteration_bounds = array<i64: 1>, scalar_prefetch = 0 : i64, scratch_operands = 0 : i64, tpu.core_type = #tpu.core_type<tc>, window_params = [{transform_indices = @transform_0, window_bounds = array<i64: 8, 784>}, {pipeline_mode = #tpu.pipeline_mode<synchronous>, transform_indices = @transform_1, window_bounds = array<i64: 784, 2304>}, {pipeline_mode = #tpu.pipeline_mode<synchronous>, transform_indices = @transform_2, window_bounds = array<i64: 1, 2304>}, {pipeline_mode = #tpu.pipeline_mode<synchronous>, transform_indices = @transform_3, window_bounds = array<i64: 2204, 512>}, {pipeline_mode = #tpu.pipeline_mode<synchronous>, transform_indices = @transform_4, window_bounds = array<i64: 1, 512>}, {pipeline_mode = #tpu.pipeline_mode<synchronous>, transform_indices = @transform_5, window_bounds = array<i64: 440, 32>}, {pipeline_mode = #tpu.pipeline_mode<synchronous>, transform_indices = @transform_6, window_bounds = array<i64: 1, 32>}, {pipeline_mode = #tpu.pipeline_mode<synchronous>, transform_indices = @transform_7, window_bounds = array<i64: 32, 16>}, {pipeline_mode = #tpu.pipeline_mode<synchronous>, transform_indices = @transform_8, window_bounds = array<i64: 1, 16>}, {pipeline_mode = #tpu.pipeline_mode<synchronous>, transform_indices = @transform_9, window_bounds = array<i64: 16, 128>}, {pipeline_mode = #tpu.pipeline_mode<synchronous>, transform_indices = @transform_10, window_bounds = array<i64: 1, 128>}, {transform_indices = @transform_11, window_bounds = array<i64: 8, 128>}]} {
    %c0 = arith.constant 0 : index
    %c0_0 = arith.constant 0 : index
    %0 = vector.load %arg1[%c0, %c0_0] : memref<8x784xbf16, #tpu.memory_space<vmem>>, vector<8x784xbf16>
    %c0_1 = arith.constant 0 : index
    %c0_2 = arith.constant 0 : index
    %1 = vector.load %arg2[%c0_1, %c0_2] : memref<784x2304xbf16, #tpu.memory_space<vmem>>, vector<784x2304xbf16>
    %cst = arith.constant dense<0.000000e+00> : vector<8x2304xf32>
    %2 = tpu.matmul %0, %1, %cst {dimension_numbers = #tpu.dot_dimension_numbers<[1], [0], [0], [1], [0, 0, 1, 1], [], []>} : vector<8x784xbf16>, vector<784x2304xbf16>, vector<8x2304xf32> -> vector<8x2304xf32>
    %c0_3 = arith.constant 0 : index
    %c0_4 = arith.constant 0 : index
    %3 = vector.load %arg3[%c0_3, %c0_4] : memref<1x2304xf32, #tpu.memory_space<vmem>>, vector<1x2304xf32>
    %4 = vector.broadcast %3 : vector<1x2304xf32> to vector<8x2304xf32>
    %5 = arith.addf %2, %4 : vector<8x2304xf32>
    %cst_5 = arith.constant 0.000000e+00 : f32
    %6 = vector.broadcast %cst_5 : f32 to vector<8x2304xf32>
    %7 = arith.maximumf %5, %6 : vector<8x2304xf32>
    %8 = vector.extract_strided_slice %7 {offsets = [0, 0], sizes = [8, 2300], strides = [1, 1]} : vector<8x2304xf32> to vector<8x2300xf32>
    %9 = vector.extract_strided_slice %7 {offsets = [0, 4], sizes = [8, 2300], strides = [1, 1]} : vector<8x2304xf32> to vector<8x2300xf32>
    %10 = arith.maximumf %8, %9 : vector<8x2300xf32>
    %11 = vector.extract_strided_slice %10 {offsets = [0, 0], sizes = [8, 2204], strides = [1, 1]} : vector<8x2300xf32> to vector<8x2204xf32>
    %12 = vector.extract_strided_slice %10 {offsets = [0, 96], sizes = [8, 2204], strides = [1, 1]} : vector<8x2300xf32> to vector<8x2204xf32>
    %13 = arith.maximumf %11, %12 : vector<8x2204xf32>
    %14 = arith.truncf %13 : vector<8x2204xf32> to vector<8x2204xbf16>
    %c0_6 = arith.constant 0 : index
    %c0_7 = arith.constant 0 : index
    %15 = vector.load %arg4[%c0_6, %c0_7] : memref<2204x512xbf16, #tpu.memory_space<vmem>>, vector<2204x512xbf16>
    %cst_8 = arith.constant dense<0.000000e+00> : vector<8x512xf32>
    %16 = tpu.matmul %14, %15, %cst_8 {dimension_numbers = #tpu.dot_dimension_numbers<[1], [0], [0], [1], [0, 0, 1, 1], [], []>} : vector<8x2204xbf16>, vector<2204x512xbf16>, vector<8x512xf32> -> vector<8x512xf32>
    %c0_9 = arith.constant 0 : index
    %c0_10 = arith.constant 0 : index
    %17 = vector.load %arg5[%c0_9, %c0_10] : memref<1x512xf32, #tpu.memory_space<vmem>>, vector<1x512xf32>
    %18 = vector.broadcast %17 : vector<1x512xf32> to vector<8x512xf32>
    %19 = arith.addf %16, %18 : vector<8x512xf32>
    %cst_11 = arith.constant 0.000000e+00 : f32
    %20 = vector.broadcast %cst_11 : f32 to vector<8x512xf32>
    %21 = arith.maximumf %19, %20 : vector<8x512xf32>
    %22 = vector.extract_strided_slice %21 {offsets = [0, 0], sizes = [8, 504], strides = [1, 1]} : vector<8x512xf32> to vector<8x504xf32>
    %23 = vector.extract_strided_slice %21 {offsets = [0, 8], sizes = [8, 504], strides = [1, 1]} : vector<8x512xf32> to vector<8x504xf32>
    %24 = arith.maximumf %22, %23 : vector<8x504xf32>
    %25 = vector.extract_strided_slice %24 {offsets = [0, 0], sizes = [8, 440], strides = [1, 1]} : vector<8x504xf32> to vector<8x440xf32>
    %26 = vector.extract_strided_slice %24 {offsets = [0, 64], sizes = [8, 440], strides = [1, 1]} : vector<8x504xf32> to vector<8x440xf32>
    %27 = arith.maximumf %25, %26 : vector<8x440xf32>
    %c0_12 = arith.constant 0 : index
    %c0_13 = arith.constant 0 : index
    %28 = vector.load %arg6[%c0_12, %c0_13] : memref<440x32xf32, #tpu.memory_space<vmem>>, vector<440x32xf32>
    %cst_14 = arith.constant dense<0.000000e+00> : vector<8x32xf32>
    %29 = tpu.matmul %27, %28, %cst_14 {dimension_numbers = #tpu.dot_dimension_numbers<[1], [0], [0], [1], [0, 0, 1, 1], [], []>} : vector<8x440xf32>, vector<440x32xf32>, vector<8x32xf32> -> vector<8x32xf32>
    %c0_15 = arith.constant 0 : index
    %c0_16 = arith.constant 0 : index
    %30 = vector.load %arg7[%c0_15, %c0_16] : memref<1x32xf32, #tpu.memory_space<vmem>>, vector<1x32xf32>
    %31 = vector.broadcast %30 : vector<1x32xf32> to vector<8x32xf32>
    %32 = arith.addf %29, %31 : vector<8x32xf32>
    %cst_17 = arith.constant 0.000000e+00 : f32
    %33 = vector.broadcast %cst_17 : f32 to vector<8x32xf32>
    %34 = arith.maximumf %32, %33 : vector<8x32xf32>
    %c0_18 = arith.constant 0 : index
    %c0_19 = arith.constant 0 : index
    %35 = vector.load %arg8[%c0_18, %c0_19] : memref<32x16xf32, #tpu.memory_space<vmem>>, vector<32x16xf32>
    %cst_20 = arith.constant dense<0.000000e+00> : vector<8x16xf32>
    %36 = tpu.matmul %34, %35, %cst_20 {dimension_numbers = #tpu.dot_dimension_numbers<[1], [0], [0], [1], [0, 0, 1, 1], [], []>} : vector<8x32xf32>, vector<32x16xf32>, vector<8x16xf32> -> vector<8x16xf32>
    %c0_21 = arith.constant 0 : index
    %c0_22 = arith.constant 0 : index
    %37 = vector.load %arg9[%c0_21, %c0_22] : memref<1x16xf32, #tpu.memory_space<vmem>>, vector<1x16xf32>
    %38 = vector.broadcast %37 : vector<1x16xf32> to vector<8x16xf32>
    %39 = arith.addf %36, %38 : vector<8x16xf32>
    %cst_23 = arith.constant 0.000000e+00 : f32
    %40 = vector.broadcast %cst_23 : f32 to vector<8x16xf32>
    %41 = arith.maximumf %39, %40 : vector<8x16xf32>
    %c0_24 = arith.constant 0 : index
    %c0_25 = arith.constant 0 : index
    %42 = vector.load %arg10[%c0_24, %c0_25] : memref<16x128xf32, #tpu.memory_space<vmem>>, vector<16x128xf32>
    %cst_26 = arith.constant dense<0.000000e+00> : vector<8x128xf32>
    %43 = tpu.matmul %41, %42, %cst_26 {dimension_numbers = #tpu.dot_dimension_numbers<[1], [0], [0], [1], [0, 0, 1, 1], [], []>} : vector<8x16xf32>, vector<16x128xf32>, vector<8x128xf32> -> vector<8x128xf32>
    %c0_27 = arith.constant 0 : index
    %c0_28 = arith.constant 0 : index
    %44 = vector.load %arg11[%c0_27, %c0_28] : memref<1x128xf32, #tpu.memory_space<vmem>>, vector<1x128xf32>
    %45 = vector.broadcast %44 : vector<1x128xf32> to vector<8x128xf32>
    %46 = arith.addf %43, %45 : vector<8x128xf32>
    %c0_29 = arith.constant 0 : index
    %c0_30 = arith.constant 0 : index
    %47 = vector.load %arg12[%c0_29, %c0_30] : memref<8x128xf32, #tpu.memory_space<vmem>>, vector<8x128xf32>
    tpu.vector_store %arg12[%c0_29, %c0_30], %46 {strides = array<i32>} : memref<8x128xf32, #tpu.memory_space<vmem>>, vector<8x128xf32>,
    return
  }
  func.func @transform_0(%arg0: i32) -> (i32, i32) {
    %c0_i32 = arith.constant 0 : i32
    %c0_i32_0 = arith.constant 0 : i32
    return %arg0, %c0_i32 : i32, i32
  }
  func.func @transform_1(%arg0: i32) -> (i32, i32) {
    %c0_i32 = arith.constant 0 : i32
    %c0_i32_0 = arith.constant 0 : i32
    %c0_i32_1 = arith.constant 0 : i32
    return %c0_i32, %c0_i32_0 : i32, i32
  }
  func.func @transform_2(%arg0: i32) -> (i32, i32) {
    %c0_i32 = arith.constant 0 : i32
    %c0_i32_0 = arith.constant 0 : i32
    %c0_i32_1 = arith.constant 0 : i32
    return %c0_i32, %c0_i32_0 : i32, i32
  }
  func.func @transform_3(%arg0: i32) -> (i32, i32) {
    %c0_i32 = arith.constant 0 : i32
    %c0_i32_0 = arith.constant 0 : i32
    %c0_i32_1 = arith.constant 0 : i32
    return %c0_i32, %c0_i32_0 : i32, i32
  }
  func.func @transform_4(%arg0: i32) -> (i32, i32) {
    %c0_i32 = arith.constant 0 : i32
    %c0_i32_0 = arith.constant 0 : i32
    %c0_i32_1 = arith.constant 0 : i32
    return %c0_i32, %c0_i32_0 : i32, i32
  }
  func.func @transform_5(%arg0: i32) -> (i32, i32) {
    %c0_i32 = arith.constant 0 : i32
    %c0_i32_0 = arith.constant 0 : i32
    %c0_i32_1 = arith.constant 0 : i32
    return %c0_i32, %c0_i32_0 : i32, i32
  }
  func.func @transform_6(%arg0: i32) -> (i32, i32) {
    %c0_i32 = arith.constant 0 : i32
    %c0_i32_0 = arith.constant 0 : i32
    %c0_i32_1 = arith.constant 0 : i32
    return %c0_i32, %c0_i32_0 : i32, i32
  }
  func.func @transform_7(%arg0: i32) -> (i32, i32) {
    %c0_i32 = arith.constant 0 : i32
    %c0_i32_0 = arith.constant 0 : i32
    %c0_i32_1 = arith.constant 0 : i32
    return %c0_i32, %c0_i32_0 : i32, i32
  }
  func.func @transform_8(%arg0: i32) -> (i32, i32) {
    %c0_i32 = arith.constant 0 : i32
    %c0_i32_0 = arith.constant 0 : i32
    %c0_i32_1 = arith.constant 0 : i32
    return %c0_i32, %c0_i32_0 : i32, i32
  }
  func.func @transform_9(%arg0: i32) -> (i32, i32) {
    %c0_i32 = arith.constant 0 : i32
    %c0_i32_0 = arith.constant 0 : i32
    %c0_i32_1 = arith.constant 0 : i32
    return %c0_i32, %c0_i32_0 : i32, i32
  }
  func.func @transform_10(%arg0: i32) -> (i32, i32) {
    %c0_i32 = arith.constant 0 : i32
    %c0_i32_0 = arith.constant 0 : i32
    %c0_i32_1 = arith.constant 0 : i32
    return %c0_i32, %c0_i32_0 : i32, i32
  }
  func.func @transform_11(%arg0: i32) -> (i32, i32) {
    %c0_i32 = arith.constant 0 : i32
    %c0_i32_0 = arith.constant 0 : i32
    return %arg0, %c0_i32 : i32, i32
  }
}

</mosaic_0001>

<llo_original>
// kernel: net_forward.1
$region0: #{net_forward.1}
  #allocation0 [shape = 'u32[]', space=smem, size = 0x4, offset = 0x4, fixed_abs, tag = 'smem constant byte address 0x4 - core index']
  #allocation1 [shape = 'u32[144,128]{1,0:T(1,128)}', space=vmem, size = 0x12000, scoped, tag = 'internal scratch']
  %s0 = inlined_call_operand.vmem [shape: bf16[8,784], index: 0, kind: input, shape index: {}]
  %s1 = inlined_call_operand.hbm [shape: bf16[784,2304], index: 1, kind: input, shape index: {}]
  %s2 = inlined_call_operand.hbm [shape: f32[1,2304], index: 2, kind: input, shape index: {}]
  %s3 = inlined_call_operand.hbm [shape: bf16[2204,512], index: 3, kind: input, shape index: {}]
  %s4 = inlined_call_operand.hbm [shape: f32[1,512], index: 4, kind: input, shape index: {}]
  %s5 = inlined_call_operand.vmem [shape: f32[440,32], index: 5, kind: input, shape index: {}]
  %s6 = inlined_call_operand.hbm [shape: f32[1,32], index: 6, kind: input, shape index: {}]
  %s7 = inlined_call_operand.vmem [shape: f32[32,16], index: 7, kind: input, shape index: {}]
  %s8 = inlined_call_operand.hbm [shape: f32[1,16], index: 8, kind: input, shape index: {}]
  %s9 = inlined_call_operand.hbm [shape: f32[16,128], index: 9, kind: input, shape index: {}]
  %s10 = inlined_call_operand.hbm [shape: f32[1,128], index: 10, kind: input, shape index: {}]
  %s11 = inlined_call_operand.vmem [shape: f32[8,128], index: 11, kind: output, shape index: {}]
  %s12 = sld [smem:[#allocation0]]
  $region86: #{net_forward.1} parent=0
    _
  %s14 = ssub.s32 1, %s12
  %s15 = scalar_select 0, %s14, %s12
  $region1: #{net_forward.1} parent=0
    #allocation2 [shape = 'u8[3612672]{0}', space=vmem, size = 0x372000, scoped, tag = 'input window, operand 1, single buffered']
    #allocation3 [shape = 's32[1]{0}', space=sflag, size = 0x4, scoped, tag = 'scoped memory for net_forward.1']
    #allocation4 [shape = 'u8[9216]{0}', space=vmem, size = 0x2400, scoped, tag = 'input window, operand 2, single buffered']
    #allocation5 [shape = 's32[1]{0}', space=sflag, size = 0x4, scoped, tag = 'scoped memory for net_forward.1']
    #allocation6 [shape = 'u8[2260992]{0}', space=vmem, size = 0x228000, scoped, tag = 'input window, operand 3, single buffered']
    #allocation7 [shape = 'u8[2048]{0}', space=vmem, size = 0x800, scoped, tag = 'input window, operand 4, single buffered']
    #allocation8 [shape = 's32[1]{0}', space=sflag, size = 0x4, scoped, tag = 'scoped memory for net_forward.1']
    #allocation9 [shape = 'u8[512]{0}', space=vmem, size = 0x400, scoped, tag = 'input window, operand 6, single buffered']
    #allocation10 [shape = 'u8[512]{0}', space=vmem, size = 0x400, scoped, tag = 'input window, operand 8, single buffered']
    #allocation11 [shape = 's32[1]{0}', space=sflag, size = 0x4, scoped, tag = 'scoped memory for net_forward.1']
    #allocation12 [shape = 'u8[8192]{0}', space=vmem, size = 0x2000, scoped, tag = 'input window, operand 9, single buffered']
    #allocation13 [shape = 'u8[512]{0}', space=vmem, size = 0x400, scoped, tag = 'input window, operand 10, single buffered']
    #allocation14 [shape = 's32[1]{0}', space=sflag, size = 0x4, scoped, tag = 'scoped memory for net_forward.1']
    %16 = vsyncpa [#allocation3], 0
    %17 = vsyncpa [#allocation5], 0
    %18 = vsyncpa [#allocation8], 0
    %19 = vsyncpa [#allocation11], 0
    %20 = vsyncpa [#allocation14], 0
    // Predicated region
    $region2: #{net_forward.1} parent=1 // pred_check
      _
    $region3: #{net_forward.1} parent=1 // pred_check_branch
      %22 = sbr.rel (0) target = $region5
    $region4: #{net_forward.1} parent=1 // pred_region
      _
    $region5: #{net_forward.1} parent=1 // pred_fallthru
      _
    // Predicated region
    $region6: #{net_forward.1} parent=1 // pred_check
      _
    $region7: #{net_forward.1} parent=1 // pred_check_branch
      %24 = sbr.rel (0) target = $region9
    $region8: #{net_forward.1} parent=1 // pred_region
      %s26 = ssub.s32 112896, 112896
      %27 = vsyncadd [#allocation3], %s26
      %s28 = sshll.u32 [#allocation2], 4
      %s29 = int_to_ptr.vmem [resolvable:$true] %s28
      %34 = dma.hbm_to_vmem [thread:$0]  %s1, 112896, %s29, [#allocation3], 1152, 1152, 72
    $region9: #{net_forward.1} parent=1 // pred_fallthru
      _
    // Predicated region
    $region10: #{net_forward.1} parent=1 // pred_check
      _
    $region11: #{net_forward.1} parent=1 // pred_check_branch
      %36 = sbr.rel (0) target = $region13
    $region12: #{net_forward.1} parent=1 // pred_region
      %s38 = ssub.s32 288, 288
      %39 = vsyncadd [#allocation5], %s38
      %s41 = sshll.u32 [#allocation4], 4
      %s42 = int_to_ptr.vmem [resolvable:$true] %s41
      %44 = dma.hbm_to_vmem [thread:$0]  %s2, 288, %s42, [#allocation5]
    $region13: #{net_forward.1} parent=1 // pred_fallthru
      _
    // Predicated region
    $region14: #{net_forward.1} parent=1 // pred_check
      _
    $region15: #{net_forward.1} parent=1 // pred_check_branch
      %46 = sbr.rel (0) target = $region17
    $region16: #{net_forward.1} parent=1 // pred_region
      %s48 = ssub.s32 70656, 70656
      %49 = vsyncadd [#allocation5], %s48
      %s50 = sshll.u32 [#allocation6], 4
      %s51 = int_to_ptr.vmem [resolvable:$true] %s50
      %56 = dma.hbm_to_vmem [thread:$0]  %s3, 70656, %s51, [#allocation5], 256, 256, 16
    $region17: #{net_forward.1} parent=1 // pred_fallthru
      _
    // Predicated region
    $region18: #{net_forward.1} parent=1 // pred_check
      _
    $region19: #{net_forward.1} parent=1 // pred_check_branch
      %58 = sbr.rel (0) target = $region21
    $region20: #{net_forward.1} parent=1 // pred_region
      %s60 = ssub.s32 64, 64
      %61 = vsyncadd [#allocation8], %s60
      %s63 = sshll.u32 [#allocation7], 4
      %s64 = int_to_ptr.vmem [resolvable:$true] %s63
      %66 = dma.hbm_to_vmem [thread:$0]  %s4, 64, %s64, [#allocation8]
    $region21: #{net_forward.1} parent=1 // pred_fallthru
      _
    // Predicated region
    $region22: #{net_forward.1} parent=1 // pred_check
      _
    $region23: #{net_forward.1} parent=1 // pred_check_branch
      %68 = sbr.rel (0) target = $region25
    $region24: #{net_forward.1} parent=1 // pred_region
      _
    $region25: #{net_forward.1} parent=1 // pred_fallthru
      _
    // Predicated region
    $region26: #{net_forward.1} parent=1 // pred_check
      _
    $region27: #{net_forward.1} parent=1 // pred_check_branch
      %70 = sbr.rel (0) target = $region29
    $region28: #{net_forward.1} parent=1 // pred_region
      %s72 = ssub.s32 16, 16
      %73 = vsyncadd [#allocation8], %s72
      %s75 = sshll.u32 [#allocation9], 4
      %s76 = int_to_ptr.vmem [resolvable:$true] %s75
      %78 = dma.hbm_to_vmem [thread:$0]  %s6, 16, %s76, [#allocation8]
    $region29: #{net_forward.1} parent=1 // pred_fallthru
      _
    // Predicated region
    $region30: #{net_forward.1} parent=1 // pred_check
      _
    $region31: #{net_forward.1} parent=1 // pred_check_branch
      %80 = sbr.rel (0) target = $region33
    $region32: #{net_forward.1} parent=1 // pred_region
      _
    $region33: #{net_forward.1} parent=1 // pred_fallthru
      _
    // Predicated region
    $region34: #{net_forward.1} parent=1 // pred_check
      _
    $region35: #{net_forward.1} parent=1 // pred_check_branch
      %82 = sbr.rel (0) target = $region37
    $region36: #{net_forward.1} parent=1 // pred_region
      %s84 = ssub.s32 16, 16
      %85 = vsyncadd [#allocation11], %s84
      %s87 = sshll.u32 [#allocation10], 4
      %s88 = int_to_ptr.vmem [resolvable:$true] %s87
      %90 = dma.hbm_to_vmem [thread:$0]  %s8, 16, %s88, [#allocation11]
    $region37: #{net_forward.1} parent=1 // pred_fallthru
      _
    // Predicated region
    $region38: #{net_forward.1} parent=1 // pred_check
      _
    $region39: #{net_forward.1} parent=1 // pred_check_branch
      %92 = sbr.rel (0) target = $region41
    $region40: #{net_forward.1} parent=1 // pred_region
      %s94 = ssub.s32 256, 256
      %95 = vsyncadd [#allocation11], %s94
      %s96 = sshll.u32 [#allocation12], 4
      %s97 = int_to_ptr.vmem [resolvable:$true] %s96
      %102 = dma.hbm_to_vmem [thread:$0]  %s9, 256, %s97, [#allocation11], 128, 128, 8
    $region41: #{net_forward.1} parent=1 // pred_fallthru
      _
    // Predicated region
    $region42: #{net_forward.1} parent=1 // pred_check
      _
    $region43: #{net_forward.1} parent=1 // pred_check_branch
      %104 = sbr.rel (0) target = $region45
    $region44: #{net_forward.1} parent=1 // pred_region
      %s106 = ssub.s32 16, 16
      %107 = vsyncadd [#allocation14], %s106
      %s109 = sshll.u32 [#allocation13], 4
      %s110 = int_to_ptr.vmem [resolvable:$true] %s109
      %112 = dma.hbm_to_vmem [thread:$0]  %s10, 16, %s110, [#allocation14]
    $region45: #{net_forward.1} parent=1 // pred_fallthru
      _
    // Predicated region
    $region46: #{net_forward.1} parent=1 // pred_check
      _
    $region47: #{net_forward.1} parent=1 // pred_check_branch
      %114 = sbr.rel (0) target = $region49
    $region48: #{net_forward.1} parent=1 // pred_region
      %115 = dma.done [#allocation3], 112896
    $region49: #{net_forward.1} parent=1 // pred_fallthru
      _
    // Predicated region
    $region50: #{net_forward.1} parent=1 // pred_check
      _
    $region51: #{net_forward.1} parent=1 // pred_check_branch
      %117 = sbr.rel (0) target = $region53
    $region52: #{net_forward.1} parent=1 // pred_region
      %118 = dma.done [#allocation5], 288
    $region53: #{net_forward.1} parent=1 // pred_fallthru
      _
    // Predicated region
    $region54: #{net_forward.1} parent=1 // pred_check
      _
    $region55: #{net_forward.1} parent=1 // pred_check_branch
      %120 = sbr.rel (0) target = $region57
    $region56: #{net_forward.1} parent=1 // pred_region
      %121 = dma.done [#allocation5], 70656
    $region57: #{net_forward.1} parent=1 // pred_fallthru
      _
    // Predicated region
    $region58: #{net_forward.1} parent=1 // pred_check
      _
    $region59: #{net_forward.1} parent=1 // pred_check_branch
      %123 = sbr.rel (0) target = $region61
    $region60: #{net_forward.1} parent=1 // pred_region
      %124 = dma.done [#allocation8], 64
    $region61: #{net_forward.1} parent=1 // pred_fallthru
      _
    // Predicated region
    $region62: #{net_forward.1} parent=1 // pred_check
      _
    $region63: #{net_forward.1} parent=1 // pred_check_branch
      %126 = sbr.rel (0) target = $region65
    $region64: #{net_forward.1} parent=1 // pred_region
      %127 = dma.done [#allocation8], 16
    $region65: #{net_forward.1} parent=1 // pred_fallthru
      _
    // Predicated region
    $region66: #{net_forward.1} parent=1 // pred_check
      _
    $region67: #{net_forward.1} parent=1 // pred_check_branch
      %129 = sbr.rel (0) target = $region69
    $region68: #{net_forward.1} parent=1 // pred_region
      %130 = dma.done [#allocation11], 16
    $region69: #{net_forward.1} parent=1 // pred_fallthru
      _
    // Predicated region
    $region70: #{net_forward.1} parent=1 // pred_check
      _
    $region71: #{net_forward.1} parent=1 // pred_check_branch
      %132 = sbr.rel (0) target = $region73
    $region72: #{net_forward.1} parent=1 // pred_region
      %133 = dma.done [#allocation11], 256
    $region73: #{net_forward.1} parent=1 // pred_fallthru
      _
    // Predicated region
    $region74: #{net_forward.1} parent=1 // pred_check
      _
    $region75: #{net_forward.1} parent=1 // pred_check_branch
      %135 = sbr.rel (0) target = $region77
    $region76: #{net_forward.1} parent=1 // pred_region
      %136 = dma.done [#allocation14], 16
    $region77: #{net_forward.1} parent=1 // pred_fallthru
      _
    %v138 = vld [vmem:[%s0] sm:$0xff]
    %v139 = vld [vmem:[%s0 + $0x8] sm:$0xff]
    %v140 = vld [vmem:[%s0 + $0x10] sm:$0xff]
    %v141 = vld [vmem:[%s0 + $0x18] sm:$0xf]
    %v142 = vld [vmem:[#allocation2] sm:$0xff]
    %v143 = vld [vmem:[#allocation2 + $0x8] sm:$0xff]
    %v144 = vld [vmem:[#allocation2 + $0x10] sm:$0xff]
    %v145 = vld [vmem:[#allocation2 + $0x18] sm:$0xff]
    %v146 = vld [vmem:[#allocation2 + $0x20] sm:$0xff]
    %v147 = vld [vmem:[#allocation2 + $0x28] sm:$0xff]
    %v148 = vld [vmem:[#allocation2 + $0x30] sm:$0xff]
    %v149 = vld [vmem:[#allocation2 + $0x38] sm:$0xff]
    %v150 = vld [vmem:[#allocation2 + $0x40] sm:$0xff]
    %v151 = vld [vmem:[#allocation2 + $0x48] sm:$0xff]
    %v152 = vld [vmem:[#allocation2 + $0x50] sm:$0xff]
    %v153 = vld [vmem:[#allocation2 + $0x58] sm:$0xff]
    %v154 = vld [vmem:[#allocation2 + $0x60] sm:$0xff]
    %v155 = vld [vmem:[#allocation2 + $0x68] sm:$0xff]
    %v156 = vld [vmem:[#allocation2 + $0x70] sm:$0xff]
    %v157 = vld [vmem:[#allocation2 + $0x78] sm:$0xff]
    %v158 = vld [vmem:[#allocation2 + $0x80] sm:$0xff]
    %v159 = vld [vmem:[#allocation2 + $0x88] sm:$0xff]
    %v160 = vld [vmem:[#allocation2 + $0x90] sm:$0xff]
    %v161 = vld [vmem:[#allocation2 + $0x98] sm:$0xff]
    %v162 = vld [vmem:[#allocation2 + $0xa0] sm:$0xff]
    %v163 = vld [vmem:[#allocation2 + $0xa8] sm:$0xff]
    %v164 = vld [vmem:[#allocation2 + $0xb0] sm:$0xff]
    %v165 = vld [vmem:[#allocation2 + $0xb8] sm:$0xff]
    %v166 = vld [vmem:[#allocation2 + $0xc0] sm:$0xff]
    %v167 = vld [vmem:[#allocation2 + $0xc8] sm:$0xff]
    %v168 = vld [vmem:[#allocation2 + $0xd0] sm:$0xff]
    %v169 = vld [vmem:[#allocation2 + $0xd8] sm:$0xff]
    %v170 = vld [vmem:[#allocation2 + $0xe0] sm:$0xff]
    %v171 = vld [vmem:[#allocation2 + $0xe8] sm:$0xff]
    %v172 = vld [vmem:[#allocation2 + $0xf0] sm:$0xff]
    %v173 = vld [vmem:[#allocation2 + $0xf8] sm:$0xff]
    %v174 = vld [vmem:[#allocation2 + $0x100] sm:$0xff]
    %v175 = vld [vmem:[#allocation2 + $0x108] sm:$0xff]
    %v176 = vld [vmem:[#allocation2 + $0x110] sm:$0xff]
    %v177 = vld [vmem:[#allocation2 + $0x118] sm:$0xff]
    %v178 = vld [vmem:[#allocation2 + $0x120] sm:$0xff]
    %v179 = vld [vmem:[#allocation2 + $0x128] sm:$0xff]
    %v180 = vld [vmem:[#allocation2 + $0x130] sm:$0xff]
    %v181 = vld [vmem:[#allocation2 + $0x138] sm:$0xff]
    %v182 = vld [vmem:[#allocation2 + $0x140] sm:$0xff]
    %v183 = vld [vmem:[#allocation2 + $0x148] sm:$0xff]
    %v184 = vld [vmem:[#allocation2 + $0x150] sm:$0xff]
    %v185 = vld [vmem:[#allocation2 + $0x158] sm:$0xff]
    %v186 = vld [vmem:[#allocation2 + $0x160] sm:$0xff]
    %v187 = vld [vmem:[#allocation2 + $0x168] sm:$0xff]
    %v188 = vld [vmem:[#allocation2 + $0x170] sm:$0xff]
    %v189 = vld [vmem:[#allocation2 + $0x178] sm:$0xff]
    %v190 = vld [vmem:[#allocation2 + $0x180] sm:$0xff]
    %v191 = vld [vmem:[#allocation2 + $0x188] sm:$0xff]
    %v192 = vld [vmem:[#allocation2 + $0x190] sm:$0xff]
    %v193 = vld [vmem:[#allocation2 + $0x198] sm:$0xff]
    %v194 = vld [vmem:[#allocation2 + $0x1a0] sm:$0xff]
    %v195 = vld [vmem:[#allocation2 + $0x1a8] sm:$0xff]
    %v196 = vld [vmem:[#allocation2 + $0x1b0] sm:$0xff]
    %v197 = vld [vmem:[#allocation2 + $0x1b8] sm:$0xff]
    %v198 = vld [vmem:[#allocation2 + $0x1c0] sm:$0xff]
    %v199 = vld [vmem:[#allocation2 + $0x1c8] sm:$0xff]
    %v200 = vld [vmem:[#allocation2 + $0x1d0] sm:$0xff]
    %v201 = vld [vmem:[#allocation2 + $0x1d8] sm:$0xff]
    %v202 = vld [vmem:[#allocation2 + $0x1e0] sm:$0xff]
    %v203 = vld [vmem:[#allocation2 + $0x1e8] sm:$0xff]
    %v204 = vld [vmem:[#allocation2 + $0x1f0] sm:$0xff]
    %v205 = vld [vmem:[#allocation2 + $0x1f8] sm:$0xff]
    %v206 = vld [vmem:[#allocation2 + $0x200] sm:$0xff]
    %v207 = vld [vmem:[#allocation2 + $0x208] sm:$0xff]
    %v208 = vld [vmem:[#allocation2 + $0x210] sm:$0xff]
    %v209 = vld [vmem:[#allocation2 + $0x218] sm:$0xff]
    %v210 = vld [vmem:[#allocation2 + $0x220] sm:$0xff]
    %v211 = vld [vmem:[#allocation2 + $0x228] sm:$0xff]
    %v212 = vld [vmem:[#allocation2 + $0x230] sm:$0xff]
    %v213 = vld [vmem:[#allocation2 + $0x238] sm:$0xff]
    %v214 = vld [vmem:[#allocation2 + $0x240] sm:$0xff]
    %v215 = vld [vmem:[#allocation2 + $0x248] sm:$0xff]
    %v216 = vld [vmem:[#allocation2 + $0x250] sm:$0xff]
    %v217 = vld [vmem:[#allocation2 + $0x258] sm:$0xff]
    %v218 = vld [vmem:[#allocation2 + $0x260] sm:$0xff]
    %v219 = vld [vmem:[#allocation2 + $0x268] sm:$0xff]
    %v220 = vld [vmem:[#allocation2 + $0x270] sm:$0xff]
    %v221 = vld [vmem:[#allocation2 + $0x278] sm:$0xff]
    %v222 = vld [vmem:[#allocation2 + $0x280] sm:$0xff]
    %v223 = vld [vmem:[#allocation2 + $0x288] sm:$0xff]
    %v224 = vld [vmem:[#allocation2 + $0x290] sm:$0xff]
    %v225 = vld [vmem:[#allocation2 + $0x298] sm:$0xff]
    %v226 = vld [vmem:[#allocation2 + $0x2a0] sm:$0xff]
    %v227 = vld [vmem:[#allocation2 + $0x2a8] sm:$0xff]
    %v228 = vld [vmem:[#allocation2 + $0x2b0] sm:$0xff]
    %v229 = vld [vmem:[#allocation2 + $0x2b8] sm:$0xff]
    %v230 = vld [vmem:[#allocation2 + $0x2c0] sm:$0xff]
    %v231 = vld [vmem:[#allocation2 + $0x2c8] sm:$0xff]
    %v232 = vld [vmem:[#allocation2 + $0x2d0] sm:$0xff]
    %v233 = vld [vmem:[#allocation2 + $0x2d8] sm:$0xff]
    %v234 = vld [vmem:[#allocation2 + $0x2e0] sm:$0xff]
    %v235 = vld [vmem:[#allocation2 + $0x2e8] sm:$0xff]
    %v236 = vld [vmem:[#allocation2 + $0x2f0] sm:$0xff]
    %v237 = vld [vmem:[#allocation2 + $0x2f8] sm:$0xff]
    %v238 = vld [vmem:[#allocation2 + $0x300] sm:$0xff]
    %v239 = vld [vmem:[#allocation2 + $0x308] sm:$0xff]
    %v240 = vld [vmem:[#allocation2 + $0x310] sm:$0xff]
    %v241 = vld [vmem:[#allocation2 + $0x318] sm:$0xff]
    %v242 = vld [vmem:[#allocation2 + $0x320] sm:$0xff]
    %v243 = vld [vmem:[#allocation2 + $0x328] sm:$0xff]
    %v244 = vld [vmem:[#allocation2 + $0x330] sm:$0xff]
    %v245 = vld [vmem:[#allocation2 + $0x338] sm:$0xff]
    %v246 = vld [vmem:[#allocation2 + $0x340] sm:$0xff]
    %v247 = vld [vmem:[#allocation2 + $0x348] sm:$0xff]
    %v248 = vld [vmem:[#allocation2 + $0x350] sm:$0xff]
    %v249 = vld [vmem:[#allocation2 + $0x358] sm:$0xff]
    %v250 = vld [vmem:[#allocation2 + $0x360] sm:$0xff]
    %v251 = vld [vmem:[#allocation2 + $0x368] sm:$0xff]
    %v252 = vld [vmem:[#allocation2 + $0x370] sm:$0xff]
    %v253 = vld [vmem:[#allocation2 + $0x378] sm:$0xff]
    %v254 = vld [vmem:[#allocation2 + $0x380] sm:$0xff]
    %v255 = vld [vmem:[#allocation2 + $0x388] sm:$0xff]
    %v256 = vld [vmem:[#allocation2 + $0x390] sm:$0xff]
    %v257 = vld [vmem:[#allocation2 + $0x398] sm:$0xff]
    %v258 = vld [vmem:[#allocation2 + $0x3a0] sm:$0xff]
    %v259 = vld [vmem:[#allocation2 + $0x3a8] sm:$0xff]
    %v260 = vld [vmem:[#allocation2 + $0x3b0] sm:$0xff]
    %v261 = vld [vmem:[#allocation2 + $0x3b8] sm:$0xff]
    %v262 = vld [vmem:[#allocation2 + $0x3c0] sm:$0xff]
    %v263 = vld [vmem:[#allocation2 + $0x3c8] sm:$0xff]
    %v264 = vld [vmem:[#allocation2 + $0x3d0] sm:$0xff]
    %v265 = vld [vmem:[#allocation2 + $0x3d8] sm:$0xff]
    %v266 = vld [vmem:[#allocation2 + $0x3e0] sm:$0xff]
    %v267 = vld [vmem:[#allocation2 + $0x3e8] sm:$0xff]
    %v268 = vld [vmem:[#allocation2 + $0x3f0] sm:$0xff]
    %v269 = vld [vmem:[#allocation2 + $0x3f8] sm:$0xff]
    %v270 = vld [vmem:[#allocation2 + $0x400] sm:$0xff]
    %v271 = vld [vmem:[#allocation2 + $0x408] sm:$0xff]
    %v272 = vld [vmem:[#allocation2 + $0x410] sm:$0xff]
    %v273 = vld [vmem:[#allocation2 + $0x418] sm:$0xff]
    %v274 = vld [vmem:[#allocation2 + $0x420] sm:$0xff]
    %v275 = vld [vmem:[#allocation2 + $0x428] sm:$0xff]
    %v276 = vld [vmem:[#allocation2 + $0x430] sm:$0xff]
    %v277 = vld [vmem:[#allocation2 + $0x438] sm:$0xff]
    %v278 = vld [vmem:[#allocation2 + $0x440] sm:$0xff]
    %v279 = vld [vmem:[#allocation2 + $0x448] sm:$0xff]
    %v280 = vld [vmem:[#allocation2 + $0x450] sm:$0xff]
    %v281 = vld [vmem:[#allocation2 + $0x458] sm:$0xff]
    %v282 = vld [vmem:[#allocation2 + $0x460] sm:$0xff]
    %v283 = vld [vmem:[#allocation2 + $0x468] sm:$0xff]
    %v284 = vld [vmem:[#allocation2 + $0x470] sm:$0xff]
    %v285 = vld [vmem:[#allocation2 + $0x478] sm:$0xff]
    %v286 = vld [vmem:[#allocation2 + $0x480] sm:$0xff]
    %v287 = vld [vmem:[#allocation2 + $0x488] sm:$0xff]
    %v288 = vld [vmem:[#allocation2 + $0x490] sm:$0xff]
    %v289 = vld [vmem:[#allocation2 + $0x498] sm:$0xff]
    %v290 = vld [vmem:[#allocation2 + $0x4a0] sm:$0xff]
    %v291 = vld [vmem:[#allocation2 + $0x4a8] sm:$0xff]
    %v292 = vld [vmem:[#allocation2 + $0x4b0] sm:$0xff]
    %v293 = vld [vmem:[#allocation2 + $0x4b8] sm:$0xff]
    %v294 = vld [vmem:[#allocation2 + $0x4c0] sm:$0xff]
    %v295 = vld [vmem:[#allocation2 + $0x4c8] sm:$0xff]
    %v296 = vld [vmem:[#allocation2 + $0x4d0] sm:$0xff]
    %v297 = vld [vmem:[#allocation2 + $0x4d8] sm:$0xff]
    %v298 = vld [vmem:[#allocation2 + $0x4e0] sm:$0xff]
    %v299 = vld [vmem:[#allocation2 + $0x4e8] sm:$0xff]
    %v300 = vld [vmem:[#allocation2 + $0x4f0] sm:$0xff]
    %v301 = vld [vmem:[#allocation2 + $0x4f8] sm:$0xff]
    %v302 = vld [vmem:[#allocation2 + $0x500] sm:$0xff]
    %v303 = vld [vmem:[#allocation2 + $0x508] sm:$0xff]
    %v304 = vld [vmem:[#allocation2 + $0x510] sm:$0xff]
    %v305 = vld [vmem:[#allocation2 + $0x518] sm:$0xff]
    %v306 = vld [vmem:[#allocation2 + $0x520] sm:$0xff]
    %v307 = vld [vmem:[#allocation2 + $0x528] sm:$0xff]
    %v308 = vld [vmem:[#allocation2 + $0x530] sm:$0xff]
    %v309 = vld [vmem:[#allocation2 + $0x538] sm:$0xff]
    %v310 = vld [vmem:[#allocation2 + $0x540] sm:$0xff]
    %v311 = vld [vmem:[#allocation2 + $0x548] sm:$0xff]
    %v312 = vld [vmem:[#allocation2 + $0x550] sm:$0xff]
    %v313 = vld [vmem:[#allocation2 + $0x558] sm:$0xff]
    %v314 = vld [vmem:[#allocation2 + $0x560] sm:$0xff]
    %v315 = vld [vmem:[#allocation2 + $0x568] sm:$0xff]
    %v316 = vld [vmem:[#allocation2 + $0x570] sm:$0xff]
    %v317 = vld [vmem:[#allocation2 + $0x578] sm:$0xff]
    %v318 = vld [vmem:[#allocation2 + $0x580] sm:$0xff]
    %v319 = vld [vmem:[#allocation2 + $0x588] sm:$0xff]
    %v320 = vld [vmem:[#allocation2 + $0x590] sm:$0xff]
    %v321 = vld [vmem:[#allocation2 + $0x598] sm:$0xff]
    %v322 = vld [vmem:[#allocation2 + $0x5a0] sm:$0xff]
    %v323 = vld [vmem:[#allocation2 + $0x5a8] sm:$0xff]
    %v324 = vld [vmem:[#allocation2 + $0x5b0] sm:$0xff]
    %v325 = vld [vmem:[#allocation2 + $0x5b8] sm:$0xff]
    %v326 = vld [vmem:[#allocation2 + $0x5c0] sm:$0xff]
    %v327 = vld [vmem:[#allocation2 + $0x5c8] sm:$0xff]
    %v328 = vld [vmem:[#allocation2 + $0x5d0] sm:$0xff]
    %v329 = vld [vmem:[#allocation2 + $0x5d8] sm:$0xff]
    %v330 = vld [vmem:[#allocation2 + $0x5e0] sm:$0xff]
    %v331 = vld [vmem:[#allocation2 + $0x5e8] sm:$0xff]
    %v332 = vld [vmem:[#allocation2 + $0x5f0] sm:$0xff]
    %v333 = vld [vmem:[#allocation2 + $0x5f8] sm:$0xff]
    %v334 = vld [vmem:[#allocation2 + $0x600] sm:$0xff]
    %v335 = vld [vmem:[#allocation2 + $0x608] sm:$0xff]
    %v336 = vld [vmem:[#allocation2 + $0x610] sm:$0xff]
    %v337 = vld [vmem:[#allocation2 + $0x618] sm:$0xff]
    %v338 = vld [vmem:[#allocation2 + $0x620] sm:$0xff]
    %v339 = vld [vmem:[#allocation2 + $0x628] sm:$0xff]
    %v340 = vld [vmem:[#allocation2 + $0x630] sm:$0xff]
    %v341 = vld [vmem:[#allocation2 + $0x638] sm:$0xff]
    %v342 = vld [vmem:[#allocation2 + $0x640] sm:$0xff]
    %v343 = vld [vmem:[#allocation2 + $0x648] sm:$0xff]
    %v344 = vld [vmem:[#allocation2 + $0x650] sm:$0xff]
    %v345 = vld [vmem:[#allocation2 + $0x658] sm:$0xff]
    %v346 = vld [vmem:[#allocation2 + $0x660] sm:$0xff]
    %v347 = vld [vmem:[#allocation2 + $0x668] sm:$0xff]
    %v348 = vld [vmem:[#allocation2 + $0x670] sm:$0xff]
    %v349 = vld [vmem:[#allocation2 + $0x678] sm:$0xff]
    %v350 = vld [vmem:[#allocation2 + $0x680] sm:$0xff]
    %v351 = vld [vmem:[#allocation2 + $0x688] sm:$0xff]
    %v352 = vld [vmem:[#allocation2 + $0x690] sm:$0xff]
    %v353 = vld [vmem:[#allocation2 + $0x698] sm:$0xff]
    %v354 = vld [vmem:[#allocation2 + $0x6a0] sm:$0xff]
    %v355 = vld [vmem:[#allocation2 + $0x6a8] sm:$0xff]
    %v356 = vld [vmem:[#allocation2 + $0x6b0] sm:$0xff]
    %v357 = vld [vmem:[#allocation2 + $0x6b8] sm:$0xff]
    %v358 = vld [vmem:[#allocation2 + $0x6c0] sm:$0xff]
    %v359 = vld [vmem:[#allocation2 + $0x6c8] sm:$0xff]
    %v360 = vld [vmem:[#allocation2 + $0x6d0] sm:$0xff]
    %v361 = vld [vmem:[#allocation2 + $0x6d8] sm:$0xff]
    %v362 = vld [vmem:[#allocation2 + $0x6e0] sm:$0xff]
    %v363 = vld [vmem:[#allocation2 + $0x6e8] sm:$0xff]
    %v364 = vld [vmem:[#allocation2 + $0x6f0] sm:$0xff]
    %v365 = vld [vmem:[#allocation2 + $0x6f8] sm:$0xff]
    %v366 = vld [vmem:[#allocation2 + $0x700] sm:$0xff]
    %v367 = vld [vmem:[#allocation2 + $0x708] sm:$0xff]
    %v368 = vld [vmem:[#allocation2 + $0x710] sm:$0xff]
    %v369 = vld [vmem:[#allocation2 + $0x718] sm:$0xff]
    %v370 = vld [vmem:[#allocation2 + $0x720] sm:$0xff]
    %v371 = vld [vmem:[#allocation2 + $0x728] sm:$0xff]
    %v372 = vld [vmem:[#allocation2 + $0x730] sm:$0xff]
    %v373 = vld [vmem:[#allocation2 + $0x738] sm:$0xff]
    %v374 = vld [vmem:[#allocation2 + $0x740] sm:$0xff]
    %v375 = vld [vmem:[#allocation2 + $0x748] sm:$0xff]
    %v376 = vld [vmem:[#allocation2 + $0x750] sm:$0xff]
    %v377 = vld [vmem:[#allocation2 + $0x758] sm:$0xff]
    %v378 = vld [vmem:[#allocation2 + $0x760] sm:$0xff]
    %v379 = vld [vmem:[#allocation2 + $0x768] sm:$0xff]
    %v380 = vld [vmem:[#allocation2 + $0x770] sm:$0xff]
    %v381 = vld [vmem:[#allocation2 + $0x778] sm:$0xff]
    %v382 = vld [vmem:[#allocation2 + $0x780] sm:$0xff]
    %v383 = vld [vmem:[#allocation2 + $0x788] sm:$0xff]
    %v384 = vld [vmem:[#allocation2 + $0x790] sm:$0xff]
    %v385 = vld [vmem:[#allocation2 + $0x798] sm:$0xff]
    %v386 = vld [vmem:[#allocation2 + $0x7a0] sm:$0xff]
    %v387 = vld [vmem:[#allocation2 + $0x7a8] sm:$0xff]
    %v388 = vld [vmem:[#allocation2 + $0x7b0] sm:$0xff]
    %v389 = vld [vmem:[#allocation2 + $0x7b8] sm:$0xff]
    %v390 = vld [vmem:[#allocation2 + $0x7c0] sm:$0xff]
    %v391 = vld [vmem:[#allocation2 + $0x7c8] sm:$0xff]
    %v392 = vld [vmem:[#allocation2 + $0x7d0] sm:$0xff]
    %v393 = vld [vmem:[#allocation2 + $0x7d8] sm:$0xff]
    %v394 = vld [vmem:[#allocation2 + $0x7e0] sm:$0xff]
    %v395 = vld [vmem:[#allocation2 + $0x7e8] sm:$0xff]
    %v396 = vld [vmem:[#allocation2 + $0x7f0] sm:$0xff]
    %v397 = vld [vmem:[#allocation2 + $0x7f8] sm:$0xff]
    %v398 = vld [vmem:[#allocation2 + $0x800] sm:$0xff]
    %v399 = vld [vmem:[#allocation2 + $0x808] sm:$0xff]
    %v400 = vld [vmem:[#allocation2 + $0x810] sm:$0xff]
    %v401 = vld [vmem:[#allocation2 + $0x818] sm:$0xff]
    %v402 = vld [vmem:[#allocation2 + $0x820] sm:$0xff]
    %v403 = vld [vmem:[#allocation2 + $0x828] sm:$0xff]
    %v404 = vld [vmem:[#allocation2 + $0x830] sm:$0xff]
    %v405 = vld [vmem:[#allocation2 + $0x838] sm:$0xff]
    %v406 = vld [vmem:[#allocation2 + $0x840] sm:$0xff]
    %v407 = vld [vmem:[#allocation2 + $0x848] sm:$0xff]
    %v408 = vld [vmem:[#allocation2 + $0x850] sm:$0xff]
    %v409 = vld [vmem:[#allocation2 + $0x858] sm:$0xff]
    %v410 = vld [vmem:[#allocation2 + $0x860] sm:$0xff]
    %v411 = vld [vmem:[#allocation2 + $0x868] sm:$0xff]
    %v412 = vld [vmem:[#allocation2 + $0x870] sm:$0xff]
    %v413 = vld [vmem:[#allocation2 + $0x878] sm:$0xff]
    %v414 = vld [vmem:[#allocation2 + $0x880] sm:$0xff]
    %v415 = vld [vmem:[#allocation2 + $0x888] sm:$0xff]
    %v416 = vld [vmem:[#allocation2 + $0x890] sm:$0xff]
    %v417 = vld [vmem:[#allocation2 + $0x898] sm:$0xff]
    %v418 = vld [vmem:[#allocation2 + $0x8a0] sm:$0xff]
    %v419 = vld [vmem:[#allocation2 + $0x8a8] sm:$0xff]
    %v420 = vld [vmem:[#allocation2 + $0x8b0] sm:$0xff]
    %v421 = vld [vmem:[#allocation2 + $0x8b8] sm:$0xff]
    %v422 = vld [vmem:[#allocation2 + $0x8c0] sm:$0xff]
    %v423 = vld [vmem:[#allocation2 + $0x8c8] sm:$0xff]
    %v424 = vld [vmem:[#allocation2 + $0x8d0] sm:$0xff]
    %v425 = vld [vmem:[#allocation2 + $0x8d8] sm:$0xff]
    %v426 = vld [vmem:[#allocation2 + $0x8e0] sm:$0xff]
    %v427 = vld [vmem:[#allocation2 + $0x8e8] sm:$0xff]
    %v428 = vld [vmem:[#allocation2 + $0x8f0] sm:$0xff]
    %v429 = vld [vmem:[#allocation2 + $0x8f8] sm:$0xff]
    %v430 = vld [vmem:[#allocation2 + $0x900] sm:$0xff]
    %v431 = vld [vmem:[#allocation2 + $0x908] sm:$0xff]
    %v432 = vld [vmem:[#allocation2 + $0x910] sm:$0xff]
    %v433 = vld [vmem:[#allocation2 + $0x918] sm:$0xff]
    %v434 = vld [vmem:[#allocation2 + $0x920] sm:$0xff]
    %v435 = vld [vmem:[#allocation2 + $0x928] sm:$0xff]
    %v436 = vld [vmem:[#allocation2 + $0x930] sm:$0xff]
    %v437 = vld [vmem:[#allocation2 + $0x938] sm:$0xff]
    %v438 = vld [vmem:[#allocation2 + $0x940] sm:$0xff]
    %v439 = vld [vmem:[#allocation2 + $0x948] sm:$0xff]
    %v440 = vld [vmem:[#allocation2 + $0x950] sm:$0xff]
    %v441 = vld [vmem:[#allocation2 + $0x958] sm:$0xff]
    %v442 = vld [vmem:[#allocation2 + $0x960] sm:$0xff]
    %v443 = vld [vmem:[#allocation2 + $0x968] sm:$0xff]
    %v444 = vld [vmem:[#allocation2 + $0x970] sm:$0xff]
    %v445 = vld [vmem:[#allocation2 + $0x978] sm:$0xff]
    %v446 = vld [vmem:[#allocation2 + $0x980] sm:$0xff]
    %v447 = vld [vmem:[#allocation2 + $0x988] sm:$0xff]
    %v448 = vld [vmem:[#allocation2 + $0x990] sm:$0xff]
    %v449 = vld [vmem:[#allocation2 + $0x998] sm:$0xff]
    %v450 = vld [vmem:[#allocation2 + $0x9a0] sm:$0xff]
    %v451 = vld [vmem:[#allocation2 + $0x9a8] sm:$0xff]
    %v452 = vld [vmem:[#allocation2 + $0x9b0] sm:$0xff]
    %v453 = vld [vmem:[#allocation2 + $0x9b8] sm:$0xff]
    %v454 = vld [vmem:[#allocation2 + $0x9c0] sm:$0xff]
    %v455 = vld [vmem:[#allocation2 + $0x9c8] sm:$0xff]
    %v456 = vld [vmem:[#allocation2 + $0x9d0] sm:$0xff]
    %v457 = vld [vmem:[#allocation2 + $0x9d8] sm:$0xff]
    %v458 = vld [vmem:[#allocation2 + $0x9e0] sm:$0xff]
    %v459 = vld [vmem:[#allocation2 + $0x9e8] sm:$0xff]
    %v460 = vld [vmem:[#allocation2 + $0x9f0] sm:$0xff]
    %v461 = vld [vmem:[#allocation2 + $0x9f8] sm:$0xff]
    %v462 = vld [vmem:[#allocation2 + $0xa00] sm:$0xff]
    %v463 = vld [vmem:[#allocation2 + $0xa08] sm:$0xff]
    %v464 = vld [vmem:[#allocation2 + $0xa10] sm:$0xff]
    %v465 = vld [vmem:[#allocation2 + $0xa18] sm:$0xff]
    %v466 = vld [vmem:[#allocation2 + $0xa20] sm:$0xff]
    %v467 = vld [vmem:[#allocation2 + $0xa28] sm:$0xff]
    %v468 = vld [vmem:[#allocation2 + $0xa30] sm:$0xff]
    %v469 = vld [vmem:[#allocation2 + $0xa38] sm:$0xff]
    %v470 = vld [vmem:[#allocation2 + $0xa40] sm:$0xff]
    %v471 = vld [vmem:[#allocation2 + $0xa48] sm:$0xff]
    %v472 = vld [vmem:[#allocation2 + $0xa50] sm:$0xff]
    %v473 = vld [vmem:[#allocation2 + $0xa58] sm:$0xff]
    %v474 = vld [vmem:[#allocation2 + $0xa60] sm:$0xff]
    %v475 = vld [vmem:[#allocation2 + $0xa68] sm:$0xff]
    %v476 = vld [vmem:[#allocation2 + $0xa70] sm:$0xff]
    %v477 = vld [vmem:[#allocation2 + $0xa78] sm:$0xff]
    %v478 = vld [vmem:[#allocation2 + $0xa80] sm:$0xff]
    %v479 = vld [vmem:[#allocation2 + $0xa88] sm:$0xff]
    %v480 = vld [vmem:[#allocation2 + $0xa90] sm:$0xff]
    %v481 = vld [vmem:[#allocation2 + $0xa98] sm:$0xff]
    %v482 = vld [vmem:[#allocation2 + $0xaa0] sm:$0xff]
    %v483 = vld [vmem:[#allocation2 + $0xaa8] sm:$0xff]
    %v484 = vld [vmem:[#allocation2 + $0xab0] sm:$0xff]
    %v485 = vld [vmem:[#allocation2 + $0xab8] sm:$0xff]
    %v486 = vld [vmem:[#allocation2 + $0xac0] sm:$0xff]
    %v487 = vld [vmem:[#allocation2 + $0xac8] sm:$0xff]
    %v488 = vld [vmem:[#allocation2 + $0xad0] sm:$0xff]
    %v489 = vld [vmem:[#allocation2 + $0xad8] sm:$0xff]
    %v490 = vld [vmem:[#allocation2 + $0xae0] sm:$0xff]
    %v491 = vld [vmem:[#allocation2 + $0xae8] sm:$0xff]
    %v492 = vld [vmem:[#allocation2 + $0xaf0] sm:$0xff]
    %v493 = vld [vmem:[#allocation2 + $0xaf8] sm:$0xff]
    %v494 = vld [vmem:[#allocation2 + $0xb00] sm:$0xff]
    %v495 = vld [vmem:[#allocation2 + $0xb08] sm:$0xff]
    %v496 = vld [vmem:[#allocation2 + $0xb10] sm:$0xff]
    %v497 = vld [vmem:[#allocation2 + $0xb18] sm:$0xff]
    %v498 = vld [vmem:[#allocation2 + $0xb20] sm:$0xff]
    %v499 = vld [vmem:[#allocation2 + $0xb28] sm:$0xff]
    %v500 = vld [vmem:[#allocation2 + $0xb30] sm:$0xff]
    %v501 = vld [vmem:[#allocation2 + $0xb38] sm:$0xff]
    %v502 = vld [vmem:[#allocation2 + $0xb40] sm:$0xff]
    %v503 = vld [vmem:[#allocation2 + $0xb48] sm:$0xff]
    %v504 = vld [vmem:[#allocation2 + $0xb50] sm:$0xff]
    %v505 = vld [vmem:[#allocation2 + $0xb58] sm:$0xff]
    %v506 = vld [vmem:[#allocation2 + $0xb60] sm:$0xff]
    %v507 = vld [vmem:[#allocation2 + $0xb68] sm:$0xff]
    %v508 = vld [vmem:[#allocation2 + $0xb70] sm:$0xff]
    %v509 = vld [vmem:[#allocation2 + $0xb78] sm:$0xff]
    %v510 = vld [vmem:[#allocation2 + $0xb80] sm:$0xff]
    %v511 = vld [vmem:[#allocation2 + $0xb88] sm:$0xff]
    %v512 = vld [vmem:[#allocation2 + $0xb90] sm:$0xff]
    %v513 = vld [vmem:[#allocation2 + $0xb98] sm:$0xff]
    %v514 = vld [vmem:[#allocation2 + $0xba0] sm:$0xff]
    %v515 = vld [vmem:[#allocation2 + $0xba8] sm:$0xff]
    %v516 = vld [vmem:[#allocation2 + $0xbb0] sm:$0xff]
    %v517 = vld [vmem:[#allocation2 + $0xbb8] sm:$0xff]
    %v518 = vld [vmem:[#allocation2 + $0xbc0] sm:$0xff]
    %v519 = vld [vmem:[#allocation2 + $0xbc8] sm:$0xff]
    %v520 = vld [vmem:[#allocation2 + $0xbd0] sm:$0xff]
    %v521 = vld [vmem:[#allocation2 + $0xbd8] sm:$0xff]
    %v522 = vld [vmem:[#allocation2 + $0xbe0] sm:$0xff]
    %v523 = vld [vmem:[#allocation2 + $0xbe8] sm:$0xff]
    %v524 = vld [vmem:[#allocation2 + $0xbf0] sm:$0xff]
    %v525 = vld [vmem:[#allocation2 + $0xbf8] sm:$0xff]
    %v526 = vld [vmem:[#allocation2 + $0xc00] sm:$0xff]
    %v527 = vld [vmem:[#allocation2 + $0xc08] sm:$0xff]
    %v528 = vld [vmem:[#allocation2 + $0xc10] sm:$0xff]
    %v529 = vld [vmem:[#allocation2 + $0xc18] sm:$0xff]
    %v530 = vld [vmem:[#allocation2 + $0xc20] sm:$0xff]
    %v531 = vld [vmem:[#allocation2 + $0xc28] sm:$0xff]
    %v532 = vld [vmem:[#allocation2 + $0xc30] sm:$0xff]
    %v533 = vld [vmem:[#allocation2 + $0xc38] sm:$0xff]
    %v534 = vld [vmem:[#allocation2 + $0xc40] sm:$0xff]
    %v535 = vld [vmem:[#allocation2 + $0xc48] sm:$0xff]
    %v536 = vld [vmem:[#allocation2 + $0xc50] sm:$0xff]
    %v537 = vld [vmem:[#allocation2 + $0xc58] sm:$0xff]
    %v538 = vld [vmem:[#allocation2 + $0xc60] sm:$0xff]
    %v539 = vld [vmem:[#allocation2 + $0xc68] sm:$0xff]
    %v540 = vld [vmem:[#allocation2 + $0xc70] sm:$0xff]
    %v541 = vld [vmem:[#allocation2 + $0xc78] sm:$0xff]
    %v542 = vld [vmem:[#allocation2 + $0xc80] sm:$0xff]
    %v543 = vld [vmem:[#allocation2 + $0xc88] sm:$0xff]
    %v544 = vld [vmem:[#allocation2 + $0xc90] sm:$0xff]
    %v545 = vld [vmem:[#allocation2 + $0xc98] sm:$0xff]
    %v546 = vld [vmem:[#allocation2 + $0xca0] sm:$0xff]
    %v547 = vld [vmem:[#allocation2 + $0xca8] sm:$0xff]
    %v548 = vld [vmem:[#allocation2 + $0xcb0] sm:$0xff]
    %v549 = vld [vmem:[#allocation2 + $0xcb8] sm:$0xff]
    %v550 = vld [vmem:[#allocation2 + $0xcc0] sm:$0xff]
    %v551 = vld [vmem:[#allocation2 + $0xcc8] sm:$0xff]
    %v552 = vld [vmem:[#allocation2 + $0xcd0] sm:$0xff]
    %v553 = vld [vmem:[#allocation2 + $0xcd8] sm:$0xff]
    %v554 = vld [vmem:[#allocation2 + $0xce0] sm:$0xff]
    %v555 = vld [vmem:[#allocation2 + $0xce8] sm:$0xff]
    %v556 = vld [vmem:[#allocation2 + $0xcf0] sm:$0xff]
    %v557 = vld [vmem:[#allocation2 + $0xcf8] sm:$0xff]
    %v558 = vld [vmem:[#allocation2 + $0xd00] sm:$0xff]
    %v559 = vld [vmem:[#allocation2 + $0xd08] sm:$0xff]
    %v560 = vld [vmem:[#allocation2 + $0xd10] sm:$0xff]
    %v561 = vld [vmem:[#allocation2 + $0xd18] sm:$0xff]
    %v562 = vld [vmem:[#allocation2 + $0xd20] sm:$0xff]
    %v563 = vld [vmem:[#allocation2 + $0xd28] sm:$0xff]
    %v564 = vld [vmem:[#allocation2 + $0xd30] sm:$0xff]
    %v565 = vld [vmem:[#allocation2 + $0xd38] sm:$0xff]
    %v566 = vld [vmem:[#allocation2 + $0xd40] sm:$0xff]
    %v567 = vld [vmem:[#allocation2 + $0xd48] sm:$0xff]
    %v568 = vld [vmem:[#allocation2 + $0xd50] sm:$0xff]
    %v569 = vld [vmem:[#allocation2 + $0xd58] sm:$0xff]
    %v570 = vld [vmem:[#allocation2 + $0xd60] sm:$0xff]
    %v571 = vld [vmem:[#allocation2 + $0xd68] sm:$0xff]
    %v572 = vld [vmem:[#allocation2 + $0xd70] sm:$0xff]
    %v573 = vld [vmem:[#allocation2 + $0xd78] sm:$0xff]
    %v574 = vld [vmem:[#allocation2 + $0xd80] sm:$0xff]
    %v575 = vld [vmem:[#allocation2 + $0xd88] sm:$0xff]
    %v576 = vld [vmem:[#allocation2 + $0xd90] sm:$0xff]
    %v577 = vld [vmem:[#allocation2 + $0xd98] sm:$0xff]
    %v578 = vld [vmem:[#allocation2 + $0xda0] sm:$0xff]
    %v579 = vld [vmem:[#allocation2 + $0xda8] sm:$0xff]
    %v580 = vld [vmem:[#allocation2 + $0xdb0] sm:$0xff]
    %v581 = vld [vmem:[#allocation2 + $0xdb8] sm:$0xff]
    %v582 = vld [vmem:[#allocation2 + $0xdc0] sm:$0xff]
    %v583 = vld [vmem:[#allocation2 + $0xdc8] sm:$0xff]
    %v584 = vld [vmem:[#allocation2 + $0xdd0] sm:$0xff]
    %v585 = vld [vmem:[#allocation2 + $0xdd8] sm:$0xff]
    %v586 = vld [vmem:[#allocation2 + $0xde0] sm:$0xff]
    %v587 = vld [vmem:[#allocation2 + $0xde8] sm:$0xff]
    %v588 = vld [vmem:[#allocation2 + $0xdf0] sm:$0xff]
    %v589 = vld [vmem:[#allocation2 + $0xdf8] sm:$0xff]
    %v590 = vld [vmem:[#allocation2 + $0xe00] sm:$0xff]
    %v591 = vld [vmem:[#allocation2 + $0xe08] sm:$0xff]
    %v592 = vld [vmem:[#allocation2 + $0xe10] sm:$0xff]
    %v593 = vld [vmem:[#allocation2 + $0xe18] sm:$0xff]
    %v594 = vld [vmem:[#allocation2 + $0xe20] sm:$0xff]
    %v595 = vld [vmem:[#allocation2 + $0xe28] sm:$0xff]
    %v596 = vld [vmem:[#allocation2 + $0xe30] sm:$0xff]
    %v597 = vld [vmem:[#allocation2 + $0xe38] sm:$0xff]
    %v598 = vld [vmem:[#allocation2 + $0xe40] sm:$0xff]
    %v599 = vld [vmem:[#allocation2 + $0xe48] sm:$0xff]
    %v600 = vld [vmem:[#allocation2 + $0xe50] sm:$0xff]
    %v601 = vld [vmem:[#allocation2 + $0xe58] sm:$0xff]
    %v602 = vld [vmem:[#allocation2 + $0xe60] sm:$0xff]
    %v603 = vld [vmem:[#allocation2 + $0xe68] sm:$0xff]
    %v604 = vld [vmem:[#allocation2 + $0xe70] sm:$0xff]
    %v605 = vld [vmem:[#allocation2 + $0xe78] sm:$0xff]
    %v606 = vld [vmem:[#allocation2 + $0xe80] sm:$0xff]
    %v607 = vld [vmem:[#allocation2 + $0xe88] sm:$0xff]
    %v608 = vld [vmem:[#allocation2 + $0xe90] sm:$0xff]
    %v609 = vld [vmem:[#allocation2 + $0xe98] sm:$0xff]
    %v610 = vld [vmem:[#allocation2 + $0xea0] sm:$0xff]
    %v611 = vld [vmem:[#allocation2 + $0xea8] sm:$0xff]
    %v612 = vld [vmem:[#allocation2 + $0xeb0] sm:$0xff]
    %v613 = vld [vmem:[#allocation2 + $0xeb8] sm:$0xff]
    %v614 = vld [vmem:[#allocation2 + $0xec0] sm:$0xff]
    %v615 = vld [vmem:[#allocation2 + $0xec8] sm:$0xff]
    %v616 = vld [vmem:[#allocation2 + $0xed0] sm:$0xff]
    %v617 = vld [vmem:[#allocation2 + $0xed8] sm:$0xff]
    %v618 = vld [vmem:[#allocation2 + $0xee0] sm:$0xff]
    %v619 = vld [vmem:[#allocation2 + $0xee8] sm:$0xff]
    %v620 = vld [vmem:[#allocation2 + $0xef0] sm:$0xff]
    %v621 = vld [vmem:[#allocation2 + $0xef8] sm:$0xff]
    %v622 = vld [vmem:[#allocation2 + $0xf00] sm:$0xff]
    %v623 = vld [vmem:[#allocation2 + $0xf08] sm:$0xff]
    %v624 = vld [vmem:[#allocation2 + $0xf10] sm:$0xff]
    %v625 = vld [vmem:[#allocation2 + $0xf18] sm:$0xff]
    %v626 = vld [vmem:[#allocation2 + $0xf20] sm:$0xff]
    %v627 = vld [vmem:[#allocation2 + $0xf28] sm:$0xff]
    %v628 = vld [vmem:[#allocation2 + $0xf30] sm:$0xff]
    %v629 = vld [vmem:[#allocation2 + $0xf38] sm:$0xff]
    %v630 = vld [vmem:[#allocation2 + $0xf40] sm:$0xff]
    %v631 = vld [vmem:[#allocation2 + $0xf48] sm:$0xff]
    %v632 = vld [vmem:[#allocation2 + $0xf50] sm:$0xff]
    %v633 = vld [vmem:[#allocation2 + $0xf58] sm:$0xff]
    %v634 = vld [vmem:[#allocation2 + $0xf60] sm:$0xff]
    %v635 = vld [vmem:[#allocation2 + $0xf68] sm:$0xff]
    %v636 = vld [vmem:[#allocation2 + $0xf70] sm:$0xff]
    %v637 = vld [vmem:[#allocation2 + $0xf78] sm:$0xff]
    %v638 = vld [vmem:[#allocation2 + $0xf80] sm:$0xff]
    %v639 = vld [vmem:[#allocation2 + $0xf88] sm:$0xff]
    %v640 = vld [vmem:[#allocation2 + $0xf90] sm:$0xff]
    %v641 = vld [vmem:[#allocation2 + $0xf98] sm:$0xff]
    %v642 = vld [vmem:[#allocation2 + $0xfa0] sm:$0xff]
    %v643 = vld [vmem:[#allocation2 + $0xfa8] sm:$0xff]
    %v644 = vld [vmem:[#allocation2 + $0xfb0] sm:$0xff]
    %v645 = vld [vmem:[#allocation2 + $0xfb8] sm:$0xff]
    %v646 = vld [vmem:[#allocation2 + $0xfc0] sm:$0xff]
    %v647 = vld [vmem:[#allocation2 + $0xfc8] sm:$0xff]
    %v648 = vld [vmem:[#allocation2 + $0xfd0] sm:$0xff]
    %v649 = vld [vmem:[#allocation2 + $0xfd8] sm:$0xff]
    %v650 = vld [vmem:[#allocation2 + $0xfe0] sm:$0xff]
    %v651 = vld [vmem:[#allocation2 + $0xfe8] sm:$0xff]
    %v652 = vld [vmem:[#allocation2 + $0xff0] sm:$0xff]
    %v653 = vld [vmem:[#allocation2 + $0xff8] sm:$0xff]
    %v654 = vld [vmem:[#allocation2 + $0x1000] sm:$0xff]
    %v655 = vld [vmem:[#allocation2 + $0x1008] sm:$0xff]
    %v656 = vld [vmem:[#allocation2 + $0x1010] sm:$0xff]
    %v657 = vld [vmem:[#allocation2 + $0x1018] sm:$0xff]
    %v658 = vld [vmem:[#allocation2 + $0x1020] sm:$0xff]
    %v659 = vld [vmem:[#allocation2 + $0x1028] sm:$0xff]
    %v660 = vld [vmem:[#allocation2 + $0x1030] sm:$0xff]
    %v661 = vld [vmem:[#allocation2 + $0x1038] sm:$0xff]
    %v662 = vld [vmem:[#allocation2 + $0x1040] sm:$0xff]
    %v663 = vld [vmem:[#allocation2 + $0x1048] sm:$0xff]
    %v664 = vld [vmem:[#allocation2 + $0x1050] sm:$0xff]
    %v665 = vld [vmem:[#allocation2 + $0x1058] sm:$0xff]
    %v666 = vld [vmem:[#allocation2 + $0x1060] sm:$0xff]
    %v667 = vld [vmem:[#allocation2 + $0x1068] sm:$0xff]
    %v668 = vld [vmem:[#allocation2 + $0x1070] sm:$0xff]
    %v669 = vld [vmem:[#allocation2 + $0x1078] sm:$0xff]
    %v670 = vld [vmem:[#allocation2 + $0x1080] sm:$0xff]
    %v671 = vld [vmem:[#allocation2 + $0x1088] sm:$0xff]
    %v672 = vld [vmem:[#allocation2 + $0x1090] sm:$0xff]
    %v673 = vld [vmem:[#allocation2 + $0x1098] sm:$0xff]
    %v674 = vld [vmem:[#allocation2 + $0x10a0] sm:$0xff]
    %v675 = vld [vmem:[#allocation2 + $0x10a8] sm:$0xff]
    %v676 = vld [vmem:[#allocation2 + $0x10b0] sm:$0xff]
    %v677 = vld [vmem:[#allocation2 + $0x10b8] sm:$0xff]
    %v678 = vld [vmem:[#allocation2 + $0x10c0] sm:$0xff]
    %v679 = vld [vmem:[#allocation2 + $0x10c8] sm:$0xff]
    %v680 = vld [vmem:[#allocation2 + $0x10d0] sm:$0xff]
    %v681 = vld [vmem:[#allocation2 + $0x10d8] sm:$0xff]
    %v682 = vld [vmem:[#allocation2 + $0x10e0] sm:$0xff]
    %v683 = vld [vmem:[#allocation2 + $0x10e8] sm:$0xff]
    %v684 = vld [vmem:[#allocation2 + $0x10f0] sm:$0xff]
    %v685 = vld [vmem:[#allocation2 + $0x10f8] sm:$0xff]
    %v686 = vld [vmem:[#allocation2 + $0x1100] sm:$0xff]
    %v687 = vld [vmem:[#allocation2 + $0x1108] sm:$0xff]
    %v688 = vld [vmem:[#allocation2 + $0x1110] sm:$0xff]
    %v689 = vld [vmem:[#allocation2 + $0x1118] sm:$0xff]
    %v690 = vld [vmem:[#allocation2 + $0x1120] sm:$0xff]
    %v691 = vld [vmem:[#allocation2 + $0x1128] sm:$0xff]
    %v692 = vld [vmem:[#allocation2 + $0x1130] sm:$0xff]
    %v693 = vld [vmem:[#allocation2 + $0x1138] sm:$0xff]
    %v694 = vld [vmem:[#allocation2 + $0x1140] sm:$0xff]
    %v695 = vld [vmem:[#allocation2 + $0x1148] sm:$0xff]
    %v696 = vld [vmem:[#allocation2 + $0x1150] sm:$0xff]
    %v697 = vld [vmem:[#allocation2 + $0x1158] sm:$0xff]
    %v698 = vld [vmem:[#allocation2 + $0x1160] sm:$0xff]
    %v699 = vld [vmem:[#allocation2 + $0x1168] sm:$0xff]
    %v700 = vld [vmem:[#allocation2 + $0x1170] sm:$0xff]
    %v701 = vld [vmem:[#allocation2 + $0x1178] sm:$0xff]
    %v702 = vld [vmem:[#allocation2 + $0x1180] sm:$0xff]
    %v703 = vld [vmem:[#allocation2 + $0x1188] sm:$0xff]
    %v704 = vld [vmem:[#allocation2 + $0x1190] sm:$0xff]
    %v705 = vld [vmem:[#allocation2 + $0x1198] sm:$0xff]
    %v706 = vld [vmem:[#allocation2 + $0x11a0] sm:$0xff]
    %v707 = vld [vmem:[#allocation2 + $0x11a8] sm:$0xff]
    %v708 = vld [vmem:[#allocation2 + $0x11b0] sm:$0xff]
    %v709 = vld [vmem:[#allocation2 + $0x11b8] sm:$0xff]
    %v710 = vld [vmem:[#allocation2 + $0x11c0] sm:$0xff]
    %v711 = vld [vmem:[#allocation2 + $0x11c8] sm:$0xff]
    %v712 = vld [vmem:[#allocation2 + $0x11d0] sm:$0xff]
    %v713 = vld [vmem:[#allocation2 + $0x11d8] sm:$0xff]
    %v714 = vld [vmem:[#allocation2 + $0x11e0] sm:$0xff]
    %v715 = vld [vmem:[#allocation2 + $0x11e8] sm:$0xff]
    %v716 = vld [vmem:[#allocation2 + $0x11f0] sm:$0xff]
    %v717 = vld [vmem:[#allocation2 + $0x11f8] sm:$0xff]
    %v718 = vld [vmem:[#allocation2 + $0x1200] sm:$0xff]
    %v719 = vld [vmem:[#allocation2 + $0x1208] sm:$0xff]
    %v720 = vld [vmem:[#allocation2 + $0x1210] sm:$0xff]
    %v721 = vld [vmem:[#allocation2 + $0x1218] sm:$0xff]
    %v722 = vld [vmem:[#allocation2 + $0x1220] sm:$0xff]
    %v723 = vld [vmem:[#allocation2 + $0x1228] sm:$0xff]
    %v724 = vld [vmem:[#allocation2 + $0x1230] sm:$0xff]
    %v725 = vld [vmem:[#allocation2 + $0x1238] sm:$0xff]
    %v726 = vld [vmem:[#allocation2 + $0x1240] sm:$0xff]
    %v727 = vld [vmem:[#allocation2 + $0x1248] sm:$0xff]
    %v728 = vld [vmem:[#allocation2 + $0x1250] sm:$0xff]
    %v729 = vld [vmem:[#allocation2 + $0x1258] sm:$0xff]
    %v730 = vld [vmem:[#allocation2 + $0x1260] sm:$0xff]
    %v731 = vld [vmem:[#allocation2 + $0x1268] sm:$0xff]
    %v732 = vld [vmem:[#allocation2 + $0x1270] sm:$0xff]
    %v733 = vld [vmem:[#allocation2 + $0x1278] sm:$0xff]
    %v734 = vld [vmem:[#allocation2 + $0x1280] sm:$0xff]
    %v735 = vld [vmem:[#allocation2 + $0x1288] sm:$0xff]
    %v736 = vld [vmem:[#allocation2 + $0x1290] sm:$0xff]
    %v737 = vld [vmem:[#allocation2 + $0x1298] sm:$0xff]
    %v738 = vld [vmem:[#allocation2 + $0x12a0] sm:$0xff]
    %v739 = vld [vmem:[#allocation2 + $0x12a8] sm:$0xff]
    %v740 = vld [vmem:[#allocation2 + $0x12b0] sm:$0xff]
    %v741 = vld [vmem:[#allocation2 + $0x12b8] sm:$0xff]
    %v742 = vld [vmem:[#allocation2 + $0x12c0] sm:$0xff]
    %v743 = vld [vmem:[#allocation2 + $0x12c8] sm:$0xff]
    %v744 = vld [vmem:[#allocation2 + $0x12d0] sm:$0xff]
    %v745 = vld [vmem:[#allocation2 + $0x12d8] sm:$0xff]
    %v746 = vld [vmem:[#allocation2 + $0x12e0] sm:$0xff]
    %v747 = vld [vmem:[#allocation2 + $0x12e8] sm:$0xff]
    %v748 = vld [vmem:[#allocation2 + $0x12f0] sm:$0xff]
    %v749 = vld [vmem:[#allocation2 + $0x12f8] sm:$0xff]
    %v750 = vld [vmem:[#allocation2 + $0x1300] sm:$0xff]
    %v751 = vld [vmem:[#allocation2 + $0x1308] sm:$0xff]
    %v752 = vld [vmem:[#allocation2 + $0x1310] sm:$0xff]
    %v753 = vld [vmem:[#allocation2 + $0x1318] sm:$0xff]
    %v754 = vld [vmem:[#allocation2 + $0x1320] sm:$0xff]
    %v755 = vld [vmem:[#allocation2 + $0x1328] sm:$0xff]
    %v756 = vld [vmem:[#allocation2 + $0x1330] sm:$0xff]
    %v757 = vld [vmem:[#allocation2 + $0x1338] sm:$0xff]
    %v758 = vld [vmem:[#allocation2 + $0x1340] sm:$0xff]
    %v759 = vld [vmem:[#allocation2 + $0x1348] sm:$0xff]
    %v760 = vld [vmem:[#allocation2 + $0x1350] sm:$0xff]
    %v761 = vld [vmem:[#allocation2 + $0x1358] sm:$0xff]
    %v762 = vld [vmem:[#allocation2 + $0x1360] sm:$0xff]
    %v763 = vld [vmem:[#allocation2 + $0x1368] sm:$0xff]
    %v764 = vld [vmem:[#allocation2 + $0x1370] sm:$0xff]
    %v765 = vld [vmem:[#allocation2 + $0x1378] sm:$0xff]
    %v766 = vld [vmem:[#allocation2 + $0x1380] sm:$0xff]
    %v767 = vld [vmem:[#allocation2 + $0x1388] sm:$0xff]
    %v768 = vld [vmem:[#allocation2 + $0x1390] sm:$0xff]
    %v769 = vld [vmem:[#allocation2 + $0x1398] sm:$0xff]
    %v770 = vld [vmem:[#allocation2 + $0x13a0] sm:$0xff]
    %v771 = vld [vmem:[#allocation2 + $0x13a8] sm:$0xff]
    %v772 = vld [vmem:[#allocation2 + $0x13b0] sm:$0xff]
    %v773 = vld [vmem:[#allocation2 + $0x13b8] sm:$0xff]
    %v774 = vld [vmem:[#allocation2 + $0x13c0] sm:$0xff]
    %v775 = vld [vmem:[#allocation2 + $0x13c8] sm:$0xff]
    %v776 = vld [vmem:[#allocation2 + $0x13d0] sm:$0xff]
    %v777 = vld [vmem:[#allocation2 + $0x13d8] sm:$0xff]
    %v778 = vld [vmem:[#allocation2 + $0x13e0] sm:$0xff]
    %v779 = vld [vmem:[#allocation2 + $0x13e8] sm:$0xff]
    %v780 = vld [vmem:[#allocation2 + $0x13f0] sm:$0xff]
    %v781 = vld [vmem:[#allocation2 + $0x13f8] sm:$0xff]
    %v782 = vld [vmem:[#allocation2 + $0x1400] sm:$0xff]
    %v783 = vld [vmem:[#allocation2 + $0x1408] sm:$0xff]
    %v784 = vld [vmem:[#allocation2 + $0x1410] sm:$0xff]
    %v785 = vld [vmem:[#allocation2 + $0x1418] sm:$0xff]
    %v786 = vld [vmem:[#allocation2 + $0x1420] sm:$0xff]
    %v787 = vld [vmem:[#allocation2 + $0x1428] sm:$0xff]
    %v788 = vld [vmem:[#allocation2 + $0x1430] sm:$0xff]
    %v789 = vld [vmem:[#allocation2 + $0x1438] sm:$0xff]
    %v790 = vld [vmem:[#allocation2 + $0x1440] sm:$0xff]
    %v791 = vld [vmem:[#allocation2 + $0x1448] sm:$0xff]
    %v792 = vld [vmem:[#allocation2 + $0x1450] sm:$0xff]
    %v793 = vld [vmem:[#allocation2 + $0x1458] sm:$0xff]
    %v794 = vld [vmem:[#allocation2 + $0x1460] sm:$0xff]
    %v795 = vld [vmem:[#allocation2 + $0x1468] sm:$0xff]
    %v796 = vld [vmem:[#allocation2 + $0x1470] sm:$0xff]
    %v797 = vld [vmem:[#allocation2 + $0x1478] sm:$0xff]
    %v798 = vld [vmem:[#allocation2 + $0x1480] sm:$0xff]
    %v799 = vld [vmem:[#allocation2 + $0x1488] sm:$0xff]
    %v800 = vld [vmem:[#allocation2 + $0x1490] sm:$0xff]
    %v801 = vld [vmem:[#allocation2 + $0x1498] sm:$0xff]
    %v802 = vld [vmem:[#allocation2 + $0x14a0] sm:$0xff]
    %v803 = vld [vmem:[#allocation2 + $0x14a8] sm:$0xff]
    %v804 = vld [vmem:[#allocation2 + $0x14b0] sm:$0xff]
    %v805 = vld [vmem:[#allocation2 + $0x14b8] sm:$0xff]
    %v806 = vld [vmem:[#allocation2 + $0x14c0] sm:$0xff]
    %v807 = vld [vmem:[#allocation2 + $0x14c8] sm:$0xff]
    %v808 = vld [vmem:[#allocation2 + $0x14d0] sm:$0xff]
    %v809 = vld [vmem:[#allocation2 + $0x14d8] sm:$0xff]
    %v810 = vld [vmem:[#allocation2 + $0x14e0] sm:$0xff]
    %v811 = vld [vmem:[#allocation2 + $0x14e8] sm:$0xff]
    %v812 = vld [vmem:[#allocation2 + $0x14f0] sm:$0xff]
    %v813 = vld [vmem:[#allocation2 + $0x14f8] sm:$0xff]
    %v814 = vld [vmem:[#allocation2 + $0x1500] sm:$0xff]
    %v815 = vld [vmem:[#allocation2 + $0x1508] sm:$0xff]
    %v816 = vld [vmem:[#allocation2 + $0x1510] sm:$0xff]
    %v817 = vld [vmem:[#allocation2 + $0x1518] sm:$0xff]
    %v818 = vld [vmem:[#allocation2 + $0x1520] sm:$0xff]
    %v819 = vld [vmem:[#allocation2 + $0x1528] sm:$0xff]
    %v820 = vld [vmem:[#allocation2 + $0x1530] sm:$0xff]
    %v821 = vld [vmem:[#allocation2 + $0x1538] sm:$0xff]
    %v822 = vld [vmem:[#allocation2 + $0x1540] sm:$0xff]
    %v823 = vld [vmem:[#allocation2 + $0x1548] sm:$0xff]
    %v824 = vld [vmem:[#allocation2 + $0x1550] sm:$0xff]
    %v825 = vld [vmem:[#allocation2 + $0x1558] sm:$0xff]
    %v826 = vld [vmem:[#allocation2 + $0x1560] sm:$0xff]
    %v827 = vld [vmem:[#allocation2 + $0x1568] sm:$0xff]
    %v828 = vld [vmem:[#allocation2 + $0x1570] sm:$0xff]
    %v829 = vld [vmem:[#allocation2 + $0x1578] sm:$0xff]
    %v830 = vld [vmem:[#allocation2 + $0x1580] sm:$0xff]
    %v831 = vld [vmem:[#allocation2 + $0x1588] sm:$0xff]
    %v832 = vld [vmem:[#allocation2 + $0x1590] sm:$0xff]
    %v833 = vld [vmem:[#allocation2 + $0x1598] sm:$0xff]
    %v834 = vld [vmem:[#allocation2 + $0x15a0] sm:$0xff]
    %v835 = vld [vmem:[#allocation2 + $0x15a8] sm:$0xff]
    %v836 = vld [vmem:[#allocation2 + $0x15b0] sm:$0xff]
    %v837 = vld [vmem:[#allocation2 + $0x15b8] sm:$0xff]
    %v838 = vld [vmem:[#allocation2 + $0x15c0] sm:$0xff]
    %v839 = vld [vmem:[#allocation2 + $0x15c8] sm:$0xff]
    %v840 = vld [vmem:[#allocation2 + $0x15d0] sm:$0xff]
    %v841 = vld [vmem:[#allocation2 + $0x15d8] sm:$0xff]
    %v842 = vld [vmem:[#allocation2 + $0x15e0] sm:$0xff]
    %v843 = vld [vmem:[#allocation2 + $0x15e8] sm:$0xff]
    %v844 = vld [vmem:[#allocation2 + $0x15f0] sm:$0xff]
    %v845 = vld [vmem:[#allocation2 + $0x15f8] sm:$0xff]
    %v846 = vld [vmem:[#allocation2 + $0x1600] sm:$0xff]
    %v847 = vld [vmem:[#allocation2 + $0x1608] sm:$0xff]
    %v848 = vld [vmem:[#allocation2 + $0x1610] sm:$0xff]
    %v849 = vld [vmem:[#allocation2 + $0x1618] sm:$0xff]
    %v850 = vld [vmem:[#allocation2 + $0x1620] sm:$0xff]
    %v851 = vld [vmem:[#allocation2 + $0x1628] sm:$0xff]
    %v852 = vld [vmem:[#allocation2 + $0x1630] sm:$0xff]
    %v853 = vld [vmem:[#allocation2 + $0x1638] sm:$0xff]
    %v854 = vld [vmem:[#allocation2 + $0x1640] sm:$0xff]
    %v855 = vld [vmem:[#allocation2 + $0x1648] sm:$0xff]
    %v856 = vld [vmem:[#allocation2 + $0x1650] sm:$0xff]
    %v857 = vld [vmem:[#allocation2 + $0x1658] sm:$0xff]
    %v858 = vld [vmem:[#allocation2 + $0x1660] sm:$0xff]
    %v859 = vld [vmem:[#allocation2 + $0x1668] sm:$0xff]
    %v860 = vld [vmem:[#allocation2 + $0x1670] sm:$0xff]
    %v861 = vld [vmem:[#allocation2 + $0x1678] sm:$0xff]
    %v862 = vld [vmem:[#allocation2 + $0x1680] sm:$0xff]
    %v863 = vld [vmem:[#allocation2 + $0x1688] sm:$0xff]
    %v864 = vld [vmem:[#allocation2 + $0x1690] sm:$0xff]
    %v865 = vld [vmem:[#allocation2 + $0x1698] sm:$0xff]
    %v866 = vld [vmem:[#allocation2 + $0x16a0] sm:$0xff]
    %v867 = vld [vmem:[#allocation2 + $0x16a8] sm:$0xff]
    %v868 = vld [vmem:[#allocation2 + $0x16b0] sm:$0xff]
    %v869 = vld [vmem:[#allocation2 + $0x16b8] sm:$0xff]
    %v870 = vld [vmem:[#allocation2 + $0x16c0] sm:$0xff]
    %v871 = vld [vmem:[#allocation2 + $0x16c8] sm:$0xff]
    %v872 = vld [vmem:[#allocation2 + $0x16d0] sm:$0xff]
    %v873 = vld [vmem:[#allocation2 + $0x16d8] sm:$0xff]
    %v874 = vld [vmem:[#allocation2 + $0x16e0] sm:$0xff]
    %v875 = vld [vmem:[#allocation2 + $0x16e8] sm:$0xff]
    %v876 = vld [vmem:[#allocation2 + $0x16f0] sm:$0xff]
    %v877 = vld [vmem:[#allocation2 + $0x16f8] sm:$0xff]
    %v878 = vld [vmem:[#allocation2 + $0x1700] sm:$0xff]
    %v879 = vld [vmem:[#allocation2 + $0x1708] sm:$0xff]
    %v880 = vld [vmem:[#allocation2 + $0x1710] sm:$0xff]
    %v881 = vld [vmem:[#allocation2 + $0x1718] sm:$0xff]
    %v882 = vld [vmem:[#allocation2 + $0x1720] sm:$0xff]
    %v883 = vld [vmem:[#allocation2 + $0x1728] sm:$0xff]
    %v884 = vld [vmem:[#allocation2 + $0x1730] sm:$0xff]
    %v885 = vld [vmem:[#allocation2 + $0x1738] sm:$0xff]
    %v886 = vld [vmem:[#allocation2 + $0x1740] sm:$0xff]
    %v887 = vld [vmem:[#allocation2 + $0x1748] sm:$0xff]
    %v888 = vld [vmem:[#allocation2 + $0x1750] sm:$0xff]
    %v889 = vld [vmem:[#allocation2 + $0x1758] sm:$0xff]
    %v890 = vld [vmem:[#allocation2 + $0x1760] sm:$0xff]
    %v891 = vld [vmem:[#allocation2 + $0x1768] sm:$0xff]
    %v892 = vld [vmem:[#allocation2 + $0x1770] sm:$0xff]
    %v893 = vld [vmem:[#allocation2 + $0x1778] sm:$0xff]
    %v894 = vld [vmem:[#allocation2 + $0x1780] sm:$0xff]
    %v895 = vld [vmem:[#allocation2 + $0x1788] sm:$0xff]
    %v896 = vld [vmem:[#allocation2 + $0x1790] sm:$0xff]
    %v897 = vld [vmem:[#allocation2 + $0x1798] sm:$0xff]
    %v898 = vld [vmem:[#allocation2 + $0x17a0] sm:$0xff]
    %v899 = vld [vmem:[#allocation2 + $0x17a8] sm:$0xff]
    %v900 = vld [vmem:[#allocation2 + $0x17b0] sm:$0xff]
    %v901 = vld [vmem:[#allocation2 + $0x17b8] sm:$0xff]
    %v902 = vld [vmem:[#allocation2 + $0x17c0] sm:$0xff]
    %v903 = vld [vmem:[#allocation2 + $0x17c8] sm:$0xff]
    %v904 = vld [vmem:[#allocation2 + $0x17d0] sm:$0xff]
    %v905 = vld [vmem:[#allocation2 + $0x17d8] sm:$0xff]
    %v906 = vld [vmem:[#allocation2 + $0x17e0] sm:$0xff]
    %v907 = vld [vmem:[#allocation2 + $0x17e8] sm:$0xff]
    %v908 = vld [vmem:[#allocation2 + $0x17f0] sm:$0xff]
    %v909 = vld [vmem:[#allocation2 + $0x17f8] sm:$0xff]
    %v910 = vld [vmem:[#allocation2 + $0x1800] sm:$0xff]
    %v911 = vld [vmem:[#allocation2 + $0x1808] sm:$0xff]
    %v912 = vld [vmem:[#allocation2 + $0x1810] sm:$0xff]
    %v913 = vld [vmem:[#allocation2 + $0x1818] sm:$0xff]
    %v914 = vld [vmem:[#allocation2 + $0x1820] sm:$0xff]
    %v915 = vld [vmem:[#allocation2 + $0x1828] sm:$0xff]
    %v916 = vld [vmem:[#allocation2 + $0x1830] sm:$0xff]
    %v917 = vld [vmem:[#allocation2 + $0x1838] sm:$0xff]
    %v918 = vld [vmem:[#allocation2 + $0x1840] sm:$0xff]
    %v919 = vld [vmem:[#allocation2 + $0x1848] sm:$0xff]
    %v920 = vld [vmem:[#allocation2 + $0x1850] sm:$0xff]
    %v921 = vld [vmem:[#allocation2 + $0x1858] sm:$0xff]
    %v922 = vld [vmem:[#allocation2 + $0x1860] sm:$0xff]
    %v923 = vld [vmem:[#allocation2 + $0x1868] sm:$0xff]
    %v924 = vld [vmem:[#allocation2 + $0x1870] sm:$0xff]
    %v925 = vld [vmem:[#allocation2 + $0x1878] sm:$0xff]
    %v926 = vld [vmem:[#allocation2 + $0x1880] sm:$0xff]
    %v927 = vld [vmem:[#allocation2 + $0x1888] sm:$0xff]
    %v928 = vld [vmem:[#allocation2 + $0x1890] sm:$0xff]
    %v929 = vld [vmem:[#allocation2 + $0x1898] sm:$0xff]
    %v930 = vld [vmem:[#allocation2 + $0x18a0] sm:$0xff]
    %v931 = vld [vmem:[#allocation2 + $0x18a8] sm:$0xff]
    %v932 = vld [vmem:[#allocation2 + $0x18b0] sm:$0xff]
    %v933 = vld [vmem:[#allocation2 + $0x18b8] sm:$0xff]
    %v934 = vld [vmem:[#allocation2 + $0x18c0] sm:$0xff]
    %v935 = vld [vmem:[#allocation2 + $0x18c8] sm:$0xff]
    %v936 = vld [vmem:[#allocation2 + $0x18d0] sm:$0xff]
    %v937 = vld [vmem:[#allocation2 + $0x18d8] sm:$0xff]
    %v938 = vld [vmem:[#allocation2 + $0x18e0] sm:$0xff]
    %v939 = vld [vmem:[#allocation2 + $0x18e8] sm:$0xff]
    %v940 = vld [vmem:[#allocation2 + $0x18f0] sm:$0xff]
    %v941 = vld [vmem:[#allocation2 + $0x18f8] sm:$0xff]
    %v942 = vld [vmem:[#allocation2 + $0x1900] sm:$0xff]
    %v943 = vld [vmem:[#allocation2 + $0x1908] sm:$0xff]
    %v944 = vld [vmem:[#allocation2 + $0x1910] sm:$0xff]
    %v945 = vld [vmem:[#allocation2 + $0x1918] sm:$0xff]
    %v946 = vld [vmem:[#allocation2 + $0x1920] sm:$0xff]
    %v947 = vld [vmem:[#allocation2 + $0x1928] sm:$0xff]
    %v948 = vld [vmem:[#allocation2 + $0x1930] sm:$0xff]
    %v949 = vld [vmem:[#allocation2 + $0x1938] sm:$0xff]
    %v950 = vld [vmem:[#allocation2 + $0x1940] sm:$0xff]
    %v951 = vld [vmem:[#allocation2 + $0x1948] sm:$0xff]
    %v952 = vld [vmem:[#allocation2 + $0x1950] sm:$0xff]
    %v953 = vld [vmem:[#allocation2 + $0x1958] sm:$0xff]
    %v954 = vld [vmem:[#allocation2 + $0x1960] sm:$0xff]
    %v955 = vld [vmem:[#allocation2 + $0x1968] sm:$0xff]
    %v956 = vld [vmem:[#allocation2 + $0x1970] sm:$0xff]
    %v957 = vld [vmem:[#allocation2 + $0x1978] sm:$0xff]
    %v958 = vld [vmem:[#allocation2 + $0x1980] sm:$0xff]
    %v959 = vld [vmem:[#allocation2 + $0x1988] sm:$0xff]
    %v960 = vld [vmem:[#allocation2 + $0x1990] sm:$0xff]
    %v961 = vld [vmem:[#allocation2 + $0x1998] sm:$0xff]
    %v962 = vld [vmem:[#allocation2 + $0x19a0] sm:$0xff]
    %v963 = vld [vmem:[#allocation2 + $0x19a8] sm:$0xff]
    %v964 = vld [vmem:[#allocation2 + $0x19b0] sm:$0xff]
    %v965 = vld [vmem:[#allocation2 + $0x19b8] sm:$0xff]
    %v966 = vld [vmem:[#allocation2 + $0x19c0] sm:$0xff]
    %v967 = vld [vmem:[#allocation2 + $0x19c8] sm:$0xff]
    %v968 = vld [vmem:[#allocation2 + $0x19d0] sm:$0xff]
    %v969 = vld [vmem:[#allocation2 + $0x19d8] sm:$0xff]
    %v970 = vld [vmem:[#allocation2 + $0x19e0] sm:$0xff]
    %v971 = vld [vmem:[#allocation2 + $0x19e8] sm:$0xff]
    %v972 = vld [vmem:[#allocation2 + $0x19f0] sm:$0xff]
    %v973 = vld [vmem:[#allocation2 + $0x19f8] sm:$0xff]
    %v974 = vld [vmem:[#allocation2 + $0x1a00] sm:$0xff]
    %v975 = vld [vmem:[#allocation2 + $0x1a08] sm:$0xff]
    %v976 = vld [vmem:[#allocation2 + $0x1a10] sm:$0xff]
    %v977 = vld [vmem:[#allocation2 + $0x1a18] sm:$0xff]
    %v978 = vld [vmem:[#allocation2 + $0x1a20] sm:$0xff]
    %v979 = vld [vmem:[#allocation2 + $0x1a28] sm:$0xff]
    %v980 = vld [vmem:[#allocation2 + $0x1a30] sm:$0xff]
    %v981 = vld [vmem:[#allocation2 + $0x1a38] sm:$0xff]
    %v982 = vld [vmem:[#allocation2 + $0x1a40] sm:$0xff]
    %v983 = vld [vmem:[#allocation2 + $0x1a48] sm:$0xff]
    %v984 = vld [vmem:[#allocation2 + $0x1a50] sm:$0xff]
    %v985 = vld [vmem:[#allocation2 + $0x1a58] sm:$0xff]
    %v986 = vld [vmem:[#allocation2 + $0x1a60] sm:$0xff]
    %v987 = vld [vmem:[#allocation2 + $0x1a68] sm:$0xff]
    %v988 = vld [vmem:[#allocation2 + $0x1a70] sm:$0xff]
    %v989 = vld [vmem:[#allocation2 + $0x1a78] sm:$0xff]
    %v990 = vld [vmem:[#allocation2 + $0x1a80] sm:$0xff]
    %v991 = vld [vmem:[#allocation2 + $0x1a88] sm:$0xff]
    %v992 = vld [vmem:[#allocation2 + $0x1a90] sm:$0xff]
    %v993 = vld [vmem:[#allocation2 + $0x1a98] sm:$0xff]
    %v994 = vld [vmem:[#allocation2 + $0x1aa0] sm:$0xff]
    %v995 = vld [vmem:[#allocation2 + $0x1aa8] sm:$0xff]
    %v996 = vld [vmem:[#allocation2 + $0x1ab0] sm:$0xff]
    %v997 = vld [vmem:[#allocation2 + $0x1ab8] sm:$0xff]
    %v998 = vld [vmem:[#allocation2 + $0x1ac0] sm:$0xff]
    %v999 = vld [vmem:[#allocation2 + $0x1ac8] sm:$0xff]
    %v1000 = vld [vmem:[#allocation2 + $0x1ad0] sm:$0xff]
    %v1001 = vld [vmem:[#allocation2 + $0x1ad8] sm:$0xff]
    %v1002 = vld [vmem:[#allocation2 + $0x1ae0] sm:$0xff]
    %v1003 = vld [vmem:[#allocation2 + $0x1ae8] sm:$0xff]
    %v1004 = vld [vmem:[#allocation2 + $0x1af0] sm:$0xff]
    %v1005 = vld [vmem:[#allocation2 + $0x1af8] sm:$0xff]
    %v1006 = vld [vmem:[#allocation2 + $0x1b00] sm:$0xff]
    %v1007 = vld [vmem:[#allocation2 + $0x1b08] sm:$0xff]
    %v1008 = vld [vmem:[#allocation2 + $0x1b10] sm:$0xff]
    %v1009 = vld [vmem:[#allocation2 + $0x1b18] sm:$0xff]
    %v1010 = vld [vmem:[#allocation2 + $0x1b20] sm:$0xff]
    %v1011 = vld [vmem:[#allocation2 + $0x1b28] sm:$0xff]
    %v1012 = vld [vmem:[#allocation2 + $0x1b30] sm:$0xff]
    %v1013 = vld [vmem:[#allocation2 + $0x1b38] sm:$0xff]
    %v1014 = vld [vmem:[#allocation2 + $0x1b40] sm:$0xff]
    %v1015 = vld [vmem:[#allocation2 + $0x1b48] sm:$0xff]
    %v1016 = vld [vmem:[#allocation2 + $0x1b50] sm:$0xff]
    %v1017 = vld [vmem:[#allocation2 + $0x1b58] sm:$0xff]
    %v1018 = vld [vmem:[#allocation2 + $0x1b60] sm:$0xff]
    %v1019 = vld [vmem:[#allocation2 + $0x1b68] sm:$0xff]
    %v1020 = vld [vmem:[#allocation2 + $0x1b70] sm:$0xff]
    %v1021 = vld [vmem:[#allocation2 + $0x1b78] sm:$0xff]
    %v1022 = vld [vmem:[#allocation2 + $0x1b80] sm:$0xff]
    %v1023 = vld [vmem:[#allocation2 + $0x1b88] sm:$0xff]
    %v1024 = vld [vmem:[#allocation4] sm:$0xff]
    %v1025 = vld [vmem:[#allocation4 + $0x8] sm:$0xff]
    %v1026 = vld [vmem:[#allocation4 + $0x10] sm:$0x3]
    %v1030 = vlaneseq
    %v1031 = vshrl.u32 %v1030, 7
    %v1032 = vsub.s32 0, %v1031
    %v1033 = vrot.slane %v1024, %v1032
    %v1034 = vlaneseq
    %v1035 = vshrl.u32 %v1034, 7
    %v1036 = vsub.s32 1, %v1035
    %v1037 = vrot.slane %v1024, %v1036
    %v1038 = vlaneseq
    %v1039 = vshrl.u32 %v1038, 7
    %v1040 = vsub.s32 2, %v1039
    %v1041 = vrot.slane %v1024, %v1040
    %v1042 = vlaneseq
    %v1043 = vshrl.u32 %v1042, 7
    %v1044 = vsub.s32 3, %v1043
    %v1045 = vrot.slane %v1024, %v1044
    %v1046 = vlaneseq
    %v1047 = vshrl.u32 %v1046, 7
    %v1048 = vsub.s32 4, %v1047
    %v1049 = vrot.slane %v1024, %v1048
    %v1050 = vlaneseq
    %v1051 = vshrl.u32 %v1050, 7
    %v1052 = vsub.s32 5, %v1051
    %v1053 = vrot.slane %v1024, %v1052
    %v1054 = vlaneseq
    %v1055 = vshrl.u32 %v1054, 7
    %v1056 = vsub.s32 6, %v1055
    %v1057 = vrot.slane %v1024, %v1056
    %v1058 = vlaneseq
    %v1059 = vshrl.u32 %v1058, 7
    %v1060 = vsub.s32 7, %v1059
    %v1061 = vrot.slane %v1024, %v1060
    %v1062 = vlaneseq
    %v1063 = vshrl.u32 %v1062, 7
    %v1064 = vsub.s32 0, %v1063
    %v1065 = vrot.slane %v1025, %v1064
    %v1066 = vlaneseq
    %v1067 = vshrl.u32 %v1066, 7
    %v1068 = vsub.s32 1, %v1067
    %v1069 = vrot.slane %v1025, %v1068
    %v1070 = vlaneseq
    %v1071 = vshrl.u32 %v1070, 7
    %v1072 = vsub.s32 2, %v1071
    %v1073 = vrot.slane %v1025, %v1072
    %v1074 = vlaneseq
    %v1075 = vshrl.u32 %v1074, 7
    %v1076 = vsub.s32 3, %v1075
    %v1077 = vrot.slane %v1025, %v1076
    %v1078 = vlaneseq
    %v1079 = vshrl.u32 %v1078, 7
    %v1080 = vsub.s32 4, %v1079
    %v1081 = vrot.slane %v1025, %v1080
    %v1082 = vlaneseq
    %v1083 = vshrl.u32 %v1082, 7
    %v1084 = vsub.s32 5, %v1083
    %v1085 = vrot.slane %v1025, %v1084
    %v1086 = vlaneseq
    %v1087 = vshrl.u32 %v1086, 7
    %v1088 = vsub.s32 6, %v1087
    %v1089 = vrot.slane %v1025, %v1088
    %v1090 = vlaneseq
    %v1091 = vshrl.u32 %v1090, 7
    %v1092 = vsub.s32 7, %v1091
    %v1093 = vrot.slane %v1025, %v1092
    %v1094 = vlaneseq
    %v1095 = vshrl.u32 %v1094, 7
    %v1096 = vsub.s32 0, %v1095
    %v1097 = vrot.slane %v1026, %v1096
    %v1098 = vlaneseq
    %v1099 = vshrl.u32 %v1098, 7
    %v1100 = vsub.s32 1, %v1099
    %v1101 = vrot.slane %v1026, %v1100
    %v1124 = vunpack.c.l.b16 %v138
    %v1125 = vunpack.c.h.b16 %v138
    %v1126 = vunpack.c.l.b16 %v139
    %v1127 = vunpack.c.h.b16 %v139
    %v1128 = vunpack.c.l.b16 %v140
    %v1129 = vunpack.c.h.b16 %v140
    %v1130 = vunpack.c.l.b16 %v141
    %v1131 = vpack.c.b16 %v1124, %v1124
    %v1132 = vpack.c.b16 %v1125, %v1125
    %v1133 = vpack.c.b16 %v1126, %v1126
    %v1134 = vpack.c.b16 %v1127, %v1127
    %v1135 = vpack.c.b16 %v1128, %v1128
    %v1136 = vpack.c.b16 %v1129, %v1129
    %v1137 = vpack.c.b16 %v1130, %v1130
    %v2026 = vunpack.c.l.b16 %v142
    %v2027 = vunpack.c.h.b16 %v142
    %v2028 = vunpack.c.l.b16 %v143
    %v2029 = vunpack.c.h.b16 %v143
    %v2030 = vunpack.c.l.b16 %v144
    %v2031 = vunpack.c.h.b16 %v144
    %v2032 = vunpack.c.l.b16 %v145
    %v2033 = vunpack.c.h.b16 %v145
    %v2034 = vunpack.c.l.b16 %v146
    %v2035 = vunpack.c.h.b16 %v146
    %v2036 = vunpack.c.l.b16 %v147
    %v2037 = vunpack.c.h.b16 %v147
    %v2038 = vunpack.c.l.b16 %v148
    %v2039 = vunpack.c.h.b16 %v148
    %v2040 = vunpack.c.l.b16 %v149
    %v2041 = vunpack.c.h.b16 %v149
    %v2042 = vunpack.c.l.b16 %v150
    %v2043 = vunpack.c.h.b16 %v150
    %v2044 = vunpack.c.l.b16 %v151
    %v2045 = vunpack.c.h.b16 %v151
    %v2046 = vunpack.c.l.b16 %v152
    %v2047 = vunpack.c.h.b16 %v152
    %v2048 = vunpack.c.l.b16 %v153
    %v2049 = vunpack.c.h.b16 %v153
    %v2050 = vunpack.c.l.b16 %v154
    %v2051 = vunpack.c.h.b16 %v154
    %v2052 = vunpack.c.l.b16 %v155
    %v2053 = vunpack.c.h.b16 %v155
    %v2054 = vunpack.c.l.b16 %v156
    %v2055 = vunpack.c.h.b16 %v156
    %v2056 = vunpack.c.l.b16 %v157
    %v2057 = vunpack.c.h.b16 %v157
    %v2058 = vunpack.c.l.b16 %v158
    %v2059 = vunpack.c.h.b16 %v158
    %v2060 = vunpack.c.l.b16 %v159
    %v2061 = vunpack.c.h.b16 %v159
    %v2062 = vunpack.c.l.b16 %v160
    %v2063 = vunpack.c.h.b16 %v160
    %v2064 = vunpack.c.l.b16 %v161
    %v2065 = vunpack.c.h.b16 %v161
    %v2066 = vunpack.c.l.b16 %v162
    %v2067 = vunpack.c.h.b16 %v162
    %v2068 = vunpack.c.l.b16 %v163
    %v2069 = vunpack.c.h.b16 %v163
    %v2070 = vunpack.c.l.b16 %v164
    %v2071 = vunpack.c.h.b16 %v164
    %v2072 = vunpack.c.l.b16 %v165
    %v2073 = vunpack.c.h.b16 %v165
    %v2074 = vunpack.c.l.b16 %v166
    %v2075 = vunpack.c.h.b16 %v166
    %v2076 = vunpack.c.l.b16 %v167
    %v2077 = vunpack.c.h.b16 %v167
    %v2078 = vunpack.c.l.b16 %v168
    %v2079 = vunpack.c.h.b16 %v168
    %v2080 = vunpack.c.l.b16 %v169
    %v2081 = vunpack.c.h.b16 %v169
    %v2082 = vunpack.c.l.b16 %v170
    %v2083 = vunpack.c.h.b16 %v170
    %v2084 = vunpack.c.l.b16 %v171
    %v2085 = vunpack.c.h.b16 %v171
    %v2086 = vunpack.c.l.b16 %v172
    %v2087 = vunpack.c.h.b16 %v172
    %v2088 = vunpack.c.l.b16 %v173
    %v2089 = vunpack.c.h.b16 %v173
    %v2090 = vunpack.c.l.b16 %v174
    %v2091 = vunpack.c.h.b16 %v174
    %v2092 = vunpack.c.l.b16 %v175
    %v2093 = vunpack.c.h.b16 %v175
    %v2094 = vunpack.c.l.b16 %v176
    %v2095 = vunpack.c.h.b16 %v176
    %v2096 = vunpack.c.l.b16 %v177
    %v2097 = vunpack.c.h.b16 %v177
    %v2098 = vunpack.c.l.b16 %v178
    %v2099 = vunpack.c.h.b16 %v178
    %v2100 = vunpack.c.l.b16 %v179
    %v2101 = vunpack.c.h.b16 %v179
    %v2102 = vunpack.c.l.b16 %v180
    %v2103 = vunpack.c.h.b16 %v180
    %v2104 = vunpack.c.l.b16 %v181
    %v2105 = vunpack.c.h.b16 %v181
    %v2106 = vunpack.c.l.b16 %v182
    %v2107 = vunpack.c.h.b16 %v182
    %v2108 = vunpack.c.l.b16 %v183
    %v2109 = vunpack.c.h.b16 %v183
    %v2110 = vunpack.c.l.b16 %v184
    %v2111 = vunpack.c.h.b16 %v184
    %v2112 = vunpack.c.l.b16 %v185
    %v2113 = vunpack.c.h.b16 %v185
    %v2114 = vunpack.c.l.b16 %v186
    %v2115 = vunpack.c.h.b16 %v186
    %v2116 = vunpack.c.l.b16 %v187
    %v2117 = vunpack.c.h.b16 %v187
    %v2118 = vunpack.c.l.b16 %v188
    %v2119 = vunpack.c.h.b16 %v188
    %v2120 = vunpack.c.l.b16 %v189
    %v2121 = vunpack.c.h.b16 %v189
    %v2122 = vunpack.c.l.b16 %v190
    %v2123 = vunpack.c.h.b16 %v190
    %v2124 = vunpack.c.l.b16 %v191
    %v2125 = vunpack.c.h.b16 %v191
    %v2126 = vunpack.c.l.b16 %v192
    %v2127 = vunpack.c.h.b16 %v192
    %v2128 = vunpack.c.l.b16 %v193
    %v2129 = vunpack.c.h.b16 %v193
    %v2130 = vunpack.c.l.b16 %v194
    %v2131 = vunpack.c.h.b16 %v194
    %v2132 = vunpack.c.l.b16 %v195
    %v2133 = vunpack.c.h.b16 %v195
    %v2134 = vunpack.c.l.b16 %v196
    %v2135 = vunpack.c.h.b16 %v196
    %v2136 = vunpack.c.l.b16 %v197
    %v2137 = vunpack.c.h.b16 %v197
    %v2138 = vunpack.c.l.b16 %v198
    %v2139 = vunpack.c.h.b16 %v198
    %v2140 = vunpack.c.l.b16 %v199
    %v2141 = vunpack.c.h.b16 %v199
    %v2142 = vunpack.c.l.b16 %v200
    %v2143 = vunpack.c.h.b16 %v200
    %v2144 = vunpack.c.l.b16 %v201
    %v2145 = vunpack.c.h.b16 %v201
    %v2146 = vunpack.c.l.b16 %v202
    %v2147 = vunpack.c.h.b16 %v202
    %v2148 = vunpack.c.l.b16 %v203
    %v2149 = vunpack.c.h.b16 %v203
    %v2150 = vunpack.c.l.b16 %v204
    %v2151 = vunpack.c.h.b16 %v204
    %v2152 = vunpack.c.l.b16 %v205
    %v2153 = vunpack.c.h.b16 %v205
    %v2154 = vunpack.c.l.b16 %v206
    %v2155 = vunpack.c.h.b16 %v206
    %v2156 = vunpack.c.l.b16 %v207
    %v2157 = vunpack.c.h.b16 %v207
    %v2158 = vunpack.c.l.b16 %v208
    %v2159 = vunpack.c.h.b16 %v208
    %v2160 = vunpack.c.l.b16 %v209
    %v2161 = vunpack.c.h.b16 %v209
    %v2162 = vunpack.c.l.b16 %v210
    %v2163 = vunpack.c.h.b16 %v210
    %v2164 = vunpack.c.l.b16 %v211
    %v2165 = vunpack.c.h.b16 %v211
    %v2166 = vunpack.c.l.b16 %v212
    %v2167 = vunpack.c.h.b16 %v212
    %v2168 = vunpack.c.l.b16 %v213
    %v2169 = vunpack.c.h.b16 %v213
    %v2170 = vunpack.c.l.b16 %v214
    %v2171 = vunpack.c.h.b16 %v214
    %v2172 = vunpack.c.l.b16 %v215
    %v2173 = vunpack.c.h.b16 %v215
    %v2174 = vunpack.c.l.b16 %v216
    %v2175 = vunpack.c.h.b16 %v216
    %v2176 = vunpack.c.l.b16 %v217
    %v2177 = vunpack.c.h.b16 %v217
    %v2178 = vunpack.c.l.b16 %v218
    %v2179 = vunpack.c.h.b16 %v218
    %v2180 = vunpack.c.l.b16 %v219
    %v2181 = vunpack.c.h.b16 %v219
    %v2182 = vunpack.c.l.b16 %v220
    %v2183 = vunpack.c.h.b16 %v220
    %v2184 = vunpack.c.l.b16 %v221
    %v2185 = vunpack.c.h.b16 %v221
    %v2186 = vunpack.c.l.b16 %v222
    %v2187 = vunpack.c.h.b16 %v222
    %v2188 = vunpack.c.l.b16 %v223
    %v2189 = vunpack.c.h.b16 %v223
    %v2190 = vunpack.c.l.b16 %v224
    %v2191 = vunpack.c.h.b16 %v224
    %v2192 = vunpack.c.l.b16 %v225
    %v2193 = vunpack.c.h.b16 %v225
    %v2194 = vunpack.c.l.b16 %v226
    %v2195 = vunpack.c.h.b16 %v226
    %v2196 = vunpack.c.l.b16 %v227
    %v2197 = vunpack.c.h.b16 %v227
    %v2198 = vunpack.c.l.b16 %v228
    %v2199 = vunpack.c.h.b16 %v228
    %v2200 = vunpack.c.l.b16 %v229
    %v2201 = vunpack.c.h.b16 %v229
    %v2202 = vunpack.c.l.b16 %v230
    %v2203 = vunpack.c.h.b16 %v230
    %v2204 = vunpack.c.l.b16 %v231
    %v2205 = vunpack.c.h.b16 %v231
    %v2206 = vunpack.c.l.b16 %v232
    %v2207 = vunpack.c.h.b16 %v232
    %v2208 = vunpack.c.l.b16 %v233
    %v2209 = vunpack.c.h.b16 %v233
    %v2210 = vunpack.c.l.b16 %v234
    %v2211 = vunpack.c.h.b16 %v234
    %v2212 = vunpack.c.l.b16 %v235
    %v2213 = vunpack.c.h.b16 %v235
    %v2214 = vunpack.c.l.b16 %v236
    %v2215 = vunpack.c.h.b16 %v236
    %v2216 = vunpack.c.l.b16 %v237
    %v2217 = vunpack.c.h.b16 %v237
    %v2218 = vunpack.c.l.b16 %v238
    %v2219 = vunpack.c.h.b16 %v238
    %v2220 = vunpack.c.l.b16 %v239
    %v2221 = vunpack.c.h.b16 %v239
    %v2222 = vunpack.c.l.b16 %v240
    %v2223 = vunpack.c.h.b16 %v240
    %v2224 = vunpack.c.l.b16 %v241
    %v2225 = vunpack.c.h.b16 %v241
    %v2226 = vunpack.c.l.b16 %v242
    %v2227 = vunpack.c.h.b16 %v242
    %v2228 = vunpack.c.l.b16 %v243
    %v2229 = vunpack.c.h.b16 %v243
    %v2230 = vunpack.c.l.b16 %v244
    %v2231 = vunpack.c.h.b16 %v244
    %v2232 = vunpack.c.l.b16 %v245
    %v2233 = vunpack.c.h.b16 %v245
    %v2234 = vunpack.c.l.b16 %v246
    %v2235 = vunpack.c.h.b16 %v246
    %v2236 = vunpack.c.l.b16 %v247
    %v2237 = vunpack.c.h.b16 %v247
    %v2238 = vunpack.c.l.b16 %v248
    %v2239 = vunpack.c.h.b16 %v248
    %v2240 = vunpack.c.l.b16 %v249
    %v2241 = vunpack.c.h.b16 %v249
    %v2242 = vunpack.c.l.b16 %v250
    %v2243 = vunpack.c.h.b16 %v250
    %v2244 = vunpack.c.l.b16 %v251
    %v2245 = vunpack.c.h.b16 %v251
    %v2246 = vunpack.c.l.b16 %v252
    %v2247 = vunpack.c.h.b16 %v252
    %v2248 = vunpack.c.l.b16 %v253
    %v2249 = vunpack.c.h.b16 %v253
    %v2250 = vunpack.c.l.b16 %v254
    %v2251 = vunpack.c.h.b16 %v254
    %v2252 = vunpack.c.l.b16 %v255
    %v2253 = vunpack.c.h.b16 %v255
    %v2254 = vunpack.c.l.b16 %v256
    %v2255 = vunpack.c.h.b16 %v256
    %v2256 = vunpack.c.l.b16 %v257
    %v2257 = vunpack.c.h.b16 %v257
    %v2258 = vunpack.c.l.b16 %v258
    %v2259 = vunpack.c.h.b16 %v258
    %v2260 = vunpack.c.l.b16 %v259
    %v2261 = vunpack.c.h.b16 %v259
    %v2262 = vunpack.c.l.b16 %v260
    %v2263 = vunpack.c.h.b16 %v260
    %v2264 = vunpack.c.l.b16 %v261
    %v2265 = vunpack.c.h.b16 %v261
    %v2266 = vunpack.c.l.b16 %v262
    %v2267 = vunpack.c.h.b16 %v262
    %v2268 = vunpack.c.l.b16 %v263
    %v2269 = vunpack.c.h.b16 %v263
    %v2270 = vunpack.c.l.b16 %v264
    %v2271 = vunpack.c.h.b16 %v264
    %v2272 = vunpack.c.l.b16 %v265
    %v2273 = vunpack.c.h.b16 %v265
    %v2274 = vunpack.c.l.b16 %v266
    %v2275 = vunpack.c.h.b16 %v266
    %v2276 = vunpack.c.l.b16 %v267
    %v2277 = vunpack.c.h.b16 %v267
    %v2278 = vunpack.c.l.b16 %v268
    %v2279 = vunpack.c.h.b16 %v268
    %v2280 = vunpack.c.l.b16 %v269
    %v2281 = vunpack.c.h.b16 %v269
    %v2282 = vunpack.c.l.b16 %v270
    %v2283 = vunpack.c.h.b16 %v270
    %v2284 = vunpack.c.l.b16 %v271
    %v2285 = vunpack.c.h.b16 %v271
    %v2286 = vunpack.c.l.b16 %v272
    %v2287 = vunpack.c.h.b16 %v272
    %v2288 = vunpack.c.l.b16 %v273
    %v2289 = vunpack.c.h.b16 %v273
    %v2290 = vunpack.c.l.b16 %v274
    %v2291 = vunpack.c.h.b16 %v274
    %v2292 = vunpack.c.l.b16 %v275
    %v2293 = vunpack.c.h.b16 %v275
    %v2294 = vunpack.c.l.b16 %v276
    %v2295 = vunpack.c.h.b16 %v276
    %v2296 = vunpack.c.l.b16 %v277
    %v2297 = vunpack.c.h.b16 %v277
    %v2298 = vunpack.c.l.b16 %v278
    %v2299 = vunpack.c.h.b16 %v278
    %v2300 = vunpack.c.l.b16 %v279
    %v2301 = vunpack.c.h.b16 %v279
    %v2302 = vunpack.c.l.b16 %v280
    %v2303 = vunpack.c.h.b16 %v280
    %v2304 = vunpack.c.l.b16 %v281
    %v2305 = vunpack.c.h.b16 %v281
    %v2306 = vunpack.c.l.b16 %v282
    %v2307 = vunpack.c.h.b16 %v282
    %v2308 = vunpack.c.l.b16 %v283
    %v2309 = vunpack.c.h.b16 %v283
    %v2310 = vunpack.c.l.b16 %v284
    %v2311 = vunpack.c.h.b16 %v284
    %v2312 = vunpack.c.l.b16 %v285
    %v2313 = vunpack.c.h.b16 %v285
    %v2314 = vunpack.c.l.b16 %v286
    %v2315 = vunpack.c.h.b16 %v286
    %v2316 = vunpack.c.l.b16 %v287
    %v2317 = vunpack.c.h.b16 %v287
    %v2318 = vunpack.c.l.b16 %v288
    %v2319 = vunpack.c.h.b16 %v288
    %v2320 = vunpack.c.l.b16 %v289
    %v2321 = vunpack.c.h.b16 %v289
    %v2322 = vunpack.c.l.b16 %v290
    %v2323 = vunpack.c.h.b16 %v290
    %v2324 = vunpack.c.l.b16 %v291
    %v2325 = vunpack.c.h.b16 %v291
    %v2326 = vunpack.c.l.b16 %v292
    %v2327 = vunpack.c.h.b16 %v292
    %v2328 = vunpack.c.l.b16 %v293
    %v2329 = vunpack.c.h.b16 %v293
    %v2330 = vunpack.c.l.b16 %v294
    %v2331 = vunpack.c.h.b16 %v294
    %v2332 = vunpack.c.l.b16 %v295
    %v2333 = vunpack.c.h.b16 %v295
    %v2334 = vunpack.c.l.b16 %v296
    %v2335 = vunpack.c.h.b16 %v296
    %v2336 = vunpack.c.l.b16 %v297
    %v2337 = vunpack.c.h.b16 %v297
    %v2338 = vunpack.c.l.b16 %v298
    %v2339 = vunpack.c.h.b16 %v298
    %v2340 = vunpack.c.l.b16 %v299
    %v2341 = vunpack.c.h.b16 %v299
    %v2342 = vunpack.c.l.b16 %v300
    %v2343 = vunpack.c.h.b16 %v300
    %v2344 = vunpack.c.l.b16 %v301
    %v2345 = vunpack.c.h.b16 %v301
    %v2346 = vunpack.c.l.b16 %v302
    %v2347 = vunpack.c.h.b16 %v302
    %v2348 = vunpack.c.l.b16 %v303
    %v2349 = vunpack.c.h.b16 %v303
    %v2350 = vunpack.c.l.b16 %v304
    %v2351 = vunpack.c.h.b16 %v304
    %v2352 = vunpack.c.l.b16 %v305
    %v2353 = vunpack.c.h.b16 %v305
    %v2354 = vunpack.c.l.b16 %v306
    %v2355 = vunpack.c.h.b16 %v306
    %v2356 = vunpack.c.l.b16 %v307
    %v2357 = vunpack.c.h.b16 %v307
    %v2358 = vunpack.c.l.b16 %v308
    %v2359 = vunpack.c.h.b16 %v308
    %v2360 = vunpack.c.l.b16 %v309
    %v2361 = vunpack.c.h.b16 %v309
    %v2362 = vunpack.c.l.b16 %v310
    %v2363 = vunpack.c.h.b16 %v310
    %v2364 = vunpack.c.l.b16 %v311
    %v2365 = vunpack.c.h.b16 %v311
    %v2366 = vunpack.c.l.b16 %v312
    %v2367 = vunpack.c.h.b16 %v312
    %v2368 = vunpack.c.l.b16 %v313
    %v2369 = vunpack.c.h.b16 %v313
    %v2370 = vunpack.c.l.b16 %v314
    %v2371 = vunpack.c.h.b16 %v314
    %v2372 = vunpack.c.l.b16 %v315
    %v2373 = vunpack.c.h.b16 %v315
    %v2374 = vunpack.c.l.b16 %v316
    %v2375 = vunpack.c.h.b16 %v316
    %v2376 = vunpack.c.l.b16 %v317
    %v2377 = vunpack.c.h.b16 %v317
    %v2378 = vunpack.c.l.b16 %v318
    %v2379 = vunpack.c.h.b16 %v318
    %v2380 = vunpack.c.l.b16 %v319
    %v2381 = vunpack.c.h.b16 %v319
    %v2382 = vunpack.c.l.b16 %v320
    %v2383 = vunpack.c.h.b16 %v320
    %v2384 = vunpack.c.l.b16 %v321
    %v2385 = vunpack.c.h.b16 %v321
    %v2386 = vunpack.c.l.b16 %v322
    %v2387 = vunpack.c.h.b16 %v322
    %v2388 = vunpack.c.l.b16 %v323
    %v2389 = vunpack.c.h.b16 %v323
    %v2390 = vunpack.c.l.b16 %v324
    %v2391 = vunpack.c.h.b16 %v324
    %v2392 = vunpack.c.l.b16 %v325
    %v2393 = vunpack.c.h.b16 %v325
    %v2394 = vunpack.c.l.b16 %v326
    %v2395 = vunpack.c.h.b16 %v326
    %v2396 = vunpack.c.l.b16 %v327
    %v2397 = vunpack.c.h.b16 %v327
    %v2398 = vunpack.c.l.b16 %v328
    %v2399 = vunpack.c.h.b16 %v328
    %v2400 = vunpack.c.l.b16 %v329
    %v2401 = vunpack.c.h.b16 %v329
    %v2402 = vunpack.c.l.b16 %v330
    %v2403 = vunpack.c.h.b16 %v330
    %v2404 = vunpack.c.l.b16 %v331
    %v2405 = vunpack.c.h.b16 %v331
    %v2406 = vunpack.c.l.b16 %v332
    %v2407 = vunpack.c.h.b16 %v332
    %v2408 = vunpack.c.l.b16 %v333
    %v2409 = vunpack.c.h.b16 %v333
    %v2410 = vunpack.c.l.b16 %v334
    %v2411 = vunpack.c.h.b16 %v334
    %v2412 = vunpack.c.l.b16 %v335
    %v2413 = vunpack.c.h.b16 %v335
    %v2414 = vunpack.c.l.b16 %v336
    %v2415 = vunpack.c.h.b16 %v336
    %v2416 = vunpack.c.l.b16 %v337
    %v2417 = vunpack.c.h.b16 %v337
    %v2418 = vunpack.c.l.b16 %v338
    %v2419 = vunpack.c.h.b16 %v338
    %v2420 = vunpack.c.l.b16 %v339
    %v2421 = vunpack.c.h.b16 %v339
    %v2422 = vunpack.c.l.b16 %v340
    %v2423 = vunpack.c.h.b16 %v340
    %v2424 = vunpack.c.l.b16 %v341
    %v2425 = vunpack.c.h.b16 %v341
    %v2426 = vunpack.c.l.b16 %v342
    %v2427 = vunpack.c.h.b16 %v342
    %v2428 = vunpack.c.l.b16 %v343
    %v2429 = vunpack.c.h.b16 %v343
    %v2430 = vunpack.c.l.b16 %v344
    %v2431 = vunpack.c.h.b16 %v344
    %v2432 = vunpack.c.l.b16 %v345
    %v2433 = vunpack.c.h.b16 %v345
    %v2434 = vunpack.c.l.b16 %v346
    %v2435 = vunpack.c.h.b16 %v346
    %v2436 = vunpack.c.l.b16 %v347
    %v2437 = vunpack.c.h.b16 %v347
    %v2438 = vunpack.c.l.b16 %v348
    %v2439 = vunpack.c.h.b16 %v348
    %v2440 = vunpack.c.l.b16 %v349
    %v2441 = vunpack.c.h.b16 %v349
    %v2442 = vunpack.c.l.b16 %v350
    %v2443 = vunpack.c.h.b16 %v350
    %v2444 = vunpack.c.l.b16 %v351
    %v2445 = vunpack.c.h.b16 %v351
    %v2446 = vunpack.c.l.b16 %v352
    %v2447 = vunpack.c.h.b16 %v352
    %v2448 = vunpack.c.l.b16 %v353
    %v2449 = vunpack.c.h.b16 %v353
    %v2450 = vunpack.c.l.b16 %v354
    %v2451 = vunpack.c.h.b16 %v354
    %v2452 = vunpack.c.l.b16 %v355
    %v2453 = vunpack.c.h.b16 %v355
    %v2454 = vunpack.c.l.b16 %v356
    %v2455 = vunpack.c.h.b16 %v356
    %v2456 = vunpack.c.l.b16 %v357
    %v2457 = vunpack.c.h.b16 %v357
    %v2458 = vunpack.c.l.b16 %v358
    %v2459 = vunpack.c.h.b16 %v358
    %v2460 = vunpack.c.l.b16 %v359
    %v2461 = vunpack.c.h.b16 %v359
    %v2462 = vunpack.c.l.b16 %v360
    %v2463 = vunpack.c.h.b16 %v360
    %v2464 = vunpack.c.l.b16 %v361
    %v2465 = vunpack.c.h.b16 %v361
    %v2466 = vunpack.c.l.b16 %v362
    %v2467 = vunpack.c.h.b16 %v362
    %v2468 = vunpack.c.l.b16 %v363
    %v2469 = vunpack.c.h.b16 %v363
    %v2470 = vunpack.c.l.b16 %v364
    %v2471 = vunpack.c.h.b16 %v364
    %v2472 = vunpack.c.l.b16 %v365
    %v2473 = vunpack.c.h.b16 %v365
    %v2474 = vunpack.c.l.b16 %v366
    %v2475 = vunpack.c.h.b16 %v366
    %v2476 = vunpack.c.l.b16 %v367
    %v2477 = vunpack.c.h.b16 %v367
    %v2478 = vunpack.c.l.b16 %v368
    %v2479 = vunpack.c.h.b16 %v368
    %v2480 = vunpack.c.l.b16 %v369
    %v2481 = vunpack.c.h.b16 %v369
    %v2482 = vunpack.c.l.b16 %v370
    %v2483 = vunpack.c.h.b16 %v370
    %v2484 = vunpack.c.l.b16 %v371
    %v2485 = vunpack.c.h.b16 %v371
    %v2486 = vunpack.c.l.b16 %v372
    %v2487 = vunpack.c.h.b16 %v372
    %v2488 = vunpack.c.l.b16 %v373
    %v2489 = vunpack.c.h.b16 %v373
    %v2490 = vunpack.c.l.b16 %v374
    %v2491 = vunpack.c.h.b16 %v374
    %v2492 = vunpack.c.l.b16 %v375
    %v2493 = vunpack.c.h.b16 %v375
    %v2494 = vunpack.c.l.b16 %v376
    %v2495 = vunpack.c.h.b16 %v376
    %v2496 = vunpack.c.l.b16 %v377
    %v2497 = vunpack.c.h.b16 %v377
    %v2498 = vunpack.c.l.b16 %v378
    %v2499 = vunpack.c.h.b16 %v378
    %v2500 = vunpack.c.l.b16 %v379
    %v2501 = vunpack.c.h.b16 %v379
    %v2502 = vunpack.c.l.b16 %v380
    %v2503 = vunpack.c.h.b16 %v380
    %v2504 = vunpack.c.l.b16 %v381
    %v2505 = vunpack.c.h.b16 %v381
    %v2506 = vunpack.c.l.b16 %v382
    %v2507 = vunpack.c.h.b16 %v382
    %v2508 = vunpack.c.l.b16 %v383
    %v2509 = vunpack.c.h.b16 %v383
    %v2510 = vunpack.c.l.b16 %v384
    %v2511 = vunpack.c.h.b16 %v384
    %v2512 = vunpack.c.l.b16 %v385
    %v2513 = vunpack.c.h.b16 %v385
    %v2514 = vunpack.c.l.b16 %v386
    %v2515 = vunpack.c.h.b16 %v386
    %v2516 = vunpack.c.l.b16 %v387
    %v2517 = vunpack.c.h.b16 %v387
    %v2518 = vunpack.c.l.b16 %v388
    %v2519 = vunpack.c.h.b16 %v388
    %v2520 = vunpack.c.l.b16 %v389
    %v2521 = vunpack.c.h.b16 %v389
    %v2522 = vunpack.c.l.b16 %v390
    %v2523 = vunpack.c.h.b16 %v390
    %v2524 = vunpack.c.l.b16 %v391
    %v2525 = vunpack.c.h.b16 %v391
    %v2526 = vunpack.c.l.b16 %v392
    %v2527 = vunpack.c.h.b16 %v392
    %v2528 = vunpack.c.l.b16 %v393
    %v2529 = vunpack.c.h.b16 %v393
    %v2530 = vunpack.c.l.b16 %v394
    %v2531 = vunpack.c.h.b16 %v394
    %v2532 = vunpack.c.l.b16 %v395
    %v2533 = vunpack.c.h.b16 %v395
    %v2534 = vunpack.c.l.b16 %v396
    %v2535 = vunpack.c.h.b16 %v396
    %v2536 = vunpack.c.l.b16 %v397
    %v2537 = vunpack.c.h.b16 %v397
    %v2538 = vunpack.c.l.b16 %v398
    %v2539 = vunpack.c.h.b16 %v398
    %v2540 = vunpack.c.l.b16 %v399
    %v2541 = vunpack.c.h.b16 %v399
    %v2542 = vunpack.c.l.b16 %v400
    %v2543 = vunpack.c.h.b16 %v400
    %v2544 = vunpack.c.l.b16 %v401
    %v2545 = vunpack.c.h.b16 %v401
    %v2546 = vunpack.c.l.b16 %v402
    %v2547 = vunpack.c.h.b16 %v402
    %v2548 = vunpack.c.l.b16 %v403
    %v2549 = vunpack.c.h.b16 %v403
    %v2550 = vunpack.c.l.b16 %v404
    %v2551 = vunpack.c.h.b16 %v404
    %v2552 = vunpack.c.l.b16 %v405
    %v2553 = vunpack.c.h.b16 %v405
    %v2554 = vunpack.c.l.b16 %v406
    %v2555 = vunpack.c.h.b16 %v406
    %v2556 = vunpack.c.l.b16 %v407
    %v2557 = vunpack.c.h.b16 %v407
    %v2558 = vunpack.c.l.b16 %v408
    %v2559 = vunpack.c.h.b16 %v408
    %v2560 = vunpack.c.l.b16 %v409
    %v2561 = vunpack.c.h.b16 %v409
    %v2562 = vunpack.c.l.b16 %v410
    %v2563 = vunpack.c.h.b16 %v410
    %v2564 = vunpack.c.l.b16 %v411
    %v2565 = vunpack.c.h.b16 %v411
    %v2566 = vunpack.c.l.b16 %v412
    %v2567 = vunpack.c.h.b16 %v412
    %v2568 = vunpack.c.l.b16 %v413
    %v2569 = vunpack.c.h.b16 %v413
    %v2570 = vunpack.c.l.b16 %v414
    %v2571 = vunpack.c.h.b16 %v414
    %v2572 = vunpack.c.l.b16 %v415
    %v2573 = vunpack.c.h.b16 %v415
    %v2574 = vunpack.c.l.b16 %v416
    %v2575 = vunpack.c.h.b16 %v416
    %v2576 = vunpack.c.l.b16 %v417
    %v2577 = vunpack.c.h.b16 %v417
    %v2578 = vunpack.c.l.b16 %v418
    %v2579 = vunpack.c.h.b16 %v418
    %v2580 = vunpack.c.l.b16 %v419
    %v2581 = vunpack.c.h.b16 %v419
    %v2582 = vunpack.c.l.b16 %v420
    %v2583 = vunpack.c.h.b16 %v420
    %v2584 = vunpack.c.l.b16 %v421
    %v2585 = vunpack.c.h.b16 %v421
    %v2586 = vunpack.c.l.b16 %v422
    %v2587 = vunpack.c.h.b16 %v422
    %v2588 = vunpack.c.l.b16 %v423
    %v2589 = vunpack.c.h.b16 %v423
    %v2590 = vunpack.c.l.b16 %v424
    %v2591 = vunpack.c.h.b16 %v424
    %v2592 = vunpack.c.l.b16 %v425
    %v2593 = vunpack.c.h.b16 %v425
    %v2594 = vunpack.c.l.b16 %v426
    %v2595 = vunpack.c.h.b16 %v426
    %v2596 = vunpack.c.l.b16 %v427
    %v2597 = vunpack.c.h.b16 %v427
    %v2598 = vunpack.c.l.b16 %v428
    %v2599 = vunpack.c.h.b16 %v428
    %v2600 = vunpack.c.l.b16 %v429
    %v2601 = vunpack.c.h.b16 %v429
    %v2602 = vunpack.c.l.b16 %v430
    %v2603 = vunpack.c.h.b16 %v430
    %v2604 = vunpack.c.l.b16 %v431
    %v2605 = vunpack.c.h.b16 %v431
    %v2606 = vunpack.c.l.b16 %v432
    %v2607 = vunpack.c.h.b16 %v432
    %v2608 = vunpack.c.l.b16 %v433
    %v2609 = vunpack.c.h.b16 %v433
    %v2610 = vunpack.c.l.b16 %v434
    %v2611 = vunpack.c.h.b16 %v434
    %v2612 = vunpack.c.l.b16 %v435
    %v2613 = vunpack.c.h.b16 %v435
    %v2614 = vunpack.c.l.b16 %v436
    %v2615 = vunpack.c.h.b16 %v436
    %v2616 = vunpack.c.l.b16 %v437
    %v2617 = vunpack.c.h.b16 %v437
    %v2618 = vunpack.c.l.b16 %v438
    %v2619 = vunpack.c.h.b16 %v438
    %v2620 = vunpack.c.l.b16 %v439
    %v2621 = vunpack.c.h.b16 %v439
    %v2622 = vunpack.c.l.b16 %v440
    %v2623 = vunpack.c.h.b16 %v440
    %v2624 = vunpack.c.l.b16 %v441
    %v2625 = vunpack.c.h.b16 %v441
    %v2626 = vunpack.c.l.b16 %v442
    %v2627 = vunpack.c.h.b16 %v442
    %v2628 = vunpack.c.l.b16 %v443
    %v2629 = vunpack.c.h.b16 %v443
    %v2630 = vunpack.c.l.b16 %v444
    %v2631 = vunpack.c.h.b16 %v444
    %v2632 = vunpack.c.l.b16 %v445
    %v2633 = vunpack.c.h.b16 %v445
    %v2634 = vunpack.c.l.b16 %v446
    %v2635 = vunpack.c.h.b16 %v446
    %v2636 = vunpack.c.l.b16 %v447
    %v2637 = vunpack.c.h.b16 %v447
    %v2638 = vunpack.c.l.b16 %v448
    %v2639 = vunpack.c.h.b16 %v448
    %v2640 = vunpack.c.l.b16 %v449
    %v2641 = vunpack.c.h.b16 %v449
    %v2642 = vunpack.c.l.b16 %v450
    %v2643 = vunpack.c.h.b16 %v450
    %v2644 = vunpack.c.l.b16 %v451
    %v2645 = vunpack.c.h.b16 %v451
    %v2646 = vunpack.c.l.b16 %v452
    %v2647 = vunpack.c.h.b16 %v452
    %v2648 = vunpack.c.l.b16 %v453
    %v2649 = vunpack.c.h.b16 %v453
    %v2650 = vunpack.c.l.b16 %v454
    %v2651 = vunpack.c.h.b16 %v454
    %v2652 = vunpack.c.l.b16 %v455
    %v2653 = vunpack.c.h.b16 %v455
    %v2654 = vunpack.c.l.b16 %v456
    %v2655 = vunpack.c.h.b16 %v456
    %v2656 = vunpack.c.l.b16 %v457
    %v2657 = vunpack.c.h.b16 %v457
    %v2658 = vunpack.c.l.b16 %v458
    %v2659 = vunpack.c.h.b16 %v458
    %v2660 = vunpack.c.l.b16 %v459
    %v2661 = vunpack.c.h.b16 %v459
    %v2662 = vunpack.c.l.b16 %v460
    %v2663 = vunpack.c.h.b16 %v460
    %v2664 = vunpack.c.l.b16 %v461
    %v2665 = vunpack.c.h.b16 %v461
    %v2666 = vunpack.c.l.b16 %v462
    %v2667 = vunpack.c.h.b16 %v462
    %v2668 = vunpack.c.l.b16 %v463
    %v2669 = vunpack.c.h.b16 %v463
    %v2670 = vunpack.c.l.b16 %v464
    %v2671 = vunpack.c.h.b16 %v464
    %v2672 = vunpack.c.l.b16 %v465
    %v2673 = vunpack.c.h.b16 %v465
    %v2674 = vunpack.c.l.b16 %v466
    %v2675 = vunpack.c.h.b16 %v466
    %v2676 = vunpack.c.l.b16 %v467
    %v2677 = vunpack.c.h.b16 %v467
    %v2678 = vunpack.c.l.b16 %v468
    %v2679 = vunpack.c.h.b16 %v468
    %v2680 = vunpack.c.l.b16 %v469
    %v2681 = vunpack.c.h.b16 %v469
    %v2682 = vunpack.c.l.b16 %v470
    %v2683 = vunpack.c.h.b16 %v470
    %v2684 = vunpack.c.l.b16 %v471
    %v2685 = vunpack.c.h.b16 %v471
    %v2686 = vunpack.c.l.b16 %v472
    %v2687 = vunpack.c.h.b16 %v472
    %v2688 = vunpack.c.l.b16 %v473
    %v2689 = vunpack.c.h.b16 %v473
    %v2690 = vunpack.c.l.b16 %v474
    %v2691 = vunpack.c.h.b16 %v474
    %v2692 = vunpack.c.l.b16 %v475
    %v2693 = vunpack.c.h.b16 %v475
    %v2694 = vunpack.c.l.b16 %v476
    %v2695 = vunpack.c.h.b16 %v476
    %v2696 = vunpack.c.l.b16 %v477
    %v2697 = vunpack.c.h.b16 %v477
    %v2698 = vunpack.c.l.b16 %v478
    %v2699 = vunpack.c.h.b16 %v478
    %v2700 = vunpack.c.l.b16 %v479
    %v2701 = vunpack.c.h.b16 %v479
    %v2702 = vunpack.c.l.b16 %v480
    %v2703 = vunpack.c.h.b16 %v480
    %v2704 = vunpack.c.l.b16 %v481
    %v2705 = vunpack.c.h.b16 %v481
    %v2706 = vunpack.c.l.b16 %v482
    %v2707 = vunpack.c.h.b16 %v482
    %v2708 = vunpack.c.l.b16 %v483
    %v2709 = vunpack.c.h.b16 %v483
    %v2710 = vunpack.c.l.b16 %v484
    %v2711 = vunpack.c.h.b16 %v484
    %v2712 = vunpack.c.l.b16 %v485
    %v2713 = vunpack.c.h.b16 %v485
    %v2714 = vunpack.c.l.b16 %v486
    %v2715 = vunpack.c.h.b16 %v486
    %v2716 = vunpack.c.l.b16 %v487
    %v2717 = vunpack.c.h.b16 %v487
    %v2718 = vunpack.c.l.b16 %v488
    %v2719 = vunpack.c.h.b16 %v488
    %v2720 = vunpack.c.l.b16 %v489
    %v2721 = vunpack.c.h.b16 %v489
    %v2722 = vunpack.c.l.b16 %v490
    %v2723 = vunpack.c.h.b16 %v490
    %v2724 = vunpack.c.l.b16 %v491
    %v2725 = vunpack.c.h.b16 %v491
    %v2726 = vunpack.c.l.b16 %v492
    %v2727 = vunpack.c.h.b16 %v492
    %v2728 = vunpack.c.l.b16 %v493
    %v2729 = vunpack.c.h.b16 %v493
    %v2730 = vunpack.c.l.b16 %v494
    %v2731 = vunpack.c.h.b16 %v494
    %v2732 = vunpack.c.l.b16 %v495
    %v2733 = vunpack.c.h.b16 %v495
    %v2734 = vunpack.c.l.b16 %v496
    %v2735 = vunpack.c.h.b16 %v496
    %v2736 = vunpack.c.l.b16 %v497
    %v2737 = vunpack.c.h.b16 %v497
    %v2738 = vunpack.c.l.b16 %v498
    %v2739 = vunpack.c.h.b16 %v498
    %v2740 = vunpack.c.l.b16 %v499
    %v2741 = vunpack.c.h.b16 %v499
    %v2742 = vunpack.c.l.b16 %v500
    %v2743 = vunpack.c.h.b16 %v500
    %v2744 = vunpack.c.l.b16 %v501
    %v2745 = vunpack.c.h.b16 %v501
    %v2746 = vunpack.c.l.b16 %v502
    %v2747 = vunpack.c.h.b16 %v502
    %v2748 = vunpack.c.l.b16 %v503
    %v2749 = vunpack.c.h.b16 %v503
    %v2750 = vunpack.c.l.b16 %v504
    %v2751 = vunpack.c.h.b16 %v504
    %v2752 = vunpack.c.l.b16 %v505
    %v2753 = vunpack.c.h.b16 %v505
    %v2754 = vunpack.c.l.b16 %v506
    %v2755 = vunpack.c.h.b16 %v506
    %v2756 = vunpack.c.l.b16 %v507
    %v2757 = vunpack.c.h.b16 %v507
    %v2758 = vunpack.c.l.b16 %v508
    %v2759 = vunpack.c.h.b16 %v508
    %v2760 = vunpack.c.l.b16 %v509
    %v2761 = vunpack.c.h.b16 %v509
    %v2762 = vunpack.c.l.b16 %v510
    %v2763 = vunpack.c.h.b16 %v510
    %v2764 = vunpack.c.l.b16 %v511
    %v2765 = vunpack.c.h.b16 %v511
    %v2766 = vunpack.c.l.b16 %v512
    %v2767 = vunpack.c.h.b16 %v512
    %v2768 = vunpack.c.l.b16 %v513
    %v2769 = vunpack.c.h.b16 %v513
    %v2770 = vunpack.c.l.b16 %v514
    %v2771 = vunpack.c.h.b16 %v514
    %v2772 = vunpack.c.l.b16 %v515
    %v2773 = vunpack.c.h.b16 %v515
    %v2774 = vunpack.c.l.b16 %v516
    %v2775 = vunpack.c.h.b16 %v516
    %v2776 = vunpack.c.l.b16 %v517
    %v2777 = vunpack.c.h.b16 %v517
    %v2778 = vunpack.c.l.b16 %v518
    %v2779 = vunpack.c.h.b16 %v518
    %v2780 = vunpack.c.l.b16 %v519
    %v2781 = vunpack.c.h.b16 %v519
    %v2782 = vunpack.c.l.b16 %v520
    %v2783 = vunpack.c.h.b16 %v520
    %v2784 = vunpack.c.l.b16 %v521
    %v2785 = vunpack.c.h.b16 %v521
    %v2786 = vunpack.c.l.b16 %v522
    %v2787 = vunpack.c.h.b16 %v522
    %v2788 = vunpack.c.l.b16 %v523
    %v2789 = vunpack.c.h.b16 %v523
    %v2790 = vunpack.c.l.b16 %v524
    %v2791 = vunpack.c.h.b16 %v524
    %v2792 = vunpack.c.l.b16 %v525
    %v2793 = vunpack.c.h.b16 %v525
    %v2794 = vunpack.c.l.b16 %v526
    %v2795 = vunpack.c.h.b16 %v526
    %v2796 = vunpack.c.l.b16 %v527
    %v2797 = vunpack.c.h.b16 %v527
    %v2798 = vunpack.c.l.b16 %v528
    %v2799 = vunpack.c.h.b16 %v528
    %v2800 = vunpack.c.l.b16 %v529
    %v2801 = vunpack.c.h.b16 %v529
    %v2802 = vunpack.c.l.b16 %v530
    %v2803 = vunpack.c.h.b16 %v530
    %v2804 = vunpack.c.l.b16 %v531
    %v2805 = vunpack.c.h.b16 %v531
    %v2806 = vunpack.c.l.b16 %v532
    %v2807 = vunpack.c.h.b16 %v532
    %v2808 = vunpack.c.l.b16 %v533
    %v2809 = vunpack.c.h.b16 %v533
    %v2810 = vunpack.c.l.b16 %v534
    %v2811 = vunpack.c.h.b16 %v534
    %v2812 = vunpack.c.l.b16 %v535
    %v2813 = vunpack.c.h.b16 %v535
    %v2814 = vunpack.c.l.b16 %v536
    %v2815 = vunpack.c.h.b16 %v536
    %v2816 = vunpack.c.l.b16 %v537
    %v2817 = vunpack.c.h.b16 %v537
    %v2818 = vunpack.c.l.b16 %v538
    %v2819 = vunpack.c.h.b16 %v538
    %v2820 = vunpack.c.l.b16 %v539
    %v2821 = vunpack.c.h.b16 %v539
    %v2822 = vunpack.c.l.b16 %v540
    %v2823 = vunpack.c.h.b16 %v540
    %v2824 = vunpack.c.l.b16 %v541
    %v2825 = vunpack.c.h.b16 %v541
    %v2826 = vunpack.c.l.b16 %v542
    %v2827 = vunpack.c.h.b16 %v542
    %v2828 = vunpack.c.l.b16 %v543
    %v2829 = vunpack.c.h.b16 %v543
    %v2830 = vunpack.c.l.b16 %v544
    %v2831 = vunpack.c.h.b16 %v544
    %v2832 = vunpack.c.l.b16 %v545
    %v2833 = vunpack.c.h.b16 %v545
    %v2834 = vunpack.c.l.b16 %v546
    %v2835 = vunpack.c.h.b16 %v546
    %v2836 = vunpack.c.l.b16 %v547
    %v2837 = vunpack.c.h.b16 %v547
    %v2838 = vunpack.c.l.b16 %v548
    %v2839 = vunpack.c.h.b16 %v548
    %v2840 = vunpack.c.l.b16 %v549
    %v2841 = vunpack.c.h.b16 %v549
    %v2842 = vunpack.c.l.b16 %v550
    %v2843 = vunpack.c.h.b16 %v550
    %v2844 = vunpack.c.l.b16 %v551
    %v2845 = vunpack.c.h.b16 %v551
    %v2846 = vunpack.c.l.b16 %v552
    %v2847 = vunpack.c.h.b16 %v552
    %v2848 = vunpack.c.l.b16 %v553
    %v2849 = vunpack.c.h.b16 %v553
    %v2850 = vunpack.c.l.b16 %v554
    %v2851 = vunpack.c.h.b16 %v554
    %v2852 = vunpack.c.l.b16 %v555
    %v2853 = vunpack.c.h.b16 %v555
    %v2854 = vunpack.c.l.b16 %v556
    %v2855 = vunpack.c.h.b16 %v556
    %v2856 = vunpack.c.l.b16 %v557
    %v2857 = vunpack.c.h.b16 %v557
    %v2858 = vunpack.c.l.b16 %v558
    %v2859 = vunpack.c.h.b16 %v558
    %v2860 = vunpack.c.l.b16 %v559
    %v2861 = vunpack.c.h.b16 %v559
    %v2862 = vunpack.c.l.b16 %v560
    %v2863 = vunpack.c.h.b16 %v560
    %v2864 = vunpack.c.l.b16 %v561
    %v2865 = vunpack.c.h.b16 %v561
    %v2866 = vunpack.c.l.b16 %v562
    %v2867 = vunpack.c.h.b16 %v562
    %v2868 = vunpack.c.l.b16 %v563
    %v2869 = vunpack.c.h.b16 %v563
    %v2870 = vunpack.c.l.b16 %v564
    %v2871 = vunpack.c.h.b16 %v564
    %v2872 = vunpack.c.l.b16 %v565
    %v2873 = vunpack.c.h.b16 %v565
    %v2874 = vunpack.c.l.b16 %v566
    %v2875 = vunpack.c.h.b16 %v566
    %v2876 = vunpack.c.l.b16 %v567
    %v2877 = vunpack.c.h.b16 %v567
    %v2878 = vunpack.c.l.b16 %v568
    %v2879 = vunpack.c.h.b16 %v568
    %v2880 = vunpack.c.l.b16 %v569
    %v2881 = vunpack.c.h.b16 %v569
    %v2882 = vunpack.c.l.b16 %v570
    %v2883 = vunpack.c.h.b16 %v570
    %v2884 = vunpack.c.l.b16 %v571
    %v2885 = vunpack.c.h.b16 %v571
    %v2886 = vunpack.c.l.b16 %v572
    %v2887 = vunpack.c.h.b16 %v572
    %v2888 = vunpack.c.l.b16 %v573
    %v2889 = vunpack.c.h.b16 %v573
    %v2890 = vunpack.c.l.b16 %v574
    %v2891 = vunpack.c.h.b16 %v574
    %v2892 = vunpack.c.l.b16 %v575
    %v2893 = vunpack.c.h.b16 %v575
    %v2894 = vunpack.c.l.b16 %v576
    %v2895 = vunpack.c.h.b16 %v576
    %v2896 = vunpack.c.l.b16 %v577
    %v2897 = vunpack.c.h.b16 %v577
    %v2898 = vunpack.c.l.b16 %v578
    %v2899 = vunpack.c.h.b16 %v578
    %v2900 = vunpack.c.l.b16 %v579
    %v2901 = vunpack.c.h.b16 %v579
    %v2902 = vunpack.c.l.b16 %v580
    %v2903 = vunpack.c.h.b16 %v580
    %v2904 = vunpack.c.l.b16 %v581
    %v2905 = vunpack.c.h.b16 %v581
    %v2906 = vunpack.c.l.b16 %v582
    %v2907 = vunpack.c.h.b16 %v582
    %v2908 = vunpack.c.l.b16 %v583
    %v2909 = vunpack.c.h.b16 %v583
    %v2910 = vunpack.c.l.b16 %v584
    %v2911 = vunpack.c.h.b16 %v584
    %v2912 = vunpack.c.l.b16 %v585
    %v2913 = vunpack.c.h.b16 %v585
    %v2914 = vunpack.c.l.b16 %v586
    %v2915 = vunpack.c.h.b16 %v586
    %v2916 = vunpack.c.l.b16 %v587
    %v2917 = vunpack.c.h.b16 %v587
    %v2918 = vunpack.c.l.b16 %v588
    %v2919 = vunpack.c.h.b16 %v588
    %v2920 = vunpack.c.l.b16 %v589
    %v2921 = vunpack.c.h.b16 %v589
    %v2922 = vunpack.c.l.b16 %v590
    %v2923 = vunpack.c.h.b16 %v590
    %v2924 = vunpack.c.l.b16 %v591
    %v2925 = vunpack.c.h.b16 %v591
    %v2926 = vunpack.c.l.b16 %v592
    %v2927 = vunpack.c.h.b16 %v592
    %v2928 = vunpack.c.l.b16 %v593
    %v2929 = vunpack.c.h.b16 %v593
    %v2930 = vunpack.c.l.b16 %v594
    %v2931 = vunpack.c.h.b16 %v594
    %v2932 = vunpack.c.l.b16 %v595
    %v2933 = vunpack.c.h.b16 %v595
    %v2934 = vunpack.c.l.b16 %v596
    %v2935 = vunpack.c.h.b16 %v596
    %v2936 = vunpack.c.l.b16 %v597
    %v2937 = vunpack.c.h.b16 %v597
    %v2938 = vunpack.c.l.b16 %v598
    %v2939 = vunpack.c.h.b16 %v598
    %v2940 = vunpack.c.l.b16 %v599
    %v2941 = vunpack.c.h.b16 %v599
    %v2942 = vunpack.c.l.b16 %v600
    %v2943 = vunpack.c.h.b16 %v600
    %v2944 = vunpack.c.l.b16 %v601
    %v2945 = vunpack.c.h.b16 %v601
    %v2946 = vunpack.c.l.b16 %v602
    %v2947 = vunpack.c.h.b16 %v602
    %v2948 = vunpack.c.l.b16 %v603
    %v2949 = vunpack.c.h.b16 %v603
    %v2950 = vunpack.c.l.b16 %v604
    %v2951 = vunpack.c.h.b16 %v604
    %v2952 = vunpack.c.l.b16 %v605
    %v2953 = vunpack.c.h.b16 %v605
    %v2954 = vunpack.c.l.b16 %v606
    %v2955 = vunpack.c.h.b16 %v606
    %v2956 = vunpack.c.l.b16 %v607
    %v2957 = vunpack.c.h.b16 %v607
    %v2958 = vunpack.c.l.b16 %v608
    %v2959 = vunpack.c.h.b16 %v608
    %v2960 = vunpack.c.l.b16 %v609
    %v2961 = vunpack.c.h.b16 %v609
    %v2962 = vunpack.c.l.b16 %v610
    %v2963 = vunpack.c.h.b16 %v610
    %v2964 = vunpack.c.l.b16 %v611
    %v2965 = vunpack.c.h.b16 %v611
    %v2966 = vunpack.c.l.b16 %v612
    %v2967 = vunpack.c.h.b16 %v612
    %v2968 = vunpack.c.l.b16 %v613
    %v2969 = vunpack.c.h.b16 %v613
    %v2970 = vunpack.c.l.b16 %v614
    %v2971 = vunpack.c.h.b16 %v614
    %v2972 = vunpack.c.l.b16 %v615
    %v2973 = vunpack.c.h.b16 %v615
    %v2974 = vunpack.c.l.b16 %v616
    %v2975 = vunpack.c.h.b16 %v616
    %v2976 = vunpack.c.l.b16 %v617
    %v2977 = vunpack.c.h.b16 %v617
    %v2978 = vunpack.c.l.b16 %v618
    %v2979 = vunpack.c.h.b16 %v618
    %v2980 = vunpack.c.l.b16 %v619
    %v2981 = vunpack.c.h.b16 %v619
    %v2982 = vunpack.c.l.b16 %v620
    %v2983 = vunpack.c.h.b16 %v620
    %v2984 = vunpack.c.l.b16 %v621
    %v2985 = vunpack.c.h.b16 %v621
    %v2986 = vunpack.c.l.b16 %v622
    %v2987 = vunpack.c.h.b16 %v622
    %v2988 = vunpack.c.l.b16 %v623
    %v2989 = vunpack.c.h.b16 %v623
    %v2990 = vunpack.c.l.b16 %v624
    %v2991 = vunpack.c.h.b16 %v624
    %v2992 = vunpack.c.l.b16 %v625
    %v2993 = vunpack.c.h.b16 %v625
    %v2994 = vunpack.c.l.b16 %v626
    %v2995 = vunpack.c.h.b16 %v626
    %v2996 = vunpack.c.l.b16 %v627
    %v2997 = vunpack.c.h.b16 %v627
    %v2998 = vunpack.c.l.b16 %v628
    %v2999 = vunpack.c.h.b16 %v628
    %v3000 = vunpack.c.l.b16 %v629
    %v3001 = vunpack.c.h.b16 %v629
    %v3002 = vunpack.c.l.b16 %v630
    %v3003 = vunpack.c.h.b16 %v630
    %v3004 = vunpack.c.l.b16 %v631
    %v3005 = vunpack.c.h.b16 %v631
    %v3006 = vunpack.c.l.b16 %v632
    %v3007 = vunpack.c.h.b16 %v632
    %v3008 = vunpack.c.l.b16 %v633
    %v3009 = vunpack.c.h.b16 %v633
    %v3010 = vunpack.c.l.b16 %v634
    %v3011 = vunpack.c.h.b16 %v634
    %v3012 = vunpack.c.l.b16 %v635
    %v3013 = vunpack.c.h.b16 %v635
    %v3014 = vunpack.c.l.b16 %v636
    %v3015 = vunpack.c.h.b16 %v636
    %v3016 = vunpack.c.l.b16 %v637
    %v3017 = vunpack.c.h.b16 %v637
    %v3018 = vunpack.c.l.b16 %v638
    %v3019 = vunpack.c.h.b16 %v638
    %v3020 = vunpack.c.l.b16 %v639
    %v3021 = vunpack.c.h.b16 %v639
    %v3022 = vunpack.c.l.b16 %v640
    %v3023 = vunpack.c.h.b16 %v640
    %v3024 = vunpack.c.l.b16 %v641
    %v3025 = vunpack.c.h.b16 %v641
    %v3026 = vunpack.c.l.b16 %v642
    %v3027 = vunpack.c.h.b16 %v642
    %v3028 = vunpack.c.l.b16 %v643
    %v3029 = vunpack.c.h.b16 %v643
    %v3030 = vunpack.c.l.b16 %v644
    %v3031 = vunpack.c.h.b16 %v644
    %v3032 = vunpack.c.l.b16 %v645
    %v3033 = vunpack.c.h.b16 %v645
    %v3034 = vunpack.c.l.b16 %v646
    %v3035 = vunpack.c.h.b16 %v646
    %v3036 = vunpack.c.l.b16 %v647
    %v3037 = vunpack.c.h.b16 %v647
    %v3038 = vunpack.c.l.b16 %v648
    %v3039 = vunpack.c.h.b16 %v648
    %v3040 = vunpack.c.l.b16 %v649
    %v3041 = vunpack.c.h.b16 %v649
    %v3042 = vunpack.c.l.b16 %v650
    %v3043 = vunpack.c.h.b16 %v650
    %v3044 = vunpack.c.l.b16 %v651
    %v3045 = vunpack.c.h.b16 %v651
    %v3046 = vunpack.c.l.b16 %v652
    %v3047 = vunpack.c.h.b16 %v652
    %v3048 = vunpack.c.l.b16 %v653
    %v3049 = vunpack.c.h.b16 %v653
    %v3050 = vunpack.c.l.b16 %v654
    %v3051 = vunpack.c.h.b16 %v654
    %v3052 = vunpack.c.l.b16 %v655
    %v3053 = vunpack.c.h.b16 %v655
    %v3054 = vunpack.c.l.b16 %v656
    %v3055 = vunpack.c.h.b16 %v656
    %v3056 = vunpack.c.l.b16 %v657
    %v3057 = vunpack.c.h.b16 %v657
    %v3058 = vunpack.c.l.b16 %v658
    %v3059 = vunpack.c.h.b16 %v658
    %v3060 = vunpack.c.l.b16 %v659
    %v3061 = vunpack.c.h.b16 %v659
    %v3062 = vunpack.c.l.b16 %v660
    %v3063 = vunpack.c.h.b16 %v660
    %v3064 = vunpack.c.l.b16 %v661
    %v3065 = vunpack.c.h.b16 %v661
    %v3066 = vunpack.c.l.b16 %v662
    %v3067 = vunpack.c.h.b16 %v662
    %v3068 = vunpack.c.l.b16 %v663
    %v3069 = vunpack.c.h.b16 %v663
    %v3070 = vunpack.c.l.b16 %v664
    %v3071 = vunpack.c.h.b16 %v664
    %v3072 = vunpack.c.l.b16 %v665
    %v3073 = vunpack.c.h.b16 %v665
    %v3074 = vunpack.c.l.b16 %v666
    %v3075 = vunpack.c.h.b16 %v666
    %v3076 = vunpack.c.l.b16 %v667
    %v3077 = vunpack.c.h.b16 %v667
    %v3078 = vunpack.c.l.b16 %v668
    %v3079 = vunpack.c.h.b16 %v668
    %v3080 = vunpack.c.l.b16 %v669
    %v3081 = vunpack.c.h.b16 %v669
    %v3082 = vunpack.c.l.b16 %v670
    %v3083 = vunpack.c.h.b16 %v670
    %v3084 = vunpack.c.l.b16 %v671
    %v3085 = vunpack.c.h.b16 %v671
    %v3086 = vunpack.c.l.b16 %v672
    %v3087 = vunpack.c.h.b16 %v672
    %v3088 = vunpack.c.l.b16 %v673
    %v3089 = vunpack.c.h.b16 %v673
    %v3090 = vunpack.c.l.b16 %v674
    %v3091 = vunpack.c.h.b16 %v674
    %v3092 = vunpack.c.l.b16 %v675
    %v3093 = vunpack.c.h.b16 %v675
    %v3094 = vunpack.c.l.b16 %v676
    %v3095 = vunpack.c.h.b16 %v676
    %v3096 = vunpack.c.l.b16 %v677
    %v3097 = vunpack.c.h.b16 %v677
    %v3098 = vunpack.c.l.b16 %v678
    %v3099 = vunpack.c.h.b16 %v678
    %v3100 = vunpack.c.l.b16 %v679
    %v3101 = vunpack.c.h.b16 %v679
    %v3102 = vunpack.c.l.b16 %v680
    %v3103 = vunpack.c.h.b16 %v680
    %v3104 = vunpack.c.l.b16 %v681
    %v3105 = vunpack.c.h.b16 %v681
    %v3106 = vunpack.c.l.b16 %v682
    %v3107 = vunpack.c.h.b16 %v682
    %v3108 = vunpack.c.l.b16 %v683
    %v3109 = vunpack.c.h.b16 %v683
    %v3110 = vunpack.c.l.b16 %v684
    %v3111 = vunpack.c.h.b16 %v684
    %v3112 = vunpack.c.l.b16 %v685
    %v3113 = vunpack.c.h.b16 %v685
    %v3114 = vunpack.c.l.b16 %v686
    %v3115 = vunpack.c.h.b16 %v686
    %v3116 = vunpack.c.l.b16 %v687
    %v3117 = vunpack.c.h.b16 %v687
    %v3118 = vunpack.c.l.b16 %v688
    %v3119 = vunpack.c.h.b16 %v688
    %v3120 = vunpack.c.l.b16 %v689
    %v3121 = vunpack.c.h.b16 %v689
    %v3122 = vunpack.c.l.b16 %v690
    %v3123 = vunpack.c.h.b16 %v690
    %v3124 = vunpack.c.l.b16 %v691
    %v3125 = vunpack.c.h.b16 %v691
    %v3126 = vunpack.c.l.b16 %v692
    %v3127 = vunpack.c.h.b16 %v692
    %v3128 = vunpack.c.l.b16 %v693
    %v3129 = vunpack.c.h.b16 %v693
    %v3130 = vunpack.c.l.b16 %v694
    %v3131 = vunpack.c.h.b16 %v694
    %v3132 = vunpack.c.l.b16 %v695
    %v3133 = vunpack.c.h.b16 %v695
    %v3134 = vunpack.c.l.b16 %v696
    %v3135 = vunpack.c.h.b16 %v696
    %v3136 = vunpack.c.l.b16 %v697
    %v3137 = vunpack.c.h.b16 %v697
    %v3138 = vunpack.c.l.b16 %v698
    %v3139 = vunpack.c.h.b16 %v698
    %v3140 = vunpack.c.l.b16 %v699
    %v3141 = vunpack.c.h.b16 %v699
    %v3142 = vunpack.c.l.b16 %v700
    %v3143 = vunpack.c.h.b16 %v700
    %v3144 = vunpack.c.l.b16 %v701
    %v3145 = vunpack.c.h.b16 %v701
    %v3146 = vunpack.c.l.b16 %v702
    %v3147 = vunpack.c.h.b16 %v702
    %v3148 = vunpack.c.l.b16 %v703
    %v3149 = vunpack.c.h.b16 %v703
    %v3150 = vunpack.c.l.b16 %v704
    %v3151 = vunpack.c.h.b16 %v704
    %v3152 = vunpack.c.l.b16 %v705
    %v3153 = vunpack.c.h.b16 %v705
    %v3154 = vunpack.c.l.b16 %v706
    %v3155 = vunpack.c.h.b16 %v706
    %v3156 = vunpack.c.l.b16 %v707
    %v3157 = vunpack.c.h.b16 %v707
    %v3158 = vunpack.c.l.b16 %v708
    %v3159 = vunpack.c.h.b16 %v708
    %v3160 = vunpack.c.l.b16 %v709
    %v3161 = vunpack.c.h.b16 %v709
    %v3162 = vunpack.c.l.b16 %v710
    %v3163 = vunpack.c.h.b16 %v710
    %v3164 = vunpack.c.l.b16 %v711
    %v3165 = vunpack.c.h.b16 %v711
    %v3166 = vunpack.c.l.b16 %v712
    %v3167 = vunpack.c.h.b16 %v712
    %v3168 = vunpack.c.l.b16 %v713
    %v3169 = vunpack.c.h.b16 %v713
    %v3170 = vunpack.c.l.b16 %v714
    %v3171 = vunpack.c.h.b16 %v714
    %v3172 = vunpack.c.l.b16 %v715
    %v3173 = vunpack.c.h.b16 %v715
    %v3174 = vunpack.c.l.b16 %v716
    %v3175 = vunpack.c.h.b16 %v716
    %v3176 = vunpack.c.l.b16 %v717
    %v3177 = vunpack.c.h.b16 %v717
    %v3178 = vunpack.c.l.b16 %v718
    %v3179 = vunpack.c.h.b16 %v718
    %v3180 = vunpack.c.l.b16 %v719
    %v3181 = vunpack.c.h.b16 %v719
    %v3182 = vunpack.c.l.b16 %v720
    %v3183 = vunpack.c.h.b16 %v720
    %v3184 = vunpack.c.l.b16 %v721
    %v3185 = vunpack.c.h.b16 %v721
    %v3186 = vunpack.c.l.b16 %v722
    %v3187 = vunpack.c.h.b16 %v722
    %v3188 = vunpack.c.l.b16 %v723
    %v3189 = vunpack.c.h.b16 %v723
    %v3190 = vunpack.c.l.b16 %v724
    %v3191 = vunpack.c.h.b16 %v724
    %v3192 = vunpack.c.l.b16 %v725
    %v3193 = vunpack.c.h.b16 %v725
    %v3194 = vunpack.c.l.b16 %v726
    %v3195 = vunpack.c.h.b16 %v726
    %v3196 = vunpack.c.l.b16 %v727
    %v3197 = vunpack.c.h.b16 %v727
    %v3198 = vunpack.c.l.b16 %v728
    %v3199 = vunpack.c.h.b16 %v728
    %v3200 = vunpack.c.l.b16 %v729
    %v3201 = vunpack.c.h.b16 %v729
    %v3202 = vunpack.c.l.b16 %v730
    %v3203 = vunpack.c.h.b16 %v730
    %v3204 = vunpack.c.l.b16 %v731
    %v3205 = vunpack.c.h.b16 %v731
    %v3206 = vunpack.c.l.b16 %v732
    %v3207 = vunpack.c.h.b16 %v732
    %v3208 = vunpack.c.l.b16 %v733
    %v3209 = vunpack.c.h.b16 %v733
    %v3210 = vunpack.c.l.b16 %v734
    %v3211 = vunpack.c.h.b16 %v734
    %v3212 = vunpack.c.l.b16 %v735
    %v3213 = vunpack.c.h.b16 %v735
    %v3214 = vunpack.c.l.b16 %v736
    %v3215 = vunpack.c.h.b16 %v736
    %v3216 = vunpack.c.l.b16 %v737
    %v3217 = vunpack.c.h.b16 %v737
    %v3218 = vunpack.c.l.b16 %v738
    %v3219 = vunpack.c.h.b16 %v738
    %v3220 = vunpack.c.l.b16 %v739
    %v3221 = vunpack.c.h.b16 %v739
    %v3222 = vunpack.c.l.b16 %v740
    %v3223 = vunpack.c.h.b16 %v740
    %v3224 = vunpack.c.l.b16 %v741
    %v3225 = vunpack.c.h.b16 %v741
    %v3226 = vunpack.c.l.b16 %v742
    %v3227 = vunpack.c.h.b16 %v742
    %v3228 = vunpack.c.l.b16 %v743
    %v3229 = vunpack.c.h.b16 %v743
    %v3230 = vunpack.c.l.b16 %v744
    %v3231 = vunpack.c.h.b16 %v744
    %v3232 = vunpack.c.l.b16 %v745
    %v3233 = vunpack.c.h.b16 %v745
    %v3234 = vunpack.c.l.b16 %v746
    %v3235 = vunpack.c.h.b16 %v746
    %v3236 = vunpack.c.l.b16 %v747
    %v3237 = vunpack.c.h.b16 %v747
    %v3238 = vunpack.c.l.b16 %v748
    %v3239 = vunpack.c.h.b16 %v748
    %v3240 = vunpack.c.l.b16 %v749
    %v3241 = vunpack.c.h.b16 %v749
    %v3242 = vunpack.c.l.b16 %v750
    %v3243 = vunpack.c.h.b16 %v750
    %v3244 = vunpack.c.l.b16 %v751
    %v3245 = vunpack.c.h.b16 %v751
    %v3246 = vunpack.c.l.b16 %v752
    %v3247 = vunpack.c.h.b16 %v752
    %v3248 = vunpack.c.l.b16 %v753
    %v3249 = vunpack.c.h.b16 %v753
    %v3250 = vunpack.c.l.b16 %v754
    %v3251 = vunpack.c.h.b16 %v754
    %v3252 = vunpack.c.l.b16 %v755
    %v3253 = vunpack.c.h.b16 %v755
    %v3254 = vunpack.c.l.b16 %v756
    %v3255 = vunpack.c.h.b16 %v756
    %v3256 = vunpack.c.l.b16 %v757
    %v3257 = vunpack.c.h.b16 %v757
    %v3258 = vunpack.c.l.b16 %v758
    %v3259 = vunpack.c.h.b16 %v758
    %v3260 = vunpack.c.l.b16 %v759
    %v3261 = vunpack.c.h.b16 %v759
    %v3262 = vunpack.c.l.b16 %v760
    %v3263 = vunpack.c.h.b16 %v760
    %v3264 = vunpack.c.l.b16 %v761
    %v3265 = vunpack.c.h.b16 %v761
    %v3266 = vunpack.c.l.b16 %v762
    %v3267 = vunpack.c.h.b16 %v762
    %v3268 = vunpack.c.l.b16 %v763
    %v3269 = vunpack.c.h.b16 %v763
    %v3270 = vunpack.c.l.b16 %v764
    %v3271 = vunpack.c.h.b16 %v764
    %v3272 = vunpack.c.l.b16 %v765
    %v3273 = vunpack.c.h.b16 %v765
    %v3274 = vunpack.c.l.b16 %v766
    %v3275 = vunpack.c.h.b16 %v766
    %v3276 = vunpack.c.l.b16 %v767
    %v3277 = vunpack.c.h.b16 %v767
    %v3278 = vunpack.c.l.b16 %v768
    %v3279 = vunpack.c.h.b16 %v768
    %v3280 = vunpack.c.l.b16 %v769
    %v3281 = vunpack.c.h.b16 %v769
    %v3282 = vunpack.c.l.b16 %v770
    %v3283 = vunpack.c.h.b16 %v770
    %v3284 = vunpack.c.l.b16 %v771
    %v3285 = vunpack.c.h.b16 %v771
    %v3286 = vunpack.c.l.b16 %v772
    %v3287 = vunpack.c.h.b16 %v772
    %v3288 = vunpack.c.l.b16 %v773
    %v3289 = vunpack.c.h.b16 %v773
    %v3290 = vunpack.c.l.b16 %v774
    %v3291 = vunpack.c.h.b16 %v774
    %v3292 = vunpack.c.l.b16 %v775
    %v3293 = vunpack.c.h.b16 %v775
    %v3294 = vunpack.c.l.b16 %v776
    %v3295 = vunpack.c.h.b16 %v776
    %v3296 = vunpack.c.l.b16 %v777
    %v3297 = vunpack.c.h.b16 %v777
    %v3298 = vunpack.c.l.b16 %v778
    %v3299 = vunpack.c.h.b16 %v778
    %v3300 = vunpack.c.l.b16 %v779
    %v3301 = vunpack.c.h.b16 %v779
    %v3302 = vunpack.c.l.b16 %v780
    %v3303 = vunpack.c.h.b16 %v780
    %v3304 = vunpack.c.l.b16 %v781
    %v3305 = vunpack.c.h.b16 %v781
    %v3306 = vunpack.c.l.b16 %v782
    %v3307 = vunpack.c.h.b16 %v782
    %v3308 = vunpack.c.l.b16 %v783
    %v3309 = vunpack.c.h.b16 %v783
    %v3310 = vunpack.c.l.b16 %v784
    %v3311 = vunpack.c.h.b16 %v784
    %v3312 = vunpack.c.l.b16 %v785
    %v3313 = vunpack.c.h.b16 %v785
    %v3314 = vunpack.c.l.b16 %v786
    %v3315 = vunpack.c.h.b16 %v786
    %v3316 = vunpack.c.l.b16 %v787
    %v3317 = vunpack.c.h.b16 %v787
    %v3318 = vunpack.c.l.b16 %v788
    %v3319 = vunpack.c.h.b16 %v788
    %v3320 = vunpack.c.l.b16 %v789
    %v3321 = vunpack.c.h.b16 %v789
    %v3322 = vunpack.c.l.b16 %v790
    %v3323 = vunpack.c.h.b16 %v790
    %v3324 = vunpack.c.l.b16 %v791
    %v3325 = vunpack.c.h.b16 %v791
    %v3326 = vunpack.c.l.b16 %v792
    %v3327 = vunpack.c.h.b16 %v792
    %v3328 = vunpack.c.l.b16 %v793
    %v3329 = vunpack.c.h.b16 %v793
    %v3330 = vunpack.c.l.b16 %v794
    %v3331 = vunpack.c.h.b16 %v794
    %v3332 = vunpack.c.l.b16 %v795
    %v3333 = vunpack.c.h.b16 %v795
    %v3334 = vunpack.c.l.b16 %v796
    %v3335 = vunpack.c.h.b16 %v796
    %v3336 = vunpack.c.l.b16 %v797
    %v3337 = vunpack.c.h.b16 %v797
    %v3338 = vunpack.c.l.b16 %v798
    %v3339 = vunpack.c.h.b16 %v798
    %v3340 = vunpack.c.l.b16 %v799
    %v3341 = vunpack.c.h.b16 %v799
    %v3342 = vunpack.c.l.b16 %v800
    %v3343 = vunpack.c.h.b16 %v800
    %v3344 = vunpack.c.l.b16 %v801
    %v3345 = vunpack.c.h.b16 %v801
    %v3346 = vunpack.c.l.b16 %v802
    %v3347 = vunpack.c.h.b16 %v802
    %v3348 = vunpack.c.l.b16 %v803
    %v3349 = vunpack.c.h.b16 %v803
    %v3350 = vunpack.c.l.b16 %v804
    %v3351 = vunpack.c.h.b16 %v804
    %v3352 = vunpack.c.l.b16 %v805
    %v3353 = vunpack.c.h.b16 %v805
    %v3354 = vunpack.c.l.b16 %v806
    %v3355 = vunpack.c.h.b16 %v806
    %v3356 = vunpack.c.l.b16 %v807
    %v3357 = vunpack.c.h.b16 %v807
    %v3358 = vunpack.c.l.b16 %v808
    %v3359 = vunpack.c.h.b16 %v808
    %v3360 = vunpack.c.l.b16 %v809
    %v3361 = vunpack.c.h.b16 %v809
    %v3362 = vunpack.c.l.b16 %v810
    %v3363 = vunpack.c.h.b16 %v810
    %v3364 = vunpack.c.l.b16 %v811
    %v3365 = vunpack.c.h.b16 %v811
    %v3366 = vunpack.c.l.b16 %v812
    %v3367 = vunpack.c.h.b16 %v812
    %v3368 = vunpack.c.l.b16 %v813
    %v3369 = vunpack.c.h.b16 %v813
    %v3370 = vunpack.c.l.b16 %v814
    %v3371 = vunpack.c.h.b16 %v814
    %v3372 = vunpack.c.l.b16 %v815
    %v3373 = vunpack.c.h.b16 %v815
    %v3374 = vunpack.c.l.b16 %v816
    %v3375 = vunpack.c.h.b16 %v816
    %v3376 = vunpack.c.l.b16 %v817
    %v3377 = vunpack.c.h.b16 %v817
    %v3378 = vunpack.c.l.b16 %v818
    %v3379 = vunpack.c.h.b16 %v818
    %v3380 = vunpack.c.l.b16 %v819
    %v3381 = vunpack.c.h.b16 %v819
    %v3382 = vunpack.c.l.b16 %v820
    %v3383 = vunpack.c.h.b16 %v820
    %v3384 = vunpack.c.l.b16 %v821
    %v3385 = vunpack.c.h.b16 %v821
    %v3386 = vunpack.c.l.b16 %v822
    %v3387 = vunpack.c.h.b16 %v822
    %v3388 = vunpack.c.l.b16 %v823
    %v3389 = vunpack.c.h.b16 %v823
    %v3390 = vunpack.c.l.b16 %v824
    %v3391 = vunpack.c.h.b16 %v824
    %v3392 = vunpack.c.l.b16 %v825
    %v3393 = vunpack.c.h.b16 %v825
    %v3394 = vunpack.c.l.b16 %v826
    %v3395 = vunpack.c.h.b16 %v826
    %v3396 = vunpack.c.l.b16 %v827
    %v3397 = vunpack.c.h.b16 %v827
    %v3398 = vunpack.c.l.b16 %v828
    %v3399 = vunpack.c.h.b16 %v828
    %v3400 = vunpack.c.l.b16 %v829
    %v3401 = vunpack.c.h.b16 %v829
    %v3402 = vunpack.c.l.b16 %v830
    %v3403 = vunpack.c.h.b16 %v830
    %v3404 = vunpack.c.l.b16 %v831
    %v3405 = vunpack.c.h.b16 %v831
    %v3406 = vunpack.c.l.b16 %v832
    %v3407 = vunpack.c.h.b16 %v832
    %v3408 = vunpack.c.l.b16 %v833
    %v3409 = vunpack.c.h.b16 %v833
    %v3410 = vunpack.c.l.b16 %v834
    %v3411 = vunpack.c.h.b16 %v834
    %v3412 = vunpack.c.l.b16 %v835
    %v3413 = vunpack.c.h.b16 %v835
    %v3414 = vunpack.c.l.b16 %v836
    %v3415 = vunpack.c.h.b16 %v836
    %v3416 = vunpack.c.l.b16 %v837
    %v3417 = vunpack.c.h.b16 %v837
    %v3418 = vunpack.c.l.b16 %v838
    %v3419 = vunpack.c.h.b16 %v838
    %v3420 = vunpack.c.l.b16 %v839
    %v3421 = vunpack.c.h.b16 %v839
    %v3422 = vunpack.c.l.b16 %v840
    %v3423 = vunpack.c.h.b16 %v840
    %v3424 = vunpack.c.l.b16 %v841
    %v3425 = vunpack.c.h.b16 %v841
    %v3426 = vunpack.c.l.b16 %v842
    %v3427 = vunpack.c.h.b16 %v842
    %v3428 = vunpack.c.l.b16 %v843
    %v3429 = vunpack.c.h.b16 %v843
    %v3430 = vunpack.c.l.b16 %v844
    %v3431 = vunpack.c.h.b16 %v844
    %v3432 = vunpack.c.l.b16 %v845
    %v3433 = vunpack.c.h.b16 %v845
    %v3434 = vunpack.c.l.b16 %v846
    %v3435 = vunpack.c.h.b16 %v846
    %v3436 = vunpack.c.l.b16 %v847
    %v3437 = vunpack.c.h.b16 %v847
    %v3438 = vunpack.c.l.b16 %v848
    %v3439 = vunpack.c.h.b16 %v848
    %v3440 = vunpack.c.l.b16 %v849
    %v3441 = vunpack.c.h.b16 %v849
    %v3442 = vunpack.c.l.b16 %v850
    %v3443 = vunpack.c.h.b16 %v850
    %v3444 = vunpack.c.l.b16 %v851
    %v3445 = vunpack.c.h.b16 %v851
    %v3446 = vunpack.c.l.b16 %v852
    %v3447 = vunpack.c.h.b16 %v852
    %v3448 = vunpack.c.l.b16 %v853
    %v3449 = vunpack.c.h.b16 %v853
    %v3450 = vunpack.c.l.b16 %v854
    %v3451 = vunpack.c.h.b16 %v854
    %v3452 = vunpack.c.l.b16 %v855
    %v3453 = vunpack.c.h.b16 %v855
    %v3454 = vunpack.c.l.b16 %v856
    %v3455 = vunpack.c.h.b16 %v856
    %v3456 = vunpack.c.l.b16 %v857
    %v3457 = vunpack.c.h.b16 %v857
    %v3458 = vunpack.c.l.b16 %v858
    %v3459 = vunpack.c.h.b16 %v858
    %v3460 = vunpack.c.l.b16 %v859
    %v3461 = vunpack.c.h.b16 %v859
    %v3462 = vunpack.c.l.b16 %v860
    %v3463 = vunpack.c.h.b16 %v860
    %v3464 = vunpack.c.l.b16 %v861
    %v3465 = vunpack.c.h.b16 %v861
    %v3466 = vunpack.c.l.b16 %v862
    %v3467 = vunpack.c.h.b16 %v862
    %v3468 = vunpack.c.l.b16 %v863
    %v3469 = vunpack.c.h.b16 %v863
    %v3470 = vunpack.c.l.b16 %v864
    %v3471 = vunpack.c.h.b16 %v864
    %v3472 = vunpack.c.l.b16 %v865
    %v3473 = vunpack.c.h.b16 %v865
    %v3474 = vunpack.c.l.b16 %v866
    %v3475 = vunpack.c.h.b16 %v866
    %v3476 = vunpack.c.l.b16 %v867
    %v3477 = vunpack.c.h.b16 %v867
    %v3478 = vunpack.c.l.b16 %v868
    %v3479 = vunpack.c.h.b16 %v868
    %v3480 = vunpack.c.l.b16 %v869
    %v3481 = vunpack.c.h.b16 %v869
    %v3482 = vunpack.c.l.b16 %v870
    %v3483 = vunpack.c.h.b16 %v870
    %v3484 = vunpack.c.l.b16 %v871
    %v3485 = vunpack.c.h.b16 %v871
    %v3486 = vunpack.c.l.b16 %v872
    %v3487 = vunpack.c.h.b16 %v872
    %v3488 = vunpack.c.l.b16 %v873
    %v3489 = vunpack.c.h.b16 %v873
    %v3490 = vunpack.c.l.b16 %v874
    %v3491 = vunpack.c.h.b16 %v874
    %v3492 = vunpack.c.l.b16 %v875
    %v3493 = vunpack.c.h.b16 %v875
    %v3494 = vunpack.c.l.b16 %v876
    %v3495 = vunpack.c.h.b16 %v876
    %v3496 = vunpack.c.l.b16 %v877
    %v3497 = vunpack.c.h.b16 %v877
    %v3498 = vunpack.c.l.b16 %v878
    %v3499 = vunpack.c.h.b16 %v878
    %v3500 = vunpack.c.l.b16 %v879
    %v3501 = vunpack.c.h.b16 %v879
    %v3502 = vunpack.c.l.b16 %v880
    %v3503 = vunpack.c.h.b16 %v880
    %v3504 = vunpack.c.l.b16 %v881
    %v3505 = vunpack.c.h.b16 %v881
    %v3506 = vunpack.c.l.b16 %v882
    %v3507 = vunpack.c.h.b16 %v882
    %v3508 = vunpack.c.l.b16 %v883
    %v3509 = vunpack.c.h.b16 %v883
    %v3510 = vunpack.c.l.b16 %v884
    %v3511 = vunpack.c.h.b16 %v884
    %v3512 = vunpack.c.l.b16 %v885
    %v3513 = vunpack.c.h.b16 %v885
    %v3514 = vunpack.c.l.b16 %v886
    %v3515 = vunpack.c.h.b16 %v886
    %v3516 = vunpack.c.l.b16 %v887
    %v3517 = vunpack.c.h.b16 %v887
    %v3518 = vunpack.c.l.b16 %v888
    %v3519 = vunpack.c.h.b16 %v888
    %v3520 = vunpack.c.l.b16 %v889
    %v3521 = vunpack.c.h.b16 %v889
    %v3522 = vunpack.c.l.b16 %v890
    %v3523 = vunpack.c.h.b16 %v890
    %v3524 = vunpack.c.l.b16 %v891
    %v3525 = vunpack.c.h.b16 %v891
    %v3526 = vunpack.c.l.b16 %v892
    %v3527 = vunpack.c.h.b16 %v892
    %v3528 = vunpack.c.l.b16 %v893
    %v3529 = vunpack.c.h.b16 %v893
    %v3530 = vunpack.c.l.b16 %v894
    %v3531 = vunpack.c.h.b16 %v894
    %v3532 = vunpack.c.l.b16 %v895
    %v3533 = vunpack.c.h.b16 %v895
    %v3534 = vunpack.c.l.b16 %v896
    %v3535 = vunpack.c.h.b16 %v896
    %v3536 = vunpack.c.l.b16 %v897
    %v3537 = vunpack.c.h.b16 %v897
    %v3538 = vunpack.c.l.b16 %v898
    %v3539 = vunpack.c.h.b16 %v898
    %v3540 = vunpack.c.l.b16 %v899
    %v3541 = vunpack.c.h.b16 %v899
    %v3542 = vunpack.c.l.b16 %v900
    %v3543 = vunpack.c.h.b16 %v900
    %v3544 = vunpack.c.l.b16 %v901
    %v3545 = vunpack.c.h.b16 %v901
    %v3546 = vunpack.c.l.b16 %v902
    %v3547 = vunpack.c.h.b16 %v902
    %v3548 = vunpack.c.l.b16 %v903
    %v3549 = vunpack.c.h.b16 %v903
    %v3550 = vunpack.c.l.b16 %v904
    %v3551 = vunpack.c.h.b16 %v904
    %v3552 = vunpack.c.l.b16 %v905
    %v3553 = vunpack.c.h.b16 %v905
    %v3554 = vunpack.c.l.b16 %v906
    %v3555 = vunpack.c.h.b16 %v906
    %v3556 = vunpack.c.l.b16 %v907
    %v3557 = vunpack.c.h.b16 %v907
    %v3558 = vunpack.c.l.b16 %v908
    %v3559 = vunpack.c.h.b16 %v908
    %v3560 = vunpack.c.l.b16 %v909
    %v3561 = vunpack.c.h.b16 %v909
    %v3562 = vunpack.c.l.b16 %v910
    %v3563 = vunpack.c.h.b16 %v910
    %v3564 = vunpack.c.l.b16 %v911
    %v3565 = vunpack.c.h.b16 %v911
    %v3566 = vunpack.c.l.b16 %v912
    %v3567 = vunpack.c.h.b16 %v912
    %v3568 = vunpack.c.l.b16 %v913
    %v3569 = vunpack.c.h.b16 %v913
    %v3570 = vunpack.c.l.b16 %v914
    %v3571 = vunpack.c.h.b16 %v914
    %v3572 = vunpack.c.l.b16 %v915
    %v3573 = vunpack.c.h.b16 %v915
    %v3574 = vunpack.c.l.b16 %v916
    %v3575 = vunpack.c.h.b16 %v916
    %v3576 = vunpack.c.l.b16 %v917
    %v3577 = vunpack.c.h.b16 %v917
    %v3578 = vunpack.c.l.b16 %v918
    %v3579 = vunpack.c.h.b16 %v918
    %v3580 = vunpack.c.l.b16 %v919
    %v3581 = vunpack.c.h.b16 %v919
    %v3582 = vunpack.c.l.b16 %v920
    %v3583 = vunpack.c.h.b16 %v920
    %v3584 = vunpack.c.l.b16 %v921
    %v3585 = vunpack.c.h.b16 %v921
    %v3586 = vunpack.c.l.b16 %v922
    %v3587 = vunpack.c.h.b16 %v922
    %v3588 = vunpack.c.l.b16 %v923
    %v3589 = vunpack.c.h.b16 %v923
    %v3590 = vunpack.c.l.b16 %v924
    %v3591 = vunpack.c.h.b16 %v924
    %v3592 = vunpack.c.l.b16 %v925
    %v3593 = vunpack.c.h.b16 %v925
    %v3594 = vunpack.c.l.b16 %v926
    %v3595 = vunpack.c.h.b16 %v926
    %v3596 = vunpack.c.l.b16 %v927
    %v3597 = vunpack.c.h.b16 %v927
    %v3598 = vunpack.c.l.b16 %v928
    %v3599 = vunpack.c.h.b16 %v928
    %v3600 = vunpack.c.l.b16 %v929
    %v3601 = vunpack.c.h.b16 %v929
    %v3602 = vunpack.c.l.b16 %v930
    %v3603 = vunpack.c.h.b16 %v930
    %v3604 = vunpack.c.l.b16 %v931
    %v3605 = vunpack.c.h.b16 %v931
    %v3606 = vunpack.c.l.b16 %v932
    %v3607 = vunpack.c.h.b16 %v932
    %v3608 = vunpack.c.l.b16 %v933
    %v3609 = vunpack.c.h.b16 %v933
    %v3610 = vunpack.c.l.b16 %v934
    %v3611 = vunpack.c.h.b16 %v934
    %v3612 = vunpack.c.l.b16 %v935
    %v3613 = vunpack.c.h.b16 %v935
    %v3614 = vunpack.c.l.b16 %v936
    %v3615 = vunpack.c.h.b16 %v936
    %v3616 = vunpack.c.l.b16 %v937
    %v3617 = vunpack.c.h.b16 %v937
    %v3618 = vunpack.c.l.b16 %v938
    %v3619 = vunpack.c.h.b16 %v938
    %v3620 = vunpack.c.l.b16 %v939
    %v3621 = vunpack.c.h.b16 %v939
    %v3622 = vunpack.c.l.b16 %v940
    %v3623 = vunpack.c.h.b16 %v940
    %v3624 = vunpack.c.l.b16 %v941
    %v3625 = vunpack.c.h.b16 %v941
    %v3626 = vunpack.c.l.b16 %v942
    %v3627 = vunpack.c.h.b16 %v942
    %v3628 = vunpack.c.l.b16 %v943
    %v3629 = vunpack.c.h.b16 %v943
    %v3630 = vunpack.c.l.b16 %v944
    %v3631 = vunpack.c.h.b16 %v944
    %v3632 = vunpack.c.l.b16 %v945
    %v3633 = vunpack.c.h.b16 %v945
    %v3634 = vunpack.c.l.b16 %v946
    %v3635 = vunpack.c.h.b16 %v946
    %v3636 = vunpack.c.l.b16 %v947
    %v3637 = vunpack.c.h.b16 %v947
    %v3638 = vunpack.c.l.b16 %v948
    %v3639 = vunpack.c.h.b16 %v948
    %v3640 = vunpack.c.l.b16 %v949
    %v3641 = vunpack.c.h.b16 %v949
    %v3642 = vunpack.c.l.b16 %v950
    %v3643 = vunpack.c.h.b16 %v950
    %v3644 = vunpack.c.l.b16 %v951
    %v3645 = vunpack.c.h.b16 %v951
    %v3646 = vunpack.c.l.b16 %v952
    %v3647 = vunpack.c.h.b16 %v952
    %v3648 = vunpack.c.l.b16 %v953
    %v3649 = vunpack.c.h.b16 %v953
    %v3650 = vunpack.c.l.b16 %v954
    %v3651 = vunpack.c.h.b16 %v954
    %v3652 = vunpack.c.l.b16 %v955
    %v3653 = vunpack.c.h.b16 %v955
    %v3654 = vunpack.c.l.b16 %v956
    %v3655 = vunpack.c.h.b16 %v956
    %v3656 = vunpack.c.l.b16 %v957
    %v3657 = vunpack.c.h.b16 %v957
    %v3658 = vunpack.c.l.b16 %v958
    %v3659 = vunpack.c.h.b16 %v958
    %v3660 = vunpack.c.l.b16 %v959
    %v3661 = vunpack.c.h.b16 %v959
    %v3662 = vunpack.c.l.b16 %v960
    %v3663 = vunpack.c.h.b16 %v960
    %v3664 = vunpack.c.l.b16 %v961
    %v3665 = vunpack.c.h.b16 %v961
    %v3666 = vunpack.c.l.b16 %v962
    %v3667 = vunpack.c.h.b16 %v962
    %v3668 = vunpack.c.l.b16 %v963
    %v3669 = vunpack.c.h.b16 %v963
    %v3670 = vunpack.c.l.b16 %v964
    %v3671 = vunpack.c.h.b16 %v964
    %v3672 = vunpack.c.l.b16 %v965
    %v3673 = vunpack.c.h.b16 %v965
    %v3674 = vunpack.c.l.b16 %v966
    %v3675 = vunpack.c.h.b16 %v966
    %v3676 = vunpack.c.l.b16 %v967
    %v3677 = vunpack.c.h.b16 %v967
    %v3678 = vunpack.c.l.b16 %v968
    %v3679 = vunpack.c.h.b16 %v968
    %v3680 = vunpack.c.l.b16 %v969
    %v3681 = vunpack.c.h.b16 %v969
    %v3682 = vunpack.c.l.b16 %v970
    %v3683 = vunpack.c.h.b16 %v970
    %v3684 = vunpack.c.l.b16 %v971
    %v3685 = vunpack.c.h.b16 %v971
    %v3686 = vunpack.c.l.b16 %v972
    %v3687 = vunpack.c.h.b16 %v972
    %v3688 = vunpack.c.l.b16 %v973
    %v3689 = vunpack.c.h.b16 %v973
    %v3690 = vunpack.c.l.b16 %v974
    %v3691 = vunpack.c.h.b16 %v974
    %v3692 = vunpack.c.l.b16 %v975
    %v3693 = vunpack.c.h.b16 %v975
    %v3694 = vunpack.c.l.b16 %v976
    %v3695 = vunpack.c.h.b16 %v976
    %v3696 = vunpack.c.l.b16 %v977
    %v3697 = vunpack.c.h.b16 %v977
    %v3698 = vunpack.c.l.b16 %v978
    %v3699 = vunpack.c.h.b16 %v978
    %v3700 = vunpack.c.l.b16 %v979
    %v3701 = vunpack.c.h.b16 %v979
    %v3702 = vunpack.c.l.b16 %v980
    %v3703 = vunpack.c.h.b16 %v980
    %v3704 = vunpack.c.l.b16 %v981
    %v3705 = vunpack.c.h.b16 %v981
    %v3706 = vunpack.c.l.b16 %v982
    %v3707 = vunpack.c.h.b16 %v982
    %v3708 = vunpack.c.l.b16 %v983
    %v3709 = vunpack.c.h.b16 %v983
    %v3710 = vunpack.c.l.b16 %v984
    %v3711 = vunpack.c.h.b16 %v984
    %v3712 = vunpack.c.l.b16 %v985
    %v3713 = vunpack.c.h.b16 %v985
    %v3714 = vunpack.c.l.b16 %v986
    %v3715 = vunpack.c.h.b16 %v986
    %v3716 = vunpack.c.l.b16 %v987
    %v3717 = vunpack.c.h.b16 %v987
    %v3718 = vunpack.c.l.b16 %v988
    %v3719 = vunpack.c.h.b16 %v988
    %v3720 = vunpack.c.l.b16 %v989
    %v3721 = vunpack.c.h.b16 %v989
    %v3722 = vunpack.c.l.b16 %v990
    %v3723 = vunpack.c.h.b16 %v990
    %v3724 = vunpack.c.l.b16 %v991
    %v3725 = vunpack.c.h.b16 %v991
    %v3726 = vunpack.c.l.b16 %v992
    %v3727 = vunpack.c.h.b16 %v992
    %v3728 = vunpack.c.l.b16 %v993
    %v3729 = vunpack.c.h.b16 %v993
    %v3730 = vunpack.c.l.b16 %v994
    %v3731 = vunpack.c.h.b16 %v994
    %v3732 = vunpack.c.l.b16 %v995
    %v3733 = vunpack.c.h.b16 %v995
    %v3734 = vunpack.c.l.b16 %v996
    %v3735 = vunpack.c.h.b16 %v996
    %v3736 = vunpack.c.l.b16 %v997
    %v3737 = vunpack.c.h.b16 %v997
    %v3738 = vunpack.c.l.b16 %v998
    %v3739 = vunpack.c.h.b16 %v998
    %v3740 = vunpack.c.l.b16 %v999
    %v3741 = vunpack.c.h.b16 %v999
    %v3742 = vunpack.c.l.b16 %v1000
    %v3743 = vunpack.c.h.b16 %v1000
    %v3744 = vunpack.c.l.b16 %v1001
    %v3745 = vunpack.c.h.b16 %v1001
    %v3746 = vunpack.c.l.b16 %v1002
    %v3747 = vunpack.c.h.b16 %v1002
    %v3748 = vunpack.c.l.b16 %v1003
    %v3749 = vunpack.c.h.b16 %v1003
    %v3750 = vunpack.c.l.b16 %v1004
    %v3751 = vunpack.c.h.b16 %v1004
    %v3752 = vunpack.c.l.b16 %v1005
    %v3753 = vunpack.c.h.b16 %v1005
    %v3754 = vunpack.c.l.b16 %v1006
    %v3755 = vunpack.c.h.b16 %v1006
    %v3756 = vunpack.c.l.b16 %v1007
    %v3757 = vunpack.c.h.b16 %v1007
    %v3758 = vunpack.c.l.b16 %v1008
    %v3759 = vunpack.c.h.b16 %v1008
    %v3760 = vunpack.c.l.b16 %v1009
    %v3761 = vunpack.c.h.b16 %v1009
    %v3762 = vunpack.c.l.b16 %v1010
    %v3763 = vunpack.c.h.b16 %v1010
    %v3764 = vunpack.c.l.b16 %v1011
    %v3765 = vunpack.c.h.b16 %v1011
    %v3766 = vunpack.c.l.b16 %v1012
    %v3767 = vunpack.c.h.b16 %v1012
    %v3768 = vunpack.c.l.b16 %v1013
    %v3769 = vunpack.c.h.b16 %v1013
    %v3770 = vunpack.c.l.b16 %v1014
    %v3771 = vunpack.c.h.b16 %v1014
    %v3772 = vunpack.c.l.b16 %v1015
    %v3773 = vunpack.c.h.b16 %v1015
    %v3774 = vunpack.c.l.b16 %v1016
    %v3775 = vunpack.c.h.b16 %v1016
    %v3776 = vunpack.c.l.b16 %v1017
    %v3777 = vunpack.c.h.b16 %v1017
    %v3778 = vunpack.c.l.b16 %v1018
    %v3779 = vunpack.c.h.b16 %v1018
    %v3780 = vunpack.c.l.b16 %v1019
    %v3781 = vunpack.c.h.b16 %v1019
    %v3782 = vunpack.c.l.b16 %v1020
    %v3783 = vunpack.c.h.b16 %v1020
    %v3784 = vunpack.c.l.b16 %v1021
    %v3785 = vunpack.c.h.b16 %v1021
    %v3786 = vunpack.c.l.b16 %v1022
    %v3787 = vunpack.c.h.b16 %v1022
    %v3788 = vunpack.c.l.b16 %v1023
    %v3789 = vunpack.c.h.b16 %v1023
    %v3790 = vpack.c.b16 %v2044, %v2026
    %v3791 = vpack.c.b16 %v2045, %v2027
    %v3792 = vpack.c.b16 %v2046, %v2028
    %v3793 = vpack.c.b16 %v2047, %v2029
    %v3794 = vpack.c.b16 %v2048, %v2030
    %v3795 = vpack.c.b16 %v2049, %v2031
    %v3796 = vpack.c.b16 %v2050, %v2032
    %v3797 = vpack.c.b16 %v2051, %v2033
    %v3798 = vpack.c.b16 %v2052, %v2034
    %v3799 = vpack.c.b16 %v2053, %v2035
    %v3800 = vpack.c.b16 %v2054, %v2036
    %v3801 = vpack.c.b16 %v2055, %v2037
    %v3802 = vpack.c.b16 %v2056, %v2038
    %v3803 = vpack.c.b16 %v2057, %v2039
    %v3804 = vpack.c.b16 %v2058, %v2040
    %v3805 = vpack.c.b16 %v2059, %v2041
    %v3806 = vpack.c.b16 %v2060, %v2042
    %v3807 = vpack.c.b16 %v2061, %v2043
    %v3808 = vpack.c.b16 %v2080, %v2062
    %v3809 = vpack.c.b16 %v2081, %v2063
    %v3810 = vpack.c.b16 %v2082, %v2064
    %v3811 = vpack.c.b16 %v2083, %v2065
    %v3812 = vpack.c.b16 %v2084, %v2066
    %v3813 = vpack.c.b16 %v2085, %v2067
    %v3814 = vpack.c.b16 %v2086, %v2068
    %v3815 = vpack.c.b16 %v2087, %v2069
    %v3816 = vpack.c.b16 %v2088, %v2070
    %v3817 = vpack.c.b16 %v2089, %v2071
    %v3818 = vpack.c.b16 %v2090, %v2072
    %v3819 = vpack.c.b16 %v2091, %v2073
    %v3820 = vpack.c.b16 %v2092, %v2074
    %v3821 = vpack.c.b16 %v2093, %v2075
    %v3822 = vpack.c.b16 %v2094, %v2076
    %v3823 = vpack.c.b16 %v2095, %v2077
    %v3824 = vpack.c.b16 %v2096, %v2078
    %v3825 = vpack.c.b16 %v2097, %v2079
    %v3826 = vpack.c.b16 %v2116, %v2098
    %v3827 = vpack.c.b16 %v2117, %v2099
    %v3828 = vpack.c.b16 %v2118, %v2100
    %v3829 = vpack.c.b16 %v2119, %v2101
    %v3830 = vpack.c.b16 %v2120, %v2102
    %v3831 = vpack.c.b16 %v2121, %v2103
    %v3832 = vpack.c.b16 %v2122, %v2104
    %v3833 = vpack.c.b16 %v2123, %v2105
    %v3834 = vpack.c.b16 %v2124, %v2106
    %v3835 = vpack.c.b16 %v2125, %v2107
    %v3836 = vpack.c.b16 %v2126, %v2108
    %v3837 = vpack.c.b16 %v2127, %v2109
    %v3838 = vpack.c.b16 %v2128, %v2110
    %v3839 = vpack.c.b16 %v2129, %v2111
    %v3840 = vpack.c.b16 %v2130, %v2112
    %v3841 = vpack.c.b16 %v2131, %v2113
    %v3842 = vpack.c.b16 %v2132, %v2114
    %v3843 = vpack.c.b16 %v2133, %v2115
    %v3844 = vpack.c.b16 %v2152, %v2134
    %v3845 = vpack.c.b16 %v2153, %v2135
    %v3846 = vpack.c.b16 %v2154, %v2136
    %v3847 = vpack.c.b16 %v2155, %v2137
    %v3848 = vpack.c.b16 %v2156, %v2138
    %v3849 = vpack.c.b16 %v2157, %v2139
    %v3850 = vpack.c.b16 %v2158, %v2140
    %v3851 = vpack.c.b16 %v2159, %v2141
    %v3852 = vpack.c.b16 %v2160, %v2142
    %v3853 = vpack.c.b16 %v2161, %v2143
    %v3854 = vpack.c.b16 %v2162, %v2144
    %v3855 = vpack.c.b16 %v2163, %v2145
    %v3856 = vpack.c.b16 %v2164, %v2146
    %v3857 = vpack.c.b16 %v2165, %v2147
    %v3858 = vpack.c.b16 %v2166, %v2148
    %v3859 = vpack.c.b16 %v2167, %v2149
    %v3860 = vpack.c.b16 %v2168, %v2150
    %v3861 = vpack.c.b16 %v2169, %v2151
    %v3862 = vpack.c.b16 %v2188, %v2170
    %v3863 = vpack.c.b16 %v2189, %v2171
    %v3864 = vpack.c.b16 %v2190, %v2172
    %v3865 = vpack.c.b16 %v2191, %v2173
    %v3866 = vpack.c.b16 %v2192, %v2174
    %v3867 = vpack.c.b16 %v2193, %v2175
    %v3868 = vpack.c.b16 %v2194, %v2176
    %v3869 = vpack.c.b16 %v2195, %v2177
    %v3870 = vpack.c.b16 %v2196, %v2178
    %v3871 = vpack.c.b16 %v2197, %v2179
    %v3872 = vpack.c.b16 %v2198, %v2180
    %v3873 = vpack.c.b16 %v2199, %v2181
    %v3874 = vpack.c.b16 %v2200, %v2182
    %v3875 = vpack.c.b16 %v2201, %v2183
    %v3876 = vpack.c.b16 %v2202, %v2184
    %v3877 = vpack.c.b16 %v2203, %v2185
    %v3878 = vpack.c.b16 %v2204, %v2186
    %v3879 = vpack.c.b16 %v2205, %v2187
    %v3880 = vpack.c.b16 %v2224, %v2206
    %v3881 = vpack.c.b16 %v2225, %v2207
    %v3882 = vpack.c.b16 %v2226, %v2208
    %v3883 = vpack.c.b16 %v2227, %v2209
    %v3884 = vpack.c.b16 %v2228, %v2210
    %v3885 = vpack.c.b16 %v2229, %v2211
    %v3886 = vpack.c.b16 %v2230, %v2212
    %v3887 = vpack.c.b16 %v2231, %v2213
    %v3888 = vpack.c.b16 %v2232, %v2214
    %v3889 = vpack.c.b16 %v2233, %v2215
    %v3890 = vpack.c.b16 %v2234, %v2216
    %v3891 = vpack.c.b16 %v2235, %v2217
    %v3892 = vpack.c.b16 %v2236, %v2218
    %v3893 = vpack.c.b16 %v2237, %v2219
    %v3894 = vpack.c.b16 %v2238, %v2220
    %v3895 = vpack.c.b16 %v2239, %v2221
    %v3896 = vpack.c.b16 %v2240, %v2222
    %v3897 = vpack.c.b16 %v2241, %v2223
    %v3898 = vpack.c.b16 %v2260, %v2242
    %v3899 = vpack.c.b16 %v2261, %v2243
    %v3900 = vpack.c.b16 %v2262, %v2244
    %v3901 = vpack.c.b16 %v2263, %v2245
    %v3902 = vpack.c.b16 %v2264, %v2246
    %v3903 = vpack.c.b16 %v2265, %v2247
    %v3904 = vpack.c.b16 %v2266, %v2248
    %v3905 = vpack.c.b16 %v2267, %v2249
    %v3906 = vpack.c.b16 %v2268, %v2250
    %v3907 = vpack.c.b16 %v2269, %v2251
    %v3908 = vpack.c.b16 %v2270, %v2252
    %v3909 = vpack.c.b16 %v2271, %v2253
    %v3910 = vpack.c.b16 %v2272, %v2254
    %v3911 = vpack.c.b16 %v2273, %v2255
    %v3912 = vpack.c.b16 %v2274, %v2256
    %v3913 = vpack.c.b16 %v2275, %v2257
    %v3914 = vpack.c.b16 %v2276, %v2258
    %v3915 = vpack.c.b16 %v2277, %v2259
    %v3916 = vpack.c.b16 %v2296, %v2278
    %v3917 = vpack.c.b16 %v2297, %v2279
    %v3918 = vpack.c.b16 %v2298, %v2280
    %v3919 = vpack.c.b16 %v2299, %v2281
    %v3920 = vpack.c.b16 %v2300, %v2282
    %v3921 = vpack.c.b16 %v2301, %v2283
    %v3922 = vpack.c.b16 %v2302, %v2284
    %v3923 = vpack.c.b16 %v2303, %v2285
    %v3924 = vpack.c.b16 %v2304, %v2286
    %v3925 = vpack.c.b16 %v2305, %v2287
    %v3926 = vpack.c.b16 %v2306, %v2288
    %v3927 = vpack.c.b16 %v2307, %v2289
    %v3928 = vpack.c.b16 %v2308, %v2290
    %v3929 = vpack.c.b16 %v2309, %v2291
    %v3930 = vpack.c.b16 %v2310, %v2292
    %v3931 = vpack.c.b16 %v2311, %v2293
    %v3932 = vpack.c.b16 %v2312, %v2294
    %v3933 = vpack.c.b16 %v2313, %v2295
    %v3934 = vpack.c.b16 %v2332, %v2314
    %v3935 = vpack.c.b16 %v2333, %v2315
    %v3936 = vpack.c.b16 %v2334, %v2316
    %v3937 = vpack.c.b16 %v2335, %v2317
    %v3938 = vpack.c.b16 %v2336, %v2318
    %v3939 = vpack.c.b16 %v2337, %v2319
    %v3940 = vpack.c.b16 %v2338, %v2320
    %v3941 = vpack.c.b16 %v2339, %v2321
    %v3942 = vpack.c.b16 %v2340, %v2322
    %v3943 = vpack.c.b16 %v2341, %v2323
    %v3944 = vpack.c.b16 %v2342, %v2324
    %v3945 = vpack.c.b16 %v2343, %v2325
    %v3946 = vpack.c.b16 %v2344, %v2326
    %v3947 = vpack.c.b16 %v2345, %v2327
    %v3948 = vpack.c.b16 %v2346, %v2328
    %v3949 = vpack.c.b16 %v2347, %v2329
    %v3950 = vpack.c.b16 %v2348, %v2330
    %v3951 = vpack.c.b16 %v2349, %v2331
    %v3952 = vpack.c.b16 %v2368, %v2350
    %v3953 = vpack.c.b16 %v2369, %v2351
    %v3954 = vpack.c.b16 %v2370, %v2352
    %v3955 = vpack.c.b16 %v2371, %v2353
    %v3956 = vpack.c.b16 %v2372, %v2354
    %v3957 = vpack.c.b16 %v2373, %v2355
    %v3958 = vpack.c.b16 %v2374, %v2356
    %v3959 = vpack.c.b16 %v2375, %v2357
    %v3960 = vpack.c.b16 %v2376, %v2358
    %v3961 = vpack.c.b16 %v2377, %v2359
    %v3962 = vpack.c.b16 %v2378, %v2360
    %v3963 = vpack.c.b16 %v2379, %v2361
    %v3964 = vpack.c.b16 %v2380, %v2362
    %v3965 = vpack.c.b16 %v2381, %v2363
    %v3966 = vpack.c.b16 %v2382, %v2364
    %v3967 = vpack.c.b16 %v2383, %v2365
    %v3968 = vpack.c.b16 %v2384, %v2366
    %v3969 = vpack.c.b16 %v2385, %v2367
    %v3970 = vpack.c.b16 %v2404, %v2386
    %v3971 = vpack.c.b16 %v2405, %v2387
    %v3972 = vpack.c.b16 %v2406, %v2388
    %v3973 = vpack.c.b16 %v2407, %v2389
    %v3974 = vpack.c.b16 %v2408, %v2390
    %v3975 = vpack.c.b16 %v2409, %v2391
    %v3976 = vpack.c.b16 %v2410, %v2392
    %v3977 = vpack.c.b16 %v2411, %v2393
    %v3978 = vpack.c.b16 %v2412, %v2394
    %v3979 = vpack.c.b16 %v2413, %v2395
    %v3980 = vpack.c.b16 %v2414, %v2396
    %v3981 = vpack.c.b16 %v2415, %v2397
    %v3982 = vpack.c.b16 %v2416, %v2398
    %v3983 = vpack.c.b16 %v2417, %v2399
    %v3984 = vpack.c.b16 %v2418, %v2400
    %v3985 = vpack.c.b16 %v2419, %v2401
    %v3986 = vpack.c.b16 %v2420, %v2402
    %v3987 = vpack.c.b16 %v2421, %v2403
    %v3988 = vpack.c.b16 %v2440, %v2422
    %v3989 = vpack.c.b16 %v2441, %v2423
    %v3990 = vpack.c.b16 %v2442, %v2424
    %v3991 = vpack.c.b16 %v2443, %v2425
    %v3992 = vpack.c.b16 %v2444, %v2426
    %v3993 = vpack.c.b16 %v2445, %v2427
    %v3994 = vpack.c.b16 %v2446, %v2428
    %v3995 = vpack.c.b16 %v2447, %v2429
    %v3996 = vpack.c.b16 %v2448, %v2430
    %v3997 = vpack.c.b16 %v2449, %v2431
    %v3998 = vpack.c.b16 %v2450, %v2432
    %v3999 = vpack.c.b16 %v2451, %v2433
    %v4000 = vpack.c.b16 %v2452, %v2434
    %v4001 = vpack.c.b16 %v2453, %v2435
    %v4002 = vpack.c.b16 %v2454, %v2436
    %v4003 = vpack.c.b16 %v2455, %v2437
    %v4004 = vpack.c.b16 %v2456, %v2438
    %v4005 = vpack.c.b16 %v2457, %v2439
    %v4006 = vpack.c.b16 %v2476, %v2458
    %v4007 = vpack.c.b16 %v2477, %v2459
    %v4008 = vpack.c.b16 %v2478, %v2460
    %v4009 = vpack.c.b16 %v2479, %v2461
    %v4010 = vpack.c.b16 %v2480, %v2462
    %v4011 = vpack.c.b16 %v2481, %v2463
    %v4012 = vpack.c.b16 %v2482, %v2464
    %v4013 = vpack.c.b16 %v2483, %v2465
    %v4014 = vpack.c.b16 %v2484, %v2466
    %v4015 = vpack.c.b16 %v2485, %v2467
    %v4016 = vpack.c.b16 %v2486, %v2468
    %v4017 = vpack.c.b16 %v2487, %v2469
    %v4018 = vpack.c.b16 %v2488, %v2470
    %v4019 = vpack.c.b16 %v2489, %v2471
    %v4020 = vpack.c.b16 %v2490, %v2472
    %v4021 = vpack.c.b16 %v2491, %v2473
    %v4022 = vpack.c.b16 %v2492, %v2474
    %v4023 = vpack.c.b16 %v2493, %v2475
    %v4024 = vpack.c.b16 %v2512, %v2494
    %v4025 = vpack.c.b16 %v2513, %v2495
    %v4026 = vpack.c.b16 %v2514, %v2496
    %v4027 = vpack.c.b16 %v2515, %v2497
    %v4028 = vpack.c.b16 %v2516, %v2498
    %v4029 = vpack.c.b16 %v2517, %v2499
    %v4030 = vpack.c.b16 %v2518, %v2500
    %v4031 = vpack.c.b16 %v2519, %v2501
    %v4032 = vpack.c.b16 %v2520, %v2502
    %v4033 = vpack.c.b16 %v2521, %v2503
    %v4034 = vpack.c.b16 %v2522, %v2504
    %v4035 = vpack.c.b16 %v2523, %v2505
    %v4036 = vpack.c.b16 %v2524, %v2506
    %v4037 = vpack.c.b16 %v2525, %v2507
    %v4038 = vpack.c.b16 %v2526, %v2508
    %v4039 = vpack.c.b16 %v2527, %v2509
    %v4040 = vpack.c.b16 %v2528, %v2510
    %v4041 = vpack.c.b16 %v2529, %v2511
    %v4042 = vpack.c.b16 %v2548, %v2530
    %v4043 = vpack.c.b16 %v2549, %v2531
    %v4044 = vpack.c.b16 %v2550, %v2532
    %v4045 = vpack.c.b16 %v2551, %v2533
    %v4046 = vpack.c.b16 %v2552, %v2534
    %v4047 = vpack.c.b16 %v2553, %v2535
    %v4048 = vpack.c.b16 %v2554, %v2536
    %v4049 = vpack.c.b16 %v2555, %v2537
    %v4050 = vpack.c.b16 %v2556, %v2538
    %v4051 = vpack.c.b16 %v2557, %v2539
    %v4052 = vpack.c.b16 %v2558, %v2540
    %v4053 = vpack.c.b16 %v2559, %v2541
    %v4054 = vpack.c.b16 %v2560, %v2542
    %v4055 = vpack.c.b16 %v2561, %v2543
    %v4056 = vpack.c.b16 %v2562, %v2544
    %v4057 = vpack.c.b16 %v2563, %v2545
    %v4058 = vpack.c.b16 %v2564, %v2546
    %v4059 = vpack.c.b16 %v2565, %v2547
    %v4060 = vpack.c.b16 %v2584, %v2566
    %v4061 = vpack.c.b16 %v2585, %v2567
    %v4062 = vpack.c.b16 %v2586, %v2568
    %v4063 = vpack.c.b16 %v2587, %v2569
    %v4064 = vpack.c.b16 %v2588, %v2570
    %v4065 = vpack.c.b16 %v2589, %v2571
    %v4066 = vpack.c.b16 %v2590, %v2572
    %v4067 = vpack.c.b16 %v2591, %v2573
    %v4068 = vpack.c.b16 %v2592, %v2574
    %v4069 = vpack.c.b16 %v2593, %v2575
    %v4070 = vpack.c.b16 %v2594, %v2576
    %v4071 = vpack.c.b16 %v2595, %v2577
    %v4072 = vpack.c.b16 %v2596, %v2578
    %v4073 = vpack.c.b16 %v2597, %v2579
    %v4074 = vpack.c.b16 %v2598, %v2580
    %v4075 = vpack.c.b16 %v2599, %v2581
    %v4076 = vpack.c.b16 %v2600, %v2582
    %v4077 = vpack.c.b16 %v2601, %v2583
    %v4078 = vpack.c.b16 %v2620, %v2602
    %v4079 = vpack.c.b16 %v2621, %v2603
    %v4080 = vpack.c.b16 %v2622, %v2604
    %v4081 = vpack.c.b16 %v2623, %v2605
    %v4082 = vpack.c.b16 %v2624, %v2606
    %v4083 = vpack.c.b16 %v2625, %v2607
    %v4084 = vpack.c.b16 %v2626, %v2608
    %v4085 = vpack.c.b16 %v2627, %v2609
    %v4086 = vpack.c.b16 %v2628, %v2610
    %v4087 = vpack.c.b16 %v2629, %v2611
    %v4088 = vpack.c.b16 %v2630, %v2612
    %v4089 = vpack.c.b16 %v2631, %v2613
    %v4090 = vpack.c.b16 %v2632, %v2614
    %v4091 = vpack.c.b16 %v2633, %v2615
    %v4092 = vpack.c.b16 %v2634, %v2616
    %v4093 = vpack.c.b16 %v2635, %v2617
    %v4094 = vpack.c.b16 %v2636, %v2618
    %v4095 = vpack.c.b16 %v2637, %v2619
    %v4096 = vpack.c.b16 %v2656, %v2638
    %v4097 = vpack.c.b16 %v2657, %v2639
    %v4098 = vpack.c.b16 %v2658, %v2640
    %v4099 = vpack.c.b16 %v2659, %v2641
    %v4100 = vpack.c.b16 %v2660, %v2642
    %v4101 = vpack.c.b16 %v2661, %v2643
    %v4102 = vpack.c.b16 %v2662, %v2644
    %v4103 = vpack.c.b16 %v2663, %v2645
    %v4104 = vpack.c.b16 %v2664, %v2646
    %v4105 = vpack.c.b16 %v2665, %v2647
    %v4106 = vpack.c.b16 %v2666, %v2648
    %v4107 = vpack.c.b16 %v2667, %v2649
    %v4108 = vpack.c.b16 %v2668, %v2650
    %v4109 = vpack.c.b16 %v2669, %v2651
    %v4110 = vpack.c.b16 %v2670, %v2652
    %v4111 = vpack.c.b16 %v2671, %v2653
    %v4112 = vpack.c.b16 %v2672, %v2654
    %v4113 = vpack.c.b16 %v2673, %v2655
    %v4114 = vpack.c.b16 %v2692, %v2674
    %v4115 = vpack.c.b16 %v2693, %v2675
    %v4116 = vpack.c.b16 %v2694, %v2676
    %v4117 = vpack.c.b16 %v2695, %v2677
    %v4118 = vpack.c.b16 %v2696, %v2678
    %v4119 = vpack.c.b16 %v2697, %v2679
    %v4120 = vpack.c.b16 %v2698, %v2680
    %v4121 = vpack.c.b16 %v2699, %v2681
    %v4122 = vpack.c.b16 %v2700, %v2682
    %v4123 = vpack.c.b16 %v2701, %v2683
    %v4124 = vpack.c.b16 %v2702, %v2684
    %v4125 = vpack.c.b16 %v2703, %v2685
    %v4126 = vpack.c.b16 %v2704, %v2686
    %v4127 = vpack.c.b16 %v2705, %v2687
    %v4128 = vpack.c.b16 %v2706, %v2688
    %v4129 = vpack.c.b16 %v2707, %v2689
    %v4130 = vpack.c.b16 %v2708, %v2690
    %v4131 = vpack.c.b16 %v2709, %v2691
    %v4132 = vpack.c.b16 %v2728, %v2710
    %v4133 = vpack.c.b16 %v2729, %v2711
    %v4134 = vpack.c.b16 %v2730, %v2712
    %v4135 = vpack.c.b16 %v2731, %v2713
    %v4136 = vpack.c.b16 %v2732, %v2714
    %v4137 = vpack.c.b16 %v2733, %v2715
    %v4138 = vpack.c.b16 %v2734, %v2716
    %v4139 = vpack.c.b16 %v2735, %v2717
    %v4140 = vpack.c.b16 %v2736, %v2718
    %v4141 = vpack.c.b16 %v2737, %v2719
    %v4142 = vpack.c.b16 %v2738, %v2720
    %v4143 = vpack.c.b16 %v2739, %v2721
    %v4144 = vpack.c.b16 %v2740, %v2722
    %v4145 = vpack.c.b16 %v2741, %v2723
    %v4146 = vpack.c.b16 %v2742, %v2724
    %v4147 = vpack.c.b16 %v2743, %v2725
    %v4148 = vpack.c.b16 %v2744, %v2726
    %v4149 = vpack.c.b16 %v2745, %v2727
    %v4150 = vpack.c.b16 %v2764, %v2746
    %v4151 = vpack.c.b16 %v2765, %v2747
    %v4152 = vpack.c.b16 %v2766, %v2748
    %v4153 = vpack.c.b16 %v2767, %v2749
    %v4154 = vpack.c.b16 %v2768, %v2750
    %v4155 = vpack.c.b16 %v2769, %v2751
    %v4156 = vpack.c.b16 %v2770, %v2752
    %v4157 = vpack.c.b16 %v2771, %v2753
    %v4158 = vpack.c.b16 %v2772, %v2754
    %v4159 = vpack.c.b16 %v2773, %v2755
    %v4160 = vpack.c.b16 %v2774, %v2756
    %v4161 = vpack.c.b16 %v2775, %v2757
    %v4162 = vpack.c.b16 %v2776, %v2758
    %v4163 = vpack.c.b16 %v2777, %v2759
    %v4164 = vpack.c.b16 %v2778, %v2760
    %v4165 = vpack.c.b16 %v2779, %v2761
    %v4166 = vpack.c.b16 %v2780, %v2762
    %v4167 = vpack.c.b16 %v2781, %v2763
    %v4168 = vpack.c.b16 %v2800, %v2782
    %v4169 = vpack.c.b16 %v2801, %v2783
    %v4170 = vpack.c.b16 %v2802, %v2784
    %v4171 = vpack.c.b16 %v2803, %v2785
    %v4172 = vpack.c.b16 %v2804, %v2786
    %v4173 = vpack.c.b16 %v2805, %v2787
    %v4174 = vpack.c.b16 %v2806, %v2788
    %v4175 = vpack.c.b16 %v2807, %v2789
    %v4176 = vpack.c.b16 %v2808, %v2790
    %v4177 = vpack.c.b16 %v2809, %v2791
    %v4178 = vpack.c.b16 %v2810, %v2792
    %v4179 = vpack.c.b16 %v2811, %v2793
    %v4180 = vpack.c.b16 %v2812, %v2794
    %v4181 = vpack.c.b16 %v2813, %v2795
    %v4182 = vpack.c.b16 %v2814, %v2796
    %v4183 = vpack.c.b16 %v2815, %v2797
    %v4184 = vpack.c.b16 %v2816, %v2798
    %v4185 = vpack.c.b16 %v2817, %v2799
    %v4186 = vpack.c.b16 %v2836, %v2818
    %v4187 = vpack.c.b16 %v2837, %v2819
    %v4188 = vpack.c.b16 %v2838, %v2820
    %v4189 = vpack.c.b16 %v2839, %v2821
    %v4190 = vpack.c.b16 %v2840, %v2822
    %v4191 = vpack.c.b16 %v2841, %v2823
    %v4192 = vpack.c.b16 %v2842, %v2824
    %v4193 = vpack.c.b16 %v2843, %v2825
    %v4194 = vpack.c.b16 %v2844, %v2826
    %v4195 = vpack.c.b16 %v2845, %v2827
    %v4196 = vpack.c.b16 %v2846, %v2828
    %v4197 = vpack.c.b16 %v2847, %v2829
    %v4198 = vpack.c.b16 %v2848, %v2830
    %v4199 = vpack.c.b16 %v2849, %v2831
    %v4200 = vpack.c.b16 %v2850, %v2832
    %v4201 = vpack.c.b16 %v2851, %v2833
    %v4202 = vpack.c.b16 %v2852, %v2834
    %v4203 = vpack.c.b16 %v2853, %v2835
    %v4204 = vpack.c.b16 %v2872, %v2854
    %v4205 = vpack.c.b16 %v2873, %v2855
    %v4206 = vpack.c.b16 %v2874, %v2856
    %v4207 = vpack.c.b16 %v2875, %v2857
    %v4208 = vpack.c.b16 %v2876, %v2858
    %v4209 = vpack.c.b16 %v2877, %v2859
    %v4210 = vpack.c.b16 %v2878, %v2860
    %v4211 = vpack.c.b16 %v2879, %v2861
    %v4212 = vpack.c.b16 %v2880, %v2862
    %v4213 = vpack.c.b16 %v2881, %v2863
    %v4214 = vpack.c.b16 %v2882, %v2864
    %v4215 = vpack.c.b16 %v2883, %v2865
    %v4216 = vpack.c.b16 %v2884, %v2866
    %v4217 = vpack.c.b16 %v2885, %v2867
    %v4218 = vpack.c.b16 %v2886, %v2868
    %v4219 = vpack.c.b16 %v2887, %v2869
    %v4220 = vpack.c.b16 %v2888, %v2870
    %v4221 = vpack.c.b16 %v2889, %v2871
    %v4222 = vpack.c.b16 %v2908, %v2890
    %v4223 = vpack.c.b16 %v2909, %v2891
    %v4224 = vpack.c.b16 %v2910, %v2892
    %v4225 = vpack.c.b16 %v2911, %v2893
    %v4226 = vpack.c.b16 %v2912, %v2894
    %v4227 = vpack.c.b16 %v2913, %v2895
    %v4228 = vpack.c.b16 %v2914, %v2896
    %v4229 = vpack.c.b16 %v2915, %v2897
    %v4230 = vpack.c.b16 %v2916, %v2898
    %v4231 = vpack.c.b16 %v2917, %v2899
    %v4232 = vpack.c.b16 %v2918, %v2900
    %v4233 = vpack.c.b16 %v2919, %v2901
    %v4234 = vpack.c.b16 %v2920, %v2902
    %v4235 = vpack.c.b16 %v2921, %v2903
    %v4236 = vpack.c.b16 %v2922, %v2904
    %v4237 = vpack.c.b16 %v2923, %v2905
    %v4238 = vpack.c.b16 %v2924, %v2906
    %v4239 = vpack.c.b16 %v2925, %v2907
    %v4240 = vpack.c.b16 %v2944, %v2926
    %v4241 = vpack.c.b16 %v2945, %v2927
    %v4242 = vpack.c.b16 %v2946, %v2928
    %v4243 = vpack.c.b16 %v2947, %v2929
    %v4244 = vpack.c.b16 %v2948, %v2930
    %v4245 = vpack.c.b16 %v2949, %v2931
    %v4246 = vpack.c.b16 %v2950, %v2932
    %v4247 = vpack.c.b16 %v2951, %v2933
    %v4248 = vpack.c.b16 %v2952, %v2934
    %v4249 = vpack.c.b16 %v2953, %v2935
    %v4250 = vpack.c.b16 %v2954, %v2936
    %v4251 = vpack.c.b16 %v2955, %v2937
    %v4252 = vpack.c.b16 %v2956, %v2938
    %v4253 = vpack.c.b16 %v2957, %v2939
    %v4254 = vpack.c.b16 %v2958, %v2940
    %v4255 = vpack.c.b16 %v2959, %v2941
    %v4256 = vpack.c.b16 %v2960, %v2942
    %v4257 = vpack.c.b16 %v2961, %v2943
    %v4258 = vpack.c.b16 %v2980, %v2962
    %v4259 = vpack.c.b16 %v2981, %v2963
    %v4260 = vpack.c.b16 %v2982, %v2964
    %v4261 = vpack.c.b16 %v2983, %v2965
    %v4262 = vpack.c.b16 %v2984, %v2966
    %v4263 = vpack.c.b16 %v2985, %v2967
    %v4264 = vpack.c.b16 %v2986, %v2968
    %v4265 = vpack.c.b16 %v2987, %v2969
    %v4266 = vpack.c.b16 %v2988, %v2970
    %v4267 = vpack.c.b16 %v2989, %v2971
    %v4268 = vpack.c.b16 %v2990, %v2972
    %v4269 = vpack.c.b16 %v2991, %v2973
    %v4270 = vpack.c.b16 %v2992, %v2974
    %v4271 = vpack.c.b16 %v2993, %v2975
    %v4272 = vpack.c.b16 %v2994, %v2976
    %v4273 = vpack.c.b16 %v2995, %v2977
    %v4274 = vpack.c.b16 %v2996, %v2978
    %v4275 = vpack.c.b16 %v2997, %v2979
    %v4276 = vpack.c.b16 %v3016, %v2998
    %v4277 = vpack.c.b16 %v3017, %v2999
    %v4278 = vpack.c.b16 %v3018, %v3000
    %v4279 = vpack.c.b16 %v3019, %v3001
    %v4280 = vpack.c.b16 %v3020, %v3002
    %v4281 = vpack.c.b16 %v3021, %v3003
    %v4282 = vpack.c.b16 %v3022, %v3004
    %v4283 = vpack.c.b16 %v3023, %v3005
    %v4284 = vpack.c.b16 %v3024, %v3006
    %v4285 = vpack.c.b16 %v3025, %v3007
    %v4286 = vpack.c.b16 %v3026, %v3008
    %v4287 = vpack.c.b16 %v3027, %v3009
    %v4288 = vpack.c.b16 %v3028, %v3010
    %v4289 = vpack.c.b16 %v3029, %v3011
    %v4290 = vpack.c.b16 %v3030, %v3012
    %v4291 = vpack.c.b16 %v3031, %v3013
    %v4292 = vpack.c.b16 %v3032, %v3014
    %v4293 = vpack.c.b16 %v3033, %v3015
    %v4294 = vpack.c.b16 %v3052, %v3034
    %v4295 = vpack.c.b16 %v3053, %v3035
    %v4296 = vpack.c.b16 %v3054, %v3036
    %v4297 = vpack.c.b16 %v3055, %v3037
    %v4298 = vpack.c.b16 %v3056, %v3038
    %v4299 = vpack.c.b16 %v3057, %v3039
    %v4300 = vpack.c.b16 %v3058, %v3040
    %v4301 = vpack.c.b16 %v3059, %v3041
    %v4302 = vpack.c.b16 %v3060, %v3042
    %v4303 = vpack.c.b16 %v3061, %v3043
    %v4304 = vpack.c.b16 %v3062, %v3044
    %v4305 = vpack.c.b16 %v3063, %v3045
    %v4306 = vpack.c.b16 %v3064, %v3046
    %v4307 = vpack.c.b16 %v3065, %v3047
    %v4308 = vpack.c.b16 %v3066, %v3048
    %v4309 = vpack.c.b16 %v3067, %v3049
    %v4310 = vpack.c.b16 %v3068, %v3050
    %v4311 = vpack.c.b16 %v3069, %v3051
    %v4312 = vpack.c.b16 %v3088, %v3070
    %v4313 = vpack.c.b16 %v3089, %v3071
    %v4314 = vpack.c.b16 %v3090, %v3072
    %v4315 = vpack.c.b16 %v3091, %v3073
    %v4316 = vpack.c.b16 %v3092, %v3074
    %v4317 = vpack.c.b16 %v3093, %v3075
    %v4318 = vpack.c.b16 %v3094, %v3076
    %v4319 = vpack.c.b16 %v3095, %v3077
    %v4320 = vpack.c.b16 %v3096, %v3078
    %v4321 = vpack.c.b16 %v3097, %v3079
    %v4322 = vpack.c.b16 %v3098, %v3080
    %v4323 = vpack.c.b16 %v3099, %v3081
    %v4324 = vpack.c.b16 %v3100, %v3082
    %v4325 = vpack.c.b16 %v3101, %v3083
    %v4326 = vpack.c.b16 %v3102, %v3084
    %v4327 = vpack.c.b16 %v3103, %v3085
    %v4328 = vpack.c.b16 %v3104, %v3086
    %v4329 = vpack.c.b16 %v3105, %v3087
    %v4330 = vpack.c.b16 %v3124, %v3106
    %v4331 = vpack.c.b16 %v3125, %v3107
    %v4332 = vpack.c.b16 %v3126, %v3108
    %v4333 = vpack.c.b16 %v3127, %v3109
    %v4334 = vpack.c.b16 %v3128, %v3110
    %v4335 = vpack.c.b16 %v3129, %v3111
    %v4336 = vpack.c.b16 %v3130, %v3112
    %v4337 = vpack.c.b16 %v3131, %v3113
    %v4338 = vpack.c.b16 %v3132, %v3114
    %v4339 = vpack.c.b16 %v3133, %v3115
    %v4340 = vpack.c.b16 %v3134, %v3116
    %v4341 = vpack.c.b16 %v3135, %v3117
    %v4342 = vpack.c.b16 %v3136, %v3118
    %v4343 = vpack.c.b16 %v3137, %v3119
    %v4344 = vpack.c.b16 %v3138, %v3120
    %v4345 = vpack.c.b16 %v3139, %v3121
    %v4346 = vpack.c.b16 %v3140, %v3122
    %v4347 = vpack.c.b16 %v3141, %v3123
    %v4348 = vpack.c.b16 %v3160, %v3142
    %v4349 = vpack.c.b16 %v3161, %v3143
    %v4350 = vpack.c.b16 %v3162, %v3144
    %v4351 = vpack.c.b16 %v3163, %v3145
    %v4352 = vpack.c.b16 %v3164, %v3146
    %v4353 = vpack.c.b16 %v3165, %v3147
    %v4354 = vpack.c.b16 %v3166, %v3148
    %v4355 = vpack.c.b16 %v3167, %v3149
    %v4356 = vpack.c.b16 %v3168, %v3150
    %v4357 = vpack.c.b16 %v3169, %v3151
    %v4358 = vpack.c.b16 %v3170, %v3152
    %v4359 = vpack.c.b16 %v3171, %v3153
    %v4360 = vpack.c.b16 %v3172, %v3154
    %v4361 = vpack.c.b16 %v3173, %v3155
    %v4362 = vpack.c.b16 %v3174, %v3156
    %v4363 = vpack.c.b16 %v3175, %v3157
    %v4364 = vpack.c.b16 %v3176, %v3158
    %v4365 = vpack.c.b16 %v3177, %v3159
    %v4366 = vpack.c.b16 %v3196, %v3178
    %v4367 = vpack.c.b16 %v3197, %v3179
    %v4368 = vpack.c.b16 %v3198, %v3180
    %v4369 = vpack.c.b16 %v3199, %v3181
    %v4370 = vpack.c.b16 %v3200, %v3182
    %v4371 = vpack.c.b16 %v3201, %v3183
    %v4372 = vpack.c.b16 %v3202, %v3184
    %v4373 = vpack.c.b16 %v3203, %v3185
    %v4374 = vpack.c.b16 %v3204, %v3186
    %v4375 = vpack.c.b16 %v3205, %v3187
    %v4376 = vpack.c.b16 %v3206, %v3188
    %v4377 = vpack.c.b16 %v3207, %v3189
    %v4378 = vpack.c.b16 %v3208, %v3190
    %v4379 = vpack.c.b16 %v3209, %v3191
    %v4380 = vpack.c.b16 %v3210, %v3192
    %v4381 = vpack.c.b16 %v3211, %v3193
    %v4382 = vpack.c.b16 %v3212, %v3194
    %v4383 = vpack.c.b16 %v3213, %v3195
    %v4384 = vpack.c.b16 %v3232, %v3214
    %v4385 = vpack.c.b16 %v3233, %v3215
    %v4386 = vpack.c.b16 %v3234, %v3216
    %v4387 = vpack.c.b16 %v3235, %v3217
    %v4388 = vpack.c.b16 %v3236, %v3218
    %v4389 = vpack.c.b16 %v3237, %v3219
    %v4390 = vpack.c.b16 %v3238, %v3220
    %v4391 = vpack.c.b16 %v3239, %v3221
    %v4392 = vpack.c.b16 %v3240, %v3222
    %v4393 = vpack.c.b16 %v3241, %v3223
    %v4394 = vpack.c.b16 %v3242, %v3224
    %v4395 = vpack.c.b16 %v3243, %v3225
    %v4396 = vpack.c.b16 %v3244, %v3226
    %v4397 = vpack.c.b16 %v3245, %v3227
    %v4398 = vpack.c.b16 %v3246, %v3228
    %v4399 = vpack.c.b16 %v3247, %v3229
    %v4400 = vpack.c.b16 %v3248, %v3230
    %v4401 = vpack.c.b16 %v3249, %v3231
    %v4402 = vpack.c.b16 %v3268, %v3250
    %v4403 = vpack.c.b16 %v3269, %v3251
    %v4404 = vpack.c.b16 %v3270, %v3252
    %v4405 = vpack.c.b16 %v3271, %v3253
    %v4406 = vpack.c.b16 %v3272, %v3254
    %v4407 = vpack.c.b16 %v3273, %v3255
    %v4408 = vpack.c.b16 %v3274, %v3256
    %v4409 = vpack.c.b16 %v3275, %v3257
    %v4410 = vpack.c.b16 %v3276, %v3258
    %v4411 = vpack.c.b16 %v3277, %v3259
    %v4412 = vpack.c.b16 %v3278, %v3260
    %v4413 = vpack.c.b16 %v3279, %v3261
    %v4414 = vpack.c.b16 %v3280, %v3262
    %v4415 = vpack.c.b16 %v3281, %v3263
    %v4416 = vpack.c.b16 %v3282, %v3264
    %v4417 = vpack.c.b16 %v3283, %v3265
    %v4418 = vpack.c.b16 %v3284, %v3266
    %v4419 = vpack.c.b16 %v3285, %v3267
    %v4420 = vpack.c.b16 %v3304, %v3286
    %v4421 = vpack.c.b16 %v3305, %v3287
    %v4422 = vpack.c.b16 %v3306, %v3288
    %v4423 = vpack.c.b16 %v3307, %v3289
    %v4424 = vpack.c.b16 %v3308, %v3290
    %v4425 = vpack.c.b16 %v3309, %v3291
    %v4426 = vpack.c.b16 %v3310, %v3292
    %v4427 = vpack.c.b16 %v3311, %v3293
    %v4428 = vpack.c.b16 %v3312, %v3294
    %v4429 = vpack.c.b16 %v3313, %v3295
    %v4430 = vpack.c.b16 %v3314, %v3296
    %v4431 = vpack.c.b16 %v3315, %v3297
    %v4432 = vpack.c.b16 %v3316, %v3298
    %v4433 = vpack.c.b16 %v3317, %v3299
    %v4434 = vpack.c.b16 %v3318, %v3300
    %v4435 = vpack.c.b16 %v3319, %v3301
    %v4436 = vpack.c.b16 %v3320, %v3302
    %v4437 = vpack.c.b16 %v3321, %v3303
    %v4438 = vpack.c.b16 %v3340, %v3322
    %v4439 = vpack.c.b16 %v3341, %v3323
    %v4440 = vpack.c.b16 %v3342, %v3324
    %v4441 = vpack.c.b16 %v3343, %v3325
    %v4442 = vpack.c.b16 %v3344, %v3326
    %v4443 = vpack.c.b16 %v3345, %v3327
    %v4444 = vpack.c.b16 %v3346, %v3328
    %v4445 = vpack.c.b16 %v3347, %v3329
    %v4446 = vpack.c.b16 %v3348, %v3330
    %v4447 = vpack.c.b16 %v3349, %v3331
    %v4448 = vpack.c.b16 %v3350, %v3332
    %v4449 = vpack.c.b16 %v3351, %v3333
    %v4450 = vpack.c.b16 %v3352, %v3334
    %v4451 = vpack.c.b16 %v3353, %v3335
    %v4452 = vpack.c.b16 %v3354, %v3336
    %v4453 = vpack.c.b16 %v3355, %v3337
    %v4454 = vpack.c.b16 %v3356, %v3338
    %v4455 = vpack.c.b16 %v3357, %v3339
    %v4456 = vpack.c.b16 %v3376, %v3358
    %v4457 = vpack.c.b16 %v3377, %v3359
    %v4458 = vpack.c.b16 %v3378, %v3360
    %v4459 = vpack.c.b16 %v3379, %v3361
    %v4460 = vpack.c.b16 %v3380, %v3362
    %v4461 = vpack.c.b16 %v3381, %v3363
    %v4462 = vpack.c.b16 %v3382, %v3364
    %v4463 = vpack.c.b16 %v3383, %v3365
    %v4464 = vpack.c.b16 %v3384, %v3366
    %v4465 = vpack.c.b16 %v3385, %v3367
    %v4466 = vpack.c.b16 %v3386, %v3368
    %v4467 = vpack.c.b16 %v3387, %v3369
    %v4468 = vpack.c.b16 %v3388, %v3370
    %v4469 = vpack.c.b16 %v3389, %v3371
    %v4470 = vpack.c.b16 %v3390, %v3372
    %v4471 = vpack.c.b16 %v3391, %v3373
    %v4472 = vpack.c.b16 %v3392, %v3374
    %v4473 = vpack.c.b16 %v3393, %v3375
    %v4474 = vpack.c.b16 %v3412, %v3394
    %v4475 = vpack.c.b16 %v3413, %v3395
    %v4476 = vpack.c.b16 %v3414, %v3396
    %v4477 = vpack.c.b16 %v3415, %v3397
    %v4478 = vpack.c.b16 %v3416, %v3398
    %v4479 = vpack.c.b16 %v3417, %v3399
    %v4480 = vpack.c.b16 %v3418, %v3400
    %v4481 = vpack.c.b16 %v3419, %v3401
    %v4482 = vpack.c.b16 %v3420, %v3402
    %v4483 = vpack.c.b16 %v3421, %v3403
    %v4484 = vpack.c.b16 %v3422, %v3404
    %v4485 = vpack.c.b16 %v3423, %v3405
    %v4486 = vpack.c.b16 %v3424, %v3406
    %v4487 = vpack.c.b16 %v3425, %v3407
    %v4488 = vpack.c.b16 %v3426, %v3408
    %v4489 = vpack.c.b16 %v3427, %v3409
    %v4490 = vpack.c.b16 %v3428, %v3410
    %v4491 = vpack.c.b16 %v3429, %v3411
    %v4492 = vpack.c.b16 %v3448, %v3430
    %v4493 = vpack.c.b16 %v3449, %v3431
    %v4494 = vpack.c.b16 %v3450, %v3432
    %v4495 = vpack.c.b16 %v3451, %v3433
    %v4496 = vpack.c.b16 %v3452, %v3434
    %v4497 = vpack.c.b16 %v3453, %v3435
    %v4498 = vpack.c.b16 %v3454, %v3436
    %v4499 = vpack.c.b16 %v3455, %v3437
    %v4500 = vpack.c.b16 %v3456, %v3438
    %v4501 = vpack.c.b16 %v3457, %v3439
    %v4502 = vpack.c.b16 %v3458, %v3440
    %v4503 = vpack.c.b16 %v3459, %v3441
    %v4504 = vpack.c.b16 %v3460, %v3442
    %v4505 = vpack.c.b16 %v3461, %v3443
    %v4506 = vpack.c.b16 %v3462, %v3444
    %v4507 = vpack.c.b16 %v3463, %v3445
    %v4508 = vpack.c.b16 %v3464, %v3446
    %v4509 = vpack.c.b16 %v3465, %v3447
    %v4510 = vpack.c.b16 %v3484, %v3466
    %v4511 = vpack.c.b16 %v3485, %v3467
    %v4512 = vpack.c.b16 %v3486, %v3468
    %v4513 = vpack.c.b16 %v3487, %v3469
    %v4514 = vpack.c.b16 %v3488, %v3470
    %v4515 = vpack.c.b16 %v3489, %v3471
    %v4516 = vpack.c.b16 %v3490, %v3472
    %v4517 = vpack.c.b16 %v3491, %v3473
    %v4518 = vpack.c.b16 %v3492, %v3474
    %v4519 = vpack.c.b16 %v3493, %v3475
    %v4520 = vpack.c.b16 %v3494, %v3476
    %v4521 = vpack.c.b16 %v3495, %v3477
    %v4522 = vpack.c.b16 %v3496, %v3478
    %v4523 = vpack.c.b16 %v3497, %v3479
    %v4524 = vpack.c.b16 %v3498, %v3480
    %v4525 = vpack.c.b16 %v3499, %v3481
    %v4526 = vpack.c.b16 %v3500, %v3482
    %v4527 = vpack.c.b16 %v3501, %v3483
    %v4528 = vpack.c.b16 %v3520, %v3502
    %v4529 = vpack.c.b16 %v3521, %v3503
    %v4530 = vpack.c.b16 %v3522, %v3504
    %v4531 = vpack.c.b16 %v3523, %v3505
    %v4532 = vpack.c.b16 %v3524, %v3506
    %v4533 = vpack.c.b16 %v3525, %v3507
    %v4534 = vpack.c.b16 %v3526, %v3508
    %v4535 = vpack.c.b16 %v3527, %v3509
    %v4536 = vpack.c.b16 %v3528, %v3510
    %v4537 = vpack.c.b16 %v3529, %v3511
    %v4538 = vpack.c.b16 %v3530, %v3512
    %v4539 = vpack.c.b16 %v3531, %v3513
    %v4540 = vpack.c.b16 %v3532, %v3514
    %v4541 = vpack.c.b16 %v3533, %v3515
    %v4542 = vpack.c.b16 %v3534, %v3516
    %v4543 = vpack.c.b16 %v3535, %v3517
    %v4544 = vpack.c.b16 %v3536, %v3518
    %v4545 = vpack.c.b16 %v3537, %v3519
    %v4546 = vpack.c.b16 %v3556, %v3538
    %v4547 = vpack.c.b16 %v3557, %v3539
    %v4548 = vpack.c.b16 %v3558, %v3540
    %v4549 = vpack.c.b16 %v3559, %v3541
    %v4550 = vpack.c.b16 %v3560, %v3542
    %v4551 = vpack.c.b16 %v3561, %v3543
    %v4552 = vpack.c.b16 %v3562, %v3544
    %v4553 = vpack.c.b16 %v3563, %v3545
    %v4554 = vpack.c.b16 %v3564, %v3546
    %v4555 = vpack.c.b16 %v3565, %v3547
    %v4556 = vpack.c.b16 %v3566, %v3548
    %v4557 = vpack.c.b16 %v3567, %v3549
    %v4558 = vpack.c.b16 %v3568, %v3550
    %v4559 = vpack.c.b16 %v3569, %v3551
    %v4560 = vpack.c.b16 %v3570, %v3552
    %v4561 = vpack.c.b16 %v3571, %v3553
    %v4562 = vpack.c.b16 %v3572, %v3554
    %v4563 = vpack.c.b16 %v3573, %v3555
    %v4564 = vpack.c.b16 %v3592, %v3574
    %v4565 = vpack.c.b16 %v3593, %v3575
    %v4566 = vpack.c.b16 %v3594, %v3576
    %v4567 = vpack.c.b16 %v3595, %v3577
    %v4568 = vpack.c.b16 %v3596, %v3578
    %v4569 = vpack.c.b16 %v3597, %v3579
    %v4570 = vpack.c.b16 %v3598, %v3580
    %v4571 = vpack.c.b16 %v3599, %v3581
    %v4572 = vpack.c.b16 %v3600, %v3582
    %v4573 = vpack.c.b16 %v3601, %v3583
    %v4574 = vpack.c.b16 %v3602, %v3584
    %v4575 = vpack.c.b16 %v3603, %v3585
    %v4576 = vpack.c.b16 %v3604, %v3586
    %v4577 = vpack.c.b16 %v3605, %v3587
    %v4578 = vpack.c.b16 %v3606, %v3588
    %v4579 = vpack.c.b16 %v3607, %v3589
    %v4580 = vpack.c.b16 %v3608, %v3590
    %v4581 = vpack.c.b16 %v3609, %v3591
    %v4582 = vpack.c.b16 %v3628, %v3610
    %v4583 = vpack.c.b16 %v3629, %v3611
    %v4584 = vpack.c.b16 %v3630, %v3612
    %v4585 = vpack.c.b16 %v3631, %v3613
    %v4586 = vpack.c.b16 %v3632, %v3614
    %v4587 = vpack.c.b16 %v3633, %v3615
    %v4588 = vpack.c.b16 %v3634, %v3616
    %v4589 = vpack.c.b16 %v3635, %v3617
    %v4590 = vpack.c.b16 %v3636, %v3618
    %v4591 = vpack.c.b16 %v3637, %v3619
    %v4592 = vpack.c.b16 %v3638, %v3620
    %v4593 = vpack.c.b16 %v3639, %v3621
    %v4594 = vpack.c.b16 %v3640, %v3622
    %v4595 = vpack.c.b16 %v3641, %v3623
    %v4596 = vpack.c.b16 %v3642, %v3624
    %v4597 = vpack.c.b16 %v3643, %v3625
    %v4598 = vpack.c.b16 %v3644, %v3626
    %v4599 = vpack.c.b16 %v3645, %v3627
    %v4600 = vpack.c.b16 %v3664, %v3646
    %v4601 = vpack.c.b16 %v3665, %v3647
    %v4602 = vpack.c.b16 %v3666, %v3648
    %v4603 = vpack.c.b16 %v3667, %v3649
    %v4604 = vpack.c.b16 %v3668, %v3650
    %v4605 = vpack.c.b16 %v3669, %v3651
    %v4606 = vpack.c.b16 %v3670, %v3652
    %v4607 = vpack.c.b16 %v3671, %v3653
    %v4608 = vpack.c.b16 %v3672, %v3654
    %v4609 = vpack.c.b16 %v3673, %v3655
    %v4610 = vpack.c.b16 %v3674, %v3656
    %v4611 = vpack.c.b16 %v3675, %v3657
    %v4612 = vpack.c.b16 %v3676, %v3658
    %v4613 = vpack.c.b16 %v3677, %v3659
    %v4614 = vpack.c.b16 %v3678, %v3660
    %v4615 = vpack.c.b16 %v3679, %v3661
    %v4616 = vpack.c.b16 %v3680, %v3662
    %v4617 = vpack.c.b16 %v3681, %v3663
    %v4618 = vpack.c.b16 %v3700, %v3682
    %v4619 = vpack.c.b16 %v3701, %v3683
    %v4620 = vpack.c.b16 %v3702, %v3684
    %v4621 = vpack.c.b16 %v3703, %v3685
    %v4622 = vpack.c.b16 %v3704, %v3686
    %v4623 = vpack.c.b16 %v3705, %v3687
    %v4624 = vpack.c.b16 %v3706, %v3688
    %v4625 = vpack.c.b16 %v3707, %v3689
    %v4626 = vpack.c.b16 %v3708, %v3690
    %v4627 = vpack.c.b16 %v3709, %v3691
    %v4628 = vpack.c.b16 %v3710, %v3692
    %v4629 = vpack.c.b16 %v3711, %v3693
    %v4630 = vpack.c.b16 %v3712, %v3694
    %v4631 = vpack.c.b16 %v3713, %v3695
    %v4632 = vpack.c.b16 %v3714, %v3696
    %v4633 = vpack.c.b16 %v3715, %v3697
    %v4634 = vpack.c.b16 %v3716, %v3698
    %v4635 = vpack.c.b16 %v3717, %v3699
    %v4636 = vpack.c.b16 %v3736, %v3718
    %v4637 = vpack.c.b16 %v3737, %v3719
    %v4638 = vpack.c.b16 %v3738, %v3720
    %v4639 = vpack.c.b16 %v3739, %v3721
    %v4640 = vpack.c.b16 %v3740, %v3722
    %v4641 = vpack.c.b16 %v3741, %v3723
    %v4642 = vpack.c.b16 %v3742, %v3724
    %v4643 = vpack.c.b16 %v3743, %v3725
    %v4644 = vpack.c.b16 %v3744, %v3726
    %v4645 = vpack.c.b16 %v3745, %v3727
    %v4646 = vpack.c.b16 %v3746, %v3728
    %v4647 = vpack.c.b16 %v3747, %v3729
    %v4648 = vpack.c.b16 %v3748, %v3730
    %v4649 = vpack.c.b16 %v3749, %v3731
    %v4650 = vpack.c.b16 %v3750, %v3732
    %v4651 = vpack.c.b16 %v3751, %v3733
    %v4652 = vpack.c.b16 %v3752, %v3734
    %v4653 = vpack.c.b16 %v3753, %v3735
    %v4654 = vpack.c.b16 %v3772, %v3754
    %v4655 = vpack.c.b16 %v3773, %v3755
    %v4656 = vpack.c.b16 %v3774, %v3756
    %v4657 = vpack.c.b16 %v3775, %v3757
    %v4658 = vpack.c.b16 %v3776, %v3758
    %v4659 = vpack.c.b16 %v3777, %v3759
    %v4660 = vpack.c.b16 %v3778, %v3760
    %v4661 = vpack.c.b16 %v3779, %v3761
    %v4662 = vpack.c.b16 %v3780, %v3762
    %v4663 = vpack.c.b16 %v3781, %v3763
    %v4664 = vpack.c.b16 %v3782, %v3764
    %v4665 = vpack.c.b16 %v3783, %v3765
    %v4666 = vpack.c.b16 %v3784, %v3766
    %v4667 = vpack.c.b16 %v3785, %v3767
    %v4668 = vpack.c.b16 %v3786, %v3768
    %v4669 = vpack.c.b16 %v3787, %v3769
    %v4670 = vpack.c.b16 %v3788, %v3770
    %v4671 = vpack.c.b16 %v3789, %v3771
    %vm5554 = vcmask 130048
    %v5556 = vsel %vm5554, %v1137, 0
    %5558 = vmatprep.subr.bf16.mxu0 %v3791
    %5559 = vmatpush1.bf16.msra.mxu0 %v3790
    %5560 = vmatprep.subr.bf16.mxu0 %v3809
    %5561 = vmatpush1.bf16.msra.mxu0 %v3808
    %5562 = vmatprep.subr.bf16.mxu0 %v3827
    %5563 = vmatpush1.bf16.msra.mxu0 %v3826
    %5564 = vmatprep.subr.bf16.mxu0 %v3845
    %5565 = vmatpush1.bf16.msra.mxu0 %v3844
    %5566 = vmatprep.subr.bf16.mxu0 %v3863
    %5567 = vmatpush1.bf16.msra.mxu0 %v3862
    %5568 = vmatprep.subr.bf16.mxu0 %v3881
    %5569 = vmatpush1.bf16.msra.mxu0 %v3880
    %5570 = vmatprep.subr.bf16.mxu0 %v3899
    %5571 = vmatpush1.bf16.msra.mxu0 %v3898
    %5572 = vmatprep.subr.bf16.mxu0 %v3917
    %5573 = vmatpush1.bf16.msra.mxu0 %v3916
    %5574 = vmatprep.subr.bf16.mxu0 %v3935
    %5575 = vmatpush1.bf16.msra.mxu0 %v3934
    %5576 = vmatprep.subr.bf16.mxu0 %v3953
    %5577 = vmatpush1.bf16.msra.mxu0 %v3952
    %5578 = vmatprep.subr.bf16.mxu0 %v3971
    %5579 = vmatpush1.bf16.msra.mxu0 %v3970
    %5580 = vmatprep.subr.bf16.mxu0 %v3989
    %5581 = vmatpush1.bf16.msra.mxu0 %v3988
    %5582 = vmatprep.subr.bf16.mxu0 %v4007
    %5583 = vmatpush1.bf16.msra.mxu0 %v4006
    %5584 = vmatprep.subr.bf16.mxu0 %v4025
    %5585 = vmatpush1.bf16.msra.mxu0 %v4024
    %5586 = vmatprep.subr.bf16.mxu0 %v4043
    %5587 = vmatpush1.bf16.msra.mxu0 %v4042
    %5588 = vmatprep.subr.bf16.mxu0 %v4061
    %5589 = vmatpush1.bf16.msra.mxu0 %v4060
    %5590 = vmatprep.mubr.bf16.mxu0 %v1132
    %5591 = vmatmul.mubr.bf16.gmra.mrb[0].mxu0 %v1131
    %v5592 = vpop.f32.mrb[0].mxu0
    %v5593 = vadd.f32 %v1033, %v5592
    %v5594 = vpop.f32.mrb[0].mxu0
    %v5595 = vadd.f32 %v1037, %v5594
    %v5596 = vpop.f32.mrb[0].mxu0
    %v5597 = vpop.f32.mrb[0].mxu0
    %5598 = vdwg.mxu0
    %5599 = vmatprep.subr.bf16.mxu0 %v4079
    %5600 = vmatpush1.bf16.msra.mxu0 %v4078
    %5601 = vmatprep.subr.bf16.mxu0 %v4097
    %5602 = vmatpush1.bf16.msra.mxu0 %v4096
    %5603 = vmatprep.subr.bf16.mxu0 %v4115
    %5604 = vmatpush1.bf16.msra.mxu0 %v4114
    %5605 = vmatprep.subr.bf16.mxu0 %v4133
    %5606 = vmatpush1.bf16.msra.mxu0 %v4132
    %5607 = vmatprep.subr.bf16.mxu0 %v4151
    %5608 = vmatpush1.bf16.msra.mxu0 %v4150
    %5609 = vmatprep.subr.bf16.mxu0 %v4169
    %5610 = vmatpush1.bf16.msra.mxu0 %v4168
    %5611 = vmatprep.subr.bf16.mxu0 %v4187
    %5612 = vmatpush1.bf16.msra.mxu0 %v4186
    %5613 = vmatprep.subr.bf16.mxu0 %v4205
    %5614 = vmatpush1.bf16.msra.mxu0 %v4204
    %5615 = vmatprep.subr.bf16.mxu0 %v4223
    %5616 = vmatpush1.bf16.msra.mxu0 %v4222
    %5617 = vmatprep.subr.bf16.mxu0 %v4241
    %5618 = vmatpush1.bf16.msra.mxu0 %v4240
    %5619 = vmatprep.subr.bf16.mxu0 %v4259
    %5620 = vmatpush1.bf16.msra.mxu0 %v4258
    %5621 = vmatprep.subr.bf16.mxu0 %v4277
    %5622 = vmatpush1.bf16.msra.mxu0 %v4276
    %5623 = vmatprep.subr.bf16.mxu0 %v4295
    %5624 = vmatpush1.bf16.msra.mxu0 %v4294
    %5625 = vmatprep.subr.bf16.mxu0 %v4313
    %5626 = vmatpush1.bf16.msra.mxu0 %v4312
    %5627 = vmatprep.subr.bf16.mxu0 %v4331
    %5628 = vmatpush1.bf16.msra.mxu0 %v4330
    %5629 = vmatprep.subr.bf16.mxu0 %v4349
    %5630 = vmatpush1.bf16.msra.mxu0 %v4348
    %5631 = vmatprep.mubr.bf16.mxu0 %v1134
    %5632 = vmatmul.mubr.bf16.gmra.mrb[0].mxu0 %v1133
    %v5633 = vpop.f32.mrb[0].mxu0
    %v5634 = vadd.f32 %v5593, %v5633
    %v5635 = vpop.f32.mrb[0].mxu0
    %v5636 = vadd.f32 %v5595, %v5635
    %v5637 = vpop.f32.mrb[0].mxu0
    %v5638 = vpop.f32.mrb[0].mxu0
    %5639 = vdwg.mxu0
    %5640 = vmatprep.subr.bf16.mxu0 %v4367
    %5641 = vmatpush1.bf16.msra.mxu0 %v4366
    %5642 = vmatprep.subr.bf16.mxu0 %v4385
    %5643 = vmatpush1.bf16.msra.mxu0 %v4384
    %5644 = vmatprep.subr.bf16.mxu0 %v4403
    %5645 = vmatpush1.bf16.msra.mxu0 %v4402
    %5646 = vmatprep.subr.bf16.mxu0 %v4421
    %5647 = vmatpush1.bf16.msra.mxu0 %v4420
    %5648 = vmatprep.subr.bf16.mxu0 %v4439
    %5649 = vmatpush1.bf16.msra.mxu0 %v4438
    %5650 = vmatprep.subr.bf16.mxu0 %v4457
    %5651 = vmatpush1.bf16.msra.mxu0 %v4456
    %5652 = vmatprep.subr.bf16.mxu0 %v4475
    %5653 = vmatpush1.bf16.msra.mxu0 %v4474
    %5654 = vmatprep.subr.bf16.mxu0 %v4493
    %5655 = vmatpush1.bf16.msra.mxu0 %v4492
    %5656 = vmatprep.subr.bf16.mxu0 %v4511
    %5657 = vmatpush1.bf16.msra.mxu0 %v4510
    %5658 = vmatprep.subr.bf16.mxu0 %v4529
    %5659 = vmatpush1.bf16.msra.mxu0 %v4528
    %5660 = vmatprep.subr.bf16.mxu0 %v4547
    %5661 = vmatpush1.bf16.msra.mxu0 %v4546
    %5662 = vmatprep.subr.bf16.mxu0 %v4565
    %5663 = vmatpush1.bf16.msra.mxu0 %v4564
    %5664 = vmatprep.subr.bf16.mxu0 %v4583
    %5665 = vmatpush1.bf16.msra.mxu0 %v4582
    %5666 = vmatprep.subr.bf16.mxu0 %v4601
    %5667 = vmatpush1.bf16.msra.mxu0 %v4600
    %5668 = vmatprep.subr.bf16.mxu0 %v4619
    %5669 = vmatpush1.bf16.msra.mxu0 %v4618
    %5670 = vmatprep.subr.bf16.mxu0 %v4637
    %5671 = vmatpush1.bf16.msra.mxu0 %v4636
    %5672 = vmatprep.mubr.bf16.mxu0 %v1136
    %5673 = vmatmul.mubr.bf16.gmra.mrb[0].mxu0 %v1135
    %v5674 = vpop.f32.mrb[0].mxu0
    %v5675 = vadd.f32 %v5634, %v5674
    %v5676 = vpop.f32.mrb[0].mxu0
    %v5677 = vadd.f32 %v5636, %v5676
    %v5678 = vpop.f32.mrb[0].mxu0
    %v5679 = vpop.f32.mrb[0].mxu0
    %5680 = vdwg.mxu0
    %5681 = vmatprep.subr.bf16.mxu0 %v4655
    %5682 = vmatpush1.bf16.msra.mxu0 %v4654
    %5683 = vmatprep.subr.bf16.mxu0 0
    %5684 = vmatpush1.bf16.msra.mxu0 0
    %5685 = vmatprep.subr.bf16.mxu0 0
    %5686 = vmatpush1.bf16.msra.mxu0 0
    %5687 = vmatprep.subr.bf16.mxu0 0
    %5688 = vmatpush1.bf16.msra.mxu0 0
    %5689 = vmatprep.subr.bf16.mxu0 0
    %5690 = vmatpush1.bf16.msra.mxu0 0
    %5691 = vmatprep.subr.bf16.mxu0 0
    %5692 = vmatpush1.bf16.msra.mxu0 0
    %5693 = vmatprep.subr.bf16.mxu0 0
    %5694 = vmatpush1.bf16.msra.mxu0 0
    %5695 = vmatprep.subr.bf16.mxu0 0
    %5696 = vmatpush1.bf16.msra.mxu0 0
    %5697 = vmatprep.subr.bf16.mxu0 0
    %5698 = vmatpush1.bf16.msra.mxu0 0
    %5699 = vmatprep.subr.bf16.mxu0 0
    %5700 = vmatpush1.bf16.msra.mxu0 0
    %5701 = vmatprep.subr.bf16.mxu0 0
    %5702 = vmatpush1.bf16.msra.mxu0 0
    %5703 = vmatprep.subr.bf16.mxu0 0
    %5704 = vmatpush1.bf16.msra.mxu0 0
    %5705 = vmatprep.subr.bf16.mxu0 0
    %5706 = vmatpush1.bf16.msra.mxu0 0
    %5707 = vmatprep.subr.bf16.mxu0 0
    %5708 = vmatpush1.bf16.msra.mxu0 0
    %5709 = vmatprep.subr.bf16.mxu0 0
    %5710 = vmatpush1.bf16.msra.mxu0 0
    %5711 = vmatprep.subr.bf16.mxu0 0
    %5712 = vmatpush1.bf16.msra.mxu0 0
    %5713 = vmatprep.mubr.bf16.mxu0 0
    %5714 = vmatmul.mubr.bf16.gmra.mrb[0].mxu0 %v5556
    %v5715 = vpop.f32.mrb[0].mxu0
    %v5716 = vadd.f32 %v5675, %v5715
    %v5717 = vpop.f32.mrb[0].mxu0
    %v5718 = vadd.f32 %v5677, %v5717
    %v5719 = vpop.f32.mrb[0].mxu0
    %v5720 = vpop.f32.mrb[0].mxu0
    %5721 = vdwg.mxu0
    %5722 = vmatprep.subr.bf16.mxu0 %v3793
    %5723 = vmatpush1.bf16.msra.mxu0 %v3792
    %5724 = vmatprep.subr.bf16.mxu0 %v3811
    %5725 = vmatpush1.bf16.msra.mxu0 %v3810
    %5726 = vmatprep.subr.bf16.mxu0 %v3829
    %5727 = vmatpush1.bf16.msra.mxu0 %v3828
    %5728 = vmatprep.subr.bf16.mxu0 %v3847
    %5729 = vmatpush1.bf16.msra.mxu0 %v3846
    %5730 = vmatprep.subr.bf16.mxu0 %v3865
    %5731 = vmatpush1.bf16.msra.mxu0 %v3864
    %5732 = vmatprep.subr.bf16.mxu0 %v3883
    %5733 = vmatpush1.bf16.msra.mxu0 %v3882
    %5734 = vmatprep.subr.bf16.mxu0 %v3901
    %5735 = vmatpush1.bf16.msra.mxu0 %v3900
    %5736 = vmatprep.subr.bf16.mxu0 %v3919
    %5737 = vmatpush1.bf16.msra.mxu0 %v3918
    %5738 = vmatprep.subr.bf16.mxu0 %v3937
    %5739 = vmatpush1.bf16.msra.mxu0 %v3936
    %5740 = vmatprep.subr.bf16.mxu0 %v3955
    %5741 = vmatpush1.bf16.msra.mxu0 %v3954
    %5742 = vmatprep.subr.bf16.mxu0 %v3973
    %5743 = vmatpush1.bf16.msra.mxu0 %v3972
    %5744 = vmatprep.subr.bf16.mxu0 %v3991
    %5745 = vmatpush1.bf16.msra.mxu0 %v3990
    %5746 = vmatprep.subr.bf16.mxu0 %v4009
    %5747 = vmatpush1.bf16.msra.mxu0 %v4008
    %5748 = vmatprep.subr.bf16.mxu0 %v4027
    %5749 = vmatpush1.bf16.msra.mxu0 %v4026
    %5750 = vmatprep.subr.bf16.mxu0 %v4045
    %5751 = vmatpush1.bf16.msra.mxu0 %v4044
    %5752 = vmatprep.subr.bf16.mxu0 %v4063
    %5753 = vmatpush1.bf16.msra.mxu0 %v4062
    %5754 = vmatprep.mubr.bf16.mxu0 %v1132
    %5755 = vmatmul.mubr.bf16.gmra.mrb[0].mxu0 %v1131
    %v5756 = vpop.f32.mrb[0].mxu0
    %v5757 = vadd.f32 %v1041, %v5756
    %v5758 = vpop.f32.mrb[0].mxu0
    %v5759 = vadd.f32 %v1045, %v5758
    %v5760 = vpop.f32.mrb[0].mxu0
    %v5761 = vpop.f32.mrb[0].mxu0
    %5762 = vdwg.mxu0
    %5763 = vmatprep.subr.bf16.mxu0 %v4081
    %5764 = vmatpush1.bf16.msra.mxu0 %v4080
    %5765 = vmatprep.subr.bf16.mxu0 %v4099
    %5766 = vmatpush1.bf16.msra.mxu0 %v4098
    %5767 = vmatprep.subr.bf16.mxu0 %v4117
    %5768 = vmatpush1.bf16.msra.mxu0 %v4116
    %5769 = vmatprep.subr.bf16.mxu0 %v4135
    %5770 = vmatpush1.bf16.msra.mxu0 %v4134
    %5771 = vmatprep.subr.bf16.mxu0 %v4153
    %5772 = vmatpush1.bf16.msra.mxu0 %v4152
    %5773 = vmatprep.subr.bf16.mxu0 %v4171
    %5774 = vmatpush1.bf16.msra.mxu0 %v4170
    %5775 = vmatprep.subr.bf16.mxu0 %v4189
    %5776 = vmatpush1.bf16.msra.mxu0 %v4188
    %5777 = vmatprep.subr.bf16.mxu0 %v4207
    %5778 = vmatpush1.bf16.msra.mxu0 %v4206
    %5779 = vmatprep.subr.bf16.mxu0 %v4225
    %5780 = vmatpush1.bf16.msra.mxu0 %v4224
    %5781 = vmatprep.subr.bf16.mxu0 %v4243
    %5782 = vmatpush1.bf16.msra.mxu0 %v4242
    %5783 = vmatprep.subr.bf16.mxu0 %v4261
    %5784 = vmatpush1.bf16.msra.mxu0 %v4260
    %5785 = vmatprep.subr.bf16.mxu0 %v4279
    %5786 = vmatpush1.bf16.msra.mxu0 %v4278
    %5787 = vmatprep.subr.bf16.mxu0 %v4297
    %5788 = vmatpush1.bf16.msra.mxu0 %v4296
    %5789 = vmatprep.subr.bf16.mxu0 %v4315
    %5790 = vmatpush1.bf16.msra.mxu0 %v4314
    %5791 = vmatprep.subr.bf16.mxu0 %v4333
    %5792 = vmatpush1.bf16.msra.mxu0 %v4332
    %5793 = vmatprep.subr.bf16.mxu0 %v4351
    %5794 = vmatpush1.bf16.msra.mxu0 %v4350
    %5795 = vmatprep.mubr.bf16.mxu0 %v1134
    %5796 = vmatmul.mubr.bf16.gmra.mrb[0].mxu0 %v1133
    %v5797 = vpop.f32.mrb[0].mxu0
    %v5798 = vadd.f32 %v5757, %v5797
    %v5799 = vpop.f32.mrb[0].mxu0
    %v5800 = vadd.f32 %v5759, %v5799
    %v5801 = vpop.f32.mrb[0].mxu0
    %v5802 = vpop.f32.mrb[0].mxu0
    %5803 = vdwg.mxu0
    %5804 = vmatprep.subr.bf16.mxu0 %v4369
    %5805 = vmatpush1.bf16.msra.mxu0 %v4368
    %5806 = vmatprep.subr.bf16.mxu0 %v4387
    %5807 = vmatpush1.bf16.msra.mxu0 %v4386
    %5808 = vmatprep.subr.bf16.mxu0 %v4405
    %5809 = vmatpush1.bf16.msra.mxu0 %v4404
    %5810 = vmatprep.subr.bf16.mxu0 %v4423
    %5811 = vmatpush1.bf16.msra.mxu0 %v4422
    %5812 = vmatprep.subr.bf16.mxu0 %v4441
    %5813 = vmatpush1.bf16.msra.mxu0 %v4440
    %5814 = vmatprep.subr.bf16.mxu0 %v4459
    %5815 = vmatpush1.bf16.msra.mxu0 %v4458
    %5816 = vmatprep.subr.bf16.mxu0 %v4477
    %5817 = vmatpush1.bf16.msra.mxu0 %v4476
    %5818 = vmatprep.subr.bf16.mxu0 %v4495
    %5819 = vmatpush1.bf16.msra.mxu0 %v4494
    %5820 = vmatprep.subr.bf16.mxu0 %v4513
    %5821 = vmatpush1.bf16.msra.mxu0 %v4512
    %5822 = vmatprep.subr.bf16.mxu0 %v4531
    %5823 = vmatpush1.bf16.msra.mxu0 %v4530
    %5824 = vmatprep.subr.bf16.mxu0 %v4549
    %5825 = vmatpush1.bf16.msra.mxu0 %v4548
    %5826 = vmatprep.subr.bf16.mxu0 %v4567
    %5827 = vmatpush1.bf16.msra.mxu0 %v4566
    %5828 = vmatprep.subr.bf16.mxu0 %v4585
    %5829 = vmatpush1.bf16.msra.mxu0 %v4584
    %5830 = vmatprep.subr.bf16.mxu0 %v4603
    %5831 = vmatpush1.bf16.msra.mxu0 %v4602
    %5832 = vmatprep.subr.bf16.mxu0 %v4621
    %5833 = vmatpush1.bf16.msra.mxu0 %v4620
    %5834 = vmatprep.subr.bf16.mxu0 %v4639
    %5835 = vmatpush1.bf16.msra.mxu0 %v4638
    %5836 = vmatprep.mubr.bf16.mxu0 %v1136
    %5837 = vmatmul.mubr.bf16.gmra.mrb[0].mxu0 %v1135
    %v5838 = vpop.f32.mrb[0].mxu0
    %v5839 = vadd.f32 %v5798, %v5838
    %v5840 = vpop.f32.mrb[0].mxu0
    %v5841 = vadd.f32 %v5800, %v5840
    %v5842 = vpop.f32.mrb[0].mxu0
    %v5843 = vpop.f32.mrb[0].mxu0
    %5844 = vdwg.mxu0
    %5845 = vmatprep.subr.bf16.mxu0 %v4657
    %5846 = vmatpush1.bf16.msra.mxu0 %v4656
    %5847 = vmatprep.subr.bf16.mxu0 0
    %5848 = vmatpush1.bf16.msra.mxu0 0
    %5849 = vmatprep.subr.bf16.mxu0 0
    %5850 = vmatpush1.bf16.msra.mxu0 0
    %5851 = vmatprep.subr.bf16.mxu0 0
    %5852 = vmatpush1.bf16.msra.mxu0 0
    %5853 = vmatprep.subr.bf16.mxu0 0
    %5854 = vmatpush1.bf16.msra.mxu0 0
    %5855 = vmatprep.subr.bf16.mxu0 0
    %5856 = vmatpush1.bf16.msra.mxu0 0
    %5857 = vmatprep.subr.bf16.mxu0 0
    %5858 = vmatpush1.bf16.msra.mxu0 0
    %5859 = vmatprep.subr.bf16.mxu0 0
    %5860 = vmatpush1.bf16.msra.mxu0 0
    %5861 = vmatprep.subr.bf16.mxu0 0
    %5862 = vmatpush1.bf16.msra.mxu0 0
    %5863 = vmatprep.subr.bf16.mxu0 0
    %5864 = vmatpush1.bf16.msra.mxu0 0
    %5865 = vmatprep.subr.bf16.mxu0 0
    %5866 = vmatpush1.bf16.msra.mxu0 0
    %5867 = vmatprep.subr.bf16.mxu0 0
    %5868 = vmatpush1.bf16.msra.mxu0 0
    %5869 = vmatprep.subr.bf16.mxu0 0
    %5870 = vmatpush1.bf16.msra.mxu0 0
    %5871 = vmatprep.subr.bf16.mxu0 0
    %5872 = vmatpush1.bf16.msra.mxu0 0
    %5873 = vmatprep.subr.bf16.mxu0 0
    %5874 = vmatpush1.bf16.msra.mxu0 0
    %5875 = vmatprep.subr.bf16.mxu0 0
    %5876 = vmatpush1.bf16.msra.mxu0 0
    %5877 = vmatprep.mubr.bf16.mxu0 0
    %5878 = vmatmul.mubr.bf16.gmra.mrb[0].mxu0 %v5556
    %v5879 = vpop.f32.mrb[0].mxu0
    %v5880 = vadd.f32 %v5839, %v5879
    %v5881 = vpop.f32.mrb[0].mxu0
    %v5882 = vadd.f32 %v5841, %v5881
    %v5883 = vpop.f32.mrb[0].mxu0
    %v5884 = vpop.f32.mrb[0].mxu0
    %5885 = vdwg.mxu0
    %5886 = vmatprep.subr.bf16.mxu0 %v3795
    %5887 = vmatpush1.bf16.msra.mxu0 %v3794
    %5888 = vmatprep.subr.bf16.mxu0 %v3813
    %5889 = vmatpush1.bf16.msra.mxu0 %v3812
    %5890 = vmatprep.subr.bf16.mxu0 %v3831
    %5891 = vmatpush1.bf16.msra.mxu0 %v3830
    %5892 = vmatprep.subr.bf16.mxu0 %v3849
    %5893 = vmatpush1.bf16.msra.mxu0 %v3848
    %5894 = vmatprep.subr.bf16.mxu0 %v3867
    %5895 = vmatpush1.bf16.msra.mxu0 %v3866
    %5896 = vmatprep.subr.bf16.mxu0 %v3885
    %5897 = vmatpush1.bf16.msra.mxu0 %v3884
    %5898 = vmatprep.subr.bf16.mxu0 %v3903
    %5899 = vmatpush1.bf16.msra.mxu0 %v3902
    %5900 = vmatprep.subr.bf16.mxu0 %v3921
    %5901 = vmatpush1.bf16.msra.mxu0 %v3920
    %5902 = vmatprep.subr.bf16.mxu0 %v3939
    %5903 = vmatpush1.bf16.msra.mxu0 %v3938
    %5904 = vmatprep.subr.bf16.mxu0 %v3957
    %5905 = vmatpush1.bf16.msra.mxu0 %v3956
    %5906 = vmatprep.subr.bf16.mxu0 %v3975
    %5907 = vmatpush1.bf16.msra.mxu0 %v3974
    %5908 = vmatprep.subr.bf16.mxu0 %v3993
    %5909 = vmatpush1.bf16.msra.mxu0 %v3992
    %5910 = vmatprep.subr.bf16.mxu0 %v4011
    %5911 = vmatpush1.bf16.msra.mxu0 %v4010
    %5912 = vmatprep.subr.bf16.mxu0 %v4029
    %5913 = vmatpush1.bf16.msra.mxu0 %v4028
    %5914 = vmatprep.subr.bf16.mxu0 %v4047
    %5915 = vmatpush1.bf16.msra.mxu0 %v4046
    %5916 = vmatprep.subr.bf16.mxu0 %v4065
    %5917 = vmatpush1.bf16.msra.mxu0 %v4064
    %5918 = vmatprep.mubr.bf16.mxu0 %v1132
    %5919 = vmatmul.mubr.bf16.gmra.mrb[0].mxu0 %v1131
    %v5920 = vpop.f32.mrb[0].mxu0
    %v5921 = vadd.f32 %v1049, %v5920
    %v5922 = vpop.f32.mrb[0].mxu0
    %v5923 = vadd.f32 %v1053, %v5922
    %v5924 = vpop.f32.mrb[0].mxu0
    %v5925 = vpop.f32.mrb[0].mxu0
    %5926 = vdwg.mxu0
    %5927 = vmatprep.subr.bf16.mxu0 %v4083
    %5928 = vmatpush1.bf16.msra.mxu0 %v4082
    %5929 = vmatprep.subr.bf16.mxu0 %v4101
    %5930 = vmatpush1.bf16.msra.mxu0 %v4100
    %5931 = vmatprep.subr.bf16.mxu0 %v4119
    %5932 = vmatpush1.bf16.msra.mxu0 %v4118
    %5933 = vmatprep.subr.bf16.mxu0 %v4137
    %5934 = vmatpush1.bf16.msra.mxu0 %v4136
    %5935 = vmatprep.subr.bf16.mxu0 %v4155
    %5936 = vmatpush1.bf16.msra.mxu0 %v4154
    %5937 = vmatprep.subr.bf16.mxu0 %v4173
    %5938 = vmatpush1.bf16.msra.mxu0 %v4172
    %5939 = vmatprep.subr.bf16.mxu0 %v4191
    %5940 = vmatpush1.bf16.msra.mxu0 %v4190
    %5941 = vmatprep.subr.bf16.mxu0 %v4209
    %5942 = vmatpush1.bf16.msra.mxu0 %v4208
    %5943 = vmatprep.subr.bf16.mxu0 %v4227
    %5944 = vmatpush1.bf16.msra.mxu0 %v4226
    %5945 = vmatprep.subr.bf16.mxu0 %v4245
    %5946 = vmatpush1.bf16.msra.mxu0 %v4244
    %5947 = vmatprep.subr.bf16.mxu0 %v4263
    %5948 = vmatpush1.bf16.msra.mxu0 %v4262
    %5949 = vmatprep.subr.bf16.mxu0 %v4281
    %5950 = vmatpush1.bf16.msra.mxu0 %v4280
    %5951 = vmatprep.subr.bf16.mxu0 %v4299
    %5952 = vmatpush1.bf16.msra.mxu0 %v4298
    %5953 = vmatprep.subr.bf16.mxu0 %v4317
    %5954 = vmatpush1.bf16.msra.mxu0 %v4316
    %5955 = vmatprep.subr.bf16.mxu0 %v4335
    %5956 = vmatpush1.bf16.msra.mxu0 %v4334
    %5957 = vmatprep.subr.bf16.mxu0 %v4353
    %5958 = vmatpush1.bf16.msra.mxu0 %v4352
    %5959 = vmatprep.mubr.bf16.mxu0 %v1134
    %5960 = vmatmul.mubr.bf16.gmra.mrb[0].mxu0 %v1133
    %v5961 = vpop.f32.mrb[0].mxu0
    %v5962 = vadd.f32 %v5921, %v5961
    %v5963 = vpop.f32.mrb[0].mxu0
    %v5964 = vadd.f32 %v5923, %v5963
    %v5965 = vpop.f32.mrb[0].mxu0
    %v5966 = vpop.f32.mrb[0].mxu0
    %5967 = vdwg.mxu0
    %5968 = vmatprep.subr.bf16.mxu0 %v4371
    %5969 = vmatpush1.bf16.msra.mxu0 %v4370
    %5970 = vmatprep.subr.bf16.mxu0 %v4389
    %5971 = vmatpush1.bf16.msra.mxu0 %v4388
    %5972 = vmatprep.subr.bf16.mxu0 %v4407
    %5973 = vmatpush1.bf16.msra.mxu0 %v4406
    %5974 = vmatprep.subr.bf16.mxu0 %v4425
    %5975 = vmatpush1.bf16.msra.mxu0 %v4424
    %5976 = vmatprep.subr.bf16.mxu0 %v4443
    %5977 = vmatpush1.bf16.msra.mxu0 %v4442
    %5978 = vmatprep.subr.bf16.mxu0 %v4461
    %5979 = vmatpush1.bf16.msra.mxu0 %v4460
    %5980 = vmatprep.subr.bf16.mxu0 %v4479
    %5981 = vmatpush1.bf16.msra.mxu0 %v4478
    %5982 = vmatprep.subr.bf16.mxu0 %v4497
    %5983 = vmatpush1.bf16.msra.mxu0 %v4496
    %5984 = vmatprep.subr.bf16.mxu0 %v4515
    %5985 = vmatpush1.bf16.msra.mxu0 %v4514
    %5986 = vmatprep.subr.bf16.mxu0 %v4533
    %5987 = vmatpush1.bf16.msra.mxu0 %v4532
    %5988 = vmatprep.subr.bf16.mxu0 %v4551
    %5989 = vmatpush1.bf16.msra.mxu0 %v4550
    %5990 = vmatprep.subr.bf16.mxu0 %v4569
    %5991 = vmatpush1.bf16.msra.mxu0 %v4568
    %5992 = vmatprep.subr.bf16.mxu0 %v4587
    %5993 = vmatpush1.bf16.msra.mxu0 %v4586
    %5994 = vmatprep.subr.bf16.mxu0 %v4605
    %5995 = vmatpush1.bf16.msra.mxu0 %v4604
    %5996 = vmatprep.subr.bf16.mxu0 %v4623
    %5997 = vmatpush1.bf16.msra.mxu0 %v4622
    %5998 = vmatprep.subr.bf16.mxu0 %v4641
    %5999 = vmatpush1.bf16.msra.mxu0 %v4640
    %6000 = vmatprep.mubr.bf16.mxu0 %v1136
    %6001 = vmatmul.mubr.bf16.gmra.mrb[0].mxu0 %v1135
    %v6002 = vpop.f32.mrb[0].mxu0
    %v6003 = vadd.f32 %v5962, %v6002
    %v6004 = vpop.f32.mrb[0].mxu0
    %v6005 = vadd.f32 %v5964, %v6004
    %v6006 = vpop.f32.mrb[0].mxu0
    %v6007 = vpop.f32.mrb[0].mxu0
    %6008 = vdwg.mxu0
    %6009 = vmatprep.subr.bf16.mxu0 %v4659
    %6010 = vmatpush1.bf16.msra.mxu0 %v4658
    %6011 = vmatprep.subr.bf16.mxu0 0
    %6012 = vmatpush1.bf16.msra.mxu0 0
    %6013 = vmatprep.subr.bf16.mxu0 0
    %6014 = vmatpush1.bf16.msra.mxu0 0
    %6015 = vmatprep.subr.bf16.mxu0 0
    %6016 = vmatpush1.bf16.msra.mxu0 0
    %6017 = vmatprep.subr.bf16.mxu0 0
    %6018 = vmatpush1.bf16.msra.mxu0 0
    %6019 = vmatprep.subr.bf16.mxu0 0
    %6020 = vmatpush1.bf16.msra.mxu0 0
    %6021 = vmatprep.subr.bf16.mxu0 0
    %6022 = vmatpush1.bf16.msra.mxu0 0
    %6023 = vmatprep.subr.bf16.mxu0 0
    %6024 = vmatpush1.bf16.msra.mxu0 0
    %6025 = vmatprep.subr.bf16.mxu0 0
    %6026 = vmatpush1.bf16.msra.mxu0 0
    %6027 = vmatprep.subr.bf16.mxu0 0
    %6028 = vmatpush1.bf16.msra.mxu0 0
    %6029 = vmatprep.subr.bf16.mxu0 0
    %6030 = vmatpush1.bf16.msra.mxu0 0
    %6031 = vmatprep.subr.bf16.mxu0 0
    %6032 = vmatpush1.bf16.msra.mxu0 0
    %6033 = vmatprep.subr.bf16.mxu0 0
    %6034 = vmatpush1.bf16.msra.mxu0 0
    %6035 = vmatprep.subr.bf16.mxu0 0
    %6036 = vmatpush1.bf16.msra.mxu0 0
    %6037 = vmatprep.subr.bf16.mxu0 0
    %6038 = vmatpush1.bf16.msra.mxu0 0
    %6039 = vmatprep.subr.bf16.mxu0 0
    %6040 = vmatpush1.bf16.msra.mxu0 0
    %6041 = vmatprep.mubr.bf16.mxu0 0
    %6042 = vmatmul.mubr.bf16.gmra.mrb[0].mxu0 %v5556
    %v6043 = vpop.f32.mrb[0].mxu0
    %v6044 = vadd.f32 %v6003, %v6043
    %v6045 = vpop.f32.mrb[0].mxu0
    %v6046 = vadd.f32 %v6005, %v6045
    %v6047 = vpop.f32.mrb[0].mxu0
    %v6048 = vpop.f32.mrb[0].mxu0
    %6049 = vdwg.mxu0
    %6050 = vmatprep.subr.bf16.mxu0 %v3797
    %6051 = vmatpush1.bf16.msra.mxu0 %v3796
    %6052 = vmatprep.subr.bf16.mxu0 %v3815
    %6053 = vmatpush1.bf16.msra.mxu0 %v3814
    %6054 = vmatprep.subr.bf16.mxu0 %v3833
    %6055 = vmatpush1.bf16.msra.mxu0 %v3832
    %6056 = vmatprep.subr.bf16.mxu0 %v3851
    %6057 = vmatpush1.bf16.msra.mxu0 %v3850
    %6058 = vmatprep.subr.bf16.mxu0 %v3869
    %6059 = vmatpush1.bf16.msra.mxu0 %v3868
    %6060 = vmatprep.subr.bf16.mxu0 %v3887
    %6061 = vmatpush1.bf16.msra.mxu0 %v3886
    %6062 = vmatprep.subr.bf16.mxu0 %v3905
    %6063 = vmatpush1.bf16.msra.mxu0 %v3904
    %6064 = vmatprep.subr.bf16.mxu0 %v3923
    %6065 = vmatpush1.bf16.msra.mxu0 %v3922
    %6066 = vmatprep.subr.bf16.mxu0 %v3941
    %6067 = vmatpush1.bf16.msra.mxu0 %v3940
    %6068 = vmatprep.subr.bf16.mxu0 %v3959
    %6069 = vmatpush1.bf16.msra.mxu0 %v3958
    %6070 = vmatprep.subr.bf16.mxu0 %v3977
    %6071 = vmatpush1.bf16.msra.mxu0 %v3976
    %6072 = vmatprep.subr.bf16.mxu0 %v3995
    %6073 = vmatpush1.bf16.msra.mxu0 %v3994
    %6074 = vmatprep.subr.bf16.mxu0 %v4013
    %6075 = vmatpush1.bf16.msra.mxu0 %v4012
    %6076 = vmatprep.subr.bf16.mxu0 %v4031
    %6077 = vmatpush1.bf16.msra.mxu0 %v4030
    %6078 = vmatprep.subr.bf16.mxu0 %v4049
    %6079 = vmatpush1.bf16.msra.mxu0 %v4048
    %6080 = vmatprep.subr.bf16.mxu0 %v4067
    %6081 = vmatpush1.bf16.msra.mxu0 %v4066
    %6082 = vmatprep.mubr.bf16.mxu0 %v1132
    %6083 = vmatmul.mubr.bf16.gmra.mrb[0].mxu0 %v1131
    %v6084 = vpop.f32.mrb[0].mxu0
    %v6085 = vadd.f32 %v1057, %v6084
    %v6086 = vpop.f32.mrb[0].mxu0
    %v6087 = vadd.f32 %v1061, %v6086
    %v6088 = vpop.f32.mrb[0].mxu0
    %v6089 = vpop.f32.mrb[0].mxu0
    %6090 = vdwg.mxu0
    %6091 = vmatprep.subr.bf16.mxu0 %v4085
    %6092 = vmatpush1.bf16.msra.mxu0 %v4084
    %6093 = vmatprep.subr.bf16.mxu0 %v4103
    %6094 = vmatpush1.bf16.msra.mxu0 %v4102
    %6095 = vmatprep.subr.bf16.mxu0 %v4121
    %6096 = vmatpush1.bf16.msra.mxu0 %v4120
    %6097 = vmatprep.subr.bf16.mxu0 %v4139
    %6098 = vmatpush1.bf16.msra.mxu0 %v4138
    %6099 = vmatprep.subr.bf16.mxu0 %v4157
    %6100 = vmatpush1.bf16.msra.mxu0 %v4156
    %6101 = vmatprep.subr.bf16.mxu0 %v4175
    %6102 = vmatpush1.bf16.msra.mxu0 %v4174
    %6103 = vmatprep.subr.bf16.mxu0 %v4193
    %6104 = vmatpush1.bf16.msra.mxu0 %v4192
    %6105 = vmatprep.subr.bf16.mxu0 %v4211
    %6106 = vmatpush1.bf16.msra.mxu0 %v4210
    %6107 = vmatprep.subr.bf16.mxu0 %v4229
    %6108 = vmatpush1.bf16.msra.mxu0 %v4228
    %6109 = vmatprep.subr.bf16.mxu0 %v4247
    %6110 = vmatpush1.bf16.msra.mxu0 %v4246
    %6111 = vmatprep.subr.bf16.mxu0 %v4265
    %6112 = vmatpush1.bf16.msra.mxu0 %v4264
    %6113 = vmatprep.subr.bf16.mxu0 %v4283
    %6114 = vmatpush1.bf16.msra.mxu0 %v4282
    %6115 = vmatprep.subr.bf16.mxu0 %v4301
    %6116 = vmatpush1.bf16.msra.mxu0 %v4300
    %6117 = vmatprep.subr.bf16.mxu0 %v4319
    %6118 = vmatpush1.bf16.msra.mxu0 %v4318
    %6119 = vmatprep.subr.bf16.mxu0 %v4337
    %6120 = vmatpush1.bf16.msra.mxu0 %v4336
    %6121 = vmatprep.subr.bf16.mxu0 %v4355
    %6122 = vmatpush1.bf16.msra.mxu0 %v4354
    %6123 = vmatprep.mubr.bf16.mxu0 %v1134
    %6124 = vmatmul.mubr.bf16.gmra.mrb[0].mxu0 %v1133
    %v6125 = vpop.f32.mrb[0].mxu0
    %v6126 = vadd.f32 %v6085, %v6125
    %v6127 = vpop.f32.mrb[0].mxu0
    %v6128 = vadd.f32 %v6087, %v6127
    %v6129 = vpop.f32.mrb[0].mxu0
    %v6130 = vpop.f32.mrb[0].mxu0
    %6131 = vdwg.mxu0
    %6132 = vmatprep.subr.bf16.mxu0 %v4373
    %6133 = vmatpush1.bf16.msra.mxu0 %v4372
    %6134 = vmatprep.subr.bf16.mxu0 %v4391
    %6135 = vmatpush1.bf16.msra.mxu0 %v4390
    %6136 = vmatprep.subr.bf16.mxu0 %v4409
    %6137 = vmatpush1.bf16.msra.mxu0 %v4408
    %6138 = vmatprep.subr.bf16.mxu0 %v4427
    %6139 = vmatpush1.bf16.msra.mxu0 %v4426
    %6140 = vmatprep.subr.bf16.mxu0 %v4445
    %6141 = vmatpush1.bf16.msra.mxu0 %v4444
    %6142 = vmatprep.subr.bf16.mxu0 %v4463
    %6143 = vmatpush1.bf16.msra.mxu0 %v4462
    %6144 = vmatprep.subr.bf16.mxu0 %v4481
    %6145 = vmatpush1.bf16.msra.mxu0 %v4480
    %6146 = vmatprep.subr.bf16.mxu0 %v4499
    %6147 = vmatpush1.bf16.msra.mxu0 %v4498
    %6148 = vmatprep.subr.bf16.mxu0 %v4517
    %6149 = vmatpush1.bf16.msra.mxu0 %v4516
    %6150 = vmatprep.subr.bf16.mxu0 %v4535
    %6151 = vmatpush1.bf16.msra.mxu0 %v4534
    %6152 = vmatprep.subr.bf16.mxu0 %v4553
    %6153 = vmatpush1.bf16.msra.mxu0 %v4552
    %6154 = vmatprep.subr.bf16.mxu0 %v4571
    %6155 = vmatpush1.bf16.msra.mxu0 %v4570
    %6156 = vmatprep.subr.bf16.mxu0 %v4589
    %6157 = vmatpush1.bf16.msra.mxu0 %v4588
    %6158 = vmatprep.subr.bf16.mxu0 %v4607
    %6159 = vmatpush1.bf16.msra.mxu0 %v4606
    %6160 = vmatprep.subr.bf16.mxu0 %v4625
    %6161 = vmatpush1.bf16.msra.mxu0 %v4624
    %6162 = vmatprep.subr.bf16.mxu0 %v4643
    %6163 = vmatpush1.bf16.msra.mxu0 %v4642
    %6164 = vmatprep.mubr.bf16.mxu0 %v1136
    %6165 = vmatmul.mubr.bf16.gmra.mrb[0].mxu0 %v1135
    %v6166 = vpop.f32.mrb[0].mxu0
    %v6167 = vadd.f32 %v6126, %v6166
    %v6168 = vpop.f32.mrb[0].mxu0
    %v6169 = vadd.f32 %v6128, %v6168
    %v6170 = vpop.f32.mrb[0].mxu0
    %v6171 = vpop.f32.mrb[0].mxu0
    %6172 = vdwg.mxu0
    %6173 = vmatprep.subr.bf16.mxu0 %v4661
    %6174 = vmatpush1.bf16.msra.mxu0 %v4660
    %6175 = vmatprep.subr.bf16.mxu0 0
    %6176 = vmatpush1.bf16.msra.mxu0 0
    %6177 = vmatprep.subr.bf16.mxu0 0
    %6178 = vmatpush1.bf16.msra.mxu0 0
    %6179 = vmatprep.subr.bf16.mxu0 0
    %6180 = vmatpush1.bf16.msra.mxu0 0
    %6181 = vmatprep.subr.bf16.mxu0 0
    %6182 = vmatpush1.bf16.msra.mxu0 0
    %6183 = vmatprep.subr.bf16.mxu0 0
    %6184 = vmatpush1.bf16.msra.mxu0 0
    %6185 = vmatprep.subr.bf16.mxu0 0
    %6186 = vmatpush1.bf16.msra.mxu0 0
    %6187 = vmatprep.subr.bf16.mxu0 0
    %6188 = vmatpush1.bf16.msra.mxu0 0
    %6189 = vmatprep.subr.bf16.mxu0 0
    %6190 = vmatpush1.bf16.msra.mxu0 0
    %6191 = vmatprep.subr.bf16.mxu0 0
    %6192 = vmatpush1.bf16.msra.mxu0 0
    %6193 = vmatprep.subr.bf16.mxu0 0
    %6194 = vmatpush1.bf16.msra.mxu0 0
    %6195 = vmatprep.subr.bf16.mxu0 0
    %6196 = vmatpush1.bf16.msra.mxu0 0
    %6197 = vmatprep.subr.bf16.mxu0 0
    %6198 = vmatpush1.bf16.msra.mxu0 0
    %6199 = vmatprep.subr.bf16.mxu0 0
    %6200 = vmatpush1.bf16.msra.mxu0 0
    %6201 = vmatprep.subr.bf16.mxu0 0
    %6202 = vmatpush1.bf16.msra.mxu0 0
    %6203 = vmatprep.subr.bf16.mxu0 0
    %6204 = vmatpush1.bf16.msra.mxu0 0
    %6205 = vmatprep.mubr.bf16.mxu0 0
    %6206 = vmatmul.mubr.bf16.gmra.mrb[0].mxu0 %v5556
    %v6207 = vpop.f32.mrb[0].mxu0
    %v6208 = vadd.f32 %v6167, %v6207
    %v6209 = vpop.f32.mrb[0].mxu0
    %v6210 = vadd.f32 %v6169, %v6209
    %v6211 = vpop.f32.mrb[0].mxu0
    %v6212 = vpop.f32.mrb[0].mxu0
    %6213 = vdwg.mxu0
    %6214 = vmatprep.subr.bf16.mxu0 %v3799
    %6215 = vmatpush1.bf16.msra.mxu0 %v3798
    %6216 = vmatprep.subr.bf16.mxu0 %v3817
    %6217 = vmatpush1.bf16.msra.mxu0 %v3816
    %6218 = vmatprep.subr.bf16.mxu0 %v3835
    %6219 = vmatpush1.bf16.msra.mxu0 %v3834
    %6220 = vmatprep.subr.bf16.mxu0 %v3853
    %6221 = vmatpush1.bf16.msra.mxu0 %v3852
    %6222 = vmatprep.subr.bf16.mxu0 %v3871
    %6223 = vmatpush1.bf16.msra.mxu0 %v3870
    %6224 = vmatprep.subr.bf16.mxu0 %v3889
    %6225 = vmatpush1.bf16.msra.mxu0 %v3888
    %6226 = vmatprep.subr.bf16.mxu0 %v3907
    %6227 = vmatpush1.bf16.msra.mxu0 %v3906
    %6228 = vmatprep.subr.bf16.mxu0 %v3925
    %6229 = vmatpush1.bf16.msra.mxu0 %v3924
    %6230 = vmatprep.subr.bf16.mxu0 %v3943
    %6231 = vmatpush1.bf16.msra.mxu0 %v3942
    %6232 = vmatprep.subr.bf16.mxu0 %v3961
    %6233 = vmatpush1.bf16.msra.mxu0 %v3960
    %6234 = vmatprep.subr.bf16.mxu0 %v3979
    %6235 = vmatpush1.bf16.msra.mxu0 %v3978
    %6236 = vmatprep.subr.bf16.mxu0 %v3997
    %6237 = vmatpush1.bf16.msra.mxu0 %v3996
    %6238 = vmatprep.subr.bf16.mxu0 %v4015
    %6239 = vmatpush1.bf16.msra.mxu0 %v4014
    %6240 = vmatprep.subr.bf16.mxu0 %v4033
    %6241 = vmatpush1.bf16.msra.mxu0 %v4032
    %6242 = vmatprep.subr.bf16.mxu0 %v4051
    %6243 = vmatpush1.bf16.msra.mxu0 %v4050
    %6244 = vmatprep.subr.bf16.mxu0 %v4069
    %6245 = vmatpush1.bf16.msra.mxu0 %v4068
    %6246 = vmatprep.mubr.bf16.mxu0 %v1132
    %6247 = vmatmul.mubr.bf16.gmra.mrb[0].mxu0 %v1131
    %v6248 = vpop.f32.mrb[0].mxu0
    %v6249 = vadd.f32 %v1065, %v6248
    %v6250 = vpop.f32.mrb[0].mxu0
    %v6251 = vadd.f32 %v1069, %v6250
    %v6252 = vpop.f32.mrb[0].mxu0
    %v6253 = vpop.f32.mrb[0].mxu0
    %6254 = vdwg.mxu0
    %6255 = vmatprep.subr.bf16.mxu0 %v4087
    %6256 = vmatpush1.bf16.msra.mxu0 %v4086
    %6257 = vmatprep.subr.bf16.mxu0 %v4105
    %6258 = vmatpush1.bf16.msra.mxu0 %v4104
    %6259 = vmatprep.subr.bf16.mxu0 %v4123
    %6260 = vmatpush1.bf16.msra.mxu0 %v4122
    %6261 = vmatprep.subr.bf16.mxu0 %v4141
    %6262 = vmatpush1.bf16.msra.mxu0 %v4140
    %6263 = vmatprep.subr.bf16.mxu0 %v4159
    %6264 = vmatpush1.bf16.msra.mxu0 %v4158
    %6265 = vmatprep.subr.bf16.mxu0 %v4177
    %6266 = vmatpush1.bf16.msra.mxu0 %v4176
    %6267 = vmatprep.subr.bf16.mxu0 %v4195
    %6268 = vmatpush1.bf16.msra.mxu0 %v4194
    %6269 = vmatprep.subr.bf16.mxu0 %v4213
    %6270 = vmatpush1.bf16.msra.mxu0 %v4212
    %6271 = vmatprep.subr.bf16.mxu0 %v4231
    %6272 = vmatpush1.bf16.msra.mxu0 %v4230
    %6273 = vmatprep.subr.bf16.mxu0 %v4249
    %6274 = vmatpush1.bf16.msra.mxu0 %v4248
    %6275 = vmatprep.subr.bf16.mxu0 %v4267
    %6276 = vmatpush1.bf16.msra.mxu0 %v4266
    %6277 = vmatprep.subr.bf16.mxu0 %v4285
    %6278 = vmatpush1.bf16.msra.mxu0 %v4284
    %6279 = vmatprep.subr.bf16.mxu0 %v4303
    %6280 = vmatpush1.bf16.msra.mxu0 %v4302
    %6281 = vmatprep.subr.bf16.mxu0 %v4321
    %6282 = vmatpush1.bf16.msra.mxu0 %v4320
    %6283 = vmatprep.subr.bf16.mxu0 %v4339
    %6284 = vmatpush1.bf16.msra.mxu0 %v4338
    %6285 = vmatprep.subr.bf16.mxu0 %v4357
    %6286 = vmatpush1.bf16.msra.mxu0 %v4356
    %6287 = vmatprep.mubr.bf16.mxu0 %v1134
    %6288 = vmatmul.mubr.bf16.gmra.mrb[0].mxu0 %v1133
    %v6289 = vpop.f32.mrb[0].mxu0
    %v6290 = vadd.f32 %v6249, %v6289
    %v6291 = vpop.f32.mrb[0].mxu0
    %v6292 = vadd.f32 %v6251, %v6291
    %v6293 = vpop.f32.mrb[0].mxu0
    %v6294 = vpop.f32.mrb[0].mxu0
    %6295 = vdwg.mxu0
    %6296 = vmatprep.subr.bf16.mxu0 %v4375
    %6297 = vmatpush1.bf16.msra.mxu0 %v4374
    %6298 = vmatprep.subr.bf16.mxu0 %v4393
    %6299 = vmatpush1.bf16.msra.mxu0 %v4392
    %6300 = vmatprep.subr.bf16.mxu0 %v4411
    %6301 = vmatpush1.bf16.msra.mxu0 %v4410
    %6302 = vmatprep.subr.bf16.mxu0 %v4429
    %6303 = vmatpush1.bf16.msra.mxu0 %v4428
    %6304 = vmatprep.subr.bf16.mxu0 %v4447
    %6305 = vmatpush1.bf16.msra.mxu0 %v4446
    %6306 = vmatprep.subr.bf16.mxu0 %v4465
    %6307 = vmatpush1.bf16.msra.mxu0 %v4464
    %6308 = vmatprep.subr.bf16.mxu0 %v4483
    %6309 = vmatpush1.bf16.msra.mxu0 %v4482
    %6310 = vmatprep.subr.bf16.mxu0 %v4501
    %6311 = vmatpush1.bf16.msra.mxu0 %v4500
    %6312 = vmatprep.subr.bf16.mxu0 %v4519
    %6313 = vmatpush1.bf16.msra.mxu0 %v4518
    %6314 = vmatprep.subr.bf16.mxu0 %v4537
    %6315 = vmatpush1.bf16.msra.mxu0 %v4536
    %6316 = vmatprep.subr.bf16.mxu0 %v4555
    %6317 = vmatpush1.bf16.msra.mxu0 %v4554
    %6318 = vmatprep.subr.bf16.mxu0 %v4573
    %6319 = vmatpush1.bf16.msra.mxu0 %v4572
    %6320 = vmatprep.subr.bf16.mxu0 %v4591
    %6321 = vmatpush1.bf16.msra.mxu0 %v4590
    %6322 = vmatprep.subr.bf16.mxu0 %v4609
    %6323 = vmatpush1.bf16.msra.mxu0 %v4608
    %6324 = vmatprep.subr.bf16.mxu0 %v4627
    %6325 = vmatpush1.bf16.msra.mxu0 %v4626
    %6326 = vmatprep.subr.bf16.mxu0 %v4645
    %6327 = vmatpush1.bf16.msra.mxu0 %v4644
    %6328 = vmatprep.mubr.bf16.mxu0 %v1136
    %6329 = vmatmul.mubr.bf16.gmra.mrb[0].mxu0 %v1135
    %v6330 = vpop.f32.mrb[0].mxu0
    %v6331 = vadd.f32 %v6290, %v6330
    %v6332 = vpop.f32.mrb[0].mxu0
    %v6333 = vadd.f32 %v6292, %v6332
    %v6334 = vpop.f32.mrb[0].mxu0
    %v6335 = vpop.f32.mrb[0].mxu0
    %6336 = vdwg.mxu0
    %6337 = vmatprep.subr.bf16.mxu0 %v4663
    %6338 = vmatpush1.bf16.msra.mxu0 %v4662
    %6339 = vmatprep.subr.bf16.mxu0 0
    %6340 = vmatpush1.bf16.msra.mxu0 0
    %6341 = vmatprep.subr.bf16.mxu0 0
    %6342 = vmatpush1.bf16.msra.mxu0 0
    %6343 = vmatprep.subr.bf16.mxu0 0
    %6344 = vmatpush1.bf16.msra.mxu0 0
    %6345 = vmatprep.subr.bf16.mxu0 0
    %6346 = vmatpush1.bf16.msra.mxu0 0
    %6347 = vmatprep.subr.bf16.mxu0 0
    %6348 = vmatpush1.bf16.msra.mxu0 0
    %6349 = vmatprep.subr.bf16.mxu0 0
    %6350 = vmatpush1.bf16.msra.mxu0 0
    %6351 = vmatprep.subr.bf16.mxu0 0
    %6352 = vmatpush1.bf16.msra.mxu0 0
    %6353 = vmatprep.subr.bf16.mxu0 0
    %6354 = vmatpush1.bf16.msra.mxu0 0
    %6355 = vmatprep.subr.bf16.mxu0 0
    %6356 = vmatpush1.bf16.msra.mxu0 0
    %6357 = vmatprep.subr.bf16.mxu0 0
    %6358 = vmatpush1.bf16.msra.mxu0 0
    %6359 = vmatprep.subr.bf16.mxu0 0
    %6360 = vmatpush1.bf16.msra.mxu0 0
    %6361 = vmatprep.subr.bf16.mxu0 0
    %6362 = vmatpush1.bf16.msra.mxu0 0
    %6363 = vmatprep.subr.bf16.mxu0 0
    %6364 = vmatpush1.bf16.msra.mxu0 0
    %6365 = vmatprep.subr.bf16.mxu0 0
    %6366 = vmatpush1.bf16.msra.mxu0 0
    %6367 = vmatprep.subr.bf16.mxu0 0
    %6368 = vmatpush1.bf16.msra.mxu0 0
    %6369 = vmatprep.mubr.bf16.mxu0 0
    %6370 = vmatmul.mubr.bf16.gmra.mrb[0].mxu0 %v5556
    %v6371 = vpop.f32.mrb[0].mxu0
    %v6372 = vadd.f32 %v6331, %v6371
    %v6373 = vpop.f32.mrb[0].mxu0
    %v6374 = vadd.f32 %v6333, %v6373
    %v6375 = vpop.f32.mrb[0].mxu0
    %v6376 = vpop.f32.mrb[0].mxu0
    %6377 = vdwg.mxu0
    %6378 = vmatprep.subr.bf16.mxu0 %v3801
    %6379 = vmatpush1.bf16.msra.mxu0 %v3800
    %6380 = vmatprep.subr.bf16.mxu0 %v3819
    %6381 = vmatpush1.bf16.msra.mxu0 %v3818
    %6382 = vmatprep.subr.bf16.mxu0 %v3837
    %6383 = vmatpush1.bf16.msra.mxu0 %v3836
    %6384 = vmatprep.subr.bf16.mxu0 %v3855
    %6385 = vmatpush1.bf16.msra.mxu0 %v3854
    %6386 = vmatprep.subr.bf16.mxu0 %v3873
    %6387 = vmatpush1.bf16.msra.mxu0 %v3872
    %6388 = vmatprep.subr.bf16.mxu0 %v3891
    %6389 = vmatpush1.bf16.msra.mxu0 %v3890
    %6390 = vmatprep.subr.bf16.mxu0 %v3909
    %6391 = vmatpush1.bf16.msra.mxu0 %v3908
    %6392 = vmatprep.subr.bf16.mxu0 %v3927
    %6393 = vmatpush1.bf16.msra.mxu0 %v3926
    %6394 = vmatprep.subr.bf16.mxu0 %v3945
    %6395 = vmatpush1.bf16.msra.mxu0 %v3944
    %6396 = vmatprep.subr.bf16.mxu0 %v3963
    %6397 = vmatpush1.bf16.msra.mxu0 %v3962
    %6398 = vmatprep.subr.bf16.mxu0 %v3981
    %6399 = vmatpush1.bf16.msra.mxu0 %v3980
    %6400 = vmatprep.subr.bf16.mxu0 %v3999
    %6401 = vmatpush1.bf16.msra.mxu0 %v3998
    %6402 = vmatprep.subr.bf16.mxu0 %v4017
    %6403 = vmatpush1.bf16.msra.mxu0 %v4016
    %6404 = vmatprep.subr.bf16.mxu0 %v4035
    %6405 = vmatpush1.bf16.msra.mxu0 %v4034
    %6406 = vmatprep.subr.bf16.mxu0 %v4053
    %6407 = vmatpush1.bf16.msra.mxu0 %v4052
    %6408 = vmatprep.subr.bf16.mxu0 %v4071
    %6409 = vmatpush1.bf16.msra.mxu0 %v4070
    %6410 = vmatprep.mubr.bf16.mxu0 %v1132
    %6411 = vmatmul.mubr.bf16.gmra.mrb[0].mxu0 %v1131
    %v6412 = vpop.f32.mrb[0].mxu0
    %v6413 = vadd.f32 %v1073, %v6412
    %v6414 = vpop.f32.mrb[0].mxu0
    %v6415 = vadd.f32 %v1077, %v6414
    %v6416 = vpop.f32.mrb[0].mxu0
    %v6417 = vpop.f32.mrb[0].mxu0
    %6418 = vdwg.mxu0
    %6419 = vmatprep.subr.bf16.mxu0 %v4089
    %6420 = vmatpush1.bf16.msra.mxu0 %v4088
    %6421 = vmatprep.subr.bf16.mxu0 %v4107
    %6422 = vmatpush1.bf16.msra.mxu0 %v4106
    %6423 = vmatprep.subr.bf16.mxu0 %v4125
    %6424 = vmatpush1.bf16.msra.mxu0 %v4124
    %6425 = vmatprep.subr.bf16.mxu0 %v4143
    %6426 = vmatpush1.bf16.msra.mxu0 %v4142
    %6427 = vmatprep.subr.bf16.mxu0 %v4161
    %6428 = vmatpush1.bf16.msra.mxu0 %v4160
    %6429 = vmatprep.subr.bf16.mxu0 %v4179
    %6430 = vmatpush1.bf16.msra.mxu0 %v4178
    %6431 = vmatprep.subr.bf16.mxu0 %v4197
    %6432 = vmatpush1.bf16.msra.mxu0 %v4196
    %6433 = vmatprep.subr.bf16.mxu0 %v4215
    %6434 = vmatpush1.bf16.msra.mxu0 %v4214
    %6435 = vmatprep.subr.bf16.mxu0 %v4233
    %6436 = vmatpush1.bf16.msra.mxu0 %v4232
    %6437 = vmatprep.subr.bf16.mxu0 %v4251
    %6438 = vmatpush1.bf16.msra.mxu0 %v4250
    %6439 = vmatprep.subr.bf16.mxu0 %v4269
    %6440 = vmatpush1.bf16.msra.mxu0 %v4268
    %6441 = vmatprep.subr.bf16.mxu0 %v4287
    %6442 = vmatpush1.bf16.msra.mxu0 %v4286
    %6443 = vmatprep.subr.bf16.mxu0 %v4305
    %6444 = vmatpush1.bf16.msra.mxu0 %v4304
    %6445 = vmatprep.subr.bf16.mxu0 %v4323
    %6446 = vmatpush1.bf16.msra.mxu0 %v4322
    %6447 = vmatprep.subr.bf16.mxu0 %v4341
    %6448 = vmatpush1.bf16.msra.mxu0 %v4340
    %6449 = vmatprep.subr.bf16.mxu0 %v4359
    %6450 = vmatpush1.bf16.msra.mxu0 %v4358
    %6451 = vmatprep.mubr.bf16.mxu0 %v1134
    %6452 = vmatmul.mubr.bf16.gmra.mrb[0].mxu0 %v1133
    %v6453 = vpop.f32.mrb[0].mxu0
    %v6454 = vadd.f32 %v6413, %v6453
    %v6455 = vpop.f32.mrb[0].mxu0
    %v6456 = vadd.f32 %v6415, %v6455
    %v6457 = vpop.f32.mrb[0].mxu0
    %v6458 = vpop.f32.mrb[0].mxu0
    %6459 = vdwg.mxu0
    %6460 = vmatprep.subr.bf16.mxu0 %v4377
    %6461 = vmatpush1.bf16.msra.mxu0 %v4376
    %6462 = vmatprep.subr.bf16.mxu0 %v4395
    %6463 = vmatpush1.bf16.msra.mxu0 %v4394
    %6464 = vmatprep.subr.bf16.mxu0 %v4413
    %6465 = vmatpush1.bf16.msra.mxu0 %v4412
    %6466 = vmatprep.subr.bf16.mxu0 %v4431
    %6467 = vmatpush1.bf16.msra.mxu0 %v4430
    %6468 = vmatprep.subr.bf16.mxu0 %v4449
    %6469 = vmatpush1.bf16.msra.mxu0 %v4448
    %6470 = vmatprep.subr.bf16.mxu0 %v4467
    %6471 = vmatpush1.bf16.msra.mxu0 %v4466
    %6472 = vmatprep.subr.bf16.mxu0 %v4485
    %6473 = vmatpush1.bf16.msra.mxu0 %v4484
    %6474 = vmatprep.subr.bf16.mxu0 %v4503
    %6475 = vmatpush1.bf16.msra.mxu0 %v4502
    %6476 = vmatprep.subr.bf16.mxu0 %v4521
    %6477 = vmatpush1.bf16.msra.mxu0 %v4520
    %6478 = vmatprep.subr.bf16.mxu0 %v4539
    %6479 = vmatpush1.bf16.msra.mxu0 %v4538
    %6480 = vmatprep.subr.bf16.mxu0 %v4557
    %6481 = vmatpush1.bf16.msra.mxu0 %v4556
    %6482 = vmatprep.subr.bf16.mxu0 %v4575
    %6483 = vmatpush1.bf16.msra.mxu0 %v4574
    %6484 = vmatprep.subr.bf16.mxu0 %v4593
    %6485 = vmatpush1.bf16.msra.mxu0 %v4592
    %6486 = vmatprep.subr.bf16.mxu0 %v4611
    %6487 = vmatpush1.bf16.msra.mxu0 %v4610
    %6488 = vmatprep.subr.bf16.mxu0 %v4629
    %6489 = vmatpush1.bf16.msra.mxu0 %v4628
    %6490 = vmatprep.subr.bf16.mxu0 %v4647
    %6491 = vmatpush1.bf16.msra.mxu0 %v4646
    %6492 = vmatprep.mubr.bf16.mxu0 %v1136
    %6493 = vmatmul.mubr.bf16.gmra.mrb[0].mxu0 %v1135
    %v6494 = vpop.f32.mrb[0].mxu0
    %v6495 = vadd.f32 %v6454, %v6494
    %v6496 = vpop.f32.mrb[0].mxu0
    %v6497 = vadd.f32 %v6456, %v6496
    %v6498 = vpop.f32.mrb[0].mxu0
    %v6499 = vpop.f32.mrb[0].mxu0
    %6500 = vdwg.mxu0
    %6501 = vmatprep.subr.bf16.mxu0 %v4665
    %6502 = vmatpush1.bf16.msra.mxu0 %v4664
    %6503 = vmatprep.subr.bf16.mxu0 0
    %6504 = vmatpush1.bf16.msra.mxu0 0
    %6505 = vmatprep.subr.bf16.mxu0 0
    %6506 = vmatpush1.bf16.msra.mxu0 0
    %6507 = vmatprep.subr.bf16.mxu0 0
    %6508 = vmatpush1.bf16.msra.mxu0 0
    %6509 = vmatprep.subr.bf16.mxu0 0
    %6510 = vmatpush1.bf16.msra.mxu0 0
    %6511 = vmatprep.subr.bf16.mxu0 0
    %6512 = vmatpush1.bf16.msra.mxu0 0
    %6513 = vmatprep.subr.bf16.mxu0 0
    %6514 = vmatpush1.bf16.msra.mxu0 0
    %6515 = vmatprep.subr.bf16.mxu0 0
    %6516 = vmatpush1.bf16.msra.mxu0 0
    %6517 = vmatprep.subr.bf16.mxu0 0
    %6518 = vmatpush1.bf16.msra.mxu0 0
    %6519 = vmatprep.subr.bf16.mxu0 0
    %6520 = vmatpush1.bf16.msra.mxu0 0
    %6521 = vmatprep.subr.bf16.mxu0 0
    %6522 = vmatpush1.bf16.msra.mxu0 0
    %6523 = vmatprep.subr.bf16.mxu0 0
    %6524 = vmatpush1.bf16.msra.mxu0 0
    %6525 = vmatprep.subr.bf16.mxu0 0
    %6526 = vmatpush1.bf16.msra.mxu0 0
    %6527 = vmatprep.subr.bf16.mxu0 0
    %6528 = vmatpush1.bf16.msra.mxu0 0
    %6529 = vmatprep.subr.bf16.mxu0 0
    %6530 = vmatpush1.bf16.msra.mxu0 0
    %6531 = vmatprep.subr.bf16.mxu0 0
    %6532 = vmatpush1.bf16.msra.mxu0 0
    %6533 = vmatprep.mubr.bf16.mxu0 0
    %6534 = vmatmul.mubr.bf16.gmra.mrb[0].mxu0 %v5556
    %v6535 = vpop.f32.mrb[0].mxu0
    %v6536 = vadd.f32 %v6495, %v6535
    %v6537 = vpop.f32.mrb[0].mxu0
    %v6538 = vadd.f32 %v6497, %v6537
    %v6539 = vpop.f32.mrb[0].mxu0
    %v6540 = vpop.f32.mrb[0].mxu0
    %6541 = vdwg.mxu0
    %6542 = vmatprep.subr.bf16.mxu0 %v3803
    %6543 = vmatpush1.bf16.msra.mxu0 %v3802
    %6544 = vmatprep.subr.bf16.mxu0 %v3821
    %6545 = vmatpush1.bf16.msra.mxu0 %v3820
    %6546 = vmatprep.subr.bf16.mxu0 %v3839
    %6547 = vmatpush1.bf16.msra.mxu0 %v3838
    %6548 = vmatprep.subr.bf16.mxu0 %v3857
    %6549 = vmatpush1.bf16.msra.mxu0 %v3856
    %6550 = vmatprep.subr.bf16.mxu0 %v3875
    %6551 = vmatpush1.bf16.msra.mxu0 %v3874
    %6552 = vmatprep.subr.bf16.mxu0 %v3893
    %6553 = vmatpush1.bf16.msra.mxu0 %v3892
    %6554 = vmatprep.subr.bf16.mxu0 %v3911
    %6555 = vmatpush1.bf16.msra.mxu0 %v3910
    %6556 = vmatprep.subr.bf16.mxu0 %v3929
    %6557 = vmatpush1.bf16.msra.mxu0 %v3928
    %6558 = vmatprep.subr.bf16.mxu0 %v3947
    %6559 = vmatpush1.bf16.msra.mxu0 %v3946
    %6560 = vmatprep.subr.bf16.mxu0 %v3965
    %6561 = vmatpush1.bf16.msra.mxu0 %v3964
    %6562 = vmatprep.subr.bf16.mxu0 %v3983
    %6563 = vmatpush1.bf16.msra.mxu0 %v3982
    %6564 = vmatprep.subr.bf16.mxu0 %v4001
    %6565 = vmatpush1.bf16.msra.mxu0 %v4000
    %6566 = vmatprep.subr.bf16.mxu0 %v4019
    %6567 = vmatpush1.bf16.msra.mxu0 %v4018
    %6568 = vmatprep.subr.bf16.mxu0 %v4037
    %6569 = vmatpush1.bf16.msra.mxu0 %v4036
    %6570 = vmatprep.subr.bf16.mxu0 %v4055
    %6571 = vmatpush1.bf16.msra.mxu0 %v4054
    %6572 = vmatprep.subr.bf16.mxu0 %v4073
    %6573 = vmatpush1.bf16.msra.mxu0 %v4072
    %6574 = vmatprep.mubr.bf16.mxu0 %v1132
    %6575 = vmatmul.mubr.bf16.gmra.mrb[0].mxu0 %v1131
    %v6576 = vpop.f32.mrb[0].mxu0
    %v6577 = vadd.f32 %v1081, %v6576
    %v6578 = vpop.f32.mrb[0].mxu0
    %v6579 = vadd.f32 %v1085, %v6578
    %v6580 = vpop.f32.mrb[0].mxu0
    %v6581 = vpop.f32.mrb[0].mxu0
    %6582 = vdwg.mxu0
    %6583 = vmatprep.subr.bf16.mxu0 %v4091
    %6584 = vmatpush1.bf16.msra.mxu0 %v4090
    %6585 = vmatprep.subr.bf16.mxu0 %v4109
    %6586 = vmatpush1.bf16.msra.mxu0 %v4108
    %6587 = vmatprep.subr.bf16.mxu0 %v4127
    %6588 = vmatpush1.bf16.msra.mxu0 %v4126
    %6589 = vmatprep.subr.bf16.mxu0 %v4145
    %6590 = vmatpush1.bf16.msra.mxu0 %v4144
    %6591 = vmatprep.subr.bf16.mxu0 %v4163
    %6592 = vmatpush1.bf16.msra.mxu0 %v4162
    %6593 = vmatprep.subr.bf16.mxu0 %v4181
    %6594 = vmatpush1.bf16.msra.mxu0 %v4180
    %6595 = vmatprep.subr.bf16.mxu0 %v4199
    %6596 = vmatpush1.bf16.msra.mxu0 %v4198
    %6597 = vmatprep.subr.bf16.mxu0 %v4217
    %6598 = vmatpush1.bf16.msra.mxu0 %v4216
    %6599 = vmatprep.subr.bf16.mxu0 %v4235
    %6600 = vmatpush1.bf16.msra.mxu0 %v4234
    %6601 = vmatprep.subr.bf16.mxu0 %v4253
    %6602 = vmatpush1.bf16.msra.mxu0 %v4252
    %6603 = vmatprep.subr.bf16.mxu0 %v4271
    %6604 = vmatpush1.bf16.msra.mxu0 %v4270
    %6605 = vmatprep.subr.bf16.mxu0 %v4289
    %6606 = vmatpush1.bf16.msra.mxu0 %v4288
    %6607 = vmatprep.subr.bf16.mxu0 %v4307
    %6608 = vmatpush1.bf16.msra.mxu0 %v4306
    %6609 = vmatprep.subr.bf16.mxu0 %v4325
    %6610 = vmatpush1.bf16.msra.mxu0 %v4324
    %6611 = vmatprep.subr.bf16.mxu0 %v4343
    %6612 = vmatpush1.bf16.msra.mxu0 %v4342
    %6613 = vmatprep.subr.bf16.mxu0 %v4361
    %6614 = vmatpush1.bf16.msra.mxu0 %v4360
    %6615 = vmatprep.mubr.bf16.mxu0 %v1134
    %6616 = vmatmul.mubr.bf16.gmra.mrb[0].mxu0 %v1133
    %v6617 = vpop.f32.mrb[0].mxu0
    %v6618 = vadd.f32 %v6577, %v6617
    %v6619 = vpop.f32.mrb[0].mxu0
    %v6620 = vadd.f32 %v6579, %v6619
    %v6621 = vpop.f32.mrb[0].mxu0
    %v6622 = vpop.f32.mrb[0].mxu0
    %6623 = vdwg.mxu0
    %6624 = vmatprep.subr.bf16.mxu0 %v4379
    %6625 = vmatpush1.bf16.msra.mxu0 %v4378
    %6626 = vmatprep.subr.bf16.mxu0 %v4397
    %6627 = vmatpush1.bf16.msra.mxu0 %v4396
    %6628 = vmatprep.subr.bf16.mxu0 %v4415
    %6629 = vmatpush1.bf16.msra.mxu0 %v4414
    %6630 = vmatprep.subr.bf16.mxu0 %v4433
    %6631 = vmatpush1.bf16.msra.mxu0 %v4432
    %6632 = vmatprep.subr.bf16.mxu0 %v4451
    %6633 = vmatpush1.bf16.msra.mxu0 %v4450
    %6634 = vmatprep.subr.bf16.mxu0 %v4469
    %6635 = vmatpush1.bf16.msra.mxu0 %v4468
    %6636 = vmatprep.subr.bf16.mxu0 %v4487
    %6637 = vmatpush1.bf16.msra.mxu0 %v4486
    %6638 = vmatprep.subr.bf16.mxu0 %v4505
    %6639 = vmatpush1.bf16.msra.mxu0 %v4504
    %6640 = vmatprep.subr.bf16.mxu0 %v4523
    %6641 = vmatpush1.bf16.msra.mxu0 %v4522
    %6642 = vmatprep.subr.bf16.mxu0 %v4541
    %6643 = vmatpush1.bf16.msra.mxu0 %v4540
    %6644 = vmatprep.subr.bf16.mxu0 %v4559
    %6645 = vmatpush1.bf16.msra.mxu0 %v4558
    %6646 = vmatprep.subr.bf16.mxu0 %v4577
    %6647 = vmatpush1.bf16.msra.mxu0 %v4576
    %6648 = vmatprep.subr.bf16.mxu0 %v4595
    %6649 = vmatpush1.bf16.msra.mxu0 %v4594
    %6650 = vmatprep.subr.bf16.mxu0 %v4613
    %6651 = vmatpush1.bf16.msra.mxu0 %v4612
    %6652 = vmatprep.subr.bf16.mxu0 %v4631
    %6653 = vmatpush1.bf16.msra.mxu0 %v4630
    %6654 = vmatprep.subr.bf16.mxu0 %v4649
    %6655 = vmatpush1.bf16.msra.mxu0 %v4648
    %6656 = vmatprep.mubr.bf16.mxu0 %v1136
    %6657 = vmatmul.mubr.bf16.gmra.mrb[0].mxu0 %v1135
    %v6658 = vpop.f32.mrb[0].mxu0
    %v6659 = vadd.f32 %v6618, %v6658
    %v6660 = vpop.f32.mrb[0].mxu0
    %v6661 = vadd.f32 %v6620, %v6660
    %v6662 = vpop.f32.mrb[0].mxu0
    %v6663 = vpop.f32.mrb[0].mxu0
    %6664 = vdwg.mxu0
    %6665 = vmatprep.subr.bf16.mxu0 %v4667
    %6666 = vmatpush1.bf16.msra.mxu0 %v4666
    %6667 = vmatprep.subr.bf16.mxu0 0
    %6668 = vmatpush1.bf16.msra.mxu0 0
    %6669 = vmatprep.subr.bf16.mxu0 0
    %6670 = vmatpush1.bf16.msra.mxu0 0
    %6671 = vmatprep.subr.bf16.mxu0 0
    %6672 = vmatpush1.bf16.msra.mxu0 0
    %6673 = vmatprep.subr.bf16.mxu0 0
    %6674 = vmatpush1.bf16.msra.mxu0 0
    %6675 = vmatprep.subr.bf16.mxu0 0
    %6676 = vmatpush1.bf16.msra.mxu0 0
    %6677 = vmatprep.subr.bf16.mxu0 0
    %6678 = vmatpush1.bf16.msra.mxu0 0
    %6679 = vmatprep.subr.bf16.mxu0 0
    %6680 = vmatpush1.bf16.msra.mxu0 0
    %6681 = vmatprep.subr.bf16.mxu0 0
    %6682 = vmatpush1.bf16.msra.mxu0 0
    %6683 = vmatprep.subr.bf16.mxu0 0
    %6684 = vmatpush1.bf16.msra.mxu0 0
    %6685 = vmatprep.subr.bf16.mxu0 0
    %6686 = vmatpush1.bf16.msra.mxu0 0
    %6687 = vmatprep.subr.bf16.mxu0 0
    %6688 = vmatpush1.bf16.msra.mxu0 0
    %6689 = vmatprep.subr.bf16.mxu0 0
    %6690 = vmatpush1.bf16.msra.mxu0 0
    %6691 = vmatprep.subr.bf16.mxu0 0
    %6692 = vmatpush1.bf16.msra.mxu0 0
    %6693 = vmatprep.subr.bf16.mxu0 0
    %6694 = vmatpush1.bf16.msra.mxu0 0
    %6695 = vmatprep.subr.bf16.mxu0 0
    %6696 = vmatpush1.bf16.msra.mxu0 0
    %6697 = vmatprep.mubr.bf16.mxu0 0
    %6698 = vmatmul.mubr.bf16.gmra.mrb[0].mxu0 %v5556
    %v6699 = vpop.f32.mrb[0].mxu0
    %v6700 = vadd.f32 %v6659, %v6699
    %v6701 = vpop.f32.mrb[0].mxu0
    %v6702 = vadd.f32 %v6661, %v6701
    %v6703 = vpop.f32.mrb[0].mxu0
    %v6704 = vpop.f32.mrb[0].mxu0
    %6705 = vdwg.mxu0
    %6706 = vmatprep.subr.bf16.mxu0 %v3805
    %6707 = vmatpush1.bf16.msra.mxu0 %v3804
    %6708 = vmatprep.subr.bf16.mxu0 %v3823
    %6709 = vmatpush1.bf16.msra.mxu0 %v3822
    %6710 = vmatprep.subr.bf16.mxu0 %v3841
    %6711 = vmatpush1.bf16.msra.mxu0 %v3840
    %6712 = vmatprep.subr.bf16.mxu0 %v3859
    %6713 = vmatpush1.bf16.msra.mxu0 %v3858
    %6714 = vmatprep.subr.bf16.mxu0 %v3877
    %6715 = vmatpush1.bf16.msra.mxu0 %v3876
    %6716 = vmatprep.subr.bf16.mxu0 %v3895
    %6717 = vmatpush1.bf16.msra.mxu0 %v3894
    %6718 = vmatprep.subr.bf16.mxu0 %v3913
    %6719 = vmatpush1.bf16.msra.mxu0 %v3912
    %6720 = vmatprep.subr.bf16.mxu0 %v3931
    %6721 = vmatpush1.bf16.msra.mxu0 %v3930
    %6722 = vmatprep.subr.bf16.mxu0 %v3949
    %6723 = vmatpush1.bf16.msra.mxu0 %v3948
    %6724 = vmatprep.subr.bf16.mxu0 %v3967
    %6725 = vmatpush1.bf16.msra.mxu0 %v3966
    %6726 = vmatprep.subr.bf16.mxu0 %v3985
    %6727 = vmatpush1.bf16.msra.mxu0 %v3984
    %6728 = vmatprep.subr.bf16.mxu0 %v4003
    %6729 = vmatpush1.bf16.msra.mxu0 %v4002
    %6730 = vmatprep.subr.bf16.mxu0 %v4021
    %6731 = vmatpush1.bf16.msra.mxu0 %v4020
    %6732 = vmatprep.subr.bf16.mxu0 %v4039
    %6733 = vmatpush1.bf16.msra.mxu0 %v4038
    %6734 = vmatprep.subr.bf16.mxu0 %v4057
    %6735 = vmatpush1.bf16.msra.mxu0 %v4056
    %6736 = vmatprep.subr.bf16.mxu0 %v4075
    %6737 = vmatpush1.bf16.msra.mxu0 %v4074
    %6738 = vmatprep.mubr.bf16.mxu0 %v1132
    %6739 = vmatmul.mubr.bf16.gmra.mrb[0].mxu0 %v1131
    %v6740 = vpop.f32.mrb[0].mxu0
    %v6741 = vadd.f32 %v1089, %v6740
    %v6742 = vpop.f32.mrb[0].mxu0
    %v6743 = vadd.f32 %v1093, %v6742
    %v6744 = vpop.f32.mrb[0].mxu0
    %v6745 = vpop.f32.mrb[0].mxu0
    %6746 = vdwg.mxu0
    %6747 = vmatprep.subr.bf16.mxu0 %v4093
    %6748 = vmatpush1.bf16.msra.mxu0 %v4092
    %6749 = vmatprep.subr.bf16.mxu0 %v4111
    %6750 = vmatpush1.bf16.msra.mxu0 %v4110
    %6751 = vmatprep.subr.bf16.mxu0 %v4129
    %6752 = vmatpush1.bf16.msra.mxu0 %v4128
    %6753 = vmatprep.subr.bf16.mxu0 %v4147
    %6754 = vmatpush1.bf16.msra.mxu0 %v4146
    %6755 = vmatprep.subr.bf16.mxu0 %v4165
    %6756 = vmatpush1.bf16.msra.mxu0 %v4164
    %6757 = vmatprep.subr.bf16.mxu0 %v4183
    %6758 = vmatpush1.bf16.msra.mxu0 %v4182
    %6759 = vmatprep.subr.bf16.mxu0 %v4201
    %6760 = vmatpush1.bf16.msra.mxu0 %v4200
    %6761 = vmatprep.subr.bf16.mxu0 %v4219
    %6762 = vmatpush1.bf16.msra.mxu0 %v4218
    %6763 = vmatprep.subr.bf16.mxu0 %v4237
    %6764 = vmatpush1.bf16.msra.mxu0 %v4236
    %6765 = vmatprep.subr.bf16.mxu0 %v4255
    %6766 = vmatpush1.bf16.msra.mxu0 %v4254
    %6767 = vmatprep.subr.bf16.mxu0 %v4273
    %6768 = vmatpush1.bf16.msra.mxu0 %v4272
    %6769 = vmatprep.subr.bf16.mxu0 %v4291
    %6770 = vmatpush1.bf16.msra.mxu0 %v4290
    %6771 = vmatprep.subr.bf16.mxu0 %v4309
    %6772 = vmatpush1.bf16.msra.mxu0 %v4308
    %6773 = vmatprep.subr.bf16.mxu0 %v4327
    %6774 = vmatpush1.bf16.msra.mxu0 %v4326
    %6775 = vmatprep.subr.bf16.mxu0 %v4345
    %6776 = vmatpush1.bf16.msra.mxu0 %v4344
    %6777 = vmatprep.subr.bf16.mxu0 %v4363
    %6778 = vmatpush1.bf16.msra.mxu0 %v4362
    %6779 = vmatprep.mubr.bf16.mxu0 %v1134
    %6780 = vmatmul.mubr.bf16.gmra.mrb[0].mxu0 %v1133
    %v6781 = vpop.f32.mrb[0].mxu0
    %v6782 = vadd.f32 %v6741, %v6781
    %v6783 = vpop.f32.mrb[0].mxu0
    %v6784 = vadd.f32 %v6743, %v6783
    %v6785 = vpop.f32.mrb[0].mxu0
    %v6786 = vpop.f32.mrb[0].mxu0
    %6787 = vdwg.mxu0
    %6788 = vmatprep.subr.bf16.mxu0 %v4381
    %6789 = vmatpush1.bf16.msra.mxu0 %v4380
    %6790 = vmatprep.subr.bf16.mxu0 %v4399
    %6791 = vmatpush1.bf16.msra.mxu0 %v4398
    %6792 = vmatprep.subr.bf16.mxu0 %v4417
    %6793 = vmatpush1.bf16.msra.mxu0 %v4416
    %6794 = vmatprep.subr.bf16.mxu0 %v4435
    %6795 = vmatpush1.bf16.msra.mxu0 %v4434
    %6796 = vmatprep.subr.bf16.mxu0 %v4453
    %6797 = vmatpush1.bf16.msra.mxu0 %v4452
    %6798 = vmatprep.subr.bf16.mxu0 %v4471
    %6799 = vmatpush1.bf16.msra.mxu0 %v4470
    %6800 = vmatprep.subr.bf16.mxu0 %v4489
    %6801 = vmatpush1.bf16.msra.mxu0 %v4488
    %6802 = vmatprep.subr.bf16.mxu0 %v4507
    %6803 = vmatpush1.bf16.msra.mxu0 %v4506
    %6804 = vmatprep.subr.bf16.mxu0 %v4525
    %6805 = vmatpush1.bf16.msra.mxu0 %v4524
    %6806 = vmatprep.subr.bf16.mxu0 %v4543
    %6807 = vmatpush1.bf16.msra.mxu0 %v4542
    %6808 = vmatprep.subr.bf16.mxu0 %v4561
    %6809 = vmatpush1.bf16.msra.mxu0 %v4560
    %6810 = vmatprep.subr.bf16.mxu0 %v4579
    %6811 = vmatpush1.bf16.msra.mxu0 %v4578
    %6812 = vmatprep.subr.bf16.mxu0 %v4597
    %6813 = vmatpush1.bf16.msra.mxu0 %v4596
    %6814 = vmatprep.subr.bf16.mxu0 %v4615
    %6815 = vmatpush1.bf16.msra.mxu0 %v4614
    %6816 = vmatprep.subr.bf16.mxu0 %v4633
    %6817 = vmatpush1.bf16.msra.mxu0 %v4632
    %6818 = vmatprep.subr.bf16.mxu0 %v4651
    %6819 = vmatpush1.bf16.msra.mxu0 %v4650
    %6820 = vmatprep.mubr.bf16.mxu0 %v1136
    %6821 = vmatmul.mubr.bf16.gmra.mrb[0].mxu0 %v1135
    %v6822 = vpop.f32.mrb[0].mxu0
    %v6823 = vadd.f32 %v6782, %v6822
    %v6824 = vpop.f32.mrb[0].mxu0
    %v6825 = vadd.f32 %v6784, %v6824
    %v6826 = vpop.f32.mrb[0].mxu0
    %v6827 = vpop.f32.mrb[0].mxu0
    %6828 = vdwg.mxu0
    %6829 = vmatprep.subr.bf16.mxu0 %v4669
    %6830 = vmatpush1.bf16.msra.mxu0 %v4668
    %6831 = vmatprep.subr.bf16.mxu0 0
    %6832 = vmatpush1.bf16.msra.mxu0 0
    %6833 = vmatprep.subr.bf16.mxu0 0
    %6834 = vmatpush1.bf16.msra.mxu0 0
    %6835 = vmatprep.subr.bf16.mxu0 0
    %6836 = vmatpush1.bf16.msra.mxu0 0
    %6837 = vmatprep.subr.bf16.mxu0 0
    %6838 = vmatpush1.bf16.msra.mxu0 0
    %6839 = vmatprep.subr.bf16.mxu0 0
    %6840 = vmatpush1.bf16.msra.mxu0 0
    %6841 = vmatprep.subr.bf16.mxu0 0
    %6842 = vmatpush1.bf16.msra.mxu0 0
    %6843 = vmatprep.subr.bf16.mxu0 0
    %6844 = vmatpush1.bf16.msra.mxu0 0
    %6845 = vmatprep.subr.bf16.mxu0 0
    %6846 = vmatpush1.bf16.msra.mxu0 0
    %6847 = vmatprep.subr.bf16.mxu0 0
    %6848 = vmatpush1.bf16.msra.mxu0 0
    %6849 = vmatprep.subr.bf16.mxu0 0
    %6850 = vmatpush1.bf16.msra.mxu0 0
    %6851 = vmatprep.subr.bf16.mxu0 0
    %6852 = vmatpush1.bf16.msra.mxu0 0
    %6853 = vmatprep.subr.bf16.mxu0 0
    %6854 = vmatpush1.bf16.msra.mxu0 0
    %6855 = vmatprep.subr.bf16.mxu0 0
    %6856 = vmatpush1.bf16.msra.mxu0 0
    %6857 = vmatprep.subr.bf16.mxu0 0
    %6858 = vmatpush1.bf16.msra.mxu0 0
    %6859 = vmatprep.subr.bf16.mxu0 0
    %6860 = vmatpush1.bf16.msra.mxu0 0
    %6861 = vmatprep.mubr.bf16.mxu0 0
    %6862 = vmatmul.mubr.bf16.gmra.mrb[0].mxu0 %v5556
    %v6863 = vpop.f32.mrb[0].mxu0
    %v6864 = vadd.f32 %v6823, %v6863
    %v6865 = vpop.f32.mrb[0].mxu0
    %v6866 = vadd.f32 %v6825, %v6865
    %v6867 = vpop.f32.mrb[0].mxu0
    %v6868 = vpop.f32.mrb[0].mxu0
    %6869 = vdwg.mxu0
    %6870 = vmatprep.subr.bf16.mxu0 %v3807
    %6871 = vmatpush1.bf16.msra.mxu0 %v3806
    %6872 = vmatprep.subr.bf16.mxu0 %v3825
    %6873 = vmatpush1.bf16.msra.mxu0 %v3824
    %6874 = vmatprep.subr.bf16.mxu0 %v3843
    %6875 = vmatpush1.bf16.msra.mxu0 %v3842
    %6876 = vmatprep.subr.bf16.mxu0 %v3861
    %6877 = vmatpush1.bf16.msra.mxu0 %v3860
    %6878 = vmatprep.subr.bf16.mxu0 %v3879
    %6879 = vmatpush1.bf16.msra.mxu0 %v3878
    %6880 = vmatprep.subr.bf16.mxu0 %v3897
    %6881 = vmatpush1.bf16.msra.mxu0 %v3896
    %6882 = vmatprep.subr.bf16.mxu0 %v3915
    %6883 = vmatpush1.bf16.msra.mxu0 %v3914
    %6884 = vmatprep.subr.bf16.mxu0 %v3933
    %6885 = vmatpush1.bf16.msra.mxu0 %v3932
    %6886 = vmatprep.subr.bf16.mxu0 %v3951
    %6887 = vmatpush1.bf16.msra.mxu0 %v3950
    %6888 = vmatprep.subr.bf16.mxu0 %v3969
    %6889 = vmatpush1.bf16.msra.mxu0 %v3968
    %6890 = vmatprep.subr.bf16.mxu0 %v3987
    %6891 = vmatpush1.bf16.msra.mxu0 %v3986
    %6892 = vmatprep.subr.bf16.mxu0 %v4005
    %6893 = vmatpush1.bf16.msra.mxu0 %v4004
    %6894 = vmatprep.subr.bf16.mxu0 %v4023
    %6895 = vmatpush1.bf16.msra.mxu0 %v4022
    %6896 = vmatprep.subr.bf16.mxu0 %v4041
    %6897 = vmatpush1.bf16.msra.mxu0 %v4040
    %6898 = vmatprep.subr.bf16.mxu0 %v4059
    %6899 = vmatpush1.bf16.msra.mxu0 %v4058
    %6900 = vmatprep.subr.bf16.mxu0 %v4077
    %6901 = vmatpush1.bf16.msra.mxu0 %v4076
    %6902 = vmatprep.mubr.bf16.mxu0 %v1132
    %6903 = vmatmul.mubr.bf16.gmra.mrb[0].mxu0 %v1131
    %v6904 = vpop.f32.mrb[0].mxu0
    %v6905 = vadd.f32 %v1097, %v6904
    %v6906 = vpop.f32.mrb[0].mxu0
    %v6907 = vadd.f32 %v1101, %v6906
    %v6908 = vpop.f32.mrb[0].mxu0
    %v6909 = vpop.f32.mrb[0].mxu0
    %6910 = vdwg.mxu0
    %6911 = vmatprep.subr.bf16.mxu0 %v4095
    %6912 = vmatpush1.bf16.msra.mxu0 %v4094
    %6913 = vmatprep.subr.bf16.mxu0 %v4113
    %6914 = vmatpush1.bf16.msra.mxu0 %v4112
    %6915 = vmatprep.subr.bf16.mxu0 %v4131
    %6916 = vmatpush1.bf16.msra.mxu0 %v4130
    %6917 = vmatprep.subr.bf16.mxu0 %v4149
    %6918 = vmatpush1.bf16.msra.mxu0 %v4148
    %6919 = vmatprep.subr.bf16.mxu0 %v4167
    %6920 = vmatpush1.bf16.msra.mxu0 %v4166
    %6921 = vmatprep.subr.bf16.mxu0 %v4185
    %6922 = vmatpush1.bf16.msra.mxu0 %v4184
    %6923 = vmatprep.subr.bf16.mxu0 %v4203
    %6924 = vmatpush1.bf16.msra.mxu0 %v4202
    %6925 = vmatprep.subr.bf16.mxu0 %v4221
    %6926 = vmatpush1.bf16.msra.mxu0 %v4220
    %6927 = vmatprep.subr.bf16.mxu0 %v4239
    %6928 = vmatpush1.bf16.msra.mxu0 %v4238
    %6929 = vmatprep.subr.bf16.mxu0 %v4257
    %6930 = vmatpush1.bf16.msra.mxu0 %v4256
    %6931 = vmatprep.subr.bf16.mxu0 %v4275
    %6932 = vmatpush1.bf16.msra.mxu0 %v4274
    %6933 = vmatprep.subr.bf16.mxu0 %v4293
    %6934 = vmatpush1.bf16.msra.mxu0 %v4292
    %6935 = vmatprep.subr.bf16.mxu0 %v4311
    %6936 = vmatpush1.bf16.msra.mxu0 %v4310
    %6937 = vmatprep.subr.bf16.mxu0 %v4329
    %6938 = vmatpush1.bf16.msra.mxu0 %v4328
    %6939 = vmatprep.subr.bf16.mxu0 %v4347
    %6940 = vmatpush1.bf16.msra.mxu0 %v4346
    %6941 = vmatprep.subr.bf16.mxu0 %v4365
    %6942 = vmatpush1.bf16.msra.mxu0 %v4364
    %6943 = vmatprep.mubr.bf16.mxu0 %v1134
    %6944 = vmatmul.mubr.bf16.gmra.mrb[0].mxu0 %v1133
    %v6945 = vpop.f32.mrb[0].mxu0
    %v6946 = vadd.f32 %v6905, %v6945
    %v6947 = vpop.f32.mrb[0].mxu0
    %v6948 = vadd.f32 %v6907, %v6947
    %v6949 = vpop.f32.mrb[0].mxu0
    %v6950 = vpop.f32.mrb[0].mxu0
    %6951 = vdwg.mxu0
    %6952 = vmatprep.subr.bf16.mxu0 %v4383
    %6953 = vmatpush1.bf16.msra.mxu0 %v4382
    %6954 = vmatprep.subr.bf16.mxu0 %v4401
    %6955 = vmatpush1.bf16.msra.mxu0 %v4400
    %6956 = vmatprep.subr.bf16.mxu0 %v4419
    %6957 = vmatpush1.bf16.msra.mxu0 %v4418
    %6958 = vmatprep.subr.bf16.mxu0 %v4437
    %6959 = vmatpush1.bf16.msra.mxu0 %v4436
    %6960 = vmatprep.subr.bf16.mxu0 %v4455
    %6961 = vmatpush1.bf16.msra.mxu0 %v4454
    %6962 = vmatprep.subr.bf16.mxu0 %v4473
    %6963 = vmatpush1.bf16.msra.mxu0 %v4472
    %6964 = vmatprep.subr.bf16.mxu0 %v4491
    %6965 = vmatpush1.bf16.msra.mxu0 %v4490
    %6966 = vmatprep.subr.bf16.mxu0 %v4509
    %6967 = vmatpush1.bf16.msra.mxu0 %v4508
    %6968 = vmatprep.subr.bf16.mxu0 %v4527
    %6969 = vmatpush1.bf16.msra.mxu0 %v4526
    %6970 = vmatprep.subr.bf16.mxu0 %v4545
    %6971 = vmatpush1.bf16.msra.mxu0 %v4544
    %6972 = vmatprep.subr.bf16.mxu0 %v4563
    %6973 = vmatpush1.bf16.msra.mxu0 %v4562
    %6974 = vmatprep.subr.bf16.mxu0 %v4581
    %6975 = vmatpush1.bf16.msra.mxu0 %v4580
    %6976 = vmatprep.subr.bf16.mxu0 %v4599
    %6977 = vmatpush1.bf16.msra.mxu0 %v4598
    %6978 = vmatprep.subr.bf16.mxu0 %v4617
    %6979 = vmatpush1.bf16.msra.mxu0 %v4616
    %6980 = vmatprep.subr.bf16.mxu0 %v4635
    %6981 = vmatpush1.bf16.msra.mxu0 %v4634
    %6982 = vmatprep.subr.bf16.mxu0 %v4653
    %6983 = vmatpush1.bf16.msra.mxu0 %v4652
    %6984 = vmatprep.mubr.bf16.mxu0 %v1136
    %6985 = vmatmul.mubr.bf16.gmra.mrb[0].mxu0 %v1135
    %v6986 = vpop.f32.mrb[0].mxu0
    %v6987 = vadd.f32 %v6946, %v6986
    %v6988 = vpop.f32.mrb[0].mxu0
    %v6989 = vadd.f32 %v6948, %v6988
    %v6990 = vpop.f32.mrb[0].mxu0
    %v6991 = vpop.f32.mrb[0].mxu0
    %6992 = vdwg.mxu0
    %6993 = vmatprep.subr.bf16.mxu0 %v4671
    %6994 = vmatpush1.bf16.msra.mxu0 %v4670
    %6995 = vmatprep.subr.bf16.mxu0 0
    %6996 = vmatpush1.bf16.msra.mxu0 0
    %6997 = vmatprep.subr.bf16.mxu0 0
    %6998 = vmatpush1.bf16.msra.mxu0 0
    %6999 = vmatprep.subr.bf16.mxu0 0
    %7000 = vmatpush1.bf16.msra.mxu0 0
    %7001 = vmatprep.subr.bf16.mxu0 0
    %7002 = vmatpush1.bf16.msra.mxu0 0
    %7003 = vmatprep.subr.bf16.mxu0 0
    %7004 = vmatpush1.bf16.msra.mxu0 0
    %7005 = vmatprep.subr.bf16.mxu0 0
    %7006 = vmatpush1.bf16.msra.mxu0 0
    %7007 = vmatprep.subr.bf16.mxu0 0
    %7008 = vmatpush1.bf16.msra.mxu0 0
    %7009 = vmatprep.subr.bf16.mxu0 0
    %7010 = vmatpush1.bf16.msra.mxu0 0
    %7011 = vmatprep.subr.bf16.mxu0 0
    %7012 = vmatpush1.bf16.msra.mxu0 0
    %7013 = vmatprep.subr.bf16.mxu0 0
    %7014 = vmatpush1.bf16.msra.mxu0 0
    %7015 = vmatprep.subr.bf16.mxu0 0
    %7016 = vmatpush1.bf16.msra.mxu0 0
    %7017 = vmatprep.subr.bf16.mxu0 0
    %7018 = vmatpush1.bf16.msra.mxu0 0
    %7019 = vmatprep.subr.bf16.mxu0 0
    %7020 = vmatpush1.bf16.msra.mxu0 0
    %7021 = vmatprep.subr.bf16.mxu0 0
    %7022 = vmatpush1.bf16.msra.mxu0 0
    %7023 = vmatprep.subr.bf16.mxu0 0
    %7024 = vmatpush1.bf16.msra.mxu0 0
    %7025 = vmatprep.mubr.bf16.mxu0 0
    %7026 = vmatmul.mubr.bf16.gmra.mrb[0].mxu0 %v5556
    %v7027 = vpop.f32.mrb[0].mxu0
    %v7028 = vadd.f32 %v6987, %v7027
    %v7029 = vpop.f32.mrb[0].mxu0
    %v7030 = vadd.f32 %v6989, %v7029
    %v7031 = vpop.f32.mrb[0].mxu0
    %v7032 = vpop.f32.mrb[0].mxu0
    %7033 = vdwg.mxu0
    %v7034 = vmax.f32 %v5716, 0.0
    %v7035 = vmax.f32 %v5718, 0.0
    %v7036 = vmax.f32 %v5880, 0.0
    %v7037 = vmax.f32 %v5882, 0.0
    %v7038 = vmax.f32 %v6044, 0.0
    %v7039 = vmax.f32 %v6046, 0.0
    %v7040 = vmax.f32 %v6208, 0.0
    %v7041 = vmax.f32 %v6210, 0.0
    %v7042 = vmax.f32 %v6372, 0.0
    %v7043 = vmax.f32 %v6374, 0.0
    %v7044 = vmax.f32 %v6536, 0.0
    %v7045 = vmax.f32 %v6538, 0.0
    %v7046 = vmax.f32 %v6700, 0.0
    %v7047 = vmax.f32 %v6702, 0.0
    %v7048 = vmax.f32 %v6864, 0.0
    %v7049 = vmax.f32 %v6866, 0.0
    %v7050 = vmax.f32 %v7028, 0.0
    %v7051 = vmax.f32 %v7030, 0.0
    %7070 = vrot.lane.b32.xlu0 %v7034, 124
    %v7071 = vpop.permute.xlu0 %7070
    %7072 = vrot.lane.b32.xlu0 %v7035, 124
    %v7073 = vpop.permute.xlu0 %7072
    %7074 = vrot.lane.b32.xlu0 %v7036, 124
    %v7075 = vpop.permute.xlu0 %7074
    %7076 = vrot.lane.b32.xlu0 %v7037, 124
    %v7077 = vpop.permute.xlu0 %7076
    %7078 = vrot.lane.b32.xlu0 %v7038, 124
    %v7079 = vpop.permute.xlu0 %7078
    %7080 = vrot.lane.b32.xlu0 %v7039, 124
    %v7081 = vpop.permute.xlu0 %7080
    %7082 = vrot.lane.b32.xlu0 %v7040, 124
    %v7083 = vpop.permute.xlu0 %7082
    %7084 = vrot.lane.b32.xlu0 %v7041, 124
    %v7085 = vpop.permute.xlu0 %7084
    %7086 = vrot.lane.b32.xlu0 %v7042, 124
    %v7087 = vpop.permute.xlu0 %7086
    %7088 = vrot.lane.b32.xlu0 %v7043, 124
    %v7089 = vpop.permute.xlu0 %7088
    %7090 = vrot.lane.b32.xlu0 %v7044, 124
    %v7091 = vpop.permute.xlu0 %7090
    %7092 = vrot.lane.b32.xlu0 %v7045, 124
    %v7093 = vpop.permute.xlu0 %7092
    %7094 = vrot.lane.b32.xlu0 %v7046, 124
    %v7095 = vpop.permute.xlu0 %7094
    %7096 = vrot.lane.b32.xlu0 %v7047, 124
    %v7097 = vpop.permute.xlu0 %7096
    %7098 = vrot.lane.b32.xlu0 %v7048, 124
    %v7099 = vpop.permute.xlu0 %7098
    %7100 = vrot.lane.b32.xlu0 %v7049, 124
    %v7101 = vpop.permute.xlu0 %7100
    %7102 = vrot.lane.b32.xlu0 %v7050, 124
    %v7103 = vpop.permute.xlu0 %7102
    %7104 = vrot.lane.b32.xlu0 %v7051, 124
    %v7105 = vpop.permute.xlu0 %7104
    %vm7106 = vcmask 1014784
    %v7107 = vsel %vm7106, %v7071, %v7073
    %v7108 = vsel %vm7106, %v7073, %v7075
    %v7109 = vsel %vm7106, %v7075, %v7077
    %v7110 = vsel %vm7106, %v7077, %v7079
    %v7111 = vsel %vm7106, %v7079, %v7081
    %v7112 = vsel %vm7106, %v7081, %v7083
    %v7113 = vsel %vm7106, %v7083, %v7085
    %v7114 = vsel %vm7106, %v7085, %v7087
    %v7115 = vsel %vm7106, %v7087, %v7089
    %v7116 = vsel %vm7106, %v7089, %v7091
    %v7117 = vsel %vm7106, %v7091, %v7093
    %v7118 = vsel %vm7106, %v7093, %v7095
    %v7119 = vsel %vm7106, %v7095, %v7097
    %v7120 = vsel %vm7106, %v7097, %v7099
    %v7121 = vsel %vm7106, %v7099, %v7101
    %v7122 = vsel %vm7106, %v7101, %v7103
    %v7123 = vsel %vm7106, %v7103, %v7105
    %v7142 = vmax.f32 %v7034, %v7107
    %v7143 = vmax.f32 %v7035, %v7108
    %v7144 = vmax.f32 %v7036, %v7109
    %v7145 = vmax.f32 %v7037, %v7110
    %v7146 = vmax.f32 %v7038, %v7111
    %v7147 = vmax.f32 %v7039, %v7112
    %v7148 = vmax.f32 %v7040, %v7113
    %v7149 = vmax.f32 %v7041, %v7114
    %v7150 = vmax.f32 %v7042, %v7115
    %v7151 = vmax.f32 %v7043, %v7116
    %v7152 = vmax.f32 %v7044, %v7117
    %v7153 = vmax.f32 %v7045, %v7118
    %v7154 = vmax.f32 %v7046, %v7119
    %v7155 = vmax.f32 %v7047, %v7120
    %v7156 = vmax.f32 %v7048, %v7121
    %v7157 = vmax.f32 %v7049, %v7122
    %v7158 = vmax.f32 %v7050, %v7123
    %v7159 = vmax.f32 %v7051, %v7105
    %7178 = vrot.lane.b32.xlu0 %v7142, 32
    %v7179 = vpop.permute.xlu0 %7178
    %7180 = vrot.lane.b32.xlu0 %v7143, 32
    %v7181 = vpop.permute.xlu0 %7180
    %7182 = vrot.lane.b32.xlu0 %v7144, 32
    %v7183 = vpop.permute.xlu0 %7182
    %7184 = vrot.lane.b32.xlu0 %v7145, 32
    %v7185 = vpop.permute.xlu0 %7184
    %7186 = vrot.lane.b32.xlu0 %v7146, 32
    %v7187 = vpop.permute.xlu0 %7186
    %7188 = vrot.lane.b32.xlu0 %v7147, 32
    %v7189 = vpop.permute.xlu0 %7188
    %7190 = vrot.lane.b32.xlu0 %v7148, 32
    %v7191 = vpop.permute.xlu0 %7190
    %7192 = vrot.lane.b32.xlu0 %v7149, 32
    %v7193 = vpop.permute.xlu0 %7192
    %7194 = vrot.lane.b32.xlu0 %v7150, 32
    %v7195 = vpop.permute.xlu0 %7194
    %7196 = vrot.lane.b32.xlu0 %v7151, 32
    %v7197 = vpop.permute.xlu0 %7196
    %7198 = vrot.lane.b32.xlu0 %v7152, 32
    %v7199 = vpop.permute.xlu0 %7198
    %7200 = vrot.lane.b32.xlu0 %v7153, 32
    %v7201 = vpop.permute.xlu0 %7200
    %7202 = vrot.lane.b32.xlu0 %v7154, 32
    %v7203 = vpop.permute.xlu0 %7202
    %7204 = vrot.lane.b32.xlu0 %v7155, 32
    %v7205 = vpop.permute.xlu0 %7204
    %7206 = vrot.lane.b32.xlu0 %v7156, 32
    %v7207 = vpop.permute.xlu0 %7206
    %7208 = vrot.lane.b32.xlu0 %v7157, 32
    %v7209 = vpop.permute.xlu0 %7208
    %7210 = vrot.lane.b32.xlu0 %v7158, 32
    %v7211 = vpop.permute.xlu0 %7210
    %7212 = vrot.lane.b32.xlu0 %v7159, 32
    %v7213 = vpop.permute.xlu0 %7212
    %vm7214 = vcmask 261120
    %v7215 = vsel %vm7214, %v7179, %v7181
    %v7216 = vsel %vm7214, %v7181, %v7183
    %v7217 = vsel %vm7214, %v7183, %v7185
    %v7218 = vsel %vm7214, %v7185, %v7187
    %v7219 = vsel %vm7214, %v7187, %v7189
    %v7220 = vsel %vm7214, %v7189, %v7191
    %v7221 = vsel %vm7214, %v7191, %v7193
    %v7222 = vsel %vm7214, %v7193, %v7195
    %v7223 = vsel %vm7214, %v7195, %v7197
    %v7224 = vsel %vm7214, %v7197, %v7199
    %v7225 = vsel %vm7214, %v7199, %v7201
    %v7226 = vsel %vm7214, %v7201, %v7203
    %v7227 = vsel %vm7214, %v7203, %v7205
    %v7228 = vsel %vm7214, %v7205, %v7207
    %v7229 = vsel %vm7214, %v7207, %v7209
    %v7230 = vsel %vm7214, %v7209, %v7211
    %v7231 = vsel %vm7214, %v7211, %v7213
    %v7250 = vmax.f32 %v7142, %v7215
    %v7251 = vmax.f32 %v7143, %v7216
    %v7252 = vmax.f32 %v7144, %v7217
    %v7253 = vmax.f32 %v7145, %v7218
    %v7254 = vmax.f32 %v7146, %v7219
    %v7255 = vmax.f32 %v7147, %v7220
    %v7256 = vmax.f32 %v7148, %v7221
    %v7257 = vmax.f32 %v7149, %v7222
    %v7258 = vmax.f32 %v7150, %v7223
    %v7259 = vmax.f32 %v7151, %v7224
    %v7260 = vmax.f32 %v7152, %v7225
    %v7261 = vmax.f32 %v7153, %v7226
    %v7262 = vmax.f32 %v7154, %v7227
    %v7263 = vmax.f32 %v7155, %v7228
    %v7264 = vmax.f32 %v7156, %v7229
    %v7265 = vmax.f32 %v7157, %v7230
    %v7266 = vmax.f32 %v7158, %v7231
    %v7267 = vmax.f32 %v7159, %v7213
    %v7268 = vpack.c.bf16 %v7250, %v7250
    %v7269 = vpack.c.bf16 %v7251, %v7251
    %v7270 = vpack.c.bf16 %v7252, %v7252
    %v7271 = vpack.c.bf16 %v7253, %v7253
    %v7272 = vpack.c.bf16 %v7254, %v7254
    %v7273 = vpack.c.bf16 %v7255, %v7255
    %v7274 = vpack.c.bf16 %v7256, %v7256
    %v7275 = vpack.c.bf16 %v7257, %v7257
    %v7276 = vpack.c.bf16 %v7258, %v7258
    %v7277 = vpack.c.bf16 %v7259, %v7259
    %v7278 = vpack.c.bf16 %v7260, %v7260
    %v7279 = vpack.c.bf16 %v7261, %v7261
    %v7280 = vpack.c.bf16 %v7262, %v7262
    %v7281 = vpack.c.bf16 %v7263, %v7263
    %v7282 = vpack.c.bf16 %v7264, %v7264
    %v7283 = vpack.c.bf16 %v7265, %v7265
    %v7284 = vpack.c.bf16 %v7266, %v7266
    %v7285 = vpack.c.bf16 %v7267, %v7267
    %v7286 = vld [vmem:[#allocation6] sm:$0xff]
    %v7287 = vld [vmem:[#allocation6 + $0x8] sm:$0xff]
    %v7288 = vld [vmem:[#allocation6 + $0x10] sm:$0xff]
    %v7289 = vld [vmem:[#allocation6 + $0x18] sm:$0xff]
    %v7290 = vld [vmem:[#allocation6 + $0x20] sm:$0xff]
    %v7291 = vld [vmem:[#allocation6 + $0x28] sm:$0xff]
    %v7292 = vld [vmem:[#allocation6 + $0x30] sm:$0xff]
    %v7293 = vld [vmem:[#allocation6 + $0x38] sm:$0xff]
    %v7294 = vld [vmem:[#allocation6 + $0x40] sm:$0xff]
    %v7295 = vld [vmem:[#allocation6 + $0x48] sm:$0xff]
    %v7296 = vld [vmem:[#allocation6 + $0x50] sm:$0xff]
    %v7297 = vld [vmem:[#allocation6 + $0x58] sm:$0xff]
    %v7298 = vld [vmem:[#allocation6 + $0x60] sm:$0xff]
    %v7299 = vld [vmem:[#allocation6 + $0x68] sm:$0xff]
    %v7300 = vld [vmem:[#allocation6 + $0x70] sm:$0xff]
    %v7301 = vld [vmem:[#allocation6 + $0x78] sm:$0xff]
    %v7302 = vld [vmem:[#allocation6 + $0x80] sm:$0xff]
    %v7303 = vld [vmem:[#allocation6 + $0x88] sm:$0xff]
    %v7304 = vld [vmem:[#allocation6 + $0x90] sm:$0xff]
    %v7305 = vld [vmem:[#allocation6 + $0x98] sm:$0xff]
    %v7306 = vld [vmem:[#allocation6 + $0xa0] sm:$0xff]
    %v7307 = vld [vmem:[#allocation6 + $0xa8] sm:$0xff]
    %v7308 = vld [vmem:[#allocation6 + $0xb0] sm:$0xff]
    %v7309 = vld [vmem:[#allocation6 + $0xb8] sm:$0xff]
    %v7310 = vld [vmem:[#allocation6 + $0xc0] sm:$0xff]
    %v7311 = vld [vmem:[#allocation6 + $0xc8] sm:$0xff]
    %v7312 = vld [vmem:[#allocation6 + $0xd0] sm:$0xff]
    %v7313 = vld [vmem:[#allocation6 + $0xd8] sm:$0xff]
    %v7314 = vld [vmem:[#allocation6 + $0xe0] sm:$0xff]
    %v7315 = vld [vmem:[#allocation6 + $0xe8] sm:$0xff]
    %v7316 = vld [vmem:[#allocation6 + $0xf0] sm:$0xff]
    %v7317 = vld [vmem:[#allocation6 + $0xf8] sm:$0xff]
    %v7318 = vld [vmem:[#allocation6 + $0x100] sm:$0xff]
    %v7319 = vld [vmem:[#allocation6 + $0x108] sm:$0xff]
    %v7320 = vld [vmem:[#allocation6 + $0x110] sm:$0xff]
    %v7321 = vld [vmem:[#allocation6 + $0x118] sm:$0xff]
    %v7322 = vld [vmem:[#allocation6 + $0x120] sm:$0xff]
    %v7323 = vld [vmem:[#allocation6 + $0x128] sm:$0xff]
    %v7324 = vld [vmem:[#allocation6 + $0x130] sm:$0xff]
    %v7325 = vld [vmem:[#allocation6 + $0x138] sm:$0xff]
    %v7326 = vld [vmem:[#allocation6 + $0x140] sm:$0xff]
    %v7327 = vld [vmem:[#allocation6 + $0x148] sm:$0xff]
    %v7328 = vld [vmem:[#allocation6 + $0x150] sm:$0xff]
    %v7329 = vld [vmem:[#allocation6 + $0x158] sm:$0xff]
    %v7330 = vld [vmem:[#allocation6 + $0x160] sm:$0xff]
    %v7331 = vld [vmem:[#allocation6 + $0x168] sm:$0xff]
    %v7332 = vld [vmem:[#allocation6 + $0x170] sm:$0xff]
    %v7333 = vld [vmem:[#allocation6 + $0x178] sm:$0xff]
    %v7334 = vld [vmem:[#allocation6 + $0x180] sm:$0xff]
    %v7335 = vld [vmem:[#allocation6 + $0x188] sm:$0xff]
    %v7336 = vld [vmem:[#allocation6 + $0x190] sm:$0xff]
    %v7337 = vld [vmem:[#allocation6 + $0x198] sm:$0xff]
    %v7338 = vld [vmem:[#allocation6 + $0x1a0] sm:$0xff]
    %v7339 = vld [vmem:[#allocation6 + $0x1a8] sm:$0xff]
    %v7340 = vld [vmem:[#allocation6 + $0x1b0] sm:$0xff]
    %v7341 = vld [vmem:[#allocation6 + $0x1b8] sm:$0xff]
    %v7342 = vld [vmem:[#allocation6 + $0x1c0] sm:$0xff]
    %v7343 = vld [vmem:[#allocation6 + $0x1c8] sm:$0xff]
    %v7344 = vld [vmem:[#allocation6 + $0x1d0] sm:$0xff]
    %v7345 = vld [vmem:[#allocation6 + $0x1d8] sm:$0xff]
    %v7346 = vld [vmem:[#allocation6 + $0x1e0] sm:$0xff]
    %v7347 = vld [vmem:[#allocation6 + $0x1e8] sm:$0xff]
    %v7348 = vld [vmem:[#allocation6 + $0x1f0] sm:$0xff]
    %v7349 = vld [vmem:[#allocation6 + $0x1f8] sm:$0xff]
    %v7350 = vld [vmem:[#allocation6 + $0x200] sm:$0xff]
    %v7351 = vld [vmem:[#allocation6 + $0x208] sm:$0xff]
    %v7352 = vld [vmem:[#allocation6 + $0x210] sm:$0xff]
    %v7353 = vld [vmem:[#allocation6 + $0x218] sm:$0xff]
    %v7354 = vld [vmem:[#allocation6 + $0x220] sm:$0xff]
    %v7355 = vld [vmem:[#allocation6 + $0x228] sm:$0xff]
    %v7356 = vld [vmem:[#allocation6 + $0x230] sm:$0xff]
    %v7357 = vld [vmem:[#allocation6 + $0x238] sm:$0xff]
    %v7358 = vld [vmem:[#allocation6 + $0x240] sm:$0xff]
    %v7359 = vld [vmem:[#allocation6 + $0x248] sm:$0xff]
    %v7360 = vld [vmem:[#allocation6 + $0x250] sm:$0xff]
    %v7361 = vld [vmem:[#allocation6 + $0x258] sm:$0xff]
    %v7362 = vld [vmem:[#allocation6 + $0x260] sm:$0xff]
    %v7363 = vld [vmem:[#allocation6 + $0x268] sm:$0xff]
    %v7364 = vld [vmem:[#allocation6 + $0x270] sm:$0xff]
    %v7365 = vld [vmem:[#allocation6 + $0x278] sm:$0xff]
    %v7366 = vld [vmem:[#allocation6 + $0x280] sm:$0xff]
    %v7367 = vld [vmem:[#allocation6 + $0x288] sm:$0xff]
    %v7368 = vld [vmem:[#allocation6 + $0x290] sm:$0xff]
    %v7369 = vld [vmem:[#allocation6 + $0x298] sm:$0xff]
    %v7370 = vld [vmem:[#allocation6 + $0x2a0] sm:$0xff]
    %v7371 = vld [vmem:[#allocation6 + $0x2a8] sm:$0xff]
    %v7372 = vld [vmem:[#allocation6 + $0x2b0] sm:$0xff]
    %v7373 = vld [vmem:[#allocation6 + $0x2b8] sm:$0xff]
    %v7374 = vld [vmem:[#allocation6 + $0x2c0] sm:$0xff]
    %v7375 = vld [vmem:[#allocation6 + $0x2c8] sm:$0xff]
    %v7376 = vld [vmem:[#allocation6 + $0x2d0] sm:$0xff]
    %v7377 = vld [vmem:[#allocation6 + $0x2d8] sm:$0xff]
    %v7378 = vld [vmem:[#allocation6 + $0x2e0] sm:$0xff]
    %v7379 = vld [vmem:[#allocation6 + $0x2e8] sm:$0xff]
    %v7380 = vld [vmem:[#allocation6 + $0x2f0] sm:$0xff]
    %v7381 = vld [vmem:[#allocation6 + $0x2f8] sm:$0xff]
    %v7382 = vld [vmem:[#allocation6 + $0x300] sm:$0xff]
    %v7383 = vld [vmem:[#allocation6 + $0x308] sm:$0xff]
    %v7384 = vld [vmem:[#allocation6 + $0x310] sm:$0xff]
    %v7385 = vld [vmem:[#allocation6 + $0x318] sm:$0xff]
    %v7386 = vld [vmem:[#allocation6 + $0x320] sm:$0xff]
    %v7387 = vld [vmem:[#allocation6 + $0x328] sm:$0xff]
    %v7388 = vld [vmem:[#allocation6 + $0x330] sm:$0xff]
    %v7389 = vld [vmem:[#allocation6 + $0x338] sm:$0xff]
    %v7390 = vld [vmem:[#allocation6 + $0x340] sm:$0xff]
    %v7391 = vld [vmem:[#allocation6 + $0x348] sm:$0xff]
    %v7392 = vld [vmem:[#allocation6 + $0x350] sm:$0xff]
    %v7393 = vld [vmem:[#allocation6 + $0x358] sm:$0xff]
    %v7394 = vld [vmem:[#allocation6 + $0x360] sm:$0xff]
    %v7395 = vld [vmem:[#allocation6 + $0x368] sm:$0xff]
    %v7396 = vld [vmem:[#allocation6 + $0x370] sm:$0xff]
    %v7397 = vld [vmem:[#allocation6 + $0x378] sm:$0xff]
    %v7398 = vld [vmem:[#allocation6 + $0x380] sm:$0xff]
    %v7399 = vld [vmem:[#allocation6 + $0x388] sm:$0xff]
    %v7400 = vld [vmem:[#allocation6 + $0x390] sm:$0xff]
    %v7401 = vld [vmem:[#allocation6 + $0x398] sm:$0xff]
    %v7402 = vld [vmem:[#allocation6 + $0x3a0] sm:$0xff]
    %v7403 = vld [vmem:[#allocation6 + $0x3a8] sm:$0xff]
    %v7404 = vld [vmem:[#allocation6 + $0x3b0] sm:$0xff]
    %v7405 = vld [vmem:[#allocation6 + $0x3b8] sm:$0xff]
    %v7406 = vld [vmem:[#allocation6 + $0x3c0] sm:$0xff]
    %v7407 = vld [vmem:[#allocation6 + $0x3c8] sm:$0xff]
    %v7408 = vld [vmem:[#allocation6 + $0x3d0] sm:$0xff]
    %v7409 = vld [vmem:[#allocation6 + $0x3d8] sm:$0xff]
    %v7410 = vld [vmem:[#allocation6 + $0x3e0] sm:$0xff]
    %v7411 = vld [vmem:[#allocation6 + $0x3e8] sm:$0xff]
    %v7412 = vld [vmem:[#allocation6 + $0x3f0] sm:$0xff]
    %v7413 = vld [vmem:[#allocation6 + $0x3f8] sm:$0xff]
    %v7414 = vld [vmem:[#allocation6 + $0x400] sm:$0xff]
    %v7415 = vld [vmem:[#allocation6 + $0x408] sm:$0xff]
    %v7416 = vld [vmem:[#allocation6 + $0x410] sm:$0xff]
    %v7417 = vld [vmem:[#allocation6 + $0x418] sm:$0xff]
    %v7418 = vld [vmem:[#allocation6 + $0x420] sm:$0xff]
    %v7419 = vld [vmem:[#allocation6 + $0x428] sm:$0xff]
    %v7420 = vld [vmem:[#allocation6 + $0x430] sm:$0xff]
    %v7421 = vld [vmem:[#allocation6 + $0x438] sm:$0xff]
    %v7422 = vld [vmem:[#allocation6 + $0x440] sm:$0xff]
    %v7423 = vld [vmem:[#allocation6 + $0x448] sm:$0xff]
    %v7424 = vld [vmem:[#allocation6 + $0x450] sm:$0xff]
    %v7425 = vld [vmem:[#allocation6 + $0x458] sm:$0xff]
    %v7426 = vld [vmem:[#allocation6 + $0x460] sm:$0xff]
    %v7427 = vld [vmem:[#allocation6 + $0x468] sm:$0xff]
    %v7428 = vld [vmem:[#allocation6 + $0x470] sm:$0xff]
    %v7429 = vld [vmem:[#allocation6 + $0x478] sm:$0xff]
    %v7430 = vld [vmem:[#allocation6 + $0x480] sm:$0xff]
    %v7431 = vld [vmem:[#allocation6 + $0x488] sm:$0xff]
    %v7432 = vld [vmem:[#allocation6 + $0x490] sm:$0xff]
    %v7433 = vld [vmem:[#allocation6 + $0x498] sm:$0xff]
    %v7434 = vld [vmem:[#allocation6 + $0x4a0] sm:$0xff]
    %v7435 = vld [vmem:[#allocation6 + $0x4a8] sm:$0xff]
    %v7436 = vld [vmem:[#allocation6 + $0x4b0] sm:$0xff]
    %v7437 = vld [vmem:[#allocation6 + $0x4b8] sm:$0xff]
    %v7438 = vld [vmem:[#allocation6 + $0x4c0] sm:$0xff]
    %v7439 = vld [vmem:[#allocation6 + $0x4c8] sm:$0xff]
    %v7440 = vld [vmem:[#allocation6 + $0x4d0] sm:$0xff]
    %v7441 = vld [vmem:[#allocation6 + $0x4d8] sm:$0xff]
    %v7442 = vld [vmem:[#allocation6 + $0x4e0] sm:$0xff]
    %v7443 = vld [vmem:[#allocation6 + $0x4e8] sm:$0xff]
    %v7444 = vld [vmem:[#allocation6 + $0x4f0] sm:$0xff]
    %v7445 = vld [vmem:[#allocation6 + $0x4f8] sm:$0xff]
    %v7446 = vld [vmem:[#allocation6 + $0x500] sm:$0xff]
    %v7447 = vld [vmem:[#allocation6 + $0x508] sm:$0xff]
    %v7448 = vld [vmem:[#allocation6 + $0x510] sm:$0xff]
    %v7449 = vld [vmem:[#allocation6 + $0x518] sm:$0xff]
    %v7450 = vld [vmem:[#allocation6 + $0x520] sm:$0xff]
    %v7451 = vld [vmem:[#allocation6 + $0x528] sm:$0xff]
    %v7452 = vld [vmem:[#allocation6 + $0x530] sm:$0xff]
    %v7453 = vld [vmem:[#allocation6 + $0x538] sm:$0xff]
    %v7454 = vld [vmem:[#allocation6 + $0x540] sm:$0xff]
    %v7455 = vld [vmem:[#allocation6 + $0x548] sm:$0xff]
    %v7456 = vld [vmem:[#allocation6 + $0x550] sm:$0xff]
    %v7457 = vld [vmem:[#allocation6 + $0x558] sm:$0xff]
    %v7458 = vld [vmem:[#allocation6 + $0x560] sm:$0xff]
    %v7459 = vld [vmem:[#allocation6 + $0x568] sm:$0xff]
    %v7460 = vld [vmem:[#allocation6 + $0x570] sm:$0xff]
    %v7461 = vld [vmem:[#allocation6 + $0x578] sm:$0xff]
    %v7462 = vld [vmem:[#allocation6 + $0x580] sm:$0xff]
    %v7463 = vld [vmem:[#allocation6 + $0x588] sm:$0xff]
    %v7464 = vld [vmem:[#allocation6 + $0x590] sm:$0xff]
    %v7465 = vld [vmem:[#allocation6 + $0x598] sm:$0xff]
    %v7466 = vld [vmem:[#allocation6 + $0x5a0] sm:$0xff]
    %v7467 = vld [vmem:[#allocation6 + $0x5a8] sm:$0xff]
    %v7468 = vld [vmem:[#allocation6 + $0x5b0] sm:$0xff]
    %v7469 = vld [vmem:[#allocation6 + $0x5b8] sm:$0xff]
    %v7470 = vld [vmem:[#allocation6 + $0x5c0] sm:$0xff]
    %v7471 = vld [vmem:[#allocation6 + $0x5c8] sm:$0xff]
    %v7472 = vld [vmem:[#allocation6 + $0x5d0] sm:$0xff]
    %v7473 = vld [vmem:[#allocation6 + $0x5d8] sm:$0xff]
    %v7474 = vld [vmem:[#allocation6 + $0x5e0] sm:$0xff]
    %v7475 = vld [vmem:[#allocation6 + $0x5e8] sm:$0xff]
    %v7476 = vld [vmem:[#allocation6 + $0x5f0] sm:$0xff]
    %v7477 = vld [vmem:[#allocation6 + $0x5f8] sm:$0xff]
    %v7478 = vld [vmem:[#allocation6 + $0x600] sm:$0xff]
    %v7479 = vld [vmem:[#allocation6 + $0x608] sm:$0xff]
    %v7480 = vld [vmem:[#allocation6 + $0x610] sm:$0xff]
    %v7481 = vld [vmem:[#allocation6 + $0x618] sm:$0xff]
    %v7482 = vld [vmem:[#allocation6 + $0x620] sm:$0xff]
    %v7483 = vld [vmem:[#allocation6 + $0x628] sm:$0xff]
    %v7484 = vld [vmem:[#allocation6 + $0x630] sm:$0xff]
    %v7485 = vld [vmem:[#allocation6 + $0x638] sm:$0xff]
    %v7486 = vld [vmem:[#allocation6 + $0x640] sm:$0xff]
    %v7487 = vld [vmem:[#allocation6 + $0x648] sm:$0xff]
    %v7488 = vld [vmem:[#allocation6 + $0x650] sm:$0xff]
    %v7489 = vld [vmem:[#allocation6 + $0x658] sm:$0xff]
    %v7490 = vld [vmem:[#allocation6 + $0x660] sm:$0xff]
    %v7491 = vld [vmem:[#allocation6 + $0x668] sm:$0xff]
    %v7492 = vld [vmem:[#allocation6 + $0x670] sm:$0xff]
    %v7493 = vld [vmem:[#allocation6 + $0x678] sm:$0xff]
    %v7494 = vld [vmem:[#allocation6 + $0x680] sm:$0xff]
    %v7495 = vld [vmem:[#allocation6 + $0x688] sm:$0xff]
    %v7496 = vld [vmem:[#allocation6 + $0x690] sm:$0xff]
    %v7497 = vld [vmem:[#allocation6 + $0x698] sm:$0xff]
    %v7498 = vld [vmem:[#allocation6 + $0x6a0] sm:$0xff]
    %v7499 = vld [vmem:[#allocation6 + $0x6a8] sm:$0xff]
    %v7500 = vld [vmem:[#allocation6 + $0x6b0] sm:$0xff]
    %v7501 = vld [vmem:[#allocation6 + $0x6b8] sm:$0xff]
    %v7502 = vld [vmem:[#allocation6 + $0x6c0] sm:$0xff]
    %v7503 = vld [vmem:[#allocation6 + $0x6c8] sm:$0xff]
    %v7504 = vld [vmem:[#allocation6 + $0x6d0] sm:$0xff]
    %v7505 = vld [vmem:[#allocation6 + $0x6d8] sm:$0xff]
    %v7506 = vld [vmem:[#allocation6 + $0x6e0] sm:$0xff]
    %v7507 = vld [vmem:[#allocation6 + $0x6e8] sm:$0xff]
    %v7508 = vld [vmem:[#allocation6 + $0x6f0] sm:$0xff]
    %v7509 = vld [vmem:[#allocation6 + $0x6f8] sm:$0xff]
    %v7510 = vld [vmem:[#allocation6 + $0x700] sm:$0xff]
    %v7511 = vld [vmem:[#allocation6 + $0x708] sm:$0xff]
    %v7512 = vld [vmem:[#allocation6 + $0x710] sm:$0xff]
    %v7513 = vld [vmem:[#allocation6 + $0x718] sm:$0xff]
    %v7514 = vld [vmem:[#allocation6 + $0x720] sm:$0xff]
    %v7515 = vld [vmem:[#allocation6 + $0x728] sm:$0xff]
    %v7516 = vld [vmem:[#allocation6 + $0x730] sm:$0xff]
    %v7517 = vld [vmem:[#allocation6 + $0x738] sm:$0xff]
    %v7518 = vld [vmem:[#allocation6 + $0x740] sm:$0xff]
    %v7519 = vld [vmem:[#allocation6 + $0x748] sm:$0xff]
    %v7520 = vld [vmem:[#allocation6 + $0x750] sm:$0xff]
    %v7521 = vld [vmem:[#allocation6 + $0x758] sm:$0xff]
    %v7522 = vld [vmem:[#allocation6 + $0x760] sm:$0xff]
    %v7523 = vld [vmem:[#allocation6 + $0x768] sm:$0xff]
    %v7524 = vld [vmem:[#allocation6 + $0x770] sm:$0xff]
    %v7525 = vld [vmem:[#allocation6 + $0x778] sm:$0xff]
    %v7526 = vld [vmem:[#allocation6 + $0x780] sm:$0xff]
    %v7527 = vld [vmem:[#allocation6 + $0x788] sm:$0xff]
    %v7528 = vld [vmem:[#allocation6 + $0x790] sm:$0xff]
    %v7529 = vld [vmem:[#allocation6 + $0x798] sm:$0xff]
    %v7530 = vld [vmem:[#allocation6 + $0x7a0] sm:$0xff]
    %v7531 = vld [vmem:[#allocation6 + $0x7a8] sm:$0xff]
    %v7532 = vld [vmem:[#allocation6 + $0x7b0] sm:$0xff]
    %v7533 = vld [vmem:[#allocation6 + $0x7b8] sm:$0xff]
    %v7534 = vld [vmem:[#allocation6 + $0x7c0] sm:$0xff]
    %v7535 = vld [vmem:[#allocation6 + $0x7c8] sm:$0xff]
    %v7536 = vld [vmem:[#allocation6 + $0x7d0] sm:$0xff]
    %v7537 = vld [vmem:[#allocation6 + $0x7d8] sm:$0xff]
    %v7538 = vld [vmem:[#allocation6 + $0x7e0] sm:$0xff]
    %v7539 = vld [vmem:[#allocation6 + $0x7e8] sm:$0xff]
    %v7540 = vld [vmem:[#allocation6 + $0x7f0] sm:$0xff]
    %v7541 = vld [vmem:[#allocation6 + $0x7f8] sm:$0xff]
    %v7542 = vld [vmem:[#allocation6 + $0x800] sm:$0xff]
    %v7543 = vld [vmem:[#allocation6 + $0x808] sm:$0xff]
    %v7544 = vld [vmem:[#allocation6 + $0x810] sm:$0xff]
    %v7545 = vld [vmem:[#allocation6 + $0x818] sm:$0xff]
    %v7546 = vld [vmem:[#allocation6 + $0x820] sm:$0xff]
    %v7547 = vld [vmem:[#allocation6 + $0x828] sm:$0xff]
    %v7548 = vld [vmem:[#allocation6 + $0x830] sm:$0xff]
    %v7549 = vld [vmem:[#allocation6 + $0x838] sm:$0xff]
    %v7550 = vld [vmem:[#allocation6 + $0x840] sm:$0xff]
    %v7551 = vld [vmem:[#allocation6 + $0x848] sm:$0xff]
    %v7552 = vld [vmem:[#allocation6 + $0x850] sm:$0xff]
    %v7553 = vld [vmem:[#allocation6 + $0x858] sm:$0xff]
    %v7554 = vld [vmem:[#allocation6 + $0x860] sm:$0xff]
    %v7555 = vld [vmem:[#allocation6 + $0x868] sm:$0xff]
    %v7556 = vld [vmem:[#allocation6 + $0x870] sm:$0xff]
    %v7557 = vld [vmem:[#allocation6 + $0x878] sm:$0xff]
    %v7558 = vld [vmem:[#allocation6 + $0x880] sm:$0xff]
    %v7559 = vld [vmem:[#allocation6 + $0x888] sm:$0xff]
    %v7560 = vld [vmem:[#allocation6 + $0x890] sm:$0xff]
    %v7561 = vld [vmem:[#allocation6 + $0x898] sm:$0xff]
    %v7562 = vld [vmem:[#allocation6 + $0x8a0] sm:$0xff]
    %v7563 = vld [vmem:[#allocation6 + $0x8a8] sm:$0xff]
    %v7564 = vld [vmem:[#allocation6 + $0x8b0] sm:$0xff]
    %v7565 = vld [vmem:[#allocation6 + $0x8b8] sm:$0xff]
    %v7566 = vld [vmem:[#allocation6 + $0x8c0] sm:$0xff]
    %v7567 = vld [vmem:[#allocation6 + $0x8c8] sm:$0xff]
    %v7568 = vld [vmem:[#allocation6 + $0x8d0] sm:$0xff]
    %v7569 = vld [vmem:[#allocation6 + $0x8d8] sm:$0xff]
    %v7570 = vld [vmem:[#allocation6 + $0x8e0] sm:$0xff]
    %v7571 = vld [vmem:[#allocation6 + $0x8e8] sm:$0xff]
    %v7572 = vld [vmem:[#allocation6 + $0x8f0] sm:$0xff]
    %v7573 = vld [vmem:[#allocation6 + $0x8f8] sm:$0xff]
    %v7574 = vld [vmem:[#allocation6 + $0x900] sm:$0xff]
    %v7575 = vld [vmem:[#allocation6 + $0x908] sm:$0xff]
    %v7576 = vld [vmem:[#allocation6 + $0x910] sm:$0xff]
    %v7577 = vld [vmem:[#allocation6 + $0x918] sm:$0xff]
    %v7578 = vld [vmem:[#allocation6 + $0x920] sm:$0xff]
    %v7579 = vld [vmem:[#allocation6 + $0x928] sm:$0xff]
    %v7580 = vld [vmem:[#allocation6 + $0x930] sm:$0xff]
    %v7581 = vld [vmem:[#allocation6 + $0x938] sm:$0xff]
    %v7582 = vld [vmem:[#allocation6 + $0x940] sm:$0xff]
    %v7583 = vld [vmem:[#allocation6 + $0x948] sm:$0xff]
    %v7584 = vld [vmem:[#allocation6 + $0x950] sm:$0xff]
    %v7585 = vld [vmem:[#allocation6 + $0x958] sm:$0xff]
    %v7586 = vld [vmem:[#allocation6 + $0x960] sm:$0xff]
    %v7587 = vld [vmem:[#allocation6 + $0x968] sm:$0xff]
    %v7588 = vld [vmem:[#allocation6 + $0x970] sm:$0xff]
    %v7589 = vld [vmem:[#allocation6 + $0x978] sm:$0xff]
    %v7590 = vld [vmem:[#allocation6 + $0x980] sm:$0xff]
    %v7591 = vld [vmem:[#allocation6 + $0x988] sm:$0xff]
    %v7592 = vld [vmem:[#allocation6 + $0x990] sm:$0xff]
    %v7593 = vld [vmem:[#allocation6 + $0x998] sm:$0xff]
    %v7594 = vld [vmem:[#allocation6 + $0x9a0] sm:$0xff]
    %v7595 = vld [vmem:[#allocation6 + $0x9a8] sm:$0xff]
    %v7596 = vld [vmem:[#allocation6 + $0x9b0] sm:$0xff]
    %v7597 = vld [vmem:[#allocation6 + $0x9b8] sm:$0xff]
    %v7598 = vld [vmem:[#allocation6 + $0x9c0] sm:$0xff]
    %v7599 = vld [vmem:[#allocation6 + $0x9c8] sm:$0xff]
    %v7600 = vld [vmem:[#allocation6 + $0x9d0] sm:$0xff]
    %v7601 = vld [vmem:[#allocation6 + $0x9d8] sm:$0xff]
    %v7602 = vld [vmem:[#allocation6 + $0x9e0] sm:$0xff]
    %v7603 = vld [vmem:[#allocation6 + $0x9e8] sm:$0xff]
    %v7604 = vld [vmem:[#allocation6 + $0x9f0] sm:$0xff]
    %v7605 = vld [vmem:[#allocation6 + $0x9f8] sm:$0xff]
    %v7606 = vld [vmem:[#allocation6 + $0xa00] sm:$0xff]
    %v7607 = vld [vmem:[#allocation6 + $0xa08] sm:$0xff]
    %v7608 = vld [vmem:[#allocation6 + $0xa10] sm:$0xff]
    %v7609 = vld [vmem:[#allocation6 + $0xa18] sm:$0xff]
    %v7610 = vld [vmem:[#allocation6 + $0xa20] sm:$0xff]
    %v7611 = vld [vmem:[#allocation6 + $0xa28] sm:$0xff]
    %v7612 = vld [vmem:[#allocation6 + $0xa30] sm:$0xff]
    %v7613 = vld [vmem:[#allocation6 + $0xa38] sm:$0xff]
    %v7614 = vld [vmem:[#allocation6 + $0xa40] sm:$0xff]
    %v7615 = vld [vmem:[#allocation6 + $0xa48] sm:$0xff]
    %v7616 = vld [vmem:[#allocation6 + $0xa50] sm:$0xff]
    %v7617 = vld [vmem:[#allocation6 + $0xa58] sm:$0xff]
    %v7618 = vld [vmem:[#allocation6 + $0xa60] sm:$0xff]
    %v7619 = vld [vmem:[#allocation6 + $0xa68] sm:$0xff]
    %v7620 = vld [vmem:[#allocation6 + $0xa70] sm:$0xff]
    %v7621 = vld [vmem:[#allocation6 + $0xa78] sm:$0xff]
    %v7622 = vld [vmem:[#allocation6 + $0xa80] sm:$0xff]
    %v7623 = vld [vmem:[#allocation6 + $0xa88] sm:$0xff]
    %v7624 = vld [vmem:[#allocation6 + $0xa90] sm:$0xff]
    %v7625 = vld [vmem:[#allocation6 + $0xa98] sm:$0xff]
    %v7626 = vld [vmem:[#allocation6 + $0xaa0] sm:$0xff]
    %v7627 = vld [vmem:[#allocation6 + $0xaa8] sm:$0xff]
    %v7628 = vld [vmem:[#allocation6 + $0xab0] sm:$0xff]
    %v7629 = vld [vmem:[#allocation6 + $0xab8] sm:$0xff]
    %v7630 = vld [vmem:[#allocation6 + $0xac0] sm:$0xff]
    %v7631 = vld [vmem:[#allocation6 + $0xac8] sm:$0xff]
    %v7632 = vld [vmem:[#allocation6 + $0xad0] sm:$0xff]
    %v7633 = vld [vmem:[#allocation6 + $0xad8] sm:$0xff]
    %v7634 = vld [vmem:[#allocation6 + $0xae0] sm:$0xff]
    %v7635 = vld [vmem:[#allocation6 + $0xae8] sm:$0xff]
    %v7636 = vld [vmem:[#allocation6 + $0xaf0] sm:$0xff]
    %v7637 = vld [vmem:[#allocation6 + $0xaf8] sm:$0xff]
    %v7638 = vld [vmem:[#allocation6 + $0xb00] sm:$0xff]
    %v7639 = vld [vmem:[#allocation6 + $0xb08] sm:$0xff]
    %v7640 = vld [vmem:[#allocation6 + $0xb10] sm:$0xff]
    %v7641 = vld [vmem:[#allocation6 + $0xb18] sm:$0xff]
    %v7642 = vld [vmem:[#allocation6 + $0xb20] sm:$0xff]
    %v7643 = vld [vmem:[#allocation6 + $0xb28] sm:$0xff]
    %v7644 = vld [vmem:[#allocation6 + $0xb30] sm:$0xff]
    %v7645 = vld [vmem:[#allocation6 + $0xb38] sm:$0xff]
    %v7646 = vld [vmem:[#allocation6 + $0xb40] sm:$0xff]
    %v7647 = vld [vmem:[#allocation6 + $0xb48] sm:$0xff]
    %v7648 = vld [vmem:[#allocation6 + $0xb50] sm:$0xff]
    %v7649 = vld [vmem:[#allocation6 + $0xb58] sm:$0xff]
    %v7650 = vld [vmem:[#allocation6 + $0xb60] sm:$0xff]
    %v7651 = vld [vmem:[#allocation6 + $0xb68] sm:$0xff]
    %v7652 = vld [vmem:[#allocation6 + $0xb70] sm:$0xff]
    %v7653 = vld [vmem:[#allocation6 + $0xb78] sm:$0xff]
    %v7654 = vld [vmem:[#allocation6 + $0xb80] sm:$0xff]
    %v7655 = vld [vmem:[#allocation6 + $0xb88] sm:$0xff]
    %v7656 = vld [vmem:[#allocation6 + $0xb90] sm:$0xff]
    %v7657 = vld [vmem:[#allocation6 + $0xb98] sm:$0xff]
    %v7658 = vld [vmem:[#allocation6 + $0xba0] sm:$0xff]
    %v7659 = vld [vmem:[#allocation6 + $0xba8] sm:$0xff]
    %v7660 = vld [vmem:[#allocation6 + $0xbb0] sm:$0xff]
    %v7661 = vld [vmem:[#allocation6 + $0xbb8] sm:$0xff]
    %v7662 = vld [vmem:[#allocation6 + $0xbc0] sm:$0xff]
    %v7663 = vld [vmem:[#allocation6 + $0xbc8] sm:$0xff]
    %v7664 = vld [vmem:[#allocation6 + $0xbd0] sm:$0xff]
    %v7665 = vld [vmem:[#allocation6 + $0xbd8] sm:$0xff]
    %v7666 = vld [vmem:[#allocation6 + $0xbe0] sm:$0xff]
    %v7667 = vld [vmem:[#allocation6 + $0xbe8] sm:$0xff]
    %v7668 = vld [vmem:[#allocation6 + $0xbf0] sm:$0xff]
    %v7669 = vld [vmem:[#allocation6 + $0xbf8] sm:$0xff]
    %v7670 = vld [vmem:[#allocation6 + $0xc00] sm:$0xff]
    %v7671 = vld [vmem:[#allocation6 + $0xc08] sm:$0xff]
    %v7672 = vld [vmem:[#allocation6 + $0xc10] sm:$0xff]
    %v7673 = vld [vmem:[#allocation6 + $0xc18] sm:$0xff]
    %v7674 = vld [vmem:[#allocation6 + $0xc20] sm:$0xff]
    %v7675 = vld [vmem:[#allocation6 + $0xc28] sm:$0xff]
    %v7676 = vld [vmem:[#allocation6 + $0xc30] sm:$0xff]
    %v7677 = vld [vmem:[#allocation6 + $0xc38] sm:$0xff]
    %v7678 = vld [vmem:[#allocation6 + $0xc40] sm:$0xff]
    %v7679 = vld [vmem:[#allocation6 + $0xc48] sm:$0xff]
    %v7680 = vld [vmem:[#allocation6 + $0xc50] sm:$0xff]
    %v7681 = vld [vmem:[#allocation6 + $0xc58] sm:$0xff]
    %v7682 = vld [vmem:[#allocation6 + $0xc60] sm:$0xff]
    %v7683 = vld [vmem:[#allocation6 + $0xc68] sm:$0xff]
    %v7684 = vld [vmem:[#allocation6 + $0xc70] sm:$0xff]
    %v7685 = vld [vmem:[#allocation6 + $0xc78] sm:$0xff]
    %v7686 = vld [vmem:[#allocation6 + $0xc80] sm:$0xff]
    %v7687 = vld [vmem:[#allocation6 + $0xc88] sm:$0xff]
    %v7688 = vld [vmem:[#allocation6 + $0xc90] sm:$0xff]
    %v7689 = vld [vmem:[#allocation6 + $0xc98] sm:$0xff]
    %v7690 = vld [vmem:[#allocation6 + $0xca0] sm:$0xff]
    %v7691 = vld [vmem:[#allocation6 + $0xca8] sm:$0xff]
    %v7692 = vld [vmem:[#allocation6 + $0xcb0] sm:$0xff]
    %v7693 = vld [vmem:[#allocation6 + $0xcb8] sm:$0xff]
    %v7694 = vld [vmem:[#allocation6 + $0xcc0] sm:$0xff]
    %v7695 = vld [vmem:[#allocation6 + $0xcc8] sm:$0xff]
    %v7696 = vld [vmem:[#allocation6 + $0xcd0] sm:$0xff]
    %v7697 = vld [vmem:[#allocation6 + $0xcd8] sm:$0xff]
    %v7698 = vld [vmem:[#allocation6 + $0xce0] sm:$0xff]
    %v7699 = vld [vmem:[#allocation6 + $0xce8] sm:$0xff]
    %v7700 = vld [vmem:[#allocation6 + $0xcf0] sm:$0xff]
    %v7701 = vld [vmem:[#allocation6 + $0xcf8] sm:$0xff]
    %v7702 = vld [vmem:[#allocation6 + $0xd00] sm:$0xff]
    %v7703 = vld [vmem:[#allocation6 + $0xd08] sm:$0xff]
    %v7704 = vld [vmem:[#allocation6 + $0xd10] sm:$0xff]
    %v7705 = vld [vmem:[#allocation6 + $0xd18] sm:$0xff]
    %v7706 = vld [vmem:[#allocation6 + $0xd20] sm:$0xff]
    %v7707 = vld [vmem:[#allocation6 + $0xd28] sm:$0xff]
    %v7708 = vld [vmem:[#allocation6 + $0xd30] sm:$0xff]
    %v7709 = vld [vmem:[#allocation6 + $0xd38] sm:$0xff]
    %v7710 = vld [vmem:[#allocation6 + $0xd40] sm:$0xff]
    %v7711 = vld [vmem:[#allocation6 + $0xd48] sm:$0xff]
    %v7712 = vld [vmem:[#allocation6 + $0xd50] sm:$0xff]
    %v7713 = vld [vmem:[#allocation6 + $0xd58] sm:$0xff]
    %v7714 = vld [vmem:[#allocation6 + $0xd60] sm:$0xff]
    %v7715 = vld [vmem:[#allocation6 + $0xd68] sm:$0xff]
    %v7716 = vld [vmem:[#allocation6 + $0xd70] sm:$0xff]
    %v7717 = vld [vmem:[#allocation6 + $0xd78] sm:$0xff]
    %v7718 = vld [vmem:[#allocation6 + $0xd80] sm:$0xff]
    %v7719 = vld [vmem:[#allocation6 + $0xd88] sm:$0xff]
    %v7720 = vld [vmem:[#allocation6 + $0xd90] sm:$0xff]
    %v7721 = vld [vmem:[#allocation6 + $0xd98] sm:$0xff]
    %v7722 = vld [vmem:[#allocation6 + $0xda0] sm:$0xff]
    %v7723 = vld [vmem:[#allocation6 + $0xda8] sm:$0xff]
    %v7724 = vld [vmem:[#allocation6 + $0xdb0] sm:$0xff]
    %v7725 = vld [vmem:[#allocation6 + $0xdb8] sm:$0xff]
    %v7726 = vld [vmem:[#allocation6 + $0xdc0] sm:$0xff]
    %v7727 = vld [vmem:[#allocation6 + $0xdc8] sm:$0xff]
    %v7728 = vld [vmem:[#allocation6 + $0xdd0] sm:$0xff]
    %v7729 = vld [vmem:[#allocation6 + $0xdd8] sm:$0xff]
    %v7730 = vld [vmem:[#allocation6 + $0xde0] sm:$0xff]
    %v7731 = vld [vmem:[#allocation6 + $0xde8] sm:$0xff]
    %v7732 = vld [vmem:[#allocation6 + $0xdf0] sm:$0xff]
    %v7733 = vld [vmem:[#allocation6 + $0xdf8] sm:$0xff]
    %v7734 = vld [vmem:[#allocation6 + $0xe00] sm:$0xff]
    %v7735 = vld [vmem:[#allocation6 + $0xe08] sm:$0xff]
    %v7736 = vld [vmem:[#allocation6 + $0xe10] sm:$0xff]
    %v7737 = vld [vmem:[#allocation6 + $0xe18] sm:$0xff]
    %v7738 = vld [vmem:[#allocation6 + $0xe20] sm:$0xff]
    %v7739 = vld [vmem:[#allocation6 + $0xe28] sm:$0xff]
    %v7740 = vld [vmem:[#allocation6 + $0xe30] sm:$0xff]
    %v7741 = vld [vmem:[#allocation6 + $0xe38] sm:$0xff]
    %v7742 = vld [vmem:[#allocation6 + $0xe40] sm:$0xff]
    %v7743 = vld [vmem:[#allocation6 + $0xe48] sm:$0xff]
    %v7744 = vld [vmem:[#allocation6 + $0xe50] sm:$0xff]
    %v7745 = vld [vmem:[#allocation6 + $0xe58] sm:$0xff]
    %v7746 = vld [vmem:[#allocation6 + $0xe60] sm:$0xff]
    %v7747 = vld [vmem:[#allocation6 + $0xe68] sm:$0xff]
    %v7748 = vld [vmem:[#allocation6 + $0xe70] sm:$0xff]
    %v7749 = vld [vmem:[#allocation6 + $0xe78] sm:$0xff]
    %v7750 = vld [vmem:[#allocation6 + $0xe80] sm:$0xff]
    %v7751 = vld [vmem:[#allocation6 + $0xe88] sm:$0xff]
    %v7752 = vld [vmem:[#allocation6 + $0xe90] sm:$0xff]
    %v7753 = vld [vmem:[#allocation6 + $0xe98] sm:$0xff]
    %v7754 = vld [vmem:[#allocation6 + $0xea0] sm:$0xff]
    %v7755 = vld [vmem:[#allocation6 + $0xea8] sm:$0xff]
    %v7756 = vld [vmem:[#allocation6 + $0xeb0] sm:$0xff]
    %v7757 = vld [vmem:[#allocation6 + $0xeb8] sm:$0xff]
    %v7758 = vld [vmem:[#allocation6 + $0xec0] sm:$0xff]
    %v7759 = vld [vmem:[#allocation6 + $0xec8] sm:$0xff]
    %v7760 = vld [vmem:[#allocation6 + $0xed0] sm:$0xff]
    %v7761 = vld [vmem:[#allocation6 + $0xed8] sm:$0xff]
    %v7762 = vld [vmem:[#allocation6 + $0xee0] sm:$0xff]
    %v7763 = vld [vmem:[#allocation6 + $0xee8] sm:$0xff]
    %v7764 = vld [vmem:[#allocation6 + $0xef0] sm:$0xff]
    %v7765 = vld [vmem:[#allocation6 + $0xef8] sm:$0xff]
    %v7766 = vld [vmem:[#allocation6 + $0xf00] sm:$0xff]
    %v7767 = vld [vmem:[#allocation6 + $0xf08] sm:$0xff]
    %v7768 = vld [vmem:[#allocation6 + $0xf10] sm:$0xff]
    %v7769 = vld [vmem:[#allocation6 + $0xf18] sm:$0xff]
    %v7770 = vld [vmem:[#allocation6 + $0xf20] sm:$0xff]
    %v7771 = vld [vmem:[#allocation6 + $0xf28] sm:$0xff]
    %v7772 = vld [vmem:[#allocation6 + $0xf30] sm:$0xff]
    %v7773 = vld [vmem:[#allocation6 + $0xf38] sm:$0xff]
    %v7774 = vld [vmem:[#allocation6 + $0xf40] sm:$0xff]
    %v7775 = vld [vmem:[#allocation6 + $0xf48] sm:$0xff]
    %v7776 = vld [vmem:[#allocation6 + $0xf50] sm:$0xff]
    %v7777 = vld [vmem:[#allocation6 + $0xf58] sm:$0xff]
    %v7778 = vld [vmem:[#allocation6 + $0xf60] sm:$0xff]
    %v7779 = vld [vmem:[#allocation6 + $0xf68] sm:$0xff]
    %v7780 = vld [vmem:[#allocation6 + $0xf70] sm:$0xff]
    %v7781 = vld [vmem:[#allocation6 + $0xf78] sm:$0xff]
    %v7782 = vld [vmem:[#allocation6 + $0xf80] sm:$0xff]
    %v7783 = vld [vmem:[#allocation6 + $0xf88] sm:$0xff]
    %v7784 = vld [vmem:[#allocation6 + $0xf90] sm:$0xff]
    %v7785 = vld [vmem:[#allocation6 + $0xf98] sm:$0xff]
    %v7786 = vld [vmem:[#allocation6 + $0xfa0] sm:$0xff]
    %v7787 = vld [vmem:[#allocation6 + $0xfa8] sm:$0xff]
    %v7788 = vld [vmem:[#allocation6 + $0xfb0] sm:$0xff]
    %v7789 = vld [vmem:[#allocation6 + $0xfb8] sm:$0xff]
    %v7790 = vld [vmem:[#allocation6 + $0xfc0] sm:$0xff]
    %v7791 = vld [vmem:[#allocation6 + $0xfc8] sm:$0xff]
    %v7792 = vld [vmem:[#allocation6 + $0xfd0] sm:$0xff]
    %v7793 = vld [vmem:[#allocation6 + $0xfd8] sm:$0xff]
    %v7794 = vld [vmem:[#allocation6 + $0xfe0] sm:$0xff]
    %v7795 = vld [vmem:[#allocation6 + $0xfe8] sm:$0xff]
    %v7796 = vld [vmem:[#allocation6 + $0xff0] sm:$0xff]
    %v7797 = vld [vmem:[#allocation6 + $0xff8] sm:$0xff]
    %v7798 = vld [vmem:[#allocation6 + $0x1000] sm:$0xff]
    %v7799 = vld [vmem:[#allocation6 + $0x1008] sm:$0xff]
    %v7800 = vld [vmem:[#allocation6 + $0x1010] sm:$0xff]
    %v7801 = vld [vmem:[#allocation6 + $0x1018] sm:$0xff]
    %v7802 = vld [vmem:[#allocation6 + $0x1020] sm:$0xff]
    %v7803 = vld [vmem:[#allocation6 + $0x1028] sm:$0xff]
    %v7804 = vld [vmem:[#allocation6 + $0x1030] sm:$0xff]
    %v7805 = vld [vmem:[#allocation6 + $0x1038] sm:$0xff]
    %v7806 = vld [vmem:[#allocation6 + $0x1040] sm:$0xff]
    %v7807 = vld [vmem:[#allocation6 + $0x1048] sm:$0xff]
    %v7808 = vld [vmem:[#allocation6 + $0x1050] sm:$0xff]
    %v7809 = vld [vmem:[#allocation6 + $0x1058] sm:$0xff]
    %v7810 = vld [vmem:[#allocation6 + $0x1060] sm:$0xff]
    %v7811 = vld [vmem:[#allocation6 + $0x1068] sm:$0xff]
    %v7812 = vld [vmem:[#allocation6 + $0x1070] sm:$0xff]
    %v7813 = vld [vmem:[#allocation6 + $0x1078] sm:$0xff]
    %v7814 = vld [vmem:[#allocation6 + $0x1080] sm:$0xff]
    %v7815 = vld [vmem:[#allocation6 + $0x1088] sm:$0xff]
    %v7816 = vld [vmem:[#allocation6 + $0x1090] sm:$0xff]
    %v7817 = vld [vmem:[#allocation6 + $0x1098] sm:$0xff]
    %v7818 = vld [vmem:[#allocation6 + $0x10a0] sm:$0xff]
    %v7819 = vld [vmem:[#allocation6 + $0x10a8] sm:$0xff]
    %v7820 = vld [vmem:[#allocation6 + $0x10b0] sm:$0xff]
    %v7821 = vld [vmem:[#allocation6 + $0x10b8] sm:$0xff]
    %v7822 = vld [vmem:[#allocation6 + $0x10c0] sm:$0xff]
    %v7823 = vld [vmem:[#allocation6 + $0x10c8] sm:$0xff]
    %v7824 = vld [vmem:[#allocation6 + $0x10d0] sm:$0xff]
    %v7825 = vld [vmem:[#allocation6 + $0x10d8] sm:$0xff]
    %v7826 = vld [vmem:[#allocation6 + $0x10e0] sm:$0xff]
    %v7827 = vld [vmem:[#allocation6 + $0x10e8] sm:$0xff]
    %v7828 = vld [vmem:[#allocation6 + $0x10f0] sm:$0xff]
    %v7829 = vld [vmem:[#allocation6 + $0x10f8] sm:$0xff]
    %v7830 = vld [vmem:[#allocation6 + $0x1100] sm:$0xff]
    %v7831 = vld [vmem:[#allocation6 + $0x1108] sm:$0xff]
    %v7832 = vld [vmem:[#allocation6 + $0x1110] sm:$0xff]
    %v7833 = vld [vmem:[#allocation6 + $0x1118] sm:$0xff]
    %v7834 = vld [vmem:[#allocation6 + $0x1120] sm:$0xff]
    %v7835 = vld [vmem:[#allocation6 + $0x1128] sm:$0xff]
    %v7836 = vld [vmem:[#allocation6 + $0x1130] sm:$0x33]
    %v7837 = vld [vmem:[#allocation6 + $0x1138] sm:$0x33]
    %v7838 = vld [vmem:[#allocation7] sm:$0xf]
    %v7840 = vlaneseq
    %v7841 = vshrl.u32 %v7840, 7
    %v7842 = vsub.s32 0, %v7841
    %v7843 = vrot.slane %v7838, %v7842
    %v7844 = vlaneseq
    %v7845 = vshrl.u32 %v7844, 7
    %v7846 = vsub.s32 1, %v7845
    %v7847 = vrot.slane %v7838, %v7846
    %v7848 = vlaneseq
    %v7849 = vshrl.u32 %v7848, 7
    %v7850 = vsub.s32 2, %v7849
    %v7851 = vrot.slane %v7838, %v7850
    %v7852 = vlaneseq
    %v7853 = vshrl.u32 %v7852, 7
    %v7854 = vsub.s32 3, %v7853
    %v7855 = vrot.slane %v7838, %v7854
    %v8412 = vunpack.c.l.b16 %v7286
    %v8413 = vunpack.c.h.b16 %v7286
    %v8414 = vunpack.c.l.b16 %v7287
    %v8415 = vunpack.c.h.b16 %v7287
    %v8416 = vunpack.c.l.b16 %v7288
    %v8417 = vunpack.c.h.b16 %v7288
    %v8418 = vunpack.c.l.b16 %v7289
    %v8419 = vunpack.c.h.b16 %v7289
    %v8420 = vunpack.c.l.b16 %v7290
    %v8421 = vunpack.c.h.b16 %v7290
    %v8422 = vunpack.c.l.b16 %v7291
    %v8423 = vunpack.c.h.b16 %v7291
    %v8424 = vunpack.c.l.b16 %v7292
    %v8425 = vunpack.c.h.b16 %v7292
    %v8426 = vunpack.c.l.b16 %v7293
    %v8427 = vunpack.c.h.b16 %v7293
    %v8428 = vunpack.c.l.b16 %v7294
    %v8429 = vunpack.c.h.b16 %v7294
    %v8430 = vunpack.c.l.b16 %v7295
    %v8431 = vunpack.c.h.b16 %v7295
    %v8432 = vunpack.c.l.b16 %v7296
    %v8433 = vunpack.c.h.b16 %v7296
    %v8434 = vunpack.c.l.b16 %v7297
    %v8435 = vunpack.c.h.b16 %v7297
    %v8436 = vunpack.c.l.b16 %v7298
    %v8437 = vunpack.c.h.b16 %v7298
    %v8438 = vunpack.c.l.b16 %v7299
    %v8439 = vunpack.c.h.b16 %v7299
    %v8440 = vunpack.c.l.b16 %v7300
    %v8441 = vunpack.c.h.b16 %v7300
    %v8442 = vunpack.c.l.b16 %v7301
    %v8443 = vunpack.c.h.b16 %v7301
    %v8444 = vunpack.c.l.b16 %v7302
    %v8445 = vunpack.c.h.b16 %v7302
    %v8446 = vunpack.c.l.b16 %v7303
    %v8447 = vunpack.c.h.b16 %v7303
    %v8448 = vunpack.c.l.b16 %v7304
    %v8449 = vunpack.c.h.b16 %v7304
    %v8450 = vunpack.c.l.b16 %v7305
    %v8451 = vunpack.c.h.b16 %v7305
    %v8452 = vunpack.c.l.b16 %v7306
    %v8453 = vunpack.c.h.b16 %v7306
    %v8454 = vunpack.c.l.b16 %v7307
    %v8455 = vunpack.c.h.b16 %v7307
    %v8456 = vunpack.c.l.b16 %v7308
    %v8457 = vunpack.c.h.b16 %v7308
    %v8458 = vunpack.c.l.b16 %v7309
    %v8459 = vunpack.c.h.b16 %v7309
    %v8460 = vunpack.c.l.b16 %v7310
    %v8461 = vunpack.c.h.b16 %v7310
    %v8462 = vunpack.c.l.b16 %v7311
    %v8463 = vunpack.c.h.b16 %v7311
    %v8464 = vunpack.c.l.b16 %v7312
    %v8465 = vunpack.c.h.b16 %v7312
    %v8466 = vunpack.c.l.b16 %v7313
    %v8467 = vunpack.c.h.b16 %v7313
    %v8468 = vunpack.c.l.b16 %v7314
    %v8469 = vunpack.c.h.b16 %v7314
    %v8470 = vunpack.c.l.b16 %v7315
    %v8471 = vunpack.c.h.b16 %v7315
    %v8472 = vunpack.c.l.b16 %v7316
    %v8473 = vunpack.c.h.b16 %v7316
    %v8474 = vunpack.c.l.b16 %v7317
    %v8475 = vunpack.c.h.b16 %v7317
    %v8476 = vunpack.c.l.b16 %v7318
    %v8477 = vunpack.c.h.b16 %v7318
    %v8478 = vunpack.c.l.b16 %v7319
    %v8479 = vunpack.c.h.b16 %v7319
    %v8480 = vunpack.c.l.b16 %v7320
    %v8481 = vunpack.c.h.b16 %v7320
    %v8482 = vunpack.c.l.b16 %v7321
    %v8483 = vunpack.c.h.b16 %v7321
    %v8484 = vunpack.c.l.b16 %v7322
    %v8485 = vunpack.c.h.b16 %v7322
    %v8486 = vunpack.c.l.b16 %v7323
    %v8487 = vunpack.c.h.b16 %v7323
    %v8488 = vunpack.c.l.b16 %v7324
    %v8489 = vunpack.c.h.b16 %v7324
    %v8490 = vunpack.c.l.b16 %v7325
    %v8491 = vunpack.c.h.b16 %v7325
    %v8492 = vunpack.c.l.b16 %v7326
    %v8493 = vunpack.c.h.b16 %v7326
    %v8494 = vunpack.c.l.b16 %v7327
    %v8495 = vunpack.c.h.b16 %v7327
    %v8496 = vunpack.c.l.b16 %v7328
    %v8497 = vunpack.c.h.b16 %v7328
    %v8498 = vunpack.c.l.b16 %v7329
    %v8499 = vunpack.c.h.b16 %v7329
    %v8500 = vunpack.c.l.b16 %v7330
    %v8501 = vunpack.c.h.b16 %v7330
    %v8502 = vunpack.c.l.b16 %v7331
    %v8503 = vunpack.c.h.b16 %v7331
    %v8504 = vunpack.c.l.b16 %v7332
    %v8505 = vunpack.c.h.b16 %v7332
    %v8506 = vunpack.c.l.b16 %v7333
    %v8507 = vunpack.c.h.b16 %v7333
    %v8508 = vunpack.c.l.b16 %v7334
    %v8509 = vunpack.c.h.b16 %v7334
    %v8510 = vunpack.c.l.b16 %v7335
    %v8511 = vunpack.c.h.b16 %v7335
    %v8512 = vunpack.c.l.b16 %v7336
    %v8513 = vunpack.c.h.b16 %v7336
    %v8514 = vunpack.c.l.b16 %v7337
    %v8515 = vunpack.c.h.b16 %v7337
    %v8516 = vunpack.c.l.b16 %v7338
    %v8517 = vunpack.c.h.b16 %v7338
    %v8518 = vunpack.c.l.b16 %v7339
    %v8519 = vunpack.c.h.b16 %v7339
    %v8520 = vunpack.c.l.b16 %v7340
    %v8521 = vunpack.c.h.b16 %v7340
    %v8522 = vunpack.c.l.b16 %v7341
    %v8523 = vunpack.c.h.b16 %v7341
    %v8524 = vunpack.c.l.b16 %v7342
    %v8525 = vunpack.c.h.b16 %v7342
    %v8526 = vunpack.c.l.b16 %v7343
    %v8527 = vunpack.c.h.b16 %v7343
    %v8528 = vunpack.c.l.b16 %v7344
    %v8529 = vunpack.c.h.b16 %v7344
    %v8530 = vunpack.c.l.b16 %v7345
    %v8531 = vunpack.c.h.b16 %v7345
    %v8532 = vunpack.c.l.b16 %v7346
    %v8533 = vunpack.c.h.b16 %v7346
    %v8534 = vunpack.c.l.b16 %v7347
    %v8535 = vunpack.c.h.b16 %v7347
    %v8536 = vunpack.c.l.b16 %v7348
    %v8537 = vunpack.c.h.b16 %v7348
    %v8538 = vunpack.c.l.b16 %v7349
    %v8539 = vunpack.c.h.b16 %v7349
    %v8540 = vunpack.c.l.b16 %v7350
    %v8541 = vunpack.c.h.b16 %v7350
    %v8542 = vunpack.c.l.b16 %v7351
    %v8543 = vunpack.c.h.b16 %v7351
    %v8544 = vunpack.c.l.b16 %v7352
    %v8545 = vunpack.c.h.b16 %v7352
    %v8546 = vunpack.c.l.b16 %v7353
    %v8547 = vunpack.c.h.b16 %v7353
    %v8548 = vunpack.c.l.b16 %v7354
    %v8549 = vunpack.c.h.b16 %v7354
    %v8550 = vunpack.c.l.b16 %v7355
    %v8551 = vunpack.c.h.b16 %v7355
    %v8552 = vunpack.c.l.b16 %v7356
    %v8553 = vunpack.c.h.b16 %v7356
    %v8554 = vunpack.c.l.b16 %v7357
    %v8555 = vunpack.c.h.b16 %v7357
    %v8556 = vunpack.c.l.b16 %v7358
    %v8557 = vunpack.c.h.b16 %v7358
    %v8558 = vunpack.c.l.b16 %v7359
    %v8559 = vunpack.c.h.b16 %v7359
    %v8560 = vunpack.c.l.b16 %v7360
    %v8561 = vunpack.c.h.b16 %v7360
    %v8562 = vunpack.c.l.b16 %v7361
    %v8563 = vunpack.c.h.b16 %v7361
    %v8564 = vunpack.c.l.b16 %v7362
    %v8565 = vunpack.c.h.b16 %v7362
    %v8566 = vunpack.c.l.b16 %v7363
    %v8567 = vunpack.c.h.b16 %v7363
    %v8568 = vunpack.c.l.b16 %v7364
    %v8569 = vunpack.c.h.b16 %v7364
    %v8570 = vunpack.c.l.b16 %v7365
    %v8571 = vunpack.c.h.b16 %v7365
    %v8572 = vunpack.c.l.b16 %v7366
    %v8573 = vunpack.c.h.b16 %v7366
    %v8574 = vunpack.c.l.b16 %v7367
    %v8575 = vunpack.c.h.b16 %v7367
    %v8576 = vunpack.c.l.b16 %v7368
    %v8577 = vunpack.c.h.b16 %v7368
    %v8578 = vunpack.c.l.b16 %v7369
    %v8579 = vunpack.c.h.b16 %v7369
    %v8580 = vunpack.c.l.b16 %v7370
    %v8581 = vunpack.c.h.b16 %v7370
    %v8582 = vunpack.c.l.b16 %v7371
    %v8583 = vunpack.c.h.b16 %v7371
    %v8584 = vunpack.c.l.b16 %v7372
    %v8585 = vunpack.c.h.b16 %v7372
    %v8586 = vunpack.c.l.b16 %v7373
    %v8587 = vunpack.c.h.b16 %v7373
    %v8588 = vunpack.c.l.b16 %v7374
    %v8589 = vunpack.c.h.b16 %v7374
    %v8590 = vunpack.c.l.b16 %v7375
    %v8591 = vunpack.c.h.b16 %v7375
    %v8592 = vunpack.c.l.b16 %v7376
    %v8593 = vunpack.c.h.b16 %v7376
    %v8594 = vunpack.c.l.b16 %v7377
    %v8595 = vunpack.c.h.b16 %v7377
    %v8596 = vunpack.c.l.b16 %v7378
    %v8597 = vunpack.c.h.b16 %v7378
    %v8598 = vunpack.c.l.b16 %v7379
    %v8599 = vunpack.c.h.b16 %v7379
    %v8600 = vunpack.c.l.b16 %v7380
    %v8601 = vunpack.c.h.b16 %v7380
    %v8602 = vunpack.c.l.b16 %v7381
    %v8603 = vunpack.c.h.b16 %v7381
    %v8604 = vunpack.c.l.b16 %v7382
    %v8605 = vunpack.c.h.b16 %v7382
    %v8606 = vunpack.c.l.b16 %v7383
    %v8607 = vunpack.c.h.b16 %v7383
    %v8608 = vunpack.c.l.b16 %v7384
    %v8609 = vunpack.c.h.b16 %v7384
    %v8610 = vunpack.c.l.b16 %v7385
    %v8611 = vunpack.c.h.b16 %v7385
    %v8612 = vunpack.c.l.b16 %v7386
    %v8613 = vunpack.c.h.b16 %v7386
    %v8614 = vunpack.c.l.b16 %v7387
    %v8615 = vunpack.c.h.b16 %v7387
    %v8616 = vunpack.c.l.b16 %v7388
    %v8617 = vunpack.c.h.b16 %v7388
    %v8618 = vunpack.c.l.b16 %v7389
    %v8619 = vunpack.c.h.b16 %v7389
    %v8620 = vunpack.c.l.b16 %v7390
    %v8621 = vunpack.c.h.b16 %v7390
    %v8622 = vunpack.c.l.b16 %v7391
    %v8623 = vunpack.c.h.b16 %v7391
    %v8624 = vunpack.c.l.b16 %v7392
    %v8625 = vunpack.c.h.b16 %v7392
    %v8626 = vunpack.c.l.b16 %v7393
    %v8627 = vunpack.c.h.b16 %v7393
    %v8628 = vunpack.c.l.b16 %v7394
    %v8629 = vunpack.c.h.b16 %v7394
    %v8630 = vunpack.c.l.b16 %v7395
    %v8631 = vunpack.c.h.b16 %v7395
    %v8632 = vunpack.c.l.b16 %v7396
    %v8633 = vunpack.c.h.b16 %v7396
    %v8634 = vunpack.c.l.b16 %v7397
    %v8635 = vunpack.c.h.b16 %v7397
    %v8636 = vunpack.c.l.b16 %v7398
    %v8637 = vunpack.c.h.b16 %v7398
    %v8638 = vunpack.c.l.b16 %v7399
    %v8639 = vunpack.c.h.b16 %v7399
    %v8640 = vunpack.c.l.b16 %v7400
    %v8641 = vunpack.c.h.b16 %v7400
    %v8642 = vunpack.c.l.b16 %v7401
    %v8643 = vunpack.c.h.b16 %v7401
    %v8644 = vunpack.c.l.b16 %v7402
    %v8645 = vunpack.c.h.b16 %v7402
    %v8646 = vunpack.c.l.b16 %v7403
    %v8647 = vunpack.c.h.b16 %v7403
    %v8648 = vunpack.c.l.b16 %v7404
    %v8649 = vunpack.c.h.b16 %v7404
    %v8650 = vunpack.c.l.b16 %v7405
    %v8651 = vunpack.c.h.b16 %v7405
    %v8652 = vunpack.c.l.b16 %v7406
    %v8653 = vunpack.c.h.b16 %v7406
    %v8654 = vunpack.c.l.b16 %v7407
    %v8655 = vunpack.c.h.b16 %v7407
    %v8656 = vunpack.c.l.b16 %v7408
    %v8657 = vunpack.c.h.b16 %v7408
    %v8658 = vunpack.c.l.b16 %v7409
    %v8659 = vunpack.c.h.b16 %v7409
    %v8660 = vunpack.c.l.b16 %v7410
    %v8661 = vunpack.c.h.b16 %v7410
    %v8662 = vunpack.c.l.b16 %v7411
    %v8663 = vunpack.c.h.b16 %v7411
    %v8664 = vunpack.c.l.b16 %v7412
    %v8665 = vunpack.c.h.b16 %v7412
    %v8666 = vunpack.c.l.b16 %v7413
    %v8667 = vunpack.c.h.b16 %v7413
    %v8668 = vunpack.c.l.b16 %v7414
    %v8669 = vunpack.c.h.b16 %v7414
    %v8670 = vunpack.c.l.b16 %v7415
    %v8671 = vunpack.c.h.b16 %v7415
    %v8672 = vunpack.c.l.b16 %v7416
    %v8673 = vunpack.c.h.b16 %v7416
    %v8674 = vunpack.c.l.b16 %v7417
    %v8675 = vunpack.c.h.b16 %v7417
    %v8676 = vunpack.c.l.b16 %v7418
    %v8677 = vunpack.c.h.b16 %v7418
    %v8678 = vunpack.c.l.b16 %v7419
    %v8679 = vunpack.c.h.b16 %v7419
    %v8680 = vunpack.c.l.b16 %v7420
    %v8681 = vunpack.c.h.b16 %v7420
    %v8682 = vunpack.c.l.b16 %v7421
    %v8683 = vunpack.c.h.b16 %v7421
    %v8684 = vunpack.c.l.b16 %v7422
    %v8685 = vunpack.c.h.b16 %v7422
    %v8686 = vunpack.c.l.b16 %v7423
    %v8687 = vunpack.c.h.b16 %v7423
    %v8688 = vunpack.c.l.b16 %v7424
    %v8689 = vunpack.c.h.b16 %v7424
    %v8690 = vunpack.c.l.b16 %v7425
    %v8691 = vunpack.c.h.b16 %v7425
    %v8692 = vunpack.c.l.b16 %v7426
    %v8693 = vunpack.c.h.b16 %v7426
    %v8694 = vunpack.c.l.b16 %v7427
    %v8695 = vunpack.c.h.b16 %v7427
    %v8696 = vunpack.c.l.b16 %v7428
    %v8697 = vunpack.c.h.b16 %v7428
    %v8698 = vunpack.c.l.b16 %v7429
    %v8699 = vunpack.c.h.b16 %v7429
    %v8700 = vunpack.c.l.b16 %v7430
    %v8701 = vunpack.c.h.b16 %v7430
    %v8702 = vunpack.c.l.b16 %v7431
    %v8703 = vunpack.c.h.b16 %v7431
    %v8704 = vunpack.c.l.b16 %v7432
    %v8705 = vunpack.c.h.b16 %v7432
    %v8706 = vunpack.c.l.b16 %v7433
    %v8707 = vunpack.c.h.b16 %v7433
    %v8708 = vunpack.c.l.b16 %v7434
    %v8709 = vunpack.c.h.b16 %v7434
    %v8710 = vunpack.c.l.b16 %v7435
    %v8711 = vunpack.c.h.b16 %v7435
    %v8712 = vunpack.c.l.b16 %v7436
    %v8713 = vunpack.c.h.b16 %v7436
    %v8714 = vunpack.c.l.b16 %v7437
    %v8715 = vunpack.c.h.b16 %v7437
    %v8716 = vunpack.c.l.b16 %v7438
    %v8717 = vunpack.c.h.b16 %v7438
    %v8718 = vunpack.c.l.b16 %v7439
    %v8719 = vunpack.c.h.b16 %v7439
    %v8720 = vunpack.c.l.b16 %v7440
    %v8721 = vunpack.c.h.b16 %v7440
    %v8722 = vunpack.c.l.b16 %v7441
    %v8723 = vunpack.c.h.b16 %v7441
    %v8724 = vunpack.c.l.b16 %v7442
    %v8725 = vunpack.c.h.b16 %v7442
    %v8726 = vunpack.c.l.b16 %v7443
    %v8727 = vunpack.c.h.b16 %v7443
    %v8728 = vunpack.c.l.b16 %v7444
    %v8729 = vunpack.c.h.b16 %v7444
    %v8730 = vunpack.c.l.b16 %v7445
    %v8731 = vunpack.c.h.b16 %v7445
    %v8732 = vunpack.c.l.b16 %v7446
    %v8733 = vunpack.c.h.b16 %v7446
    %v8734 = vunpack.c.l.b16 %v7447
    %v8735 = vunpack.c.h.b16 %v7447
    %v8736 = vunpack.c.l.b16 %v7448
    %v8737 = vunpack.c.h.b16 %v7448
    %v8738 = vunpack.c.l.b16 %v7449
    %v8739 = vunpack.c.h.b16 %v7449
    %v8740 = vunpack.c.l.b16 %v7450
    %v8741 = vunpack.c.h.b16 %v7450
    %v8742 = vunpack.c.l.b16 %v7451
    %v8743 = vunpack.c.h.b16 %v7451
    %v8744 = vunpack.c.l.b16 %v7452
    %v8745 = vunpack.c.h.b16 %v7452
    %v8746 = vunpack.c.l.b16 %v7453
    %v8747 = vunpack.c.h.b16 %v7453
    %v8748 = vunpack.c.l.b16 %v7454
    %v8749 = vunpack.c.h.b16 %v7454
    %v8750 = vunpack.c.l.b16 %v7455
    %v8751 = vunpack.c.h.b16 %v7455
    %v8752 = vunpack.c.l.b16 %v7456
    %v8753 = vunpack.c.h.b16 %v7456
    %v8754 = vunpack.c.l.b16 %v7457
    %v8755 = vunpack.c.h.b16 %v7457
    %v8756 = vunpack.c.l.b16 %v7458
    %v8757 = vunpack.c.h.b16 %v7458
    %v8758 = vunpack.c.l.b16 %v7459
    %v8759 = vunpack.c.h.b16 %v7459
    %v8760 = vunpack.c.l.b16 %v7460
    %v8761 = vunpack.c.h.b16 %v7460
    %v8762 = vunpack.c.l.b16 %v7461
    %v8763 = vunpack.c.h.b16 %v7461
    %v8764 = vunpack.c.l.b16 %v7462
    %v8765 = vunpack.c.h.b16 %v7462
    %v8766 = vunpack.c.l.b16 %v7463
    %v8767 = vunpack.c.h.b16 %v7463
    %v8768 = vunpack.c.l.b16 %v7464
    %v8769 = vunpack.c.h.b16 %v7464
    %v8770 = vunpack.c.l.b16 %v7465
    %v8771 = vunpack.c.h.b16 %v7465
    %v8772 = vunpack.c.l.b16 %v7466
    %v8773 = vunpack.c.h.b16 %v7466
    %v8774 = vunpack.c.l.b16 %v7467
    %v8775 = vunpack.c.h.b16 %v7467
    %v8776 = vunpack.c.l.b16 %v7468
    %v8777 = vunpack.c.h.b16 %v7468
    %v8778 = vunpack.c.l.b16 %v7469
    %v8779 = vunpack.c.h.b16 %v7469
    %v8780 = vunpack.c.l.b16 %v7470
    %v8781 = vunpack.c.h.b16 %v7470
    %v8782 = vunpack.c.l.b16 %v7471
    %v8783 = vunpack.c.h.b16 %v7471
    %v8784 = vunpack.c.l.b16 %v7472
    %v8785 = vunpack.c.h.b16 %v7472
    %v8786 = vunpack.c.l.b16 %v7473
    %v8787 = vunpack.c.h.b16 %v7473
    %v8788 = vunpack.c.l.b16 %v7474
    %v8789 = vunpack.c.h.b16 %v7474
    %v8790 = vunpack.c.l.b16 %v7475
    %v8791 = vunpack.c.h.b16 %v7475
    %v8792 = vunpack.c.l.b16 %v7476
    %v8793 = vunpack.c.h.b16 %v7476
    %v8794 = vunpack.c.l.b16 %v7477
    %v8795 = vunpack.c.h.b16 %v7477
    %v8796 = vunpack.c.l.b16 %v7478
    %v8797 = vunpack.c.h.b16 %v7478
    %v8798 = vunpack.c.l.b16 %v7479
    %v8799 = vunpack.c.h.b16 %v7479
    %v8800 = vunpack.c.l.b16 %v7480
    %v8801 = vunpack.c.h.b16 %v7480
    %v8802 = vunpack.c.l.b16 %v7481
    %v8803 = vunpack.c.h.b16 %v7481
    %v8804 = vunpack.c.l.b16 %v7482
    %v8805 = vunpack.c.h.b16 %v7482
    %v8806 = vunpack.c.l.b16 %v7483
    %v8807 = vunpack.c.h.b16 %v7483
    %v8808 = vunpack.c.l.b16 %v7484
    %v8809 = vunpack.c.h.b16 %v7484
    %v8810 = vunpack.c.l.b16 %v7485
    %v8811 = vunpack.c.h.b16 %v7485
    %v8812 = vunpack.c.l.b16 %v7486
    %v8813 = vunpack.c.h.b16 %v7486
    %v8814 = vunpack.c.l.b16 %v7487
    %v8815 = vunpack.c.h.b16 %v7487
    %v8816 = vunpack.c.l.b16 %v7488
    %v8817 = vunpack.c.h.b16 %v7488
    %v8818 = vunpack.c.l.b16 %v7489
    %v8819 = vunpack.c.h.b16 %v7489
    %v8820 = vunpack.c.l.b16 %v7490
    %v8821 = vunpack.c.h.b16 %v7490
    %v8822 = vunpack.c.l.b16 %v7491
    %v8823 = vunpack.c.h.b16 %v7491
    %v8824 = vunpack.c.l.b16 %v7492
    %v8825 = vunpack.c.h.b16 %v7492
    %v8826 = vunpack.c.l.b16 %v7493
    %v8827 = vunpack.c.h.b16 %v7493
    %v8828 = vunpack.c.l.b16 %v7494
    %v8829 = vunpack.c.h.b16 %v7494
    %v8830 = vunpack.c.l.b16 %v7495
    %v8831 = vunpack.c.h.b16 %v7495
    %v8832 = vunpack.c.l.b16 %v7496
    %v8833 = vunpack.c.h.b16 %v7496
    %v8834 = vunpack.c.l.b16 %v7497
    %v8835 = vunpack.c.h.b16 %v7497
    %v8836 = vunpack.c.l.b16 %v7498
    %v8837 = vunpack.c.h.b16 %v7498
    %v8838 = vunpack.c.l.b16 %v7499
    %v8839 = vunpack.c.h.b16 %v7499
    %v8840 = vunpack.c.l.b16 %v7500
    %v8841 = vunpack.c.h.b16 %v7500
    %v8842 = vunpack.c.l.b16 %v7501
    %v8843 = vunpack.c.h.b16 %v7501
    %v8844 = vunpack.c.l.b16 %v7502
    %v8845 = vunpack.c.h.b16 %v7502
    %v8846 = vunpack.c.l.b16 %v7503
    %v8847 = vunpack.c.h.b16 %v7503
    %v8848 = vunpack.c.l.b16 %v7504
    %v8849 = vunpack.c.h.b16 %v7504
    %v8850 = vunpack.c.l.b16 %v7505
    %v8851 = vunpack.c.h.b16 %v7505
    %v8852 = vunpack.c.l.b16 %v7506
    %v8853 = vunpack.c.h.b16 %v7506
    %v8854 = vunpack.c.l.b16 %v7507
    %v8855 = vunpack.c.h.b16 %v7507
    %v8856 = vunpack.c.l.b16 %v7508
    %v8857 = vunpack.c.h.b16 %v7508
    %v8858 = vunpack.c.l.b16 %v7509
    %v8859 = vunpack.c.h.b16 %v7509
    %v8860 = vunpack.c.l.b16 %v7510
    %v8861 = vunpack.c.h.b16 %v7510
    %v8862 = vunpack.c.l.b16 %v7511
    %v8863 = vunpack.c.h.b16 %v7511
    %v8864 = vunpack.c.l.b16 %v7512
    %v8865 = vunpack.c.h.b16 %v7512
    %v8866 = vunpack.c.l.b16 %v7513
    %v8867 = vunpack.c.h.b16 %v7513
    %v8868 = vunpack.c.l.b16 %v7514
    %v8869 = vunpack.c.h.b16 %v7514
    %v8870 = vunpack.c.l.b16 %v7515
    %v8871 = vunpack.c.h.b16 %v7515
    %v8872 = vunpack.c.l.b16 %v7516
    %v8873 = vunpack.c.h.b16 %v7516
    %v8874 = vunpack.c.l.b16 %v7517
    %v8875 = vunpack.c.h.b16 %v7517
    %v8876 = vunpack.c.l.b16 %v7518
    %v8877 = vunpack.c.h.b16 %v7518
    %v8878 = vunpack.c.l.b16 %v7519
    %v8879 = vunpack.c.h.b16 %v7519
    %v8880 = vunpack.c.l.b16 %v7520
    %v8881 = vunpack.c.h.b16 %v7520
    %v8882 = vunpack.c.l.b16 %v7521
    %v8883 = vunpack.c.h.b16 %v7521
    %v8884 = vunpack.c.l.b16 %v7522
    %v8885 = vunpack.c.h.b16 %v7522
    %v8886 = vunpack.c.l.b16 %v7523
    %v8887 = vunpack.c.h.b16 %v7523
    %v8888 = vunpack.c.l.b16 %v7524
    %v8889 = vunpack.c.h.b16 %v7524
    %v8890 = vunpack.c.l.b16 %v7525
    %v8891 = vunpack.c.h.b16 %v7525
    %v8892 = vunpack.c.l.b16 %v7526
    %v8893 = vunpack.c.h.b16 %v7526
    %v8894 = vunpack.c.l.b16 %v7527
    %v8895 = vunpack.c.h.b16 %v7527
    %v8896 = vunpack.c.l.b16 %v7528
    %v8897 = vunpack.c.h.b16 %v7528
    %v8898 = vunpack.c.l.b16 %v7529
    %v8899 = vunpack.c.h.b16 %v7529
    %v8900 = vunpack.c.l.b16 %v7530
    %v8901 = vunpack.c.h.b16 %v7530
    %v8902 = vunpack.c.l.b16 %v7531
    %v8903 = vunpack.c.h.b16 %v7531
    %v8904 = vunpack.c.l.b16 %v7532
    %v8905 = vunpack.c.h.b16 %v7532
    %v8906 = vunpack.c.l.b16 %v7533
    %v8907 = vunpack.c.h.b16 %v7533
    %v8908 = vunpack.c.l.b16 %v7534
    %v8909 = vunpack.c.h.b16 %v7534
    %v8910 = vunpack.c.l.b16 %v7535
    %v8911 = vunpack.c.h.b16 %v7535
    %v8912 = vunpack.c.l.b16 %v7536
    %v8913 = vunpack.c.h.b16 %v7536
    %v8914 = vunpack.c.l.b16 %v7537
    %v8915 = vunpack.c.h.b16 %v7537
    %v8916 = vunpack.c.l.b16 %v7538
    %v8917 = vunpack.c.h.b16 %v7538
    %v8918 = vunpack.c.l.b16 %v7539
    %v8919 = vunpack.c.h.b16 %v7539
    %v8920 = vunpack.c.l.b16 %v7540
    %v8921 = vunpack.c.h.b16 %v7540
    %v8922 = vunpack.c.l.b16 %v7541
    %v8923 = vunpack.c.h.b16 %v7541
    %v8924 = vunpack.c.l.b16 %v7542
    %v8925 = vunpack.c.h.b16 %v7542
    %v8926 = vunpack.c.l.b16 %v7543
    %v8927 = vunpack.c.h.b16 %v7543
    %v8928 = vunpack.c.l.b16 %v7544
    %v8929 = vunpack.c.h.b16 %v7544
    %v8930 = vunpack.c.l.b16 %v7545
    %v8931 = vunpack.c.h.b16 %v7545
    %v8932 = vunpack.c.l.b16 %v7546
    %v8933 = vunpack.c.h.b16 %v7546
    %v8934 = vunpack.c.l.b16 %v7547
    %v8935 = vunpack.c.h.b16 %v7547
    %v8936 = vunpack.c.l.b16 %v7548
    %v8937 = vunpack.c.h.b16 %v7548
    %v8938 = vunpack.c.l.b16 %v7549
    %v8939 = vunpack.c.h.b16 %v7549
    %v8940 = vunpack.c.l.b16 %v7550
    %v8941 = vunpack.c.h.b16 %v7550
    %v8942 = vunpack.c.l.b16 %v7551
    %v8943 = vunpack.c.h.b16 %v7551
    %v8944 = vunpack.c.l.b16 %v7552
    %v8945 = vunpack.c.h.b16 %v7552
    %v8946 = vunpack.c.l.b16 %v7553
    %v8947 = vunpack.c.h.b16 %v7553
    %v8948 = vunpack.c.l.b16 %v7554
    %v8949 = vunpack.c.h.b16 %v7554
    %v8950 = vunpack.c.l.b16 %v7555
    %v8951 = vunpack.c.h.b16 %v7555
    %v8952 = vunpack.c.l.b16 %v7556
    %v8953 = vunpack.c.h.b16 %v7556
    %v8954 = vunpack.c.l.b16 %v7557
    %v8955 = vunpack.c.h.b16 %v7557
    %v8956 = vunpack.c.l.b16 %v7558
    %v8957 = vunpack.c.h.b16 %v7558
    %v8958 = vunpack.c.l.b16 %v7559
    %v8959 = vunpack.c.h.b16 %v7559
    %v8960 = vunpack.c.l.b16 %v7560
    %v8961 = vunpack.c.h.b16 %v7560
    %v8962 = vunpack.c.l.b16 %v7561
    %v8963 = vunpack.c.h.b16 %v7561
    %v8964 = vunpack.c.l.b16 %v7562
    %v8965 = vunpack.c.h.b16 %v7562
    %v8966 = vunpack.c.l.b16 %v7563
    %v8967 = vunpack.c.h.b16 %v7563
    %v8968 = vunpack.c.l.b16 %v7564
    %v8969 = vunpack.c.h.b16 %v7564
    %v8970 = vunpack.c.l.b16 %v7565
    %v8971 = vunpack.c.h.b16 %v7565
    %v8972 = vunpack.c.l.b16 %v7566
    %v8973 = vunpack.c.h.b16 %v7566
    %v8974 = vunpack.c.l.b16 %v7567
    %v8975 = vunpack.c.h.b16 %v7567
    %v8976 = vunpack.c.l.b16 %v7568
    %v8977 = vunpack.c.h.b16 %v7568
    %v8978 = vunpack.c.l.b16 %v7569
    %v8979 = vunpack.c.h.b16 %v7569
    %v8980 = vunpack.c.l.b16 %v7570
    %v8981 = vunpack.c.h.b16 %v7570
    %v8982 = vunpack.c.l.b16 %v7571
    %v8983 = vunpack.c.h.b16 %v7571
    %v8984 = vunpack.c.l.b16 %v7572
    %v8985 = vunpack.c.h.b16 %v7572
    %v8986 = vunpack.c.l.b16 %v7573
    %v8987 = vunpack.c.h.b16 %v7573
    %v8988 = vunpack.c.l.b16 %v7574
    %v8989 = vunpack.c.h.b16 %v7574
    %v8990 = vunpack.c.l.b16 %v7575
    %v8991 = vunpack.c.h.b16 %v7575
    %v8992 = vunpack.c.l.b16 %v7576
    %v8993 = vunpack.c.h.b16 %v7576
    %v8994 = vunpack.c.l.b16 %v7577
    %v8995 = vunpack.c.h.b16 %v7577
    %v8996 = vunpack.c.l.b16 %v7578
    %v8997 = vunpack.c.h.b16 %v7578
    %v8998 = vunpack.c.l.b16 %v7579
    %v8999 = vunpack.c.h.b16 %v7579
    %v9000 = vunpack.c.l.b16 %v7580
    %v9001 = vunpack.c.h.b16 %v7580
    %v9002 = vunpack.c.l.b16 %v7581
    %v9003 = vunpack.c.h.b16 %v7581
    %v9004 = vunpack.c.l.b16 %v7582
    %v9005 = vunpack.c.h.b16 %v7582
    %v9006 = vunpack.c.l.b16 %v7583
    %v9007 = vunpack.c.h.b16 %v7583
    %v9008 = vunpack.c.l.b16 %v7584
    %v9009 = vunpack.c.h.b16 %v7584
    %v9010 = vunpack.c.l.b16 %v7585
    %v9011 = vunpack.c.h.b16 %v7585
    %v9012 = vunpack.c.l.b16 %v7586
    %v9013 = vunpack.c.h.b16 %v7586
    %v9014 = vunpack.c.l.b16 %v7587
    %v9015 = vunpack.c.h.b16 %v7587
    %v9016 = vunpack.c.l.b16 %v7588
    %v9017 = vunpack.c.h.b16 %v7588
    %v9018 = vunpack.c.l.b16 %v7589
    %v9019 = vunpack.c.h.b16 %v7589
    %v9020 = vunpack.c.l.b16 %v7590
    %v9021 = vunpack.c.h.b16 %v7590
    %v9022 = vunpack.c.l.b16 %v7591
    %v9023 = vunpack.c.h.b16 %v7591
    %v9024 = vunpack.c.l.b16 %v7592
    %v9025 = vunpack.c.h.b16 %v7592
    %v9026 = vunpack.c.l.b16 %v7593
    %v9027 = vunpack.c.h.b16 %v7593
    %v9028 = vunpack.c.l.b16 %v7594
    %v9029 = vunpack.c.h.b16 %v7594
    %v9030 = vunpack.c.l.b16 %v7595
    %v9031 = vunpack.c.h.b16 %v7595
    %v9032 = vunpack.c.l.b16 %v7596
    %v9033 = vunpack.c.h.b16 %v7596
    %v9034 = vunpack.c.l.b16 %v7597
    %v9035 = vunpack.c.h.b16 %v7597
    %v9036 = vunpack.c.l.b16 %v7598
    %v9037 = vunpack.c.h.b16 %v7598
    %v9038 = vunpack.c.l.b16 %v7599
    %v9039 = vunpack.c.h.b16 %v7599
    %v9040 = vunpack.c.l.b16 %v7600
    %v9041 = vunpack.c.h.b16 %v7600
    %v9042 = vunpack.c.l.b16 %v7601
    %v9043 = vunpack.c.h.b16 %v7601
    %v9044 = vunpack.c.l.b16 %v7602
    %v9045 = vunpack.c.h.b16 %v7602
    %v9046 = vunpack.c.l.b16 %v7603
    %v9047 = vunpack.c.h.b16 %v7603
    %v9048 = vunpack.c.l.b16 %v7604
    %v9049 = vunpack.c.h.b16 %v7604
    %v9050 = vunpack.c.l.b16 %v7605
    %v9051 = vunpack.c.h.b16 %v7605
    %v9052 = vunpack.c.l.b16 %v7606
    %v9053 = vunpack.c.h.b16 %v7606
    %v9054 = vunpack.c.l.b16 %v7607
    %v9055 = vunpack.c.h.b16 %v7607
    %v9056 = vunpack.c.l.b16 %v7608
    %v9057 = vunpack.c.h.b16 %v7608
    %v9058 = vunpack.c.l.b16 %v7609
    %v9059 = vunpack.c.h.b16 %v7609
    %v9060 = vunpack.c.l.b16 %v7610
    %v9061 = vunpack.c.h.b16 %v7610
    %v9062 = vunpack.c.l.b16 %v7611
    %v9063 = vunpack.c.h.b16 %v7611
    %v9064 = vunpack.c.l.b16 %v7612
    %v9065 = vunpack.c.h.b16 %v7612
    %v9066 = vunpack.c.l.b16 %v7613
    %v9067 = vunpack.c.h.b16 %v7613
    %v9068 = vunpack.c.l.b16 %v7614
    %v9069 = vunpack.c.h.b16 %v7614
    %v9070 = vunpack.c.l.b16 %v7615
    %v9071 = vunpack.c.h.b16 %v7615
    %v9072 = vunpack.c.l.b16 %v7616
    %v9073 = vunpack.c.h.b16 %v7616
    %v9074 = vunpack.c.l.b16 %v7617
    %v9075 = vunpack.c.h.b16 %v7617
    %v9076 = vunpack.c.l.b16 %v7618
    %v9077 = vunpack.c.h.b16 %v7618
    %v9078 = vunpack.c.l.b16 %v7619
    %v9079 = vunpack.c.h.b16 %v7619
    %v9080 = vunpack.c.l.b16 %v7620
    %v9081 = vunpack.c.h.b16 %v7620
    %v9082 = vunpack.c.l.b16 %v7621
    %v9083 = vunpack.c.h.b16 %v7621
    %v9084 = vunpack.c.l.b16 %v7622
    %v9085 = vunpack.c.h.b16 %v7622
    %v9086 = vunpack.c.l.b16 %v7623
    %v9087 = vunpack.c.h.b16 %v7623
    %v9088 = vunpack.c.l.b16 %v7624
    %v9089 = vunpack.c.h.b16 %v7624
    %v9090 = vunpack.c.l.b16 %v7625
    %v9091 = vunpack.c.h.b16 %v7625
    %v9092 = vunpack.c.l.b16 %v7626
    %v9093 = vunpack.c.h.b16 %v7626
    %v9094 = vunpack.c.l.b16 %v7627
    %v9095 = vunpack.c.h.b16 %v7627
    %v9096 = vunpack.c.l.b16 %v7628
    %v9097 = vunpack.c.h.b16 %v7628
    %v9098 = vunpack.c.l.b16 %v7629
    %v9099 = vunpack.c.h.b16 %v7629
    %v9100 = vunpack.c.l.b16 %v7630
    %v9101 = vunpack.c.h.b16 %v7630
    %v9102 = vunpack.c.l.b16 %v7631
    %v9103 = vunpack.c.h.b16 %v7631
    %v9104 = vunpack.c.l.b16 %v7632
    %v9105 = vunpack.c.h.b16 %v7632
    %v9106 = vunpack.c.l.b16 %v7633
    %v9107 = vunpack.c.h.b16 %v7633
    %v9108 = vunpack.c.l.b16 %v7634
    %v9109 = vunpack.c.h.b16 %v7634
    %v9110 = vunpack.c.l.b16 %v7635
    %v9111 = vunpack.c.h.b16 %v7635
    %v9112 = vunpack.c.l.b16 %v7636
    %v9113 = vunpack.c.h.b16 %v7636
    %v9114 = vunpack.c.l.b16 %v7637
    %v9115 = vunpack.c.h.b16 %v7637
    %v9116 = vunpack.c.l.b16 %v7638
    %v9117 = vunpack.c.h.b16 %v7638
    %v9118 = vunpack.c.l.b16 %v7639
    %v9119 = vunpack.c.h.b16 %v7639
    %v9120 = vunpack.c.l.b16 %v7640
    %v9121 = vunpack.c.h.b16 %v7640
    %v9122 = vunpack.c.l.b16 %v7641
    %v9123 = vunpack.c.h.b16 %v7641
    %v9124 = vunpack.c.l.b16 %v7642
    %v9125 = vunpack.c.h.b16 %v7642
    %v9126 = vunpack.c.l.b16 %v7643
    %v9127 = vunpack.c.h.b16 %v7643
    %v9128 = vunpack.c.l.b16 %v7644
    %v9129 = vunpack.c.h.b16 %v7644
    %v9130 = vunpack.c.l.b16 %v7645
    %v9131 = vunpack.c.h.b16 %v7645
    %v9132 = vunpack.c.l.b16 %v7646
    %v9133 = vunpack.c.h.b16 %v7646
    %v9134 = vunpack.c.l.b16 %v7647
    %v9135 = vunpack.c.h.b16 %v7647
    %v9136 = vunpack.c.l.b16 %v7648
    %v9137 = vunpack.c.h.b16 %v7648
    %v9138 = vunpack.c.l.b16 %v7649
    %v9139 = vunpack.c.h.b16 %v7649
    %v9140 = vunpack.c.l.b16 %v7650
    %v9141 = vunpack.c.h.b16 %v7650
    %v9142 = vunpack.c.l.b16 %v7651
    %v9143 = vunpack.c.h.b16 %v7651
    %v9144 = vunpack.c.l.b16 %v7652
    %v9145 = vunpack.c.h.b16 %v7652
    %v9146 = vunpack.c.l.b16 %v7653
    %v9147 = vunpack.c.h.b16 %v7653
    %v9148 = vunpack.c.l.b16 %v7654
    %v9149 = vunpack.c.h.b16 %v7654
    %v9150 = vunpack.c.l.b16 %v7655
    %v9151 = vunpack.c.h.b16 %v7655
    %v9152 = vunpack.c.l.b16 %v7656
    %v9153 = vunpack.c.h.b16 %v7656
    %v9154 = vunpack.c.l.b16 %v7657
    %v9155 = vunpack.c.h.b16 %v7657
    %v9156 = vunpack.c.l.b16 %v7658
    %v9157 = vunpack.c.h.b16 %v7658
    %v9158 = vunpack.c.l.b16 %v7659
    %v9159 = vunpack.c.h.b16 %v7659
    %v9160 = vunpack.c.l.b16 %v7660
    %v9161 = vunpack.c.h.b16 %v7660
    %v9162 = vunpack.c.l.b16 %v7661
    %v9163 = vunpack.c.h.b16 %v7661
    %v9164 = vunpack.c.l.b16 %v7662
    %v9165 = vunpack.c.h.b16 %v7662
    %v9166 = vunpack.c.l.b16 %v7663
    %v9167 = vunpack.c.h.b16 %v7663
    %v9168 = vunpack.c.l.b16 %v7664
    %v9169 = vunpack.c.h.b16 %v7664
    %v9170 = vunpack.c.l.b16 %v7665
    %v9171 = vunpack.c.h.b16 %v7665
    %v9172 = vunpack.c.l.b16 %v7666
    %v9173 = vunpack.c.h.b16 %v7666
    %v9174 = vunpack.c.l.b16 %v7667
    %v9175 = vunpack.c.h.b16 %v7667
    %v9176 = vunpack.c.l.b16 %v7668
    %v9177 = vunpack.c.h.b16 %v7668
    %v9178 = vunpack.c.l.b16 %v7669
    %v9179 = vunpack.c.h.b16 %v7669
    %v9180 = vunpack.c.l.b16 %v7670
    %v9181 = vunpack.c.h.b16 %v7670
    %v9182 = vunpack.c.l.b16 %v7671
    %v9183 = vunpack.c.h.b16 %v7671
    %v9184 = vunpack.c.l.b16 %v7672
    %v9185 = vunpack.c.h.b16 %v7672
    %v9186 = vunpack.c.l.b16 %v7673
    %v9187 = vunpack.c.h.b16 %v7673
    %v9188 = vunpack.c.l.b16 %v7674
    %v9189 = vunpack.c.h.b16 %v7674
    %v9190 = vunpack.c.l.b16 %v7675
    %v9191 = vunpack.c.h.b16 %v7675
    %v9192 = vunpack.c.l.b16 %v7676
    %v9193 = vunpack.c.h.b16 %v7676
    %v9194 = vunpack.c.l.b16 %v7677
    %v9195 = vunpack.c.h.b16 %v7677
    %v9196 = vunpack.c.l.b16 %v7678
    %v9197 = vunpack.c.h.b16 %v7678
    %v9198 = vunpack.c.l.b16 %v7679
    %v9199 = vunpack.c.h.b16 %v7679
    %v9200 = vunpack.c.l.b16 %v7680
    %v9201 = vunpack.c.h.b16 %v7680
    %v9202 = vunpack.c.l.b16 %v7681
    %v9203 = vunpack.c.h.b16 %v7681
    %v9204 = vunpack.c.l.b16 %v7682
    %v9205 = vunpack.c.h.b16 %v7682
    %v9206 = vunpack.c.l.b16 %v7683
    %v9207 = vunpack.c.h.b16 %v7683
    %v9208 = vunpack.c.l.b16 %v7684
    %v9209 = vunpack.c.h.b16 %v7684
    %v9210 = vunpack.c.l.b16 %v7685
    %v9211 = vunpack.c.h.b16 %v7685
    %v9212 = vunpack.c.l.b16 %v7686
    %v9213 = vunpack.c.h.b16 %v7686
    %v9214 = vunpack.c.l.b16 %v7687
    %v9215 = vunpack.c.h.b16 %v7687
    %v9216 = vunpack.c.l.b16 %v7688
    %v9217 = vunpack.c.h.b16 %v7688
    %v9218 = vunpack.c.l.b16 %v7689
    %v9219 = vunpack.c.h.b16 %v7689
    %v9220 = vunpack.c.l.b16 %v7690
    %v9221 = vunpack.c.h.b16 %v7690
    %v9222 = vunpack.c.l.b16 %v7691
    %v9223 = vunpack.c.h.b16 %v7691
    %v9224 = vunpack.c.l.b16 %v7692
    %v9225 = vunpack.c.h.b16 %v7692
    %v9226 = vunpack.c.l.b16 %v7693
    %v9227 = vunpack.c.h.b16 %v7693
    %v9228 = vunpack.c.l.b16 %v7694
    %v9229 = vunpack.c.h.b16 %v7694
    %v9230 = vunpack.c.l.b16 %v7695
    %v9231 = vunpack.c.h.b16 %v7695
    %v9232 = vunpack.c.l.b16 %v7696
    %v9233 = vunpack.c.h.b16 %v7696
    %v9234 = vunpack.c.l.b16 %v7697
    %v9235 = vunpack.c.h.b16 %v7697
    %v9236 = vunpack.c.l.b16 %v7698
    %v9237 = vunpack.c.h.b16 %v7698
    %v9238 = vunpack.c.l.b16 %v7699
    %v9239 = vunpack.c.h.b16 %v7699
    %v9240 = vunpack.c.l.b16 %v7700
    %v9241 = vunpack.c.h.b16 %v7700
    %v9242 = vunpack.c.l.b16 %v7701
    %v9243 = vunpack.c.h.b16 %v7701
    %v9244 = vunpack.c.l.b16 %v7702
    %v9245 = vunpack.c.h.b16 %v7702
    %v9246 = vunpack.c.l.b16 %v7703
    %v9247 = vunpack.c.h.b16 %v7703
    %v9248 = vunpack.c.l.b16 %v7704
    %v9249 = vunpack.c.h.b16 %v7704
    %v9250 = vunpack.c.l.b16 %v7705
    %v9251 = vunpack.c.h.b16 %v7705
    %v9252 = vunpack.c.l.b16 %v7706
    %v9253 = vunpack.c.h.b16 %v7706
    %v9254 = vunpack.c.l.b16 %v7707
    %v9255 = vunpack.c.h.b16 %v7707
    %v9256 = vunpack.c.l.b16 %v7708
    %v9257 = vunpack.c.h.b16 %v7708
    %v9258 = vunpack.c.l.b16 %v7709
    %v9259 = vunpack.c.h.b16 %v7709
    %v9260 = vunpack.c.l.b16 %v7710
    %v9261 = vunpack.c.h.b16 %v7710
    %v9262 = vunpack.c.l.b16 %v7711
    %v9263 = vunpack.c.h.b16 %v7711
    %v9264 = vunpack.c.l.b16 %v7712
    %v9265 = vunpack.c.h.b16 %v7712
    %v9266 = vunpack.c.l.b16 %v7713
    %v9267 = vunpack.c.h.b16 %v7713
    %v9268 = vunpack.c.l.b16 %v7714
    %v9269 = vunpack.c.h.b16 %v7714
    %v9270 = vunpack.c.l.b16 %v7715
    %v9271 = vunpack.c.h.b16 %v7715
    %v9272 = vunpack.c.l.b16 %v7716
    %v9273 = vunpack.c.h.b16 %v7716
    %v9274 = vunpack.c.l.b16 %v7717
    %v9275 = vunpack.c.h.b16 %v7717
    %v9276 = vunpack.c.l.b16 %v7718
    %v9277 = vunpack.c.h.b16 %v7718
    %v9278 = vunpack.c.l.b16 %v7719
    %v9279 = vunpack.c.h.b16 %v7719
    %v9280 = vunpack.c.l.b16 %v7720
    %v9281 = vunpack.c.h.b16 %v7720
    %v9282 = vunpack.c.l.b16 %v7721
    %v9283 = vunpack.c.h.b16 %v7721
    %v9284 = vunpack.c.l.b16 %v7722
    %v9285 = vunpack.c.h.b16 %v7722
    %v9286 = vunpack.c.l.b16 %v7723
    %v9287 = vunpack.c.h.b16 %v7723
    %v9288 = vunpack.c.l.b16 %v7724
    %v9289 = vunpack.c.h.b16 %v7724
    %v9290 = vunpack.c.l.b16 %v7725
    %v9291 = vunpack.c.h.b16 %v7725
    %v9292 = vunpack.c.l.b16 %v7726
    %v9293 = vunpack.c.h.b16 %v7726
    %v9294 = vunpack.c.l.b16 %v7727
    %v9295 = vunpack.c.h.b16 %v7727
    %v9296 = vunpack.c.l.b16 %v7728
    %v9297 = vunpack.c.h.b16 %v7728
    %v9298 = vunpack.c.l.b16 %v7729
    %v9299 = vunpack.c.h.b16 %v7729
    %v9300 = vunpack.c.l.b16 %v7730
    %v9301 = vunpack.c.h.b16 %v7730
    %v9302 = vunpack.c.l.b16 %v7731
    %v9303 = vunpack.c.h.b16 %v7731
    %v9304 = vunpack.c.l.b16 %v7732
    %v9305 = vunpack.c.h.b16 %v7732
    %v9306 = vunpack.c.l.b16 %v7733
    %v9307 = vunpack.c.h.b16 %v7733
    %v9308 = vunpack.c.l.b16 %v7734
    %v9309 = vunpack.c.h.b16 %v7734
    %v9310 = vunpack.c.l.b16 %v7735
    %v9311 = vunpack.c.h.b16 %v7735
    %v9312 = vunpack.c.l.b16 %v7736
    %v9313 = vunpack.c.h.b16 %v7736
    %v9314 = vunpack.c.l.b16 %v7737
    %v9315 = vunpack.c.h.b16 %v7737
    %v9316 = vunpack.c.l.b16 %v7738
    %v9317 = vunpack.c.h.b16 %v7738
    %v9318 = vunpack.c.l.b16 %v7739
    %v9319 = vunpack.c.h.b16 %v7739
    %v9320 = vunpack.c.l.b16 %v7740
    %v9321 = vunpack.c.h.b16 %v7740
    %v9322 = vunpack.c.l.b16 %v7741
    %v9323 = vunpack.c.h.b16 %v7741
    %v9324 = vunpack.c.l.b16 %v7742
    %v9325 = vunpack.c.h.b16 %v7742
    %v9326 = vunpack.c.l.b16 %v7743
    %v9327 = vunpack.c.h.b16 %v7743
    %v9328 = vunpack.c.l.b16 %v7744
    %v9329 = vunpack.c.h.b16 %v7744
    %v9330 = vunpack.c.l.b16 %v7745
    %v9331 = vunpack.c.h.b16 %v7745
    %v9332 = vunpack.c.l.b16 %v7746
    %v9333 = vunpack.c.h.b16 %v7746
    %v9334 = vunpack.c.l.b16 %v7747
    %v9335 = vunpack.c.h.b16 %v7747
    %v9336 = vunpack.c.l.b16 %v7748
    %v9337 = vunpack.c.h.b16 %v7748
    %v9338 = vunpack.c.l.b16 %v7749
    %v9339 = vunpack.c.h.b16 %v7749
    %v9340 = vunpack.c.l.b16 %v7750
    %v9341 = vunpack.c.h.b16 %v7750
    %v9342 = vunpack.c.l.b16 %v7751
    %v9343 = vunpack.c.h.b16 %v7751
    %v9344 = vunpack.c.l.b16 %v7752
    %v9345 = vunpack.c.h.b16 %v7752
    %v9346 = vunpack.c.l.b16 %v7753
    %v9347 = vunpack.c.h.b16 %v7753
    %v9348 = vunpack.c.l.b16 %v7754
    %v9349 = vunpack.c.h.b16 %v7754
    %v9350 = vunpack.c.l.b16 %v7755
    %v9351 = vunpack.c.h.b16 %v7755
    %v9352 = vunpack.c.l.b16 %v7756
    %v9353 = vunpack.c.h.b16 %v7756
    %v9354 = vunpack.c.l.b16 %v7757
    %v9355 = vunpack.c.h.b16 %v7757
    %v9356 = vunpack.c.l.b16 %v7758
    %v9357 = vunpack.c.h.b16 %v7758
    %v9358 = vunpack.c.l.b16 %v7759
    %v9359 = vunpack.c.h.b16 %v7759
    %v9360 = vunpack.c.l.b16 %v7760
    %v9361 = vunpack.c.h.b16 %v7760
    %v9362 = vunpack.c.l.b16 %v7761
    %v9363 = vunpack.c.h.b16 %v7761
    %v9364 = vunpack.c.l.b16 %v7762
    %v9365 = vunpack.c.h.b16 %v7762
    %v9366 = vunpack.c.l.b16 %v7763
    %v9367 = vunpack.c.h.b16 %v7763
    %v9368 = vunpack.c.l.b16 %v7764
    %v9369 = vunpack.c.h.b16 %v7764
    %v9370 = vunpack.c.l.b16 %v7765
    %v9371 = vunpack.c.h.b16 %v7765
    %v9372 = vunpack.c.l.b16 %v7766
    %v9373 = vunpack.c.h.b16 %v7766
    %v9374 = vunpack.c.l.b16 %v7767
    %v9375 = vunpack.c.h.b16 %v7767
    %v9376 = vunpack.c.l.b16 %v7768
    %v9377 = vunpack.c.h.b16 %v7768
    %v9378 = vunpack.c.l.b16 %v7769
    %v9379 = vunpack.c.h.b16 %v7769
    %v9380 = vunpack.c.l.b16 %v7770
    %v9381 = vunpack.c.h.b16 %v7770
    %v9382 = vunpack.c.l.b16 %v7771
    %v9383 = vunpack.c.h.b16 %v7771
    %v9384 = vunpack.c.l.b16 %v7772
    %v9385 = vunpack.c.h.b16 %v7772
    %v9386 = vunpack.c.l.b16 %v7773
    %v9387 = vunpack.c.h.b16 %v7773
    %v9388 = vunpack.c.l.b16 %v7774
    %v9389 = vunpack.c.h.b16 %v7774
    %v9390 = vunpack.c.l.b16 %v7775
    %v9391 = vunpack.c.h.b16 %v7775
    %v9392 = vunpack.c.l.b16 %v7776
    %v9393 = vunpack.c.h.b16 %v7776
    %v9394 = vunpack.c.l.b16 %v7777
    %v9395 = vunpack.c.h.b16 %v7777
    %v9396 = vunpack.c.l.b16 %v7778
    %v9397 = vunpack.c.h.b16 %v7778
    %v9398 = vunpack.c.l.b16 %v7779
    %v9399 = vunpack.c.h.b16 %v7779
    %v9400 = vunpack.c.l.b16 %v7780
    %v9401 = vunpack.c.h.b16 %v7780
    %v9402 = vunpack.c.l.b16 %v7781
    %v9403 = vunpack.c.h.b16 %v7781
    %v9404 = vunpack.c.l.b16 %v7782
    %v9405 = vunpack.c.h.b16 %v7782
    %v9406 = vunpack.c.l.b16 %v7783
    %v9407 = vunpack.c.h.b16 %v7783
    %v9408 = vunpack.c.l.b16 %v7784
    %v9409 = vunpack.c.h.b16 %v7784
    %v9410 = vunpack.c.l.b16 %v7785
    %v9411 = vunpack.c.h.b16 %v7785
    %v9412 = vunpack.c.l.b16 %v7786
    %v9413 = vunpack.c.h.b16 %v7786
    %v9414 = vunpack.c.l.b16 %v7787
    %v9415 = vunpack.c.h.b16 %v7787
    %v9416 = vunpack.c.l.b16 %v7788
    %v9417 = vunpack.c.h.b16 %v7788
    %v9418 = vunpack.c.l.b16 %v7789
    %v9419 = vunpack.c.h.b16 %v7789
    %v9420 = vunpack.c.l.b16 %v7790
    %v9421 = vunpack.c.h.b16 %v7790
    %v9422 = vunpack.c.l.b16 %v7791
    %v9423 = vunpack.c.h.b16 %v7791
    %v9424 = vunpack.c.l.b16 %v7792
    %v9425 = vunpack.c.h.b16 %v7792
    %v9426 = vunpack.c.l.b16 %v7793
    %v9427 = vunpack.c.h.b16 %v7793
    %v9428 = vunpack.c.l.b16 %v7794
    %v9429 = vunpack.c.h.b16 %v7794
    %v9430 = vunpack.c.l.b16 %v7795
    %v9431 = vunpack.c.h.b16 %v7795
    %v9432 = vunpack.c.l.b16 %v7796
    %v9433 = vunpack.c.h.b16 %v7796
    %v9434 = vunpack.c.l.b16 %v7797
    %v9435 = vunpack.c.h.b16 %v7797
    %v9436 = vunpack.c.l.b16 %v7798
    %v9437 = vunpack.c.h.b16 %v7798
    %v9438 = vunpack.c.l.b16 %v7799
    %v9439 = vunpack.c.h.b16 %v7799
    %v9440 = vunpack.c.l.b16 %v7800
    %v9441 = vunpack.c.h.b16 %v7800
    %v9442 = vunpack.c.l.b16 %v7801
    %v9443 = vunpack.c.h.b16 %v7801
    %v9444 = vunpack.c.l.b16 %v7802
    %v9445 = vunpack.c.h.b16 %v7802
    %v9446 = vunpack.c.l.b16 %v7803
    %v9447 = vunpack.c.h.b16 %v7803
    %v9448 = vunpack.c.l.b16 %v7804
    %v9449 = vunpack.c.h.b16 %v7804
    %v9450 = vunpack.c.l.b16 %v7805
    %v9451 = vunpack.c.h.b16 %v7805
    %v9452 = vunpack.c.l.b16 %v7806
    %v9453 = vunpack.c.h.b16 %v7806
    %v9454 = vunpack.c.l.b16 %v7807
    %v9455 = vunpack.c.h.b16 %v7807
    %v9456 = vunpack.c.l.b16 %v7808
    %v9457 = vunpack.c.h.b16 %v7808
    %v9458 = vunpack.c.l.b16 %v7809
    %v9459 = vunpack.c.h.b16 %v7809
    %v9460 = vunpack.c.l.b16 %v7810
    %v9461 = vunpack.c.h.b16 %v7810
    %v9462 = vunpack.c.l.b16 %v7811
    %v9463 = vunpack.c.h.b16 %v7811
    %v9464 = vunpack.c.l.b16 %v7812
    %v9465 = vunpack.c.h.b16 %v7812
    %v9466 = vunpack.c.l.b16 %v7813
    %v9467 = vunpack.c.h.b16 %v7813
    %v9468 = vunpack.c.l.b16 %v7814
    %v9469 = vunpack.c.h.b16 %v7814
    %v9470 = vunpack.c.l.b16 %v7815
    %v9471 = vunpack.c.h.b16 %v7815
    %v9472 = vunpack.c.l.b16 %v7816
    %v9473 = vunpack.c.h.b16 %v7816
    %v9474 = vunpack.c.l.b16 %v7817
    %v9475 = vunpack.c.h.b16 %v7817
    %v9476 = vunpack.c.l.b16 %v7818
    %v9477 = vunpack.c.h.b16 %v7818
    %v9478 = vunpack.c.l.b16 %v7819
    %v9479 = vunpack.c.h.b16 %v7819
    %v9480 = vunpack.c.l.b16 %v7820
    %v9481 = vunpack.c.h.b16 %v7820
    %v9482 = vunpack.c.l.b16 %v7821
    %v9483 = vunpack.c.h.b16 %v7821
    %v9484 = vunpack.c.l.b16 %v7822
    %v9485 = vunpack.c.h.b16 %v7822
    %v9486 = vunpack.c.l.b16 %v7823
    %v9487 = vunpack.c.h.b16 %v7823
    %v9488 = vunpack.c.l.b16 %v7824
    %v9489 = vunpack.c.h.b16 %v7824
    %v9490 = vunpack.c.l.b16 %v7825
    %v9491 = vunpack.c.h.b16 %v7825
    %v9492 = vunpack.c.l.b16 %v7826
    %v9493 = vunpack.c.h.b16 %v7826
    %v9494 = vunpack.c.l.b16 %v7827
    %v9495 = vunpack.c.h.b16 %v7827
    %v9496 = vunpack.c.l.b16 %v7828
    %v9497 = vunpack.c.h.b16 %v7828
    %v9498 = vunpack.c.l.b16 %v7829
    %v9499 = vunpack.c.h.b16 %v7829
    %v9500 = vunpack.c.l.b16 %v7830
    %v9501 = vunpack.c.h.b16 %v7830
    %v9502 = vunpack.c.l.b16 %v7831
    %v9503 = vunpack.c.h.b16 %v7831
    %v9504 = vunpack.c.l.b16 %v7832
    %v9505 = vunpack.c.h.b16 %v7832
    %v9506 = vunpack.c.l.b16 %v7833
    %v9507 = vunpack.c.h.b16 %v7833
    %v9508 = vunpack.c.l.b16 %v7834
    %v9509 = vunpack.c.h.b16 %v7834
    %v9510 = vunpack.c.l.b16 %v7835
    %v9511 = vunpack.c.h.b16 %v7835
    %v9512 = vunpack.c.l.b16 %v7836
    %v9513 = vunpack.c.h.b16 %v7836
    %v9514 = vunpack.c.l.b16 %v7837
    %v9515 = vunpack.c.h.b16 %v7837
    %v9516 = vpack.c.b16 %v8416, %v8412
    %v9517 = vpack.c.b16 %v8417, %v8413
    %v9518 = vpack.c.b16 %v8418, %v8414
    %v9519 = vpack.c.b16 %v8419, %v8415
    %v9520 = vpack.c.b16 %v8424, %v8420
    %v9521 = vpack.c.b16 %v8425, %v8421
    %v9522 = vpack.c.b16 %v8426, %v8422
    %v9523 = vpack.c.b16 %v8427, %v8423
    %v9524 = vpack.c.b16 %v8432, %v8428
    %v9525 = vpack.c.b16 %v8433, %v8429
    %v9526 = vpack.c.b16 %v8434, %v8430
    %v9527 = vpack.c.b16 %v8435, %v8431
    %v9528 = vpack.c.b16 %v8440, %v8436
    %v9529 = vpack.c.b16 %v8441, %v8437
    %v9530 = vpack.c.b16 %v8442, %v8438
    %v9531 = vpack.c.b16 %v8443, %v8439
    %v9532 = vpack.c.b16 %v8448, %v8444
    %v9533 = vpack.c.b16 %v8449, %v8445
    %v9534 = vpack.c.b16 %v8450, %v8446
    %v9535 = vpack.c.b16 %v8451, %v8447
    %v9536 = vpack.c.b16 %v8456, %v8452
    %v9537 = vpack.c.b16 %v8457, %v8453
    %v9538 = vpack.c.b16 %v8458, %v8454
    %v9539 = vpack.c.b16 %v8459, %v8455
    %v9540 = vpack.c.b16 %v8464, %v8460
    %v9541 = vpack.c.b16 %v8465, %v8461
    %v9542 = vpack.c.b16 %v8466, %v8462
    %v9543 = vpack.c.b16 %v8467, %v8463
    %v9544 = vpack.c.b16 %v8472, %v8468
    %v9545 = vpack.c.b16 %v8473, %v8469
    %v9546 = vpack.c.b16 %v8474, %v8470
    %v9547 = vpack.c.b16 %v8475, %v8471
    %v9548 = vpack.c.b16 %v8480, %v8476
    %v9549 = vpack.c.b16 %v8481, %v8477
    %v9550 = vpack.c.b16 %v8482, %v8478
    %v9551 = vpack.c.b16 %v8483, %v8479
    %v9552 = vpack.c.b16 %v8488, %v8484
    %v9553 = vpack.c.b16 %v8489, %v8485
    %v9554 = vpack.c.b16 %v8490, %v8486
    %v9555 = vpack.c.b16 %v8491, %v8487
    %v9556 = vpack.c.b16 %v8496, %v8492
    %v9557 = vpack.c.b16 %v8497, %v8493
    %v9558 = vpack.c.b16 %v8498, %v8494
    %v9559 = vpack.c.b16 %v8499, %v8495
    %v9560 = vpack.c.b16 %v8504, %v8500
    %v9561 = vpack.c.b16 %v8505, %v8501
    %v9562 = vpack.c.b16 %v8506, %v8502
    %v9563 = vpack.c.b16 %v8507, %v8503
    %v9564 = vpack.c.b16 %v8512, %v8508
    %v9565 = vpack.c.b16 %v8513, %v8509
    %v9566 = vpack.c.b16 %v8514, %v8510
    %v9567 = vpack.c.b16 %v8515, %v8511
    %v9568 = vpack.c.b16 %v8520, %v8516
    %v9569 = vpack.c.b16 %v8521, %v8517
    %v9570 = vpack.c.b16 %v8522, %v8518
    %v9571 = vpack.c.b16 %v8523, %v8519
    %v9572 = vpack.c.b16 %v8528, %v8524
    %v9573 = vpack.c.b16 %v8529, %v8525
    %v9574 = vpack.c.b16 %v8530, %v8526
    %v9575 = vpack.c.b16 %v8531, %v8527
    %v9576 = vpack.c.b16 %v8536, %v8532
    %v9577 = vpack.c.b16 %v8537, %v8533
    %v9578 = vpack.c.b16 %v8538, %v8534
    %v9579 = vpack.c.b16 %v8539, %v8535
    %v9580 = vpack.c.b16 %v8544, %v8540
    %v9581 = vpack.c.b16 %v8545, %v8541
    %v9582 = vpack.c.b16 %v8546, %v8542
    %v9583 = vpack.c.b16 %v8547, %v8543
    %v9584 = vpack.c.b16 %v8552, %v8548
    %v9585 = vpack.c.b16 %v8553, %v8549
    %v9586 = vpack.c.b16 %v8554, %v8550
    %v9587 = vpack.c.b16 %v8555, %v8551
    %v9588 = vpack.c.b16 %v8560, %v8556
    %v9589 = vpack.c.b16 %v8561, %v8557
    %v9590 = vpack.c.b16 %v8562, %v8558
    %v9591 = vpack.c.b16 %v8563, %v8559
    %v9592 = vpack.c.b16 %v8568, %v8564
    %v9593 = vpack.c.b16 %v8569, %v8565
    %v9594 = vpack.c.b16 %v8570, %v8566
    %v9595 = vpack.c.b16 %v8571, %v8567
    %v9596 = vpack.c.b16 %v8576, %v8572
    %v9597 = vpack.c.b16 %v8577, %v8573
    %v9598 = vpack.c.b16 %v8578, %v8574
    %v9599 = vpack.c.b16 %v8579, %v8575
    %v9600 = vpack.c.b16 %v8584, %v8580
    %v9601 = vpack.c.b16 %v8585, %v8581
    %v9602 = vpack.c.b16 %v8586, %v8582
    %v9603 = vpack.c.b16 %v8587, %v8583
    %v9604 = vpack.c.b16 %v8592, %v8588
    %v9605 = vpack.c.b16 %v8593, %v8589
    %v9606 = vpack.c.b16 %v8594, %v8590
    %v9607 = vpack.c.b16 %v8595, %v8591
    %v9608 = vpack.c.b16 %v8600, %v8596
    %v9609 = vpack.c.b16 %v8601, %v8597
    %v9610 = vpack.c.b16 %v8602, %v8598
    %v9611 = vpack.c.b16 %v8603, %v8599
    %v9612 = vpack.c.b16 %v8608, %v8604
    %v9613 = vpack.c.b16 %v8609, %v8605
    %v9614 = vpack.c.b16 %v8610, %v8606
    %v9615 = vpack.c.b16 %v8611, %v8607
    %v9616 = vpack.c.b16 %v8616, %v8612
    %v9617 = vpack.c.b16 %v8617, %v8613
    %v9618 = vpack.c.b16 %v8618, %v8614
    %v9619 = vpack.c.b16 %v8619, %v8615
    %v9620 = vpack.c.b16 %v8624, %v8620
    %v9621 = vpack.c.b16 %v8625, %v8621
    %v9622 = vpack.c.b16 %v8626, %v8622
    %v9623 = vpack.c.b16 %v8627, %v8623
    %v9624 = vpack.c.b16 %v8632, %v8628
    %v9625 = vpack.c.b16 %v8633, %v8629
    %v9626 = vpack.c.b16 %v8634, %v8630
    %v9627 = vpack.c.b16 %v8635, %v8631
    %v9628 = vpack.c.b16 %v8640, %v8636
    %v9629 = vpack.c.b16 %v8641, %v8637
    %v9630 = vpack.c.b16 %v8642, %v8638
    %v9631 = vpack.c.b16 %v8643, %v8639
    %v9632 = vpack.c.b16 %v8648, %v8644
    %v9633 = vpack.c.b16 %v8649, %v8645
    %v9634 = vpack.c.b16 %v8650, %v8646
    %v9635 = vpack.c.b16 %v8651, %v8647
    %v9636 = vpack.c.b16 %v8656, %v8652
    %v9637 = vpack.c.b16 %v8657, %v8653
    %v9638 = vpack.c.b16 %v8658, %v8654
    %v9639 = vpack.c.b16 %v8659, %v8655
    %v9640 = vpack.c.b16 %v8664, %v8660
    %v9641 = vpack.c.b16 %v8665, %v8661
    %v9642 = vpack.c.b16 %v8666, %v8662
    %v9643 = vpack.c.b16 %v8667, %v8663
    %v9644 = vpack.c.b16 %v8672, %v8668
    %v9645 = vpack.c.b16 %v8673, %v8669
    %v9646 = vpack.c.b16 %v8674, %v8670
    %v9647 = vpack.c.b16 %v8675, %v8671
    %v9648 = vpack.c.b16 %v8680, %v8676
    %v9649 = vpack.c.b16 %v8681, %v8677
    %v9650 = vpack.c.b16 %v8682, %v8678
    %v9651 = vpack.c.b16 %v8683, %v8679
    %v9652 = vpack.c.b16 %v8688, %v8684
    %v9653 = vpack.c.b16 %v8689, %v8685
    %v9654 = vpack.c.b16 %v8690, %v8686
    %v9655 = vpack.c.b16 %v8691, %v8687
    %v9656 = vpack.c.b16 %v8696, %v8692
    %v9657 = vpack.c.b16 %v8697, %v8693
    %v9658 = vpack.c.b16 %v8698, %v8694
    %v9659 = vpack.c.b16 %v8699, %v8695
    %v9660 = vpack.c.b16 %v8704, %v8700
    %v9661 = vpack.c.b16 %v8705, %v8701
    %v9662 = vpack.c.b16 %v8706, %v8702
    %v9663 = vpack.c.b16 %v8707, %v8703
    %v9664 = vpack.c.b16 %v8712, %v8708
    %v9665 = vpack.c.b16 %v8713, %v8709
    %v9666 = vpack.c.b16 %v8714, %v8710
    %v9667 = vpack.c.b16 %v8715, %v8711
    %v9668 = vpack.c.b16 %v8720, %v8716
    %v9669 = vpack.c.b16 %v8721, %v8717
    %v9670 = vpack.c.b16 %v8722, %v8718
    %v9671 = vpack.c.b16 %v8723, %v8719
    %v9672 = vpack.c.b16 %v8728, %v8724
    %v9673 = vpack.c.b16 %v8729, %v8725
    %v9674 = vpack.c.b16 %v8730, %v8726
    %v9675 = vpack.c.b16 %v8731, %v8727
    %v9676 = vpack.c.b16 %v8736, %v8732
    %v9677 = vpack.c.b16 %v8737, %v8733
    %v9678 = vpack.c.b16 %v8738, %v8734
    %v9679 = vpack.c.b16 %v8739, %v8735
    %v9680 = vpack.c.b16 %v8744, %v8740
    %v9681 = vpack.c.b16 %v8745, %v8741
    %v9682 = vpack.c.b16 %v8746, %v8742
    %v9683 = vpack.c.b16 %v8747, %v8743
    %v9684 = vpack.c.b16 %v8752, %v8748
    %v9685 = vpack.c.b16 %v8753, %v8749
    %v9686 = vpack.c.b16 %v8754, %v8750
    %v9687 = vpack.c.b16 %v8755, %v8751
    %v9688 = vpack.c.b16 %v8760, %v8756
    %v9689 = vpack.c.b16 %v8761, %v8757
    %v9690 = vpack.c.b16 %v8762, %v8758
    %v9691 = vpack.c.b16 %v8763, %v8759
    %v9692 = vpack.c.b16 %v8768, %v8764
    %v9693 = vpack.c.b16 %v8769, %v8765
    %v9694 = vpack.c.b16 %v8770, %v8766
    %v9695 = vpack.c.b16 %v8771, %v8767
    %v9696 = vpack.c.b16 %v8776, %v8772
    %v9697 = vpack.c.b16 %v8777, %v8773
    %v9698 = vpack.c.b16 %v8778, %v8774
    %v9699 = vpack.c.b16 %v8779, %v8775
    %v9700 = vpack.c.b16 %v8784, %v8780
    %v9701 = vpack.c.b16 %v8785, %v8781
    %v9702 = vpack.c.b16 %v8786, %v8782
    %v9703 = vpack.c.b16 %v8787, %v8783
    %v9704 = vpack.c.b16 %v8792, %v8788
    %v9705 = vpack.c.b16 %v8793, %v8789
    %v9706 = vpack.c.b16 %v8794, %v8790
    %v9707 = vpack.c.b16 %v8795, %v8791
    %v9708 = vpack.c.b16 %v8800, %v8796
    %v9709 = vpack.c.b16 %v8801, %v8797
    %v9710 = vpack.c.b16 %v8802, %v8798
    %v9711 = vpack.c.b16 %v8803, %v8799
    %v9712 = vpack.c.b16 %v8808, %v8804
    %v9713 = vpack.c.b16 %v8809, %v8805
    %v9714 = vpack.c.b16 %v8810, %v8806
    %v9715 = vpack.c.b16 %v8811, %v8807
    %v9716 = vpack.c.b16 %v8816, %v8812
    %v9717 = vpack.c.b16 %v8817, %v8813
    %v9718 = vpack.c.b16 %v8818, %v8814
    %v9719 = vpack.c.b16 %v8819, %v8815
    %v9720 = vpack.c.b16 %v8824, %v8820
    %v9721 = vpack.c.b16 %v8825, %v8821
    %v9722 = vpack.c.b16 %v8826, %v8822
    %v9723 = vpack.c.b16 %v8827, %v8823
    %v9724 = vpack.c.b16 %v8832, %v8828
    %v9725 = vpack.c.b16 %v8833, %v8829
    %v9726 = vpack.c.b16 %v8834, %v8830
    %v9727 = vpack.c.b16 %v8835, %v8831
    %v9728 = vpack.c.b16 %v8840, %v8836
    %v9729 = vpack.c.b16 %v8841, %v8837
    %v9730 = vpack.c.b16 %v8842, %v8838
    %v9731 = vpack.c.b16 %v8843, %v8839
    %v9732 = vpack.c.b16 %v8848, %v8844
    %v9733 = vpack.c.b16 %v8849, %v8845
    %v9734 = vpack.c.b16 %v8850, %v8846
    %v9735 = vpack.c.b16 %v8851, %v8847
    %v9736 = vpack.c.b16 %v8856, %v8852
    %v9737 = vpack.c.b16 %v8857, %v8853
    %v9738 = vpack.c.b16 %v8858, %v8854
    %v9739 = vpack.c.b16 %v8859, %v8855
    %v9740 = vpack.c.b16 %v8864, %v8860
    %v9741 = vpack.c.b16 %v8865, %v8861
    %v9742 = vpack.c.b16 %v8866, %v8862
    %v9743 = vpack.c.b16 %v8867, %v8863
    %v9744 = vpack.c.b16 %v8872, %v8868
    %v9745 = vpack.c.b16 %v8873, %v8869
    %v9746 = vpack.c.b16 %v8874, %v8870
    %v9747 = vpack.c.b16 %v8875, %v8871
    %v9748 = vpack.c.b16 %v8880, %v8876
    %v9749 = vpack.c.b16 %v8881, %v8877
    %v9750 = vpack.c.b16 %v8882, %v8878
    %v9751 = vpack.c.b16 %v8883, %v8879
    %v9752 = vpack.c.b16 %v8888, %v8884
    %v9753 = vpack.c.b16 %v8889, %v8885
    %v9754 = vpack.c.b16 %v8890, %v8886
    %v9755 = vpack.c.b16 %v8891, %v8887
    %v9756 = vpack.c.b16 %v8896, %v8892
    %v9757 = vpack.c.b16 %v8897, %v8893
    %v9758 = vpack.c.b16 %v8898, %v8894
    %v9759 = vpack.c.b16 %v8899, %v8895
    %v9760 = vpack.c.b16 %v8904, %v8900
    %v9761 = vpack.c.b16 %v8905, %v8901
    %v9762 = vpack.c.b16 %v8906, %v8902
    %v9763 = vpack.c.b16 %v8907, %v8903
    %v9764 = vpack.c.b16 %v8912, %v8908
    %v9765 = vpack.c.b16 %v8913, %v8909
    %v9766 = vpack.c.b16 %v8914, %v8910
    %v9767 = vpack.c.b16 %v8915, %v8911
    %v9768 = vpack.c.b16 %v8920, %v8916
    %v9769 = vpack.c.b16 %v8921, %v8917
    %v9770 = vpack.c.b16 %v8922, %v8918
    %v9771 = vpack.c.b16 %v8923, %v8919
    %v9772 = vpack.c.b16 %v8928, %v8924
    %v9773 = vpack.c.b16 %v8929, %v8925
    %v9774 = vpack.c.b16 %v8930, %v8926
    %v9775 = vpack.c.b16 %v8931, %v8927
    %v9776 = vpack.c.b16 %v8936, %v8932
    %v9777 = vpack.c.b16 %v8937, %v8933
    %v9778 = vpack.c.b16 %v8938, %v8934
    %v9779 = vpack.c.b16 %v8939, %v8935
    %v9780 = vpack.c.b16 %v8944, %v8940
    %v9781 = vpack.c.b16 %v8945, %v8941
    %v9782 = vpack.c.b16 %v8946, %v8942
    %v9783 = vpack.c.b16 %v8947, %v8943
    %v9784 = vpack.c.b16 %v8952, %v8948
    %v9785 = vpack.c.b16 %v8953, %v8949
    %v9786 = vpack.c.b16 %v8954, %v8950
    %v9787 = vpack.c.b16 %v8955, %v8951
    %v9788 = vpack.c.b16 %v8960, %v8956
    %v9789 = vpack.c.b16 %v8961, %v8957
    %v9790 = vpack.c.b16 %v8962, %v8958
    %v9791 = vpack.c.b16 %v8963, %v8959
    %v9792 = vpack.c.b16 %v8968, %v8964
    %v9793 = vpack.c.b16 %v8969, %v8965
    %v9794 = vpack.c.b16 %v8970, %v8966
    %v9795 = vpack.c.b16 %v8971, %v8967
    %v9796 = vpack.c.b16 %v8976, %v8972
    %v9797 = vpack.c.b16 %v8977, %v8973
    %v9798 = vpack.c.b16 %v8978, %v8974
    %v9799 = vpack.c.b16 %v8979, %v8975
    %v9800 = vpack.c.b16 %v8984, %v8980
    %v9801 = vpack.c.b16 %v8985, %v8981
    %v9802 = vpack.c.b16 %v8986, %v8982
    %v9803 = vpack.c.b16 %v8987, %v8983
    %v9804 = vpack.c.b16 %v8992, %v8988
    %v9805 = vpack.c.b16 %v8993, %v8989
    %v9806 = vpack.c.b16 %v8994, %v8990
    %v9807 = vpack.c.b16 %v8995, %v8991
    %v9808 = vpack.c.b16 %v9000, %v8996
    %v9809 = vpack.c.b16 %v9001, %v8997
    %v9810 = vpack.c.b16 %v9002, %v8998
    %v9811 = vpack.c.b16 %v9003, %v8999
    %v9812 = vpack.c.b16 %v9008, %v9004
    %v9813 = vpack.c.b16 %v9009, %v9005
    %v9814 = vpack.c.b16 %v9010, %v9006
    %v9815 = vpack.c.b16 %v9011, %v9007
    %v9816 = vpack.c.b16 %v9016, %v9012
    %v9817 = vpack.c.b16 %v9017, %v9013
    %v9818 = vpack.c.b16 %v9018, %v9014
    %v9819 = vpack.c.b16 %v9019, %v9015
    %v9820 = vpack.c.b16 %v9024, %v9020
    %v9821 = vpack.c.b16 %v9025, %v9021
    %v9822 = vpack.c.b16 %v9026, %v9022
    %v9823 = vpack.c.b16 %v9027, %v9023
    %v9824 = vpack.c.b16 %v9032, %v9028
    %v9825 = vpack.c.b16 %v9033, %v9029
    %v9826 = vpack.c.b16 %v9034, %v9030
    %v9827 = vpack.c.b16 %v9035, %v9031
    %v9828 = vpack.c.b16 %v9040, %v9036
    %v9829 = vpack.c.b16 %v9041, %v9037
    %v9830 = vpack.c.b16 %v9042, %v9038
    %v9831 = vpack.c.b16 %v9043, %v9039
    %v9832 = vpack.c.b16 %v9048, %v9044
    %v9833 = vpack.c.b16 %v9049, %v9045
    %v9834 = vpack.c.b16 %v9050, %v9046
    %v9835 = vpack.c.b16 %v9051, %v9047
    %v9836 = vpack.c.b16 %v9056, %v9052
    %v9837 = vpack.c.b16 %v9057, %v9053
    %v9838 = vpack.c.b16 %v9058, %v9054
    %v9839 = vpack.c.b16 %v9059, %v9055
    %v9840 = vpack.c.b16 %v9064, %v9060
    %v9841 = vpack.c.b16 %v9065, %v9061
    %v9842 = vpack.c.b16 %v9066, %v9062
    %v9843 = vpack.c.b16 %v9067, %v9063
    %v9844 = vpack.c.b16 %v9072, %v9068
    %v9845 = vpack.c.b16 %v9073, %v9069
    %v9846 = vpack.c.b16 %v9074, %v9070
    %v9847 = vpack.c.b16 %v9075, %v9071
    %v9848 = vpack.c.b16 %v9080, %v9076
    %v9849 = vpack.c.b16 %v9081, %v9077
    %v9850 = vpack.c.b16 %v9082, %v9078
    %v9851 = vpack.c.b16 %v9083, %v9079
    %v9852 = vpack.c.b16 %v9088, %v9084
    %v9853 = vpack.c.b16 %v9089, %v9085
    %v9854 = vpack.c.b16 %v9090, %v9086
    %v9855 = vpack.c.b16 %v9091, %v9087
    %v9856 = vpack.c.b16 %v9096, %v9092
    %v9857 = vpack.c.b16 %v9097, %v9093
    %v9858 = vpack.c.b16 %v9098, %v9094
    %v9859 = vpack.c.b16 %v9099, %v9095
    %v9860 = vpack.c.b16 %v9104, %v9100
    %v9861 = vpack.c.b16 %v9105, %v9101
    %v9862 = vpack.c.b16 %v9106, %v9102
    %v9863 = vpack.c.b16 %v9107, %v9103
    %v9864 = vpack.c.b16 %v9112, %v9108
    %v9865 = vpack.c.b16 %v9113, %v9109
    %v9866 = vpack.c.b16 %v9114, %v9110
    %v9867 = vpack.c.b16 %v9115, %v9111
    %v9868 = vpack.c.b16 %v9120, %v9116
    %v9869 = vpack.c.b16 %v9121, %v9117
    %v9870 = vpack.c.b16 %v9122, %v9118
    %v9871 = vpack.c.b16 %v9123, %v9119
    %v9872 = vpack.c.b16 %v9128, %v9124
    %v9873 = vpack.c.b16 %v9129, %v9125
    %v9874 = vpack.c.b16 %v9130, %v9126
    %v9875 = vpack.c.b16 %v9131, %v9127
    %v9876 = vpack.c.b16 %v9136, %v9132
    %v9877 = vpack.c.b16 %v9137, %v9133
    %v9878 = vpack.c.b16 %v9138, %v9134
    %v9879 = vpack.c.b16 %v9139, %v9135
    %v9880 = vpack.c.b16 %v9144, %v9140
    %v9881 = vpack.c.b16 %v9145, %v9141
    %v9882 = vpack.c.b16 %v9146, %v9142
    %v9883 = vpack.c.b16 %v9147, %v9143
    %v9884 = vpack.c.b16 %v9152, %v9148
    %v9885 = vpack.c.b16 %v9153, %v9149
    %v9886 = vpack.c.b16 %v9154, %v9150
    %v9887 = vpack.c.b16 %v9155, %v9151
    %v9888 = vpack.c.b16 %v9160, %v9156
    %v9889 = vpack.c.b16 %v9161, %v9157
    %v9890 = vpack.c.b16 %v9162, %v9158
    %v9891 = vpack.c.b16 %v9163, %v9159
    %v9892 = vpack.c.b16 %v9168, %v9164
    %v9893 = vpack.c.b16 %v9169, %v9165
    %v9894 = vpack.c.b16 %v9170, %v9166
    %v9895 = vpack.c.b16 %v9171, %v9167
    %v9896 = vpack.c.b16 %v9176, %v9172
    %v9897 = vpack.c.b16 %v9177, %v9173
    %v9898 = vpack.c.b16 %v9178, %v9174
    %v9899 = vpack.c.b16 %v9179, %v9175
    %v9900 = vpack.c.b16 %v9184, %v9180
    %v9901 = vpack.c.b16 %v9185, %v9181
    %v9902 = vpack.c.b16 %v9186, %v9182
    %v9903 = vpack.c.b16 %v9187, %v9183
    %v9904 = vpack.c.b16 %v9192, %v9188
    %v9905 = vpack.c.b16 %v9193, %v9189
    %v9906 = vpack.c.b16 %v9194, %v9190
    %v9907 = vpack.c.b16 %v9195, %v9191
    %v9908 = vpack.c.b16 %v9200, %v9196
    %v9909 = vpack.c.b16 %v9201, %v9197
    %v9910 = vpack.c.b16 %v9202, %v9198
    %v9911 = vpack.c.b16 %v9203, %v9199
    %v9912 = vpack.c.b16 %v9208, %v9204
    %v9913 = vpack.c.b16 %v9209, %v9205
    %v9914 = vpack.c.b16 %v9210, %v9206
    %v9915 = vpack.c.b16 %v9211, %v9207
    %v9916 = vpack.c.b16 %v9216, %v9212
    %v9917 = vpack.c.b16 %v9217, %v9213
    %v9918 = vpack.c.b16 %v9218, %v9214
    %v9919 = vpack.c.b16 %v9219, %v9215
    %v9920 = vpack.c.b16 %v9224, %v9220
    %v9921 = vpack.c.b16 %v9225, %v9221
    %v9922 = vpack.c.b16 %v9226, %v9222
    %v9923 = vpack.c.b16 %v9227, %v9223
    %v9924 = vpack.c.b16 %v9232, %v9228
    %v9925 = vpack.c.b16 %v9233, %v9229
    %v9926 = vpack.c.b16 %v9234, %v9230
    %v9927 = vpack.c.b16 %v9235, %v9231
    %v9928 = vpack.c.b16 %v9240, %v9236
    %v9929 = vpack.c.b16 %v9241, %v9237
    %v9930 = vpack.c.b16 %v9242, %v9238
    %v9931 = vpack.c.b16 %v9243, %v9239
    %v9932 = vpack.c.b16 %v9248, %v9244
    %v9933 = vpack.c.b16 %v9249, %v9245
    %v9934 = vpack.c.b16 %v9250, %v9246
    %v9935 = vpack.c.b16 %v9251, %v9247
    %v9936 = vpack.c.b16 %v9256, %v9252
    %v9937 = vpack.c.b16 %v9257, %v9253
    %v9938 = vpack.c.b16 %v9258, %v9254
    %v9939 = vpack.c.b16 %v9259, %v9255
    %v9940 = vpack.c.b16 %v9264, %v9260
    %v9941 = vpack.c.b16 %v9265, %v9261
    %v9942 = vpack.c.b16 %v9266, %v9262
    %v9943 = vpack.c.b16 %v9267, %v9263
    %v9944 = vpack.c.b16 %v9272, %v9268
    %v9945 = vpack.c.b16 %v9273, %v9269
    %v9946 = vpack.c.b16 %v9274, %v9270
    %v9947 = vpack.c.b16 %v9275, %v9271
    %v9948 = vpack.c.b16 %v9280, %v9276
    %v9949 = vpack.c.b16 %v9281, %v9277
    %v9950 = vpack.c.b16 %v9282, %v9278
    %v9951 = vpack.c.b16 %v9283, %v9279
    %v9952 = vpack.c.b16 %v9288, %v9284
    %v9953 = vpack.c.b16 %v9289, %v9285
    %v9954 = vpack.c.b16 %v9290, %v9286
    %v9955 = vpack.c.b16 %v9291, %v9287
    %v9956 = vpack.c.b16 %v9296, %v9292
    %v9957 = vpack.c.b16 %v9297, %v9293
    %v9958 = vpack.c.b16 %v9298, %v9294
    %v9959 = vpack.c.b16 %v9299, %v9295
    %v9960 = vpack.c.b16 %v9304, %v9300
    %v9961 = vpack.c.b16 %v9305, %v9301
    %v9962 = vpack.c.b16 %v9306, %v9302
    %v9963 = vpack.c.b16 %v9307, %v9303
    %v9964 = vpack.c.b16 %v9312, %v9308
    %v9965 = vpack.c.b16 %v9313, %v9309
    %v9966 = vpack.c.b16 %v9314, %v9310
    %v9967 = vpack.c.b16 %v9315, %v9311
    %v9968 = vpack.c.b16 %v9320, %v9316
    %v9969 = vpack.c.b16 %v9321, %v9317
    %v9970 = vpack.c.b16 %v9322, %v9318
    %v9971 = vpack.c.b16 %v9323, %v9319
    %v9972 = vpack.c.b16 %v9328, %v9324
    %v9973 = vpack.c.b16 %v9329, %v9325
    %v9974 = vpack.c.b16 %v9330, %v9326
    %v9975 = vpack.c.b16 %v9331, %v9327
    %v9976 = vpack.c.b16 %v9336, %v9332
    %v9977 = vpack.c.b16 %v9337, %v9333
    %v9978 = vpack.c.b16 %v9338, %v9334
    %v9979 = vpack.c.b16 %v9339, %v9335
    %v9980 = vpack.c.b16 %v9344, %v9340
    %v9981 = vpack.c.b16 %v9345, %v9341
    %v9982 = vpack.c.b16 %v9346, %v9342
    %v9983 = vpack.c.b16 %v9347, %v9343
    %v9984 = vpack.c.b16 %v9352, %v9348
    %v9985 = vpack.c.b16 %v9353, %v9349
    %v9986 = vpack.c.b16 %v9354, %v9350
    %v9987 = vpack.c.b16 %v9355, %v9351
    %v9988 = vpack.c.b16 %v9360, %v9356
    %v9989 = vpack.c.b16 %v9361, %v9357
    %v9990 = vpack.c.b16 %v9362, %v9358
    %v9991 = vpack.c.b16 %v9363, %v9359
    %v9992 = vpack.c.b16 %v9368, %v9364
    %v9993 = vpack.c.b16 %v9369, %v9365
    %v9994 = vpack.c.b16 %v9370, %v9366
    %v9995 = vpack.c.b16 %v9371, %v9367
    %v9996 = vpack.c.b16 %v9376, %v9372
    %v9997 = vpack.c.b16 %v9377, %v9373
    %v9998 = vpack.c.b16 %v9378, %v9374
    %v9999 = vpack.c.b16 %v9379, %v9375
    %v10000 = vpack.c.b16 %v9384, %v9380
    %v10001 = vpack.c.b16 %v9385, %v9381
    %v10002 = vpack.c.b16 %v9386, %v9382
    %v10003 = vpack.c.b16 %v9387, %v9383
    %v10004 = vpack.c.b16 %v9392, %v9388
    %v10005 = vpack.c.b16 %v9393, %v9389
    %v10006 = vpack.c.b16 %v9394, %v9390
    %v10007 = vpack.c.b16 %v9395, %v9391
    %v10008 = vpack.c.b16 %v9400, %v9396
    %v10009 = vpack.c.b16 %v9401, %v9397
    %v10010 = vpack.c.b16 %v9402, %v9398
    %v10011 = vpack.c.b16 %v9403, %v9399
    %v10012 = vpack.c.b16 %v9408, %v9404
    %v10013 = vpack.c.b16 %v9409, %v9405
    %v10014 = vpack.c.b16 %v9410, %v9406
    %v10015 = vpack.c.b16 %v9411, %v9407
    %v10016 = vpack.c.b16 %v9416, %v9412
    %v10017 = vpack.c.b16 %v9417, %v9413
    %v10018 = vpack.c.b16 %v9418, %v9414
    %v10019 = vpack.c.b16 %v9419, %v9415
    %v10020 = vpack.c.b16 %v9424, %v9420
    %v10021 = vpack.c.b16 %v9425, %v9421
    %v10022 = vpack.c.b16 %v9426, %v9422
    %v10023 = vpack.c.b16 %v9427, %v9423
    %v10024 = vpack.c.b16 %v9432, %v9428
    %v10025 = vpack.c.b16 %v9433, %v9429
    %v10026 = vpack.c.b16 %v9434, %v9430
    %v10027 = vpack.c.b16 %v9435, %v9431
    %v10028 = vpack.c.b16 %v9440, %v9436
    %v10029 = vpack.c.b16 %v9441, %v9437
    %v10030 = vpack.c.b16 %v9442, %v9438
    %v10031 = vpack.c.b16 %v9443, %v9439
    %v10032 = vpack.c.b16 %v9448, %v9444
    %v10033 = vpack.c.b16 %v9449, %v9445
    %v10034 = vpack.c.b16 %v9450, %v9446
    %v10035 = vpack.c.b16 %v9451, %v9447
    %v10036 = vpack.c.b16 %v9456, %v9452
    %v10037 = vpack.c.b16 %v9457, %v9453
    %v10038 = vpack.c.b16 %v9458, %v9454
    %v10039 = vpack.c.b16 %v9459, %v9455
    %v10040 = vpack.c.b16 %v9464, %v9460
    %v10041 = vpack.c.b16 %v9465, %v9461
    %v10042 = vpack.c.b16 %v9466, %v9462
    %v10043 = vpack.c.b16 %v9467, %v9463
    %v10044 = vpack.c.b16 %v9472, %v9468
    %v10045 = vpack.c.b16 %v9473, %v9469
    %v10046 = vpack.c.b16 %v9474, %v9470
    %v10047 = vpack.c.b16 %v9475, %v9471
    %v10048 = vpack.c.b16 %v9480, %v9476
    %v10049 = vpack.c.b16 %v9481, %v9477
    %v10050 = vpack.c.b16 %v9482, %v9478
    %v10051 = vpack.c.b16 %v9483, %v9479
    %v10052 = vpack.c.b16 %v9488, %v9484
    %v10053 = vpack.c.b16 %v9489, %v9485
    %v10054 = vpack.c.b16 %v9490, %v9486
    %v10055 = vpack.c.b16 %v9491, %v9487
    %v10056 = vpack.c.b16 %v9496, %v9492
    %v10057 = vpack.c.b16 %v9497, %v9493
    %v10058 = vpack.c.b16 %v9498, %v9494
    %v10059 = vpack.c.b16 %v9499, %v9495
    %v10060 = vpack.c.b16 %v9504, %v9500
    %v10061 = vpack.c.b16 %v9505, %v9501
    %v10062 = vpack.c.b16 %v9506, %v9502
    %v10063 = vpack.c.b16 %v9507, %v9503
    %v10064 = vpack.c.b16 %v9512, %v9508
    %v10065 = vpack.c.b16 %v9513, %v9509
    %v10066 = vpack.c.b16 %v9514, %v9510
    %v10067 = vpack.c.b16 %v9515, %v9511
    %vm10616 = vcmask 228352
    %v10618 = vsel %vm10616, %v7285, 0
    %vm10620 = vcmask 1045504
    %v10622 = vsel %vm10620, %v10064, 0
    %v10625 = vsel %vm10620, %v10065, 0
    %v10628 = vsel %vm10620, %v10066, 0
    %v10631 = vsel %vm10620, %v10067, 0
    %10633 = vmatprep.subr.bf16.mxu0 %v9517
    %10634 = vmatpush1.bf16.msra.mxu0 %v9516
    %10635 = vmatprep.subr.bf16.mxu0 %v9521
    %10636 = vmatpush1.bf16.msra.mxu0 %v9520
    %10637 = vmatprep.subr.bf16.mxu0 %v9525
    %10638 = vmatpush1.bf16.msra.mxu0 %v9524
    %10639 = vmatprep.subr.bf16.mxu0 %v9529
    %10640 = vmatpush1.bf16.msra.mxu0 %v9528
    %10641 = vmatprep.subr.bf16.mxu0 %v9533
    %10642 = vmatpush1.bf16.msra.mxu0 %v9532
    %10643 = vmatprep.subr.bf16.mxu0 %v9537
    %10644 = vmatpush1.bf16.msra.mxu0 %v9536
    %10645 = vmatprep.subr.bf16.mxu0 %v9541
    %10646 = vmatpush1.bf16.msra.mxu0 %v9540
    %10647 = vmatprep.subr.bf16.mxu0 %v9545
    %10648 = vmatpush1.bf16.msra.mxu0 %v9544
    %10649 = vmatprep.subr.bf16.mxu0 %v9549
    %10650 = vmatpush1.bf16.msra.mxu0 %v9548
    %10651 = vmatprep.subr.bf16.mxu0 %v9553
    %10652 = vmatpush1.bf16.msra.mxu0 %v9552
    %10653 = vmatprep.subr.bf16.mxu0 %v9557
    %10654 = vmatpush1.bf16.msra.mxu0 %v9556
    %10655 = vmatprep.subr.bf16.mxu0 %v9561
    %10656 = vmatpush1.bf16.msra.mxu0 %v9560
    %10657 = vmatprep.subr.bf16.mxu0 %v9565
    %10658 = vmatpush1.bf16.msra.mxu0 %v9564
    %10659 = vmatprep.subr.bf16.mxu0 %v9569
    %10660 = vmatpush1.bf16.msra.mxu0 %v9568
    %10661 = vmatprep.subr.bf16.mxu0 %v9573
    %10662 = vmatpush1.bf16.msra.mxu0 %v9572
    %10663 = vmatprep.subr.bf16.mxu0 %v9577
    %10664 = vmatpush1.bf16.msra.mxu0 %v9576
    %10665 = vmatprep.mubr.bf16.mxu0 %v7269
    %10666 = vmatmul.mubr.bf16.gmra.mrb[0].mxu0 %v7268
    %v10667 = vpop.f32.mrb[0].mxu0
    %v10668 = vadd.f32 %v7843, %v10667
    %v10669 = vpop.f32.mrb[0].mxu0
    %v10670 = vadd.f32 %v7847, %v10669
    %v10671 = vpop.f32.mrb[0].mxu0
    %v10672 = vpop.f32.mrb[0].mxu0
    %10673 = vdwg.mxu0
    %10674 = vmatprep.subr.bf16.mxu0 %v9581
    %10675 = vmatpush1.bf16.msra.mxu0 %v9580
    %10676 = vmatprep.subr.bf16.mxu0 %v9585
    %10677 = vmatpush1.bf16.msra.mxu0 %v9584
    %10678 = vmatprep.subr.bf16.mxu0 %v9589
    %10679 = vmatpush1.bf16.msra.mxu0 %v9588
    %10680 = vmatprep.subr.bf16.mxu0 %v9593
    %10681 = vmatpush1.bf16.msra.mxu0 %v9592
    %10682 = vmatprep.subr.bf16.mxu0 %v9597
    %10683 = vmatpush1.bf16.msra.mxu0 %v9596
    %10684 = vmatprep.subr.bf16.mxu0 %v9601
    %10685 = vmatpush1.bf16.msra.mxu0 %v9600
    %10686 = vmatprep.subr.bf16.mxu0 %v9605
    %10687 = vmatpush1.bf16.msra.mxu0 %v9604
    %10688 = vmatprep.subr.bf16.mxu0 %v9609
    %10689 = vmatpush1.bf16.msra.mxu0 %v9608
    %10690 = vmatprep.subr.bf16.mxu0 %v9613
    %10691 = vmatpush1.bf16.msra.mxu0 %v9612
    %10692 = vmatprep.subr.bf16.mxu0 %v9617
    %10693 = vmatpush1.bf16.msra.mxu0 %v9616
    %10694 = vmatprep.subr.bf16.mxu0 %v9621
    %10695 = vmatpush1.bf16.msra.mxu0 %v9620
    %10696 = vmatprep.subr.bf16.mxu0 %v9625
    %10697 = vmatpush1.bf16.msra.mxu0 %v9624
    %10698 = vmatprep.subr.bf16.mxu0 %v9629
    %10699 = vmatpush1.bf16.msra.mxu0 %v9628
    %10700 = vmatprep.subr.bf16.mxu0 %v9633
    %10701 = vmatpush1.bf16.msra.mxu0 %v9632
    %10702 = vmatprep.subr.bf16.mxu0 %v9637
    %10703 = vmatpush1.bf16.msra.mxu0 %v9636
    %10704 = vmatprep.subr.bf16.mxu0 %v9641
    %10705 = vmatpush1.bf16.msra.mxu0 %v9640
    %10706 = vmatprep.mubr.bf16.mxu0 %v7271
    %10707 = vmatmul.mubr.bf16.gmra.mrb[0].mxu0 %v7270
    %v10708 = vpop.f32.mrb[0].mxu0
    %v10709 = vadd.f32 %v10668, %v10708
    %v10710 = vpop.f32.mrb[0].mxu0
    %v10711 = vadd.f32 %v10670, %v10710
    %v10712 = vpop.f32.mrb[0].mxu0
    %v10713 = vpop.f32.mrb[0].mxu0
    %10714 = vdwg.mxu0
    %10715 = vmatprep.subr.bf16.mxu0 %v9645
    %10716 = vmatpush1.bf16.msra.mxu0 %v9644
    %10717 = vmatprep.subr.bf16.mxu0 %v9649
    %10718 = vmatpush1.bf16.msra.mxu0 %v9648
    %10719 = vmatprep.subr.bf16.mxu0 %v9653
    %10720 = vmatpush1.bf16.msra.mxu0 %v9652
    %10721 = vmatprep.subr.bf16.mxu0 %v9657
    %10722 = vmatpush1.bf16.msra.mxu0 %v9656
    %10723 = vmatprep.subr.bf16.mxu0 %v9661
    %10724 = vmatpush1.bf16.msra.mxu0 %v9660
    %10725 = vmatprep.subr.bf16.mxu0 %v9665
    %10726 = vmatpush1.bf16.msra.mxu0 %v9664
    %10727 = vmatprep.subr.bf16.mxu0 %v9669
    %10728 = vmatpush1.bf16.msra.mxu0 %v9668
    %10729 = vmatprep.subr.bf16.mxu0 %v9673
    %10730 = vmatpush1.bf16.msra.mxu0 %v9672
    %10731 = vmatprep.subr.bf16.mxu0 %v9677
    %10732 = vmatpush1.bf16.msra.mxu0 %v9676
    %10733 = vmatprep.subr.bf16.mxu0 %v9681
    %10734 = vmatpush1.bf16.msra.mxu0 %v9680
    %10735 = vmatprep.subr.bf16.mxu0 %v9685
    %10736 = vmatpush1.bf16.msra.mxu0 %v9684
    %10737 = vmatprep.subr.bf16.mxu0 %v9689
    %10738 = vmatpush1.bf16.msra.mxu0 %v9688
    %10739 = vmatprep.subr.bf16.mxu0 %v9693
    %10740 = vmatpush1.bf16.msra.mxu0 %v9692
    %10741 = vmatprep.subr.bf16.mxu0 %v9697
    %10742 = vmatpush1.bf16.msra.mxu0 %v9696
    %10743 = vmatprep.subr.bf16.mxu0 %v9701
    %10744 = vmatpush1.bf16.msra.mxu0 %v9700
    %10745 = vmatprep.subr.bf16.mxu0 %v9705
    %10746 = vmatpush1.bf16.msra.mxu0 %v9704
    %10747 = vmatprep.mubr.bf16.mxu0 %v7273
    %10748 = vmatmul.mubr.bf16.gmra.mrb[0].mxu0 %v7272
    %v10749 = vpop.f32.mrb[0].mxu0
    %v10750 = vadd.f32 %v10709, %v10749
    %v10751 = vpop.f32.mrb[0].mxu0
    %v10752 = vadd.f32 %v10711, %v10751
    %v10753 = vpop.f32.mrb[0].mxu0
    %v10754 = vpop.f32.mrb[0].mxu0
    %10755 = vdwg.mxu0
    %10756 = vmatprep.subr.bf16.mxu0 %v9709
    %10757 = vmatpush1.bf16.msra.mxu0 %v9708
    %10758 = vmatprep.subr.bf16.mxu0 %v9713
    %10759 = vmatpush1.bf16.msra.mxu0 %v9712
    %10760 = vmatprep.subr.bf16.mxu0 %v9717
    %10761 = vmatpush1.bf16.msra.mxu0 %v9716
    %10762 = vmatprep.subr.bf16.mxu0 %v9721
    %10763 = vmatpush1.bf16.msra.mxu0 %v9720
    %10764 = vmatprep.subr.bf16.mxu0 %v9725
    %10765 = vmatpush1.bf16.msra.mxu0 %v9724
    %10766 = vmatprep.subr.bf16.mxu0 %v9729
    %10767 = vmatpush1.bf16.msra.mxu0 %v9728
    %10768 = vmatprep.subr.bf16.mxu0 %v9733
    %10769 = vmatpush1.bf16.msra.mxu0 %v9732
    %10770 = vmatprep.subr.bf16.mxu0 %v9737
    %10771 = vmatpush1.bf16.msra.mxu0 %v9736
    %10772 = vmatprep.subr.bf16.mxu0 %v9741
    %10773 = vmatpush1.bf16.msra.mxu0 %v9740
    %10774 = vmatprep.subr.bf16.mxu0 %v9745
    %10775 = vmatpush1.bf16.msra.mxu0 %v9744
    %10776 = vmatprep.subr.bf16.mxu0 %v9749
    %10777 = vmatpush1.bf16.msra.mxu0 %v9748
    %10778 = vmatprep.subr.bf16.mxu0 %v9753
    %10779 = vmatpush1.bf16.msra.mxu0 %v9752
    %10780 = vmatprep.subr.bf16.mxu0 %v9757
    %10781 = vmatpush1.bf16.msra.mxu0 %v9756
    %10782 = vmatprep.subr.bf16.mxu0 %v9761
    %10783 = vmatpush1.bf16.msra.mxu0 %v9760
    %10784 = vmatprep.subr.bf16.mxu0 %v9765
    %10785 = vmatpush1.bf16.msra.mxu0 %v9764
    %10786 = vmatprep.subr.bf16.mxu0 %v9769
    %10787 = vmatpush1.bf16.msra.mxu0 %v9768
    %10788 = vmatprep.mubr.bf16.mxu0 %v7275
    %10789 = vmatmul.mubr.bf16.gmra.mrb[0].mxu0 %v7274
    %v10790 = vpop.f32.mrb[0].mxu0
    %v10791 = vadd.f32 %v10750, %v10790
    %v10792 = vpop.f32.mrb[0].mxu0
    %v10793 = vadd.f32 %v10752, %v10792
    %v10794 = vpop.f32.mrb[0].mxu0
    %v10795 = vpop.f32.mrb[0].mxu0
    %10796 = vdwg.mxu0
    %10797 = vmatprep.subr.bf16.mxu0 %v9773
    %10798 = vmatpush1.bf16.msra.mxu0 %v9772
    %10799 = vmatprep.subr.bf16.mxu0 %v9777
    %10800 = vmatpush1.bf16.msra.mxu0 %v9776
    %10801 = vmatprep.subr.bf16.mxu0 %v9781
    %10802 = vmatpush1.bf16.msra.mxu0 %v9780
    %10803 = vmatprep.subr.bf16.mxu0 %v9785
    %10804 = vmatpush1.bf16.msra.mxu0 %v9784
    %10805 = vmatprep.subr.bf16.mxu0 %v9789
    %10806 = vmatpush1.bf16.msra.mxu0 %v9788
    %10807 = vmatprep.subr.bf16.mxu0 %v9793
    %10808 = vmatpush1.bf16.msra.mxu0 %v9792
    %10809 = vmatprep.subr.bf16.mxu0 %v9797
    %10810 = vmatpush1.bf16.msra.mxu0 %v9796
    %10811 = vmatprep.subr.bf16.mxu0 %v9801
    %10812 = vmatpush1.bf16.msra.mxu0 %v9800
    %10813 = vmatprep.subr.bf16.mxu0 %v9805
    %10814 = vmatpush1.bf16.msra.mxu0 %v9804
    %10815 = vmatprep.subr.bf16.mxu0 %v9809
    %10816 = vmatpush1.bf16.msra.mxu0 %v9808
    %10817 = vmatprep.subr.bf16.mxu0 %v9813
    %10818 = vmatpush1.bf16.msra.mxu0 %v9812
    %10819 = vmatprep.subr.bf16.mxu0 %v9817
    %10820 = vmatpush1.bf16.msra.mxu0 %v9816
    %10821 = vmatprep.subr.bf16.mxu0 %v9821
    %10822 = vmatpush1.bf16.msra.mxu0 %v9820
    %10823 = vmatprep.subr.bf16.mxu0 %v9825
    %10824 = vmatpush1.bf16.msra.mxu0 %v9824
    %10825 = vmatprep.subr.bf16.mxu0 %v9829
    %10826 = vmatpush1.bf16.msra.mxu0 %v9828
    %10827 = vmatprep.subr.bf16.mxu0 %v9833
    %10828 = vmatpush1.bf16.msra.mxu0 %v9832
    %10829 = vmatprep.mubr.bf16.mxu0 %v7277
    %10830 = vmatmul.mubr.bf16.gmra.mrb[0].mxu0 %v7276
    %v10831 = vpop.f32.mrb[0].mxu0
    %v10832 = vadd.f32 %v10791, %v10831
    %v10833 = vpop.f32.mrb[0].mxu0
    %v10834 = vadd.f32 %v10793, %v10833
    %v10835 = vpop.f32.mrb[0].mxu0
    %v10836 = vpop.f32.mrb[0].mxu0
    %10837 = vdwg.mxu0
    %10838 = vmatprep.subr.bf16.mxu0 %v9837
    %10839 = vmatpush1.bf16.msra.mxu0 %v9836
    %10840 = vmatprep.subr.bf16.mxu0 %v9841
    %10841 = vmatpush1.bf16.msra.mxu0 %v9840
    %10842 = vmatprep.subr.bf16.mxu0 %v9845
    %10843 = vmatpush1.bf16.msra.mxu0 %v9844
    %10844 = vmatprep.subr.bf16.mxu0 %v9849
    %10845 = vmatpush1.bf16.msra.mxu0 %v9848
    %10846 = vmatprep.subr.bf16.mxu0 %v9853
    %10847 = vmatpush1.bf16.msra.mxu0 %v9852
    %10848 = vmatprep.subr.bf16.mxu0 %v9857
    %10849 = vmatpush1.bf16.msra.mxu0 %v9856
    %10850 = vmatprep.subr.bf16.mxu0 %v9861
    %10851 = vmatpush1.bf16.msra.mxu0 %v9860
    %10852 = vmatprep.subr.bf16.mxu0 %v9865
    %10853 = vmatpush1.bf16.msra.mxu0 %v9864
    %10854 = vmatprep.subr.bf16.mxu0 %v9869
    %10855 = vmatpush1.bf16.msra.mxu0 %v9868
    %10856 = vmatprep.subr.bf16.mxu0 %v9873
    %10857 = vmatpush1.bf16.msra.mxu0 %v9872
    %10858 = vmatprep.subr.bf16.mxu0 %v9877
    %10859 = vmatpush1.bf16.msra.mxu0 %v9876
    %10860 = vmatprep.subr.bf16.mxu0 %v9881
    %10861 = vmatpush1.bf16.msra.mxu0 %v9880
    %10862 = vmatprep.subr.bf16.mxu0 %v9885
    %10863 = vmatpush1.bf16.msra.mxu0 %v9884
    %10864 = vmatprep.subr.bf16.mxu0 %v9889
    %10865 = vmatpush1.bf16.msra.mxu0 %v9888
    %10866 = vmatprep.subr.bf16.mxu0 %v9893
    %10867 = vmatpush1.bf16.msra.mxu0 %v9892
    %10868 = vmatprep.subr.bf16.mxu0 %v9897
    %10869 = vmatpush1.bf16.msra.mxu0 %v9896
    %10870 = vmatprep.mubr.bf16.mxu0 %v7279
    %10871 = vmatmul.mubr.bf16.gmra.mrb[0].mxu0 %v7278
    %v10872 = vpop.f32.mrb[0].mxu0
    %v10873 = vadd.f32 %v10832, %v10872
    %v10874 = vpop.f32.mrb[0].mxu0
    %v10875 = vadd.f32 %v10834, %v10874
    %v10876 = vpop.f32.mrb[0].mxu0
    %v10877 = vpop.f32.mrb[0].mxu0
    %10878 = vdwg.mxu0
    %10879 = vmatprep.subr.bf16.mxu0 %v9901
    %10880 = vmatpush1.bf16.msra.mxu0 %v9900
    %10881 = vmatprep.subr.bf16.mxu0 %v9905
    %10882 = vmatpush1.bf16.msra.mxu0 %v9904
    %10883 = vmatprep.subr.bf16.mxu0 %v9909
    %10884 = vmatpush1.bf16.msra.mxu0 %v9908
    %10885 = vmatprep.subr.bf16.mxu0 %v9913
    %10886 = vmatpush1.bf16.msra.mxu0 %v9912
    %10887 = vmatprep.subr.bf16.mxu0 %v9917
    %10888 = vmatpush1.bf16.msra.mxu0 %v9916
    %10889 = vmatprep.subr.bf16.mxu0 %v9921
    %10890 = vmatpush1.bf16.msra.mxu0 %v9920
    %10891 = vmatprep.subr.bf16.mxu0 %v9925
    %10892 = vmatpush1.bf16.msra.mxu0 %v9924
    %10893 = vmatprep.subr.bf16.mxu0 %v9929
    %10894 = vmatpush1.bf16.msra.mxu0 %v9928
    %10895 = vmatprep.subr.bf16.mxu0 %v9933
    %10896 = vmatpush1.bf16.msra.mxu0 %v9932
    %10897 = vmatprep.subr.bf16.mxu0 %v9937
    %10898 = vmatpush1.bf16.msra.mxu0 %v9936
    %10899 = vmatprep.subr.bf16.mxu0 %v9941
    %10900 = vmatpush1.bf16.msra.mxu0 %v9940
    %10901 = vmatprep.subr.bf16.mxu0 %v9945
    %10902 = vmatpush1.bf16.msra.mxu0 %v9944
    %10903 = vmatprep.subr.bf16.mxu0 %v9949
    %10904 = vmatpush1.bf16.msra.mxu0 %v9948
    %10905 = vmatprep.subr.bf16.mxu0 %v9953
    %10906 = vmatpush1.bf16.msra.mxu0 %v9952
    %10907 = vmatprep.subr.bf16.mxu0 %v9957
    %10908 = vmatpush1.bf16.msra.mxu0 %v9956
    %10909 = vmatprep.subr.bf16.mxu0 %v9961
    %10910 = vmatpush1.bf16.msra.mxu0 %v9960
    %10911 = vmatprep.mubr.bf16.mxu0 %v7281
    %10912 = vmatmul.mubr.bf16.gmra.mrb[0].mxu0 %v7280
    %v10913 = vpop.f32.mrb[0].mxu0
    %v10914 = vadd.f32 %v10873, %v10913
    %v10915 = vpop.f32.mrb[0].mxu0
    %v10916 = vadd.f32 %v10875, %v10915
    %v10917 = vpop.f32.mrb[0].mxu0
    %v10918 = vpop.f32.mrb[0].mxu0
    %10919 = vdwg.mxu0
    %10920 = vmatprep.subr.bf16.mxu0 %v9965
    %10921 = vmatpush1.bf16.msra.mxu0 %v9964
    %10922 = vmatprep.subr.bf16.mxu0 %v9969
    %10923 = vmatpush1.bf16.msra.mxu0 %v9968
    %10924 = vmatprep.subr.bf16.mxu0 %v9973
    %10925 = vmatpush1.bf16.msra.mxu0 %v9972
    %10926 = vmatprep.subr.bf16.mxu0 %v9977
    %10927 = vmatpush1.bf16.msra.mxu0 %v9976
    %10928 = vmatprep.subr.bf16.mxu0 %v9981
    %10929 = vmatpush1.bf16.msra.mxu0 %v9980
    %10930 = vmatprep.subr.bf16.mxu0 %v9985
    %10931 = vmatpush1.bf16.msra.mxu0 %v9984
    %10932 = vmatprep.subr.bf16.mxu0 %v9989
    %10933 = vmatpush1.bf16.msra.mxu0 %v9988
    %10934 = vmatprep.subr.bf16.mxu0 %v9993
    %10935 = vmatpush1.bf16.msra.mxu0 %v9992
    %10936 = vmatprep.subr.bf16.mxu0 %v9997
    %10937 = vmatpush1.bf16.msra.mxu0 %v9996
    %10938 = vmatprep.subr.bf16.mxu0 %v10001
    %10939 = vmatpush1.bf16.msra.mxu0 %v10000
    %10940 = vmatprep.subr.bf16.mxu0 %v10005
    %10941 = vmatpush1.bf16.msra.mxu0 %v10004
    %10942 = vmatprep.subr.bf16.mxu0 %v10009
    %10943 = vmatpush1.bf16.msra.mxu0 %v10008
    %10944 = vmatprep.subr.bf16.mxu0 %v10013
    %10945 = vmatpush1.bf16.msra.mxu0 %v10012
    %10946 = vmatprep.subr.bf16.mxu0 %v10017
    %10947 = vmatpush1.bf16.msra.mxu0 %v10016
    %10948 = vmatprep.subr.bf16.mxu0 %v10021
    %10949 = vmatpush1.bf16.msra.mxu0 %v10020
    %10950 = vmatprep.subr.bf16.mxu0 %v10025
    %10951 = vmatpush1.bf16.msra.mxu0 %v10024
    %10952 = vmatprep.mubr.bf16.mxu0 %v7283
    %10953 = vmatmul.mubr.bf16.gmra.mrb[0].mxu0 %v7282
    %v10954 = vpop.f32.mrb[0].mxu0
    %v10955 = vadd.f32 %v10914, %v10954
    %v10956 = vpop.f32.mrb[0].mxu0
    %v10957 = vadd.f32 %v10916, %v10956
    %v10958 = vpop.f32.mrb[0].mxu0
    %v10959 = vpop.f32.mrb[0].mxu0
    %10960 = vdwg.mxu0
    %10961 = vmatprep.subr.bf16.mxu0 %v10029
    %10962 = vmatpush1.bf16.msra.mxu0 %v10028
    %10963 = vmatprep.subr.bf16.mxu0 %v10033
    %10964 = vmatpush1.bf16.msra.mxu0 %v10032
    %10965 = vmatprep.subr.bf16.mxu0 %v10037
    %10966 = vmatpush1.bf16.msra.mxu0 %v10036
    %10967 = vmatprep.subr.bf16.mxu0 %v10041
    %10968 = vmatpush1.bf16.msra.mxu0 %v10040
    %10969 = vmatprep.subr.bf16.mxu0 %v10045
    %10970 = vmatpush1.bf16.msra.mxu0 %v10044
    %10971 = vmatprep.subr.bf16.mxu0 %v10049
    %10972 = vmatpush1.bf16.msra.mxu0 %v10048
    %10973 = vmatprep.subr.bf16.mxu0 %v10053
    %10974 = vmatpush1.bf16.msra.mxu0 %v10052
    %10975 = vmatprep.subr.bf16.mxu0 %v10057
    %10976 = vmatpush1.bf16.msra.mxu0 %v10056
    %10977 = vmatprep.subr.bf16.mxu0 %v10061
    %10978 = vmatpush1.bf16.msra.mxu0 %v10060
    %10979 = vmatprep.subr.bf16.mxu0 %v10625
    %10980 = vmatpush1.bf16.msra.mxu0 %v10622
    %10981 = vmatprep.subr.bf16.mxu0 0
    %10982 = vmatpush1.bf16.msra.mxu0 0
    %10983 = vmatprep.subr.bf16.mxu0 0
    %10984 = vmatpush1.bf16.msra.mxu0 0
    %10985 = vmatprep.subr.bf16.mxu0 0
    %10986 = vmatpush1.bf16.msra.mxu0 0
    %10987 = vmatprep.subr.bf16.mxu0 0
    %10988 = vmatpush1.bf16.msra.mxu0 0
    %10989 = vmatprep.subr.bf16.mxu0 0
    %10990 = vmatpush1.bf16.msra.mxu0 0
    %10991 = vmatprep.subr.bf16.mxu0 0
    %10992 = vmatpush1.bf16.msra.mxu0 0
    %10993 = vmatprep.mubr.bf16.mxu0 %v10618
    %10994 = vmatmul.mubr.bf16.gmra.mrb[0].mxu0 %v7284
    %v10995 = vpop.f32.mrb[0].mxu0
    %v10996 = vadd.f32 %v10955, %v10995
    %v10997 = vpop.f32.mrb[0].mxu0
    %v10998 = vadd.f32 %v10957, %v10997
    %v10999 = vpop.f32.mrb[0].mxu0
    %v11000 = vpop.f32.mrb[0].mxu0
    %11001 = vdwg.mxu0
    %11002 = vmatprep.subr.bf16.mxu0 %v9519
    %11003 = vmatpush1.bf16.msra.mxu0 %v9518
    %11004 = vmatprep.subr.bf16.mxu0 %v9523
    %11005 = vmatpush1.bf16.msra.mxu0 %v9522
    %11006 = vmatprep.subr.bf16.mxu0 %v9527
    %11007 = vmatpush1.bf16.msra.mxu0 %v9526
    %11008 = vmatprep.subr.bf16.mxu0 %v9531
    %11009 = vmatpush1.bf16.msra.mxu0 %v9530
    %11010 = vmatprep.subr.bf16.mxu0 %v9535
    %11011 = vmatpush1.bf16.msra.mxu0 %v9534
    %11012 = vmatprep.subr.bf16.mxu0 %v9539
    %11013 = vmatpush1.bf16.msra.mxu0 %v9538
    %11014 = vmatprep.subr.bf16.mxu0 %v9543
    %11015 = vmatpush1.bf16.msra.mxu0 %v9542
    %11016 = vmatprep.subr.bf16.mxu0 %v9547
    %11017 = vmatpush1.bf16.msra.mxu0 %v9546
    %11018 = vmatprep.subr.bf16.mxu0 %v9551
    %11019 = vmatpush1.bf16.msra.mxu0 %v9550
    %11020 = vmatprep.subr.bf16.mxu0 %v9555
    %11021 = vmatpush1.bf16.msra.mxu0 %v9554
    %11022 = vmatprep.subr.bf16.mxu0 %v9559
    %11023 = vmatpush1.bf16.msra.mxu0 %v9558
    %11024 = vmatprep.subr.bf16.mxu0 %v9563
    %11025 = vmatpush1.bf16.msra.mxu0 %v9562
    %11026 = vmatprep.subr.bf16.mxu0 %v9567
    %11027 = vmatpush1.bf16.msra.mxu0 %v9566
    %11028 = vmatprep.subr.bf16.mxu0 %v9571
    %11029 = vmatpush1.bf16.msra.mxu0 %v9570
    %11030 = vmatprep.subr.bf16.mxu0 %v9575
    %11031 = vmatpush1.bf16.msra.mxu0 %v9574
    %11032 = vmatprep.subr.bf16.mxu0 %v9579
    %11033 = vmatpush1.bf16.msra.mxu0 %v9578
    %11034 = vmatprep.mubr.bf16.mxu0 %v7269
    %11035 = vmatmul.mubr.bf16.gmra.mrb[0].mxu0 %v7268
    %v11036 = vpop.f32.mrb[0].mxu0
    %v11037 = vadd.f32 %v7851, %v11036
    %v11038 = vpop.f32.mrb[0].mxu0
    %v11039 = vadd.f32 %v7855, %v11038
    %v11040 = vpop.f32.mrb[0].mxu0
    %v11041 = vpop.f32.mrb[0].mxu0
    %11042 = vdwg.mxu0
    %11043 = vmatprep.subr.bf16.mxu0 %v9583
    %11044 = vmatpush1.bf16.msra.mxu0 %v9582
    %11045 = vmatprep.subr.bf16.mxu0 %v9587
    %11046 = vmatpush1.bf16.msra.mxu0 %v9586
    %11047 = vmatprep.subr.bf16.mxu0 %v9591
    %11048 = vmatpush1.bf16.msra.mxu0 %v9590
    %11049 = vmatprep.subr.bf16.mxu0 %v9595
    %11050 = vmatpush1.bf16.msra.mxu0 %v9594
    %11051 = vmatprep.subr.bf16.mxu0 %v9599
    %11052 = vmatpush1.bf16.msra.mxu0 %v9598
    %11053 = vmatprep.subr.bf16.mxu0 %v9603
    %11054 = vmatpush1.bf16.msra.mxu0 %v9602
    %11055 = vmatprep.subr.bf16.mxu0 %v9607
    %11056 = vmatpush1.bf16.msra.mxu0 %v9606
    %11057 = vmatprep.subr.bf16.mxu0 %v9611
    %11058 = vmatpush1.bf16.msra.mxu0 %v9610
    %11059 = vmatprep.subr.bf16.mxu0 %v9615
    %11060 = vmatpush1.bf16.msra.mxu0 %v9614
    %11061 = vmatprep.subr.bf16.mxu0 %v9619
    %11062 = vmatpush1.bf16.msra.mxu0 %v9618
    %11063 = vmatprep.subr.bf16.mxu0 %v9623
    %11064 = vmatpush1.bf16.msra.mxu0 %v9622
    %11065 = vmatprep.subr.bf16.mxu0 %v9627
    %11066 = vmatpush1.bf16.msra.mxu0 %v9626
    %11067 = vmatprep.subr.bf16.mxu0 %v9631
    %11068 = vmatpush1.bf16.msra.mxu0 %v9630
    %11069 = vmatprep.subr.bf16.mxu0 %v9635
    %11070 = vmatpush1.bf16.msra.mxu0 %v9634
    %11071 = vmatprep.subr.bf16.mxu0 %v9639
    %11072 = vmatpush1.bf16.msra.mxu0 %v9638
    %11073 = vmatprep.subr.bf16.mxu0 %v9643
    %11074 = vmatpush1.bf16.msra.mxu0 %v9642
    %11075 = vmatprep.mubr.bf16.mxu0 %v7271
    %11076 = vmatmul.mubr.bf16.gmra.mrb[0].mxu0 %v7270
    %v11077 = vpop.f32.mrb[0].mxu0
    %v11078 = vadd.f32 %v11037, %v11077
    %v11079 = vpop.f32.mrb[0].mxu0
    %v11080 = vadd.f32 %v11039, %v11079
    %v11081 = vpop.f32.mrb[0].mxu0
    %v11082 = vpop.f32.mrb[0].mxu0
    %11083 = vdwg.mxu0
    %11084 = vmatprep.subr.bf16.mxu0 %v9647
    %11085 = vmatpush1.bf16.msra.mxu0 %v9646
    %11086 = vmatprep.subr.bf16.mxu0 %v9651
    %11087 = vmatpush1.bf16.msra.mxu0 %v9650
    %11088 = vmatprep.subr.bf16.mxu0 %v9655
    %11089 = vmatpush1.bf16.msra.mxu0 %v9654
    %11090 = vmatprep.subr.bf16.mxu0 %v9659
    %11091 = vmatpush1.bf16.msra.mxu0 %v9658
    %11092 = vmatprep.subr.bf16.mxu0 %v9663
    %11093 = vmatpush1.bf16.msra.mxu0 %v9662
    %11094 = vmatprep.subr.bf16.mxu0 %v9667
    %11095 = vmatpush1.bf16.msra.mxu0 %v9666
    %11096 = vmatprep.subr.bf16.mxu0 %v9671
    %11097 = vmatpush1.bf16.msra.mxu0 %v9670
    %11098 = vmatprep.subr.bf16.mxu0 %v9675
    %11099 = vmatpush1.bf16.msra.mxu0 %v9674
    %11100 = vmatprep.subr.bf16.mxu0 %v9679
    %11101 = vmatpush1.bf16.msra.mxu0 %v9678
    %11102 = vmatprep.subr.bf16.mxu0 %v9683
    %11103 = vmatpush1.bf16.msra.mxu0 %v9682
    %11104 = vmatprep.subr.bf16.mxu0 %v9687
    %11105 = vmatpush1.bf16.msra.mxu0 %v9686
    %11106 = vmatprep.subr.bf16.mxu0 %v9691
    %11107 = vmatpush1.bf16.msra.mxu0 %v9690
    %11108 = vmatprep.subr.bf16.mxu0 %v9695
    %11109 = vmatpush1.bf16.msra.mxu0 %v9694
    %11110 = vmatprep.subr.bf16.mxu0 %v9699
    %11111 = vmatpush1.bf16.msra.mxu0 %v9698
    %11112 = vmatprep.subr.bf16.mxu0 %v9703
    %11113 = vmatpush1.bf16.msra.mxu0 %v9702
    %11114 = vmatprep.subr.bf16.mxu0 %v9707
    %11115 = vmatpush1.bf16.msra.mxu0 %v9706
    %11116 = vmatprep.mubr.bf16.mxu0 %v7273
    %11117 = vmatmul.mubr.bf16.gmra.mrb[0].mxu0 %v7272
    %v11118 = vpop.f32.mrb[0].mxu0
    %v11119 = vadd.f32 %v11078, %v11118
    %v11120 = vpop.f32.mrb[0].mxu0
    %v11121 = vadd.f32 %v11080, %v11120
    %v11122 = vpop.f32.mrb[0].mxu0
    %v11123 = vpop.f32.mrb[0].mxu0
    %11124 = vdwg.mxu0
    %11125 = vmatprep.subr.bf16.mxu0 %v9711
    %11126 = vmatpush1.bf16.msra.mxu0 %v9710
    %11127 = vmatprep.subr.bf16.mxu0 %v9715
    %11128 = vmatpush1.bf16.msra.mxu0 %v9714
    %11129 = vmatprep.subr.bf16.mxu0 %v9719
    %11130 = vmatpush1.bf16.msra.mxu0 %v9718
    %11131 = vmatprep.subr.bf16.mxu0 %v9723
    %11132 = vmatpush1.bf16.msra.mxu0 %v9722
    %11133 = vmatprep.subr.bf16.mxu0 %v9727
    %11134 = vmatpush1.bf16.msra.mxu0 %v9726
    %11135 = vmatprep.subr.bf16.mxu0 %v9731
    %11136 = vmatpush1.bf16.msra.mxu0 %v9730
    %11137 = vmatprep.subr.bf16.mxu0 %v9735
    %11138 = vmatpush1.bf16.msra.mxu0 %v9734
    %11139 = vmatprep.subr.bf16.mxu0 %v9739
    %11140 = vmatpush1.bf16.msra.mxu0 %v9738
    %11141 = vmatprep.subr.bf16.mxu0 %v9743
    %11142 = vmatpush1.bf16.msra.mxu0 %v9742
    %11143 = vmatprep.subr.bf16.mxu0 %v9747
    %11144 = vmatpush1.bf16.msra.mxu0 %v9746
    %11145 = vmatprep.subr.bf16.mxu0 %v9751
    %11146 = vmatpush1.bf16.msra.mxu0 %v9750
    %11147 = vmatprep.subr.bf16.mxu0 %v9755
    %11148 = vmatpush1.bf16.msra.mxu0 %v9754
    %11149 = vmatprep.subr.bf16.mxu0 %v9759
    %11150 = vmatpush1.bf16.msra.mxu0 %v9758
    %11151 = vmatprep.subr.bf16.mxu0 %v9763
    %11152 = vmatpush1.bf16.msra.mxu0 %v9762
    %11153 = vmatprep.subr.bf16.mxu0 %v9767
    %11154 = vmatpush1.bf16.msra.mxu0 %v9766
    %11155 = vmatprep.subr.bf16.mxu0 %v9771
    %11156 = vmatpush1.bf16.msra.mxu0 %v9770
    %11157 = vmatprep.mubr.bf16.mxu0 %v7275
    %11158 = vmatmul.mubr.bf16.gmra.mrb[0].mxu0 %v7274
    %v11159 = vpop.f32.mrb[0].mxu0
    %v11160 = vadd.f32 %v11119, %v11159
    %v11161 = vpop.f32.mrb[0].mxu0
    %v11162 = vadd.f32 %v11121, %v11161
    %v11163 = vpop.f32.mrb[0].mxu0
    %v11164 = vpop.f32.mrb[0].mxu0
    %11165 = vdwg.mxu0
    %11166 = vmatprep.subr.bf16.mxu0 %v9775
    %11167 = vmatpush1.bf16.msra.mxu0 %v9774
    %11168 = vmatprep.subr.bf16.mxu0 %v9779
    %11169 = vmatpush1.bf16.msra.mxu0 %v9778
    %11170 = vmatprep.subr.bf16.mxu0 %v9783
    %11171 = vmatpush1.bf16.msra.mxu0 %v9782
    %11172 = vmatprep.subr.bf16.mxu0 %v9787
    %11173 = vmatpush1.bf16.msra.mxu0 %v9786
    %11174 = vmatprep.subr.bf16.mxu0 %v9791
    %11175 = vmatpush1.bf16.msra.mxu0 %v9790
    %11176 = vmatprep.subr.bf16.mxu0 %v9795
    %11177 = vmatpush1.bf16.msra.mxu0 %v9794
    %11178 = vmatprep.subr.bf16.mxu0 %v9799
    %11179 = vmatpush1.bf16.msra.mxu0 %v9798
    %11180 = vmatprep.subr.bf16.mxu0 %v9803
    %11181 = vmatpush1.bf16.msra.mxu0 %v9802
    %11182 = vmatprep.subr.bf16.mxu0 %v9807
    %11183 = vmatpush1.bf16.msra.mxu0 %v9806
    %11184 = vmatprep.subr.bf16.mxu0 %v9811
    %11185 = vmatpush1.bf16.msra.mxu0 %v9810
    %11186 = vmatprep.subr.bf16.mxu0 %v9815
    %11187 = vmatpush1.bf16.msra.mxu0 %v9814
    %11188 = vmatprep.subr.bf16.mxu0 %v9819
    %11189 = vmatpush1.bf16.msra.mxu0 %v9818
    %11190 = vmatprep.subr.bf16.mxu0 %v9823
    %11191 = vmatpush1.bf16.msra.mxu0 %v9822
    %11192 = vmatprep.subr.bf16.mxu0 %v9827
    %11193 = vmatpush1.bf16.msra.mxu0 %v9826
    %11194 = vmatprep.subr.bf16.mxu0 %v9831
    %11195 = vmatpush1.bf16.msra.mxu0 %v9830
    %11196 = vmatprep.subr.bf16.mxu0 %v9835
    %11197 = vmatpush1.bf16.msra.mxu0 %v9834
    %11198 = vmatprep.mubr.bf16.mxu0 %v7277
    %11199 = vmatmul.mubr.bf16.gmra.mrb[0].mxu0 %v7276
    %v11200 = vpop.f32.mrb[0].mxu0
    %v11201 = vadd.f32 %v11160, %v11200
    %v11202 = vpop.f32.mrb[0].mxu0
    %v11203 = vadd.f32 %v11162, %v11202
    %v11204 = vpop.f32.mrb[0].mxu0
    %v11205 = vpop.f32.mrb[0].mxu0
    %11206 = vdwg.mxu0
    %11207 = vmatprep.subr.bf16.mxu0 %v9839
    %11208 = vmatpush1.bf16.msra.mxu0 %v9838
    %11209 = vmatprep.subr.bf16.mxu0 %v9843
    %11210 = vmatpush1.bf16.msra.mxu0 %v9842
    %11211 = vmatprep.subr.bf16.mxu0 %v9847
    %11212 = vmatpush1.bf16.msra.mxu0 %v9846
    %11213 = vmatprep.subr.bf16.mxu0 %v9851
    %11214 = vmatpush1.bf16.msra.mxu0 %v9850
    %11215 = vmatprep.subr.bf16.mxu0 %v9855
    %11216 = vmatpush1.bf16.msra.mxu0 %v9854
    %11217 = vmatprep.subr.bf16.mxu0 %v9859
    %11218 = vmatpush1.bf16.msra.mxu0 %v9858
    %11219 = vmatprep.subr.bf16.mxu0 %v9863
    %11220 = vmatpush1.bf16.msra.mxu0 %v9862
    %11221 = vmatprep.subr.bf16.mxu0 %v9867
    %11222 = vmatpush1.bf16.msra.mxu0 %v9866
    %11223 = vmatprep.subr.bf16.mxu0 %v9871
    %11224 = vmatpush1.bf16.msra.mxu0 %v9870
    %11225 = vmatprep.subr.bf16.mxu0 %v9875
    %11226 = vmatpush1.bf16.msra.mxu0 %v9874
    %11227 = vmatprep.subr.bf16.mxu0 %v9879
    %11228 = vmatpush1.bf16.msra.mxu0 %v9878
    %11229 = vmatprep.subr.bf16.mxu0 %v9883
    %11230 = vmatpush1.bf16.msra.mxu0 %v9882
    %11231 = vmatprep.subr.bf16.mxu0 %v9887
    %11232 = vmatpush1.bf16.msra.mxu0 %v9886
    %11233 = vmatprep.subr.bf16.mxu0 %v9891
    %11234 = vmatpush1.bf16.msra.mxu0 %v9890
    %11235 = vmatprep.subr.bf16.mxu0 %v9895
    %11236 = vmatpush1.bf16.msra.mxu0 %v9894
    %11237 = vmatprep.subr.bf16.mxu0 %v9899
    %11238 = vmatpush1.bf16.msra.mxu0 %v9898
    %11239 = vmatprep.mubr.bf16.mxu0 %v7279
    %11240 = vmatmul.mubr.bf16.gmra.mrb[0].mxu0 %v7278
    %v11241 = vpop.f32.mrb[0].mxu0
    %v11242 = vadd.f32 %v11201, %v11241
    %v11243 = vpop.f32.mrb[0].mxu0
    %v11244 = vadd.f32 %v11203, %v11243
    %v11245 = vpop.f32.mrb[0].mxu0
    %v11246 = vpop.f32.mrb[0].mxu0
    %11247 = vdwg.mxu0
    %11248 = vmatprep.subr.bf16.mxu0 %v9903
    %11249 = vmatpush1.bf16.msra.mxu0 %v9902
    %11250 = vmatprep.subr.bf16.mxu0 %v9907
    %11251 = vmatpush1.bf16.msra.mxu0 %v9906
    %11252 = vmatprep.subr.bf16.mxu0 %v9911
    %11253 = vmatpush1.bf16.msra.mxu0 %v9910
    %11254 = vmatprep.subr.bf16.mxu0 %v9915
    %11255 = vmatpush1.bf16.msra.mxu0 %v9914
    %11256 = vmatprep.subr.bf16.mxu0 %v9919
    %11257 = vmatpush1.bf16.msra.mxu0 %v9918
    %11258 = vmatprep.subr.bf16.mxu0 %v9923
    %11259 = vmatpush1.bf16.msra.mxu0 %v9922
    %11260 = vmatprep.subr.bf16.mxu0 %v9927
    %11261 = vmatpush1.bf16.msra.mxu0 %v9926
    %11262 = vmatprep.subr.bf16.mxu0 %v9931
    %11263 = vmatpush1.bf16.msra.mxu0 %v9930
    %11264 = vmatprep.subr.bf16.mxu0 %v9935
    %11265 = vmatpush1.bf16.msra.mxu0 %v9934
    %11266 = vmatprep.subr.bf16.mxu0 %v9939
    %11267 = vmatpush1.bf16.msra.mxu0 %v9938
    %11268 = vmatprep.subr.bf16.mxu0 %v9943
    %11269 = vmatpush1.bf16.msra.mxu0 %v9942
    %11270 = vmatprep.subr.bf16.mxu0 %v9947
    %11271 = vmatpush1.bf16.msra.mxu0 %v9946
    %11272 = vmatprep.subr.bf16.mxu0 %v9951
    %11273 = vmatpush1.bf16.msra.mxu0 %v9950
    %11274 = vmatprep.subr.bf16.mxu0 %v9955
    %11275 = vmatpush1.bf16.msra.mxu0 %v9954
    %11276 = vmatprep.subr.bf16.mxu0 %v9959
    %11277 = vmatpush1.bf16.msra.mxu0 %v9958
    %11278 = vmatprep.subr.bf16.mxu0 %v9963
    %11279 = vmatpush1.bf16.msra.mxu0 %v9962
    %11280 = vmatprep.mubr.bf16.mxu0 %v7281
    %11281 = vmatmul.mubr.bf16.gmra.mrb[0].mxu0 %v7280
    %v11282 = vpop.f32.mrb[0].mxu0
    %v11283 = vadd.f32 %v11242, %v11282
    %v11284 = vpop.f32.mrb[0].mxu0
    %v11285 = vadd.f32 %v11244, %v11284
    %v11286 = vpop.f32.mrb[0].mxu0
    %v11287 = vpop.f32.mrb[0].mxu0
    %11288 = vdwg.mxu0
    %11289 = vmatprep.subr.bf16.mxu0 %v9967
    %11290 = vmatpush1.bf16.msra.mxu0 %v9966
    %11291 = vmatprep.subr.bf16.mxu0 %v9971
    %11292 = vmatpush1.bf16.msra.mxu0 %v9970
    %11293 = vmatprep.subr.bf16.mxu0 %v9975
    %11294 = vmatpush1.bf16.msra.mxu0 %v9974
    %11295 = vmatprep.subr.bf16.mxu0 %v9979
    %11296 = vmatpush1.bf16.msra.mxu0 %v9978
    %11297 = vmatprep.subr.bf16.mxu0 %v9983
    %11298 = vmatpush1.bf16.msra.mxu0 %v9982
    %11299 = vmatprep.subr.bf16.mxu0 %v9987
    %11300 = vmatpush1.bf16.msra.mxu0 %v9986
    %11301 = vmatprep.subr.bf16.mxu0 %v9991
    %11302 = vmatpush1.bf16.msra.mxu0 %v9990
    %11303 = vmatprep.subr.bf16.mxu0 %v9995
    %11304 = vmatpush1.bf16.msra.mxu0 %v9994
    %11305 = vmatprep.subr.bf16.mxu0 %v9999
    %11306 = vmatpush1.bf16.msra.mxu0 %v9998
    %11307 = vmatprep.subr.bf16.mxu0 %v10003
    %11308 = vmatpush1.bf16.msra.mxu0 %v10002
    %11309 = vmatprep.subr.bf16.mxu0 %v10007
    %11310 = vmatpush1.bf16.msra.mxu0 %v10006
    %11311 = vmatprep.subr.bf16.mxu0 %v10011
    %11312 = vmatpush1.bf16.msra.mxu0 %v10010
    %11313 = vmatprep.subr.bf16.mxu0 %v10015
    %11314 = vmatpush1.bf16.msra.mxu0 %v10014
    %11315 = vmatprep.subr.bf16.mxu0 %v10019
    %11316 = vmatpush1.bf16.msra.mxu0 %v10018
    %11317 = vmatprep.subr.bf16.mxu0 %v10023
    %11318 = vmatpush1.bf16.msra.mxu0 %v10022
    %11319 = vmatprep.subr.bf16.mxu0 %v10027
    %11320 = vmatpush1.bf16.msra.mxu0 %v10026
    %11321 = vmatprep.mubr.bf16.mxu0 %v7283
    %11322 = vmatmul.mubr.bf16.gmra.mrb[0].mxu0 %v7282
    %v11323 = vpop.f32.mrb[0].mxu0
    %v11324 = vadd.f32 %v11283, %v11323
    %v11325 = vpop.f32.mrb[0].mxu0
    %v11326 = vadd.f32 %v11285, %v11325
    %v11327 = vpop.f32.mrb[0].mxu0
    %v11328 = vpop.f32.mrb[0].mxu0
    %11329 = vdwg.mxu0
    %11330 = vmatprep.subr.bf16.mxu0 %v10031
    %11331 = vmatpush1.bf16.msra.mxu0 %v10030
    %11332 = vmatprep.subr.bf16.mxu0 %v10035
    %11333 = vmatpush1.bf16.msra.mxu0 %v10034
    %11334 = vmatprep.subr.bf16.mxu0 %v10039
    %11335 = vmatpush1.bf16.msra.mxu0 %v10038
    %11336 = vmatprep.subr.bf16.mxu0 %v10043
    %11337 = vmatpush1.bf16.msra.mxu0 %v10042
    %11338 = vmatprep.subr.bf16.mxu0 %v10047
    %11339 = vmatpush1.bf16.msra.mxu0 %v10046
    %11340 = vmatprep.subr.bf16.mxu0 %v10051
    %11341 = vmatpush1.bf16.msra.mxu0 %v10050
    %11342 = vmatprep.subr.bf16.mxu0 %v10055
    %11343 = vmatpush1.bf16.msra.mxu0 %v10054
    %11344 = vmatprep.subr.bf16.mxu0 %v10059
    %11345 = vmatpush1.bf16.msra.mxu0 %v10058
    %11346 = vmatprep.subr.bf16.mxu0 %v10063
    %11347 = vmatpush1.bf16.msra.mxu0 %v10062
    %11348 = vmatprep.subr.bf16.mxu0 %v10631
    %11349 = vmatpush1.bf16.msra.mxu0 %v10628
    %11350 = vmatprep.subr.bf16.mxu0 0
    %11351 = vmatpush1.bf16.msra.mxu0 0
    %11352 = vmatprep.subr.bf16.mxu0 0
    %11353 = vmatpush1.bf16.msra.mxu0 0
    %11354 = vmatprep.subr.bf16.mxu0 0
    %11355 = vmatpush1.bf16.msra.mxu0 0
    %11356 = vmatprep.subr.bf16.mxu0 0
    %11357 = vmatpush1.bf16.msra.mxu0 0
    %11358 = vmatprep.subr.bf16.mxu0 0
    %11359 = vmatpush1.bf16.msra.mxu0 0
    %11360 = vmatprep.subr.bf16.mxu0 0
    %11361 = vmatpush1.bf16.msra.mxu0 0
    %11362 = vmatprep.mubr.bf16.mxu0 %v10618
    %11363 = vmatmul.mubr.bf16.gmra.mrb[0].mxu0 %v7284
    %v11364 = vpop.f32.mrb[0].mxu0
    %v11365 = vadd.f32 %v11324, %v11364
    %v11366 = vpop.f32.mrb[0].mxu0
    %v11367 = vadd.f32 %v11326, %v11366
    %v11368 = vpop.f32.mrb[0].mxu0
    %v11369 = vpop.f32.mrb[0].mxu0
    %11370 = vdwg.mxu0
    %v11371 = vmax.f32 %v10996, 0.0
    %v11372 = vmax.f32 %v10998, 0.0
    %v11373 = vmax.f32 %v11365, 0.0
    %v11374 = vmax.f32 %v11367, 0.0
    %11379 = vrot.lane.b32.xlu0 %v11371, 120
    %v11380 = vpop.permute.xlu0 %11379
    %11381 = vrot.lane.b32.xlu0 %v11372, 120
    %v11382 = vpop.permute.xlu0 %11381
    %11383 = vrot.lane.b32.xlu0 %v11373, 120
    %v11384 = vpop.permute.xlu0 %11383
    %11385 = vrot.lane.b32.xlu0 %v11374, 120
    %v11386 = vpop.permute.xlu0 %11385
    %vm11387 = vcmask 982016
    %v11388 = vsel %vm11387, %v11380, %v11382
    %v11389 = vsel %vm11387, %v11382, %v11384
    %v11390 = vsel %vm11387, %v11384, %v11386
    %v11395 = vmax.f32 %v11371, %v11388
    %v11396 = vmax.f32 %v11372, %v11389
    %v11397 = vmax.f32 %v11373, %v11390
    %v11398 = vmax.f32 %v11374, %v11386
    %11403 = vrot.lane.b32.xlu0 %v11395, 64
    %v11404 = vpop.permute.xlu0 %11403
    %11405 = vrot.lane.b32.xlu0 %v11396, 64
    %v11406 = vpop.permute.xlu0 %11405
    %11407 = vrot.lane.b32.xlu0 %v11397, 64
    %v11408 = vpop.permute.xlu0 %11407
    %11409 = vrot.lane.b32.xlu0 %v11398, 64
    %v11410 = vpop.permute.xlu0 %11409
    %vm11411 = vcmask 523264
    %v11412 = vsel %vm11411, %v11404, %v11406
    %v11413 = vsel %vm11411, %v11406, %v11408
    %v11414 = vsel %vm11411, %v11408, %v11410
    %v11419 = vmax.f32 %v11395, %v11412
    %v11420 = vmax.f32 %v11396, %v11413
    %v11421 = vmax.f32 %v11397, %v11414
    %v11422 = vmax.f32 %v11398, %v11410
    %v11423 = vld [vmem:[%s5] sm:$0xff]
    %v11424 = vld [vmem:[%s5 + $0x8] sm:$0xff]
    %v11425 = vld [vmem:[%s5 + $0x10] sm:$0xff]
    %v11426 = vld [vmem:[%s5 + $0x18] sm:$0xff]
    %v11427 = vld [vmem:[%s5 + $0x20] sm:$0xff]
    %v11428 = vld [vmem:[%s5 + $0x28] sm:$0xff]
    %v11429 = vld [vmem:[%s5 + $0x30] sm:$0xff]
    %v11430 = vld [vmem:[%s5 + $0x38] sm:$0xff]
    %v11431 = vld [vmem:[%s5 + $0x40] sm:$0xff]
    %v11432 = vld [vmem:[%s5 + $0x48] sm:$0xff]
    %v11433 = vld [vmem:[%s5 + $0x50] sm:$0xff]
    %v11434 = vld [vmem:[%s5 + $0x58] sm:$0xff]
    %v11435 = vld [vmem:[%s5 + $0x60] sm:$0xff]
    %v11436 = vld [vmem:[%s5 + $0x68] sm:$0xff]
    %v11437 = vld [vmem:[%s5 + $0x70] sm:$0xff]
    %v11438 = vld [vmem:[%s5 + $0x78] sm:$0xff]
    %v11439 = vld [vmem:[%s5 + $0x80] sm:$0xff]
    %v11440 = vld [vmem:[%s5 + $0x88] sm:$0xff]
    %v11441 = vld [vmem:[%s5 + $0x90] sm:$0xff]
    %v11442 = vld [vmem:[%s5 + $0x98] sm:$0xff]
    %v11443 = vld [vmem:[%s5 + $0xa0] sm:$0xff]
    %v11444 = vld [vmem:[%s5 + $0xa8] sm:$0xff]
    %v11445 = vld [vmem:[%s5 + $0xb0] sm:$0xff]
    %v11446 = vld [vmem:[%s5 + $0xb8] sm:$0xff]
    %v11447 = vld [vmem:[%s5 + $0xc0] sm:$0xff]
    %v11448 = vld [vmem:[%s5 + $0xc8] sm:$0xff]
    %v11449 = vld [vmem:[%s5 + $0xd0] sm:$0xff]
    %v11450 = vld [vmem:[%s5 + $0xd8] sm:$0xff]
    %v11451 = vld [vmem:[%s5 + $0xe0] sm:$0xff]
    %v11452 = vld [vmem:[%s5 + $0xe8] sm:$0xff]
    %v11453 = vld [vmem:[%s5 + $0xf0] sm:$0xff]
    %v11454 = vld [vmem:[%s5 + $0xf8] sm:$0xff]
    %v11455 = vld [vmem:[%s5 + $0x100] sm:$0xff]
    %v11456 = vld [vmem:[%s5 + $0x108] sm:$0xff]
    %v11457 = vld [vmem:[%s5 + $0x110] sm:$0xff]
    %v11458 = vld [vmem:[%s5 + $0x118] sm:$0xff]
    %v11459 = vld [vmem:[%s5 + $0x120] sm:$0xff]
    %v11460 = vld [vmem:[%s5 + $0x128] sm:$0xff]
    %v11461 = vld [vmem:[%s5 + $0x130] sm:$0xff]
    %v11462 = vld [vmem:[%s5 + $0x138] sm:$0xff]
    %v11463 = vld [vmem:[%s5 + $0x140] sm:$0xff]
    %v11464 = vld [vmem:[%s5 + $0x148] sm:$0xff]
    %v11465 = vld [vmem:[%s5 + $0x150] sm:$0xff]
    %v11466 = vld [vmem:[%s5 + $0x158] sm:$0xff]
    %v11467 = vld [vmem:[%s5 + $0x160] sm:$0xff]
    %v11468 = vld [vmem:[%s5 + $0x168] sm:$0xff]
    %v11469 = vld [vmem:[%s5 + $0x170] sm:$0xff]
    %v11470 = vld [vmem:[%s5 + $0x178] sm:$0xff]
    %v11471 = vld [vmem:[%s5 + $0x180] sm:$0xff]
    %v11472 = vld [vmem:[%s5 + $0x188] sm:$0xff]
    %v11473 = vld [vmem:[%s5 + $0x190] sm:$0xff]
    %v11474 = vld [vmem:[%s5 + $0x198] sm:$0xff]
    %v11475 = vld [vmem:[%s5 + $0x1a0] sm:$0xff]
    %v11476 = vld [vmem:[%s5 + $0x1a8] sm:$0xff]
    %v11477 = vld [vmem:[%s5 + $0x1b0] sm:$0xff]
    %v11478 = vld [vmem:[#allocation9] sm:$0x1]
    %v11480 = vlaneseq
    %v11481 = vshrl.u32 %v11480, 7
    %v11482 = vsub.s32 0, %v11481
    %v11483 = vrot.slane %v11478, %v11482
    %vm11485 = vcmask 457728
    %v11487 = vsel %vm11485, %v11422, 0
    %11489 = vmatprep.subr.mxu0 0.0
    %11490 = vmatpush1.msra.mxu0 %v11423
    %11491 = vmatprep.subr.mxu0 0.0
    %11492 = vmatpush1.msra.mxu0 %v11424
    %11493 = vmatprep.subr.mxu0 0.0
    %11494 = vmatpush1.msra.mxu0 %v11425
    %11495 = vmatprep.subr.mxu0 0.0
    %11496 = vmatpush1.msra.mxu0 %v11426
    %11497 = vmatprep.subr.mxu0 0.0
    %11498 = vmatpush1.msra.mxu0 %v11427
    %11499 = vmatprep.subr.mxu0 0.0
    %11500 = vmatpush1.msra.mxu0 %v11428
    %11501 = vmatprep.subr.mxu0 0.0
    %11502 = vmatpush1.msra.mxu0 %v11429
    %11503 = vmatprep.subr.mxu0 0.0
    %11504 = vmatpush1.msra.mxu0 %v11430
    %11505 = vmatprep.subr.mxu0 0.0
    %11506 = vmatpush1.msra.mxu0 %v11431
    %11507 = vmatprep.subr.mxu0 0.0
    %11508 = vmatpush1.msra.mxu0 %v11432
    %11509 = vmatprep.subr.mxu0 0.0
    %11510 = vmatpush1.msra.mxu0 %v11433
    %11511 = vmatprep.subr.mxu0 0.0
    %11512 = vmatpush1.msra.mxu0 %v11434
    %11513 = vmatprep.subr.mxu0 0.0
    %11514 = vmatpush1.msra.mxu0 %v11435
    %11515 = vmatprep.subr.mxu0 0.0
    %11516 = vmatpush1.msra.mxu0 %v11436
    %11517 = vmatprep.subr.mxu0 0.0
    %11518 = vmatpush1.msra.mxu0 %v11437
    %11519 = vmatprep.subr.mxu0 0.0
    %11520 = vmatpush1.msra.mxu0 %v11438
    %11521 = vmatprep.subr.mxu0 0.0
    %11522 = vmatpush1.msra.mxu0 %v11439
    %11523 = vmatprep.subr.mxu0 0.0
    %11524 = vmatpush1.msra.mxu0 %v11440
    %11525 = vmatprep.subr.mxu0 0.0
    %11526 = vmatpush1.msra.mxu0 %v11441
    %11527 = vmatprep.subr.mxu0 0.0
    %11528 = vmatpush1.msra.mxu0 %v11442
    %11529 = vmatprep.subr.mxu0 0.0
    %11530 = vmatpush1.msra.mxu0 %v11443
    %11531 = vmatprep.subr.mxu0 0.0
    %11532 = vmatpush1.msra.mxu0 %v11444
    %11533 = vmatprep.subr.mxu0 0.0
    %11534 = vmatpush1.msra.mxu0 %v11445
    %11535 = vmatprep.subr.mxu0 0.0
    %11536 = vmatpush1.msra.mxu0 %v11446
    %11537 = vmatprep.subr.mxu0 0.0
    %11538 = vmatpush1.msra.mxu0 %v11447
    %11539 = vmatprep.subr.mxu0 0.0
    %11540 = vmatpush1.msra.mxu0 %v11448
    %11541 = vmatprep.subr.mxu0 0.0
    %11542 = vmatpush1.msra.mxu0 %v11449
    %11543 = vmatprep.subr.mxu0 0.0
    %11544 = vmatpush1.msra.mxu0 %v11450
    %11545 = vmatprep.subr.mxu0 0.0
    %11546 = vmatpush1.msra.mxu0 %v11451
    %11547 = vmatprep.subr.mxu0 0.0
    %11548 = vmatpush1.msra.mxu0 %v11452
    %11549 = vmatprep.subr.mxu0 0.0
    %11550 = vmatpush1.msra.mxu0 %v11453
    %11551 = vmatprep.subr.mxu0 0.0
    %11552 = vmatpush1.msra.mxu0 %v11454
    %11553 = vmatprep.mubr.f32.mxu0 %v11420
    %11554 = vmatmul.mubr.f32.gmra.mrb[0].mxu0 %v11419
    %v11555 = vpop.f32.mrb[0].mxu0
    %v11556 = vadd.f32 %v11483, %v11555
    %v11557 = vpop.f32.mrb[0].mxu0
    %11558 = vdwg.mxu0
    %11559 = vmatprep.subr.mxu0 0.0
    %11560 = vmatpush1.msra.mxu0 %v11455
    %11561 = vmatprep.subr.mxu0 0.0
    %11562 = vmatpush1.msra.mxu0 %v11456
    %11563 = vmatprep.subr.mxu0 0.0
    %11564 = vmatpush1.msra.mxu0 %v11457
    %11565 = vmatprep.subr.mxu0 0.0
    %11566 = vmatpush1.msra.mxu0 %v11458
    %11567 = vmatprep.subr.mxu0 0.0
    %11568 = vmatpush1.msra.mxu0 %v11459
    %11569 = vmatprep.subr.mxu0 0.0
    %11570 = vmatpush1.msra.mxu0 %v11460
    %11571 = vmatprep.subr.mxu0 0.0
    %11572 = vmatpush1.msra.mxu0 %v11461
    %11573 = vmatprep.subr.mxu0 0.0
    %11574 = vmatpush1.msra.mxu0 %v11462
    %11575 = vmatprep.subr.mxu0 0.0
    %11576 = vmatpush1.msra.mxu0 %v11463
    %11577 = vmatprep.subr.mxu0 0.0
    %11578 = vmatpush1.msra.mxu0 %v11464
    %11579 = vmatprep.subr.mxu0 0.0
    %11580 = vmatpush1.msra.mxu0 %v11465
    %11581 = vmatprep.subr.mxu0 0.0
    %11582 = vmatpush1.msra.mxu0 %v11466
    %11583 = vmatprep.subr.mxu0 0.0
    %11584 = vmatpush1.msra.mxu0 %v11467
    %11585 = vmatprep.subr.mxu0 0.0
    %11586 = vmatpush1.msra.mxu0 %v11468
    %11587 = vmatprep.subr.mxu0 0.0
    %11588 = vmatpush1.msra.mxu0 %v11469
    %11589 = vmatprep.subr.mxu0 0.0
    %11590 = vmatpush1.msra.mxu0 %v11470
    %11591 = vmatprep.subr.mxu0 0.0
    %11592 = vmatpush1.msra.mxu0 %v11471
    %11593 = vmatprep.subr.mxu0 0.0
    %11594 = vmatpush1.msra.mxu0 %v11472
    %11595 = vmatprep.subr.mxu0 0.0
    %11596 = vmatpush1.msra.mxu0 %v11473
    %11597 = vmatprep.subr.mxu0 0.0
    %11598 = vmatpush1.msra.mxu0 %v11474
    %11599 = vmatprep.subr.mxu0 0.0
    %11600 = vmatpush1.msra.mxu0 %v11475
    %11601 = vmatprep.subr.mxu0 0.0
    %11602 = vmatpush1.msra.mxu0 %v11476
    %11603 = vmatprep.subr.mxu0 0.0
    %11604 = vmatpush1.msra.mxu0 %v11477
    %11605 = vmatprep.subr.mxu0 0.0
    %11606 = vmatpush1.msra.mxu0 0.0
    %11607 = vmatprep.subr.mxu0 0.0
    %11608 = vmatpush1.msra.mxu0 0.0
    %11609 = vmatprep.subr.mxu0 0.0
    %11610 = vmatpush1.msra.mxu0 0.0
    %11611 = vmatprep.subr.mxu0 0.0
    %11612 = vmatpush1.msra.mxu0 0.0
    %11613 = vmatprep.subr.mxu0 0.0
    %11614 = vmatpush1.msra.mxu0 0.0
    %11615 = vmatprep.subr.mxu0 0.0
    %11616 = vmatpush1.msra.mxu0 0.0
    %11617 = vmatprep.subr.mxu0 0.0
    %11618 = vmatpush1.msra.mxu0 0.0
    %11619 = vmatprep.subr.mxu0 0.0
    %11620 = vmatpush1.msra.mxu0 0.0
    %11621 = vmatprep.subr.mxu0 0.0
    %11622 = vmatpush1.msra.mxu0 0.0
    %11623 = vmatprep.mubr.f32.mxu0 %v11487
    %11624 = vmatmul.mubr.f32.gmra.mrb[0].mxu0 %v11421
    %v11625 = vpop.f32.mrb[0].mxu0
    %v11626 = vadd.f32 %v11556, %v11625
    %v11627 = vpop.f32.mrb[0].mxu0
    %11628 = vdwg.mxu0
    %v11629 = vmax.f32 %v11626, 0.0
    %v11630 = vld [vmem:[%s7] sm:$0xff]
    %v11631 = vld [vmem:[%s7 + $0x8] sm:$0xff]
    %v11632 = vld [vmem:[%s7 + $0x10] sm:$0xff]
    %v11633 = vld [vmem:[%s7 + $0x18] sm:$0xff]
    %v11634 = vld [vmem:[#allocation10] sm:$0x1]
    %v11636 = vlaneseq
    %v11637 = vshrl.u32 %v11636, 7
    %v11638 = vsub.s32 0, %v11637
    %v11639 = vrot.slane %v11634, %v11638
    %v11642 = vsel %vm7214, %v11629, 0
    %11644 = vmatprep.subr.mxu0 0.0
    %11645 = vmatpush1.msra.mxu0 %v11630
    %11646 = vmatprep.subr.mxu0 0.0
    %11647 = vmatpush1.msra.mxu0 %v11631
    %11648 = vmatprep.subr.mxu0 0.0
    %11649 = vmatpush1.msra.mxu0 %v11632
    %11650 = vmatprep.subr.mxu0 0.0
    %11651 = vmatpush1.msra.mxu0 %v11633
    %11652 = vmatprep.subr.mxu0 0.0
    %11653 = vmatpush1.msra.mxu0 0.0
    %11654 = vmatprep.subr.mxu0 0.0
    %11655 = vmatpush1.msra.mxu0 0.0
    %11656 = vmatprep.subr.mxu0 0.0
    %11657 = vmatpush1.msra.mxu0 0.0
    %11658 = vmatprep.subr.mxu0 0.0
    %11659 = vmatpush1.msra.mxu0 0.0
    %11660 = vmatprep.subr.mxu0 0.0
    %11661 = vmatpush1.msra.mxu0 0.0
    %11662 = vmatprep.subr.mxu0 0.0
    %11663 = vmatpush1.msra.mxu0 0.0
    %11664 = vmatprep.subr.mxu0 0.0
    %11665 = vmatpush1.msra.mxu0 0.0
    %11666 = vmatprep.subr.mxu0 0.0
    %11667 = vmatpush1.msra.mxu0 0.0
    %11668 = vmatprep.subr.mxu0 0.0
    %11669 = vmatpush1.msra.mxu0 0.0
    %11670 = vmatprep.subr.mxu0 0.0
    %11671 = vmatpush1.msra.mxu0 0.0
    %11672 = vmatprep.subr.mxu0 0.0
    %11673 = vmatpush1.msra.mxu0 0.0
    %11674 = vmatprep.subr.mxu0 0.0
    %11675 = vmatpush1.msra.mxu0 0.0
    %11676 = vmatprep.subr.mxu0 0.0
    %11677 = vmatpush1.msra.mxu0 0.0
    %11678 = vmatprep.subr.mxu0 0.0
    %11679 = vmatpush1.msra.mxu0 0.0
    %11680 = vmatprep.subr.mxu0 0.0
    %11681 = vmatpush1.msra.mxu0 0.0
    %11682 = vmatprep.subr.mxu0 0.0
    %11683 = vmatpush1.msra.mxu0 0.0
    %11684 = vmatprep.subr.mxu0 0.0
    %11685 = vmatpush1.msra.mxu0 0.0
    %11686 = vmatprep.subr.mxu0 0.0
    %11687 = vmatpush1.msra.mxu0 0.0
    %11688 = vmatprep.subr.mxu0 0.0
    %11689 = vmatpush1.msra.mxu0 0.0
    %11690 = vmatprep.subr.mxu0 0.0
    %11691 = vmatpush1.msra.mxu0 0.0
    %11692 = vmatprep.subr.mxu0 0.0
    %11693 = vmatpush1.msra.mxu0 0.0
    %11694 = vmatprep.subr.mxu0 0.0
    %11695 = vmatpush1.msra.mxu0 0.0
    %11696 = vmatprep.subr.mxu0 0.0
    %11697 = vmatpush1.msra.mxu0 0.0
    %11698 = vmatprep.subr.mxu0 0.0
    %11699 = vmatpush1.msra.mxu0 0.0
    %11700 = vmatprep.subr.mxu0 0.0
    %11701 = vmatpush1.msra.mxu0 0.0
    %11702 = vmatprep.subr.mxu0 0.0
    %11703 = vmatpush1.msra.mxu0 0.0
    %11704 = vmatprep.subr.mxu0 0.0
    %11705 = vmatpush1.msra.mxu0 0.0
    %11706 = vmatprep.subr.mxu0 0.0
    %11707 = vmatpush1.msra.mxu0 0.0
    %11708 = vmatprep.mubr.f32.mxu0 0.0
    %11709 = vmatmul.mubr.f32.gmra.mrb[0].mxu0 %v11642
    %v11710 = vpop.f32.mrb[0].mxu0
    %v11711 = vadd.f32 %v11639, %v11710
    %v11712 = vpop.f32.mrb[0].mxu0
    %11713 = vdwg.mxu0
    %v11714 = vmax.f32 %v11711, 0.0
    %v11715 = vld [vmem:[#allocation12] sm:$0xff]
    %v11716 = vld [vmem:[#allocation12 + $0x8] sm:$0xff]
    %v11717 = vld [vmem:[#allocation13] sm:$0x1]
    %v11719 = vlaneseq
    %v11720 = vshrl.u32 %v11719, 7
    %v11721 = vsub.s32 0, %v11720
    %v11722 = vrot.slane %v11717, %v11721
    %v11725 = vsel %vm5554, %v11714, 0
    %11727 = vmatprep.subr.mxu0 0.0
    %11728 = vmatpush1.msra.mxu0 %v11715
    %11729 = vmatprep.subr.mxu0 0.0
    %11730 = vmatpush1.msra.mxu0 %v11716
    %11731 = vmatprep.subr.mxu0 0.0
    %11732 = vmatpush1.msra.mxu0 0.0
    %11733 = vmatprep.subr.mxu0 0.0
    %11734 = vmatpush1.msra.mxu0 0.0
    %11735 = vmatprep.subr.mxu0 0.0
    %11736 = vmatpush1.msra.mxu0 0.0
    %11737 = vmatprep.subr.mxu0 0.0
    %11738 = vmatpush1.msra.mxu0 0.0
    %11739 = vmatprep.subr.mxu0 0.0
    %11740 = vmatpush1.msra.mxu0 0.0
    %11741 = vmatprep.subr.mxu0 0.0
    %11742 = vmatpush1.msra.mxu0 0.0
    %11743 = vmatprep.subr.mxu0 0.0
    %11744 = vmatpush1.msra.mxu0 0.0
    %11745 = vmatprep.subr.mxu0 0.0
    %11746 = vmatpush1.msra.mxu0 0.0
    %11747 = vmatprep.subr.mxu0 0.0
    %11748 = vmatpush1.msra.mxu0 0.0
    %11749 = vmatprep.subr.mxu0 0.0
    %11750 = vmatpush1.msra.mxu0 0.0
    %11751 = vmatprep.subr.mxu0 0.0
    %11752 = vmatpush1.msra.mxu0 0.0
    %11753 = vmatprep.subr.mxu0 0.0
    %11754 = vmatpush1.msra.mxu0 0.0
    %11755 = vmatprep.subr.mxu0 0.0
    %11756 = vmatpush1.msra.mxu0 0.0
    %11757 = vmatprep.subr.mxu0 0.0
    %11758 = vmatpush1.msra.mxu0 0.0
    %11759 = vmatprep.subr.mxu0 0.0
    %11760 = vmatpush1.msra.mxu0 0.0
    %11761 = vmatprep.subr.mxu0 0.0
    %11762 = vmatpush1.msra.mxu0 0.0
    %11763 = vmatprep.subr.mxu0 0.0
    %11764 = vmatpush1.msra.mxu0 0.0
    %11765 = vmatprep.subr.mxu0 0.0
    %11766 = vmatpush1.msra.mxu0 0.0
    %11767 = vmatprep.subr.mxu0 0.0
    %11768 = vmatpush1.msra.mxu0 0.0
    %11769 = vmatprep.subr.mxu0 0.0
    %11770 = vmatpush1.msra.mxu0 0.0
    %11771 = vmatprep.subr.mxu0 0.0
    %11772 = vmatpush1.msra.mxu0 0.0
    %11773 = vmatprep.subr.mxu0 0.0
    %11774 = vmatpush1.msra.mxu0 0.0
    %11775 = vmatprep.subr.mxu0 0.0
    %11776 = vmatpush1.msra.mxu0 0.0
    %11777 = vmatprep.subr.mxu0 0.0
    %11778 = vmatpush1.msra.mxu0 0.0
    %11779 = vmatprep.subr.mxu0 0.0
    %11780 = vmatpush1.msra.mxu0 0.0
    %11781 = vmatprep.subr.mxu0 0.0
    %11782 = vmatpush1.msra.mxu0 0.0
    %11783 = vmatprep.subr.mxu0 0.0
    %11784 = vmatpush1.msra.mxu0 0.0
    %11785 = vmatprep.subr.mxu0 0.0
    %11786 = vmatpush1.msra.mxu0 0.0
    %11787 = vmatprep.subr.mxu0 0.0
    %11788 = vmatpush1.msra.mxu0 0.0
    %11789 = vmatprep.subr.mxu0 0.0
    %11790 = vmatpush1.msra.mxu0 0.0
    %11791 = vmatprep.mubr.f32.mxu0 0.0
    %11792 = vmatmul.mubr.f32.gmra.mrb[0].mxu0 %v11725
    %v11793 = vpop.f32.mrb[0].mxu0
    %v11794 = vadd.f32 %v11722, %v11793
    %v11795 = vpop.f32.mrb[0].mxu0
    %11796 = vdwg.mxu0
    %11797 = vst [vmem:[%s11] sm:$0xff] %v11794
    // Predicated region
    $region78: #{net_forward.1} parent=1 // pred_check
      _
    $region79: #{net_forward.1} parent=1 // pred_check_branch
      %11799 = sbr.rel (0) target = $region81
    $region80: #{net_forward.1} parent=1 // pred_region
      _
    $region81: #{net_forward.1} parent=1 // pred_fallthru
      _
    // Predicated region
    $region82: #{net_forward.1} parent=1 // pred_check
      _
    $region83: #{net_forward.1} parent=1 // pred_check_branch
      %11801 = sbr.rel (0) target = $region85
    $region84: #{net_forward.1} parent=1 // pred_region
      _
    $region85: #{net_forward.1} parent=1 // pred_fallthru
      _
    %11802 = vsyncpa [#allocation3], 1
    %11803 = vsyncpa [#allocation5], 1
    %11804 = vsyncpa [#allocation8], 1
    %11805 = vsyncpa [#allocation11], 1
    %11806 = vsyncpa [#allocation14], 1

</llo_original>
